<compile_context>
chip_gen: v6e
topology: v6e:2x2x1
jax: 0.10.0
libtpu: 0.0.40
codegen_flags: <defaults>
</compile_context>

<pallas_src>
import math

import jax
import jax.numpy as jnp
from jax.experimental import pallas as pl
from jax.experimental.pallas import tpu as pltpu

MXU_PREC = jax.lax.Precision.HIGHEST
_PAD = 8   # sublane-aligned scratch tail so shifted / strided reads stay in bounds


def _celu(v):
    # CELU with alpha=1:  v if v > 0 else exp(v) - 1
    return jnp.where(v > 0, v, jnp.exp(v) - 1.0)


def conv_encoder_kernel(x_ref, w1_ref, b1_ref, w2_ref, b2_ref, o_ref,
                        x_sc, h_sc, p1_sc, g_sc):
    # x_ref : (R, Cin)       flat slab, R = B_TILE * L  (length-major rows)
    # w1_ref: (K1, Cin, C1)  per-tap weights;  b1_ref: (1, C1)
    # w2_ref: (K2, C1, C2)   per-tap weights;  b2_ref: (1, C2)
    # o_ref : (R // 4, C2)   flat pooled output slab (pad rows sliced off later)
    R, Cin = x_ref.shape
    K1, _, C1 = w1_ref.shape
    K2, _, C2 = w2_ref.shape
    R1 = R // 2
    R2 = R // 4

    # Stage the input with a zeroed tail so the K-1 shifted tap reads are in
    # bounds (the tail only ever feeds batch-boundary padding rows).
    x = x_ref[...]
    x_sc[pl.ds(0, R), :] = x
    x_sc[pl.ds(R, x_sc.shape[0] - R), :] = jnp.zeros(
        (x_sc.shape[0] - R, Cin), jnp.float32)

    # ---- layer_1: Conv1d(Cin -> C1, k=K1, valid): K1 tall tap matmuls (M=R) --
    h = b1_ref[...] + jnp.dot(x, w1_ref[0],
                              preferred_element_type=jnp.float32,
                              precision=MXU_PREC)
    for k in range(1, K1):
        h = h + jnp.dot(x_sc[pl.ds(k, R), :], w1_ref[k],
                        preferred_element_type=jnp.float32, precision=MXU_PREC)
    h_sc[pl.ds(0, R), :] = h

    # ---- layer_3 then layer_2 (CELU monotone => CELU∘max == max∘CELU) --------
    # MaxPool1d(2) = max of even/odd sublane rows (VPU, strided reads); CELU on
    # the pooled R/2 rows costs half the exp/select of CELU-before-pool.
    p1 = _celu(jnp.maximum(h_sc[pl.ds(0, R1, stride=2), :],
                           h_sc[pl.ds(1, R1, stride=2), :]))
    p1_sc[pl.ds(0, R1), :] = p1
    p1_sc[pl.ds(R1, p1_sc.shape[0] - R1), :] = jnp.zeros(
        (p1_sc.shape[0] - R1, C1), jnp.float32)

    # ---- layer_4: Conv1d(C1 -> C2, k=K2, valid): K2 tap matmuls (M=R1) -------
    g = b2_ref[...] + jnp.dot(p1, w2_ref[0],
                              preferred_element_type=jnp.float32,
                              precision=MXU_PREC)
    for k in range(1, K2):
        g = g + jnp.dot(p1_sc[pl.ds(k, R1), :], w2_ref[k],
                        preferred_element_type=jnp.float32, precision=MXU_PREC)
    g_sc[pl.ds(0, R1), :] = g

    # ---- layer_5: MaxPool1d(2);  layer_6: CELU -------------------------------
    p2 = jnp.maximum(g_sc[pl.ds(0, R2, stride=2), :],
                     g_sc[pl.ds(1, R2, stride=2), :])
    o_ref[...] = _celu(p2)


def conv_encoder(x, w1, b1, w2, b2, *, b_tile=8):
    """x: (N, Cin, L) NCW like PyTorch.  w1: (32, Cin, 3), w2: (16, 32, 3)."""
    N, Cin, L = x.shape
    C1, _, K1 = w1.shape
    C2, _, K2 = w2.shape
    L1 = L - K1 + 1          # valid conv1 length
    P1 = L1 // 2             # after first MaxPool1d(2)
    L2 = P1 - K2 + 1         # valid conv2 length
    P2 = L2 // 2             # after second MaxPool1d(2)

    if N % b_tile != 0:
        b_tile = math.gcd(b_tile, N)      # keep the grid exact for small demos
    assert L % 4 == 0, "flat-slab pooling needs L divisible by 4"
    assert K1 - 1 <= _PAD and K2 - 1 <= _PAD

    R = b_tile * L
    Lp1, Lp2 = L // 2, L // 4             # padded per-batch lengths after pools

    # Layout glue stays outside the kernel: NCW -> flat (N*L, Cin) slab
    # (length on sublanes, channels on lanes) and per-tap (K, Cin, Cout) weights.
    x_flat = jnp.transpose(x, (0, 2, 1)).reshape(N * L, Cin).astype(jnp.float32)
    w1_t = jnp.transpose(w1, (2, 1, 0)).astype(jnp.float32)   # (K1, Cin, C1)
    w2_t = jnp.transpose(w2, (2, 1, 0)).astype(jnp.float32)   # (K2, C1, C2)
    b1_2d = b1.reshape(1, C1).astype(jnp.float32)
    b2_2d = b2.reshape(1, C2).astype(jnp.float32)

    out_flat = pl.pallas_call(
        conv_encoder_kernel,
        out_shape=jax.ShapeDtypeStruct((N * Lp2, C2), jnp.float32),
        grid=(N // b_tile,),
        in_specs=[
            pl.BlockSpec((R, Cin), lambda n: (n, 0)),
            pl.BlockSpec((K1, Cin, C1), lambda n: (0, 0, 0)),
            pl.BlockSpec((1, C1), lambda n: (0, 0)),
            pl.BlockSpec((K2, C1, C2), lambda n: (0, 0, 0)),
            pl.BlockSpec((1, C2), lambda n: (0, 0)),
        ],
        out_specs=pl.BlockSpec((b_tile * Lp2, C2), lambda n: (n, 0)),
        scratch_shapes=[
            pltpu.VMEM((R + _PAD, Cin), jnp.float32),             # staged input
            pltpu.VMEM((R + _PAD, C1), jnp.float32),              # conv1
            pltpu.VMEM((b_tile * Lp1 + _PAD, C1), jnp.float32),   # pool1+celu
            pltpu.VMEM((b_tile * Lp1 + _PAD, C2), jnp.float32),   # conv2
        ],
        compiler_params=pltpu.CompilerParams(
            dimension_semantics=("parallel",)),
    )(x_flat, w1_t, b1_2d, w2_t, b2_2d)

    # Drop the per-batch padding rows and return to PyTorch NCW convention.
    out = out_flat.reshape(N, Lp2, C2)[:, :P2, :]
    return jnp.transpose(out, (0, 2, 1))      # (N, C2, P2)


def reference(x, w1, b1, w2, b2):
    """Pure-JAX reference with the exact PyTorch layer order (NCW in/out)."""
    def conv1d(v, w, b):
        Cout, Cin, K = w.shape
        Lo = v.shape[-1] - K + 1
        acc = jnp.zeros((v.shape[0], Cout, Lo), jnp.float32)
        for k in range(K):
            acc = acc + jnp.einsum('ncl,oc->nol', v[:, :, k:k + Lo], w[:, :, k],
                                   precision=jax.lax.Precision.HIGHEST)
        return acc + b[None, :, None]

    def maxpool(v):
        P = v.shape[-1] // 2
        return jnp.maximum(v[..., 0:2 * P:2], v[..., 1:2 * P:2])

    h = maxpool(_celu(conv1d(x, w1, b1)))
    g = _celu(maxpool(conv1d(h, w2, b2)))
    return g


def make_params(key, input_size):
    """Deterministic synthetic params mirroring weight_norm(Conv1d) shapes."""
    k1, k2, k3, k4 = jax.random.split(key, 4)

    # weight_norm: w = g * v / ||v||  (norm over (Cin, K) per output channel);
    # at init g = ||v||, so the effective weight equals v.
    v1 = 0.01 * jax.random.normal(k1, (32, input_size, 3), jnp.float32)
    n1 = jnp.sqrt(jnp.sum(v1 * v1, axis=(1, 2), keepdims=True))
    w1 = n1 * v1 / n1
    bound1 = 1.0 / jnp.sqrt(float(input_size * 3))
    b1 = jax.random.uniform(k2, (32,), jnp.float32, -bound1, bound1)

    v2 = 0.01 * jax.random.normal(k3, (16, 32, 3), jnp.float32)
    n2 = jnp.sqrt(jnp.sum(v2 * v2, axis=(1, 2), keepdims=True))
    w2 = n2 * v2 / n2
    bound2 = 1.0 / jnp.sqrt(float(32 * 3))
    b2 = jax.random.uniform(k4, (16,), jnp.float32, -bound2, bound2)
    return w1, b1, w2, b2


if __name__ == "__main__":
    key = jax.random.PRNGKey(0)
    kx, kp = jax.random.split(key)

    # Small NCW input; N=16 with B_TILE=8 gives a length-2 parallel grid.
    N, Cin, L = 16, 4, 32
    x = jax.random.normal(kx, (N, Cin, L), jnp.float32)
    w1, b1, w2, b2 = make_params(kp, Cin)

    run = jax.jit(conv_encoder)
    out = jax.block_until_ready(run(x, w1, b1, w2, b2))

    ref = reference(x, w1, b1, w2, b2)
    assert out.shape == ref.shape == (N, 16, 6), (out.shape, ref.shape)
    assert jnp.allclose(out, ref, rtol=1e-4, atol=1e-5), (
        float(jnp.max(jnp.abs(out - ref))))

    print("KERNEL_OK")
</pallas_src>

<mosaic_0001>
module attributes {stable_mosaic.version = 11 : i64} {
  func.func @conv_encoder_kernel(%arg0: i32, %arg1: memref<256x4xf32, #tpu.memory_space<vmem>>, %arg2: memref<3x4x32xf32, #tpu.memory_space<vmem>>, %arg3: memref<1x32xf32, #tpu.memory_space<vmem>>, %arg4: memref<3x32x16xf32, #tpu.memory_space<vmem>>, %arg5: memref<1x16xf32, #tpu.memory_space<vmem>>, %arg6: memref<64x16xf32, #tpu.memory_space<vmem>>, %arg7: memref<264x4xf32, #tpu.memory_space<vmem>>, %arg8: memref<264x32xf32, #tpu.memory_space<vmem>>, %arg9: memref<136x32xf32, #tpu.memory_space<vmem>>, %arg10: memref<136x16xf32, #tpu.memory_space<vmem>>) attributes {dimension_semantics = [#tpu.dimension_semantics<parallel>], iteration_bounds = array<i64: 2>, scalar_prefetch = 0 : i64, scratch_operands = 4 : i64, tpu.core_type = #tpu.core_type<tc>, window_params = [{transform_indices = @transform_0, window_bounds = array<i64: 256, 4>}, {pipeline_mode = #tpu.pipeline_mode<synchronous>, transform_indices = @transform_1, window_bounds = array<i64: 3, 4, 32>}, {pipeline_mode = #tpu.pipeline_mode<synchronous>, transform_indices = @transform_2, window_bounds = array<i64: 1, 32>}, {pipeline_mode = #tpu.pipeline_mode<synchronous>, transform_indices = @transform_3, window_bounds = array<i64: 3, 32, 16>}, {pipeline_mode = #tpu.pipeline_mode<synchronous>, transform_indices = @transform_4, window_bounds = array<i64: 1, 16>}, {transform_indices = @transform_5, window_bounds = array<i64: 64, 16>}]} {
    %c0 = arith.constant 0 : index
    %c0_0 = arith.constant 0 : index
    %0 = vector.load %arg1[%c0, %c0_0] : memref<256x4xf32, #tpu.memory_space<vmem>>, vector<256x4xf32>
    %c0_1 = arith.constant 0 : index
    %c0_2 = arith.constant 0 : index
    %1 = vector.load %arg7[%c0_1, %c0_2] : memref<264x4xf32, #tpu.memory_space<vmem>>, vector<256x4xf32>
    tpu.vector_store %arg7[%c0_1, %c0_2], %0 {strides = array<i32>} : memref<264x4xf32, #tpu.memory_space<vmem>>, vector<256x4xf32>,
    %cst = arith.constant 0.000000e+00 : f32
    %2 = vector.broadcast %cst : f32 to vector<8x4xf32>
    %c256 = arith.constant 256 : index
    %c0_3 = arith.constant 0 : index
    %3 = vector.load %arg7[%c256, %c0_3] : memref<264x4xf32, #tpu.memory_space<vmem>>, vector<8x4xf32>
    tpu.vector_store %arg7[%c256, %c0_3], %2 {strides = array<i32>} : memref<264x4xf32, #tpu.memory_space<vmem>>, vector<8x4xf32>,
    %c0_4 = arith.constant 0 : index
    %c0_5 = arith.constant 0 : index
    %4 = vector.load %arg3[%c0_4, %c0_5] : memref<1x32xf32, #tpu.memory_space<vmem>>, vector<1x32xf32>
    %c0_6 = arith.constant 0 : index
    %c0_7 = arith.constant 0 : index
    %c0_8 = arith.constant 0 : index
    %5 = vector.load %arg2[%c0_6, %c0_7, %c0_8] : memref<3x4x32xf32, #tpu.memory_space<vmem>>, vector<1x4x32xf32>
    %6 = vector.shape_cast %5 : vector<1x4x32xf32> to vector<4x32xf32>
    %cst_9 = arith.constant dense<0.000000e+00> : vector<256x32xf32>
    %7 = tpu.matmul %0, %6, %cst_9 {dimension_numbers = #tpu.dot_dimension_numbers<[1], [0], [0], [1], [0, 0, 1, 1], [], []>, precision = #tpu.contract_precision<fp32>} : vector<256x4xf32>, vector<4x32xf32>, vector<256x32xf32> -> vector<256x32xf32>
    %8 = vector.broadcast %4 : vector<1x32xf32> to vector<256x32xf32>
    %9 = arith.addf %8, %7 : vector<256x32xf32>
    %c1 = arith.constant 1 : index
    %c0_10 = arith.constant 0 : index
    %10 = vector.load %arg7[%c1, %c0_10] : memref<264x4xf32, #tpu.memory_space<vmem>>, vector<256x4xf32>
    %c1_11 = arith.constant 1 : index
    %c0_12 = arith.constant 0 : index
    %c0_13 = arith.constant 0 : index
    %11 = vector.load %arg2[%c1_11, %c0_12, %c0_13] : memref<3x4x32xf32, #tpu.memory_space<vmem>>, vector<1x4x32xf32>
    %12 = vector.shape_cast %11 : vector<1x4x32xf32> to vector<4x32xf32>
    %cst_14 = arith.constant dense<0.000000e+00> : vector<256x32xf32>
    %13 = tpu.matmul %10, %12, %cst_14 {dimension_numbers = #tpu.dot_dimension_numbers<[1], [0], [0], [1], [0, 0, 1, 1], [], []>, precision = #tpu.contract_precision<fp32>} : vector<256x4xf32>, vector<4x32xf32>, vector<256x32xf32> -> vector<256x32xf32>
    %14 = arith.addf %9, %13 : vector<256x32xf32>
    %c2 = arith.constant 2 : index
    %c0_15 = arith.constant 0 : index
    %15 = vector.load %arg7[%c2, %c0_15] : memref<264x4xf32, #tpu.memory_space<vmem>>, vector<256x4xf32>
    %c2_16 = arith.constant 2 : index
    %c0_17 = arith.constant 0 : index
    %c0_18 = arith.constant 0 : index
    %16 = vector.load %arg2[%c2_16, %c0_17, %c0_18] : memref<3x4x32xf32, #tpu.memory_space<vmem>>, vector<1x4x32xf32>
    %17 = vector.shape_cast %16 : vector<1x4x32xf32> to vector<4x32xf32>
    %cst_19 = arith.constant dense<0.000000e+00> : vector<256x32xf32>
    %18 = tpu.matmul %15, %17, %cst_19 {dimension_numbers = #tpu.dot_dimension_numbers<[1], [0], [0], [1], [0, 0, 1, 1], [], []>, precision = #tpu.contract_precision<fp32>} : vector<256x4xf32>, vector<4x32xf32>, vector<256x32xf32> -> vector<256x32xf32>
    %19 = arith.addf %14, %18 : vector<256x32xf32>
    %c0_20 = arith.constant 0 : index
    %c0_21 = arith.constant 0 : index
    %20 = vector.load %arg8[%c0_20, %c0_21] : memref<264x32xf32, #tpu.memory_space<vmem>>, vector<256x32xf32>
    tpu.vector_store %arg8[%c0_20, %c0_21], %19 {strides = array<i32>} : memref<264x32xf32, #tpu.memory_space<vmem>>, vector<256x32xf32>,
    %c0_22 = arith.constant 0 : index
    %c0_23 = arith.constant 0 : index
    %21 = tpu.strided_load %arg8[%c0_22, %c0_23] {strides = array<i32: 2, 1>} : memref<264x32xf32, #tpu.memory_space<vmem>>, vector<128x32xf32>
    %c1_24 = arith.constant 1 : index
    %c0_25 = arith.constant 0 : index
    %22 = tpu.strided_load %arg8[%c1_24, %c0_25] {strides = array<i32: 2, 1>} : memref<264x32xf32, #tpu.memory_space<vmem>>, vector<128x32xf32>
    %23 = arith.maximumf %21, %22 : vector<128x32xf32>
    %cst_26 = arith.constant 0.000000e+00 : f32
    %24 = vector.broadcast %cst_26 : f32 to vector<128x32xf32>
    %25 = arith.cmpf ogt, %23, %24 : vector<128x32xf32>
    %26 = math.exp %23 : vector<128x32xf32>
    %cst_27 = arith.constant 1.000000e+00 : f32
    %27 = vector.broadcast %cst_27 : f32 to vector<128x32xf32>
    %28 = arith.subf %26, %27 : vector<128x32xf32>
    %29 = arith.select %25, %23, %28 : vector<128x32xi1>, vector<128x32xf32>
    %c0_28 = arith.constant 0 : index
    %c0_29 = arith.constant 0 : index
    %30 = vector.load %arg9[%c0_28, %c0_29] : memref<136x32xf32, #tpu.memory_space<vmem>>, vector<128x32xf32>
    tpu.vector_store %arg9[%c0_28, %c0_29], %29 {strides = array<i32>} : memref<136x32xf32, #tpu.memory_space<vmem>>, vector<128x32xf32>,
    %cst_30 = arith.constant 0.000000e+00 : f32
    %31 = vector.broadcast %cst_30 : f32 to vector<8x32xf32>
    %c128 = arith.constant 128 : index
    %c0_31 = arith.constant 0 : index
    %32 = vector.load %arg9[%c128, %c0_31] : memref<136x32xf32, #tpu.memory_space<vmem>>, vector<8x32xf32>
    tpu.vector_store %arg9[%c128, %c0_31], %31 {strides = array<i32>} : memref<136x32xf32, #tpu.memory_space<vmem>>, vector<8x32xf32>,
    %c0_32 = arith.constant 0 : index
    %c0_33 = arith.constant 0 : index
    %33 = vector.load %arg5[%c0_32, %c0_33] : memref<1x16xf32, #tpu.memory_space<vmem>>, vector<1x16xf32>
    %c0_34 = arith.constant 0 : index
    %c0_35 = arith.constant 0 : index
    %c0_36 = arith.constant 0 : index
    %34 = vector.load %arg4[%c0_34, %c0_35, %c0_36] : memref<3x32x16xf32, #tpu.memory_space<vmem>>, vector<1x32x16xf32>
    %35 = vector.shape_cast %34 : vector<1x32x16xf32> to vector<32x16xf32>
    %cst_37 = arith.constant dense<0.000000e+00> : vector<128x16xf32>
    %36 = tpu.matmul %29, %35, %cst_37 {dimension_numbers = #tpu.dot_dimension_numbers<[1], [0], [0], [1], [0, 0, 1, 1], [], []>, precision = #tpu.contract_precision<fp32>} : vector<128x32xf32>, vector<32x16xf32>, vector<128x16xf32> -> vector<128x16xf32>
    %37 = vector.broadcast %33 : vector<1x16xf32> to vector<128x16xf32>
    %38 = arith.addf %37, %36 : vector<128x16xf32>
    %c1_38 = arith.constant 1 : index
    %c0_39 = arith.constant 0 : index
    %39 = vector.load %arg9[%c1_38, %c0_39] : memref<136x32xf32, #tpu.memory_space<vmem>>, vector<128x32xf32>
    %c1_40 = arith.constant 1 : index
    %c0_41 = arith.constant 0 : index
    %c0_42 = arith.constant 0 : index
    %40 = vector.load %arg4[%c1_40, %c0_41, %c0_42] : memref<3x32x16xf32, #tpu.memory_space<vmem>>, vector<1x32x16xf32>
    %41 = vector.shape_cast %40 : vector<1x32x16xf32> to vector<32x16xf32>
    %cst_43 = arith.constant dense<0.000000e+00> : vector<128x16xf32>
    %42 = tpu.matmul %39, %41, %cst_43 {dimension_numbers = #tpu.dot_dimension_numbers<[1], [0], [0], [1], [0, 0, 1, 1], [], []>, precision = #tpu.contract_precision<fp32>} : vector<128x32xf32>, vector<32x16xf32>, vector<128x16xf32> -> vector<128x16xf32>
    %43 = arith.addf %38, %42 : vector<128x16xf32>
    %c2_44 = arith.constant 2 : index
    %c0_45 = arith.constant 0 : index
    %44 = vector.load %arg9[%c2_44, %c0_45] : memref<136x32xf32, #tpu.memory_space<vmem>>, vector<128x32xf32>
    %c2_46 = arith.constant 2 : index
    %c0_47 = arith.constant 0 : index
    %c0_48 = arith.constant 0 : index
    %45 = vector.load %arg4[%c2_46, %c0_47, %c0_48] : memref<3x32x16xf32, #tpu.memory_space<vmem>>, vector<1x32x16xf32>
    %46 = vector.shape_cast %45 : vector<1x32x16xf32> to vector<32x16xf32>
    %cst_49 = arith.constant dense<0.000000e+00> : vector<128x16xf32>
    %47 = tpu.matmul %44, %46, %cst_49 {dimension_numbers = #tpu.dot_dimension_numbers<[1], [0], [0], [1], [0, 0, 1, 1], [], []>, precision = #tpu.contract_precision<fp32>} : vector<128x32xf32>, vector<32x16xf32>, vector<128x16xf32> -> vector<128x16xf32>
    %48 = arith.addf %43, %47 : vector<128x16xf32>
    %c0_50 = arith.constant 0 : index
    %c0_51 = arith.constant 0 : index
    %49 = vector.load %arg10[%c0_50, %c0_51] : memref<136x16xf32, #tpu.memory_space<vmem>>, vector<128x16xf32>
    tpu.vector_store %arg10[%c0_50, %c0_51], %48 {strides = array<i32>} : memref<136x16xf32, #tpu.memory_space<vmem>>, vector<128x16xf32>,
    %c0_52 = arith.constant 0 : index
    %c0_53 = arith.constant 0 : index
    %50 = tpu.strided_load %arg10[%c0_52, %c0_53] {strides = array<i32: 2, 1>} : memref<136x16xf32, #tpu.memory_space<vmem>>, vector<64x16xf32>
    %c1_54 = arith.constant 1 : index
    %c0_55 = arith.constant 0 : index
    %51 = tpu.strided_load %arg10[%c1_54, %c0_55] {strides = array<i32: 2, 1>} : memref<136x16xf32, #tpu.memory_space<vmem>>, vector<64x16xf32>
    %52 = arith.maximumf %50, %51 : vector<64x16xf32>
    %cst_56 = arith.constant 0.000000e+00 : f32
    %53 = vector.broadcast %cst_56 : f32 to vector<64x16xf32>
    %54 = arith.cmpf ogt, %52, %53 : vector<64x16xf32>
    %55 = math.exp %52 : vector<64x16xf32>
    %cst_57 = arith.constant 1.000000e+00 : f32
    %56 = vector.broadcast %cst_57 : f32 to vector<64x16xf32>
    %57 = arith.subf %55, %56 : vector<64x16xf32>
    %58 = arith.select %54, %52, %57 : vector<64x16xi1>, vector<64x16xf32>
    %c0_58 = arith.constant 0 : index
    %c0_59 = arith.constant 0 : index
    %59 = vector.load %arg6[%c0_58, %c0_59] : memref<64x16xf32, #tpu.memory_space<vmem>>, vector<64x16xf32>
    tpu.vector_store %arg6[%c0_58, %c0_59], %58 {strides = array<i32>} : memref<64x16xf32, #tpu.memory_space<vmem>>, vector<64x16xf32>,
    return
  }
  func.func @transform_0(%arg0: i32) -> (i32, i32) {
    %c0_i32 = arith.constant 0 : i32
    %c0_i32_0 = arith.constant 0 : i32
    return %arg0, %c0_i32 : i32, i32
  }
  func.func @transform_1(%arg0: i32) -> (i32, i32, i32) {
    %c0_i32 = arith.constant 0 : i32
    %c0_i32_0 = arith.constant 0 : i32
    %c0_i32_1 = arith.constant 0 : i32
    %c0_i32_2 = arith.constant 0 : i32
    return %c0_i32, %c0_i32_0, %c0_i32_1 : i32, i32, i32
  }
  func.func @transform_2(%arg0: i32) -> (i32, i32) {
    %c0_i32 = arith.constant 0 : i32
    %c0_i32_0 = arith.constant 0 : i32
    %c0_i32_1 = arith.constant 0 : i32
    return %c0_i32, %c0_i32_0 : i32, i32
  }
  func.func @transform_3(%arg0: i32) -> (i32, i32, i32) {
    %c0_i32 = arith.constant 0 : i32
    %c0_i32_0 = arith.constant 0 : i32
    %c0_i32_1 = arith.constant 0 : i32
    %c0_i32_2 = arith.constant 0 : i32
    return %c0_i32, %c0_i32_0, %c0_i32_1 : i32, i32, i32
  }
  func.func @transform_4(%arg0: i32) -> (i32, i32) {
    %c0_i32 = arith.constant 0 : i32
    %c0_i32_0 = arith.constant 0 : i32
    %c0_i32_1 = arith.constant 0 : i32
    return %c0_i32, %c0_i32_0 : i32, i32
  }
  func.func @transform_5(%arg0: i32) -> (i32, i32) {
    %c0_i32 = arith.constant 0 : i32
    %c0_i32_0 = arith.constant 0 : i32
    return %arg0, %c0_i32 : i32, i32
  }
}

</mosaic_0001>

<llo_original>
// kernel: conv_encoder.1
$region0: #{conv_encoder.1}
  #allocation0 [shape = 'u32[]', space=smem, size = 0x4, offset = 0x4, fixed_abs, tag = 'smem constant byte address 0x4 - core index']
  #allocation1 [shape = 'u32[144,128]{1,0:T(1,128)}', space=vmem, size = 0x12000, scoped, tag = 'internal scratch']
  #allocation2 [shape = 'f32[264,4]{1,0:T(8,128)}', space=vmem, size = 0x21000, scoped, tag = 'scratch operand']
  #allocation3 [shape = 'f32[264,32]{1,0:T(8,128)}', space=vmem, size = 0x21000, scoped, tag = 'scratch operand']
  #allocation4 [shape = 'f32[136,32]{1,0:T(8,128)}', space=vmem, size = 0x11000, scoped, tag = 'scratch operand']
  #allocation5 [shape = 'f32[136,16]{1,0:T(8,128)}', space=vmem, size = 0x11000, scoped, tag = 'scratch operand']
  %s0 = inlined_call_operand.vmem [shape: f32[512,4], index: 0, kind: input, shape index: {}]
  %s1 = inlined_call_operand.vmem [shape: f32[3,4,32], index: 1, kind: input, shape index: {}]
  %s2 = inlined_call_operand.vmem [shape: f32[1,32], index: 2, kind: input, shape index: {}]
  %s3 = inlined_call_operand.vmem [shape: f32[3,32,16], index: 3, kind: input, shape index: {}]
  %s4 = inlined_call_operand.vmem [shape: f32[1,16], index: 4, kind: input, shape index: {}]
  %s5 = inlined_call_operand.vmem [shape: f32[128,16], index: 5, kind: output, shape index: {}]
  %s6 = sld [smem:[#allocation0]]
  $region53: #{conv_encoder.1} parent=0
    _
  %s8 = ssub.s32 1, %s6
  %s9 = scalar_select 0, %s8, %s6
  loop: start=0, step=1, limit=4
  $region2: #{conv_encoder.1} parent=0 // loop_pre_header
    _
  $region3: #{conv_encoder.1} parent=0 // loop_header
    %s11 = sphi 0, %s15
    %p12 = scmp.ge.s32.totalorder %s11, 4
    %s21 = sphi 0, %s23
    %s24 = sphi 0, %s21
    %s25 = sphi 0, %s24
    %s41 = sphi 0, %s25
    %s45 = sphi 0, %s45
    %s47 = sphi 0, %s45
    %s48 = sphi 0, %s47
    %s62 = sphi 0, %s48
    %s66 = sphi 0, %s66
    %s68 = sphi 0, %s66
    %s69 = sphi 0, %s68
    %s83 = sphi 0, %s69
    %s87 = sphi 0, %s87
    %s89 = sphi 0, %s87
    %s90 = sphi 0, %s89
    %s104 = sphi 0, %s90
    %s108 = sphi 0, %s108
    %s110 = sphi 0, %s108
    %s111 = sphi 0, %s110
    %s125 = sphi 0, %s111
    %s131 = sphi 0, %s133
    %s134 = sphi 0, %s131
    %s135 = sphi 0, %s134
    %s151 = sphi 0, %s135
  $region4: #{conv_encoder.1} parent=0 // loop_header_branch
    %14 = sbr.rel (%p12) target = $region8
  $region5: #{conv_encoder.1} parent=0 // loop_body
    %s16 = ssub.s32 %s11, 1
    %s17 = ssub.s32 %s11, 2
    %s18 = sadd.s32 %s11, 1
    %s19 = ssub.s32 %s11, %s18
    %p20 = scmp.eq.s32.totalorder %s19, 0
    %s22 = sadd.s32 %s21, 1
    %s23 = scalar_select %p20, %s21, %s22
    %p26 = pneg %p20
    %p27 = scmp.eq.s32.totalorder %s11, 1
    %p28 = por %p26, %p27
    %p29 = scmp.ne.s32.totalorder %s21, %s24
    %p30 = scmp.eq.s32.totalorder %s11, 0
    %p31 = por %p29, %p30
    %p32 = scmp.ne.s32.totalorder %s21, %s24
    %p33 = scmp.eq.s32.totalorder %s16, 1
    %p34 = por %p32, %p33
    %p35 = scmp.ne.s32.totalorder %s24, %s25
    %p36 = scmp.eq.s32.totalorder %s16, 0
    %p37 = por %p35, %p36
    %p38 = scmp.ne.s32.totalorder %s24, %s25
    %p39 = scmp.eq.s32.totalorder %s17, 1
    %p40 = por %p38, %p39
    %p42 = scmp.ne.s32.totalorder %s25, %s41
    %p43 = scmp.eq.s32.totalorder %s17, 0
    %p44 = por %p42, %p43
    %s46 = sadd.s32 %s45, 1
    %p49 = scmp.eq.s32.totalorder %s11, 1
    %p50 = scmp.ne.s32.totalorder %s45, %s47
    %p51 = scmp.eq.s32.totalorder %s11, 0
    %p52 = por %p50, %p51
    %p53 = scmp.ne.s32.totalorder %s45, %s47
    %p54 = scmp.eq.s32.totalorder %s16, 1
    %p55 = por %p53, %p54
    %p56 = scmp.ne.s32.totalorder %s47, %s48
    %p57 = scmp.eq.s32.totalorder %s16, 0
    %p58 = por %p56, %p57
    %p59 = scmp.ne.s32.totalorder %s47, %s48
    %p60 = scmp.eq.s32.totalorder %s17, 1
    %p61 = por %p59, %p60
    %p63 = scmp.ne.s32.totalorder %s48, %s62
    %p64 = scmp.eq.s32.totalorder %s17, 0
    %p65 = por %p63, %p64
    %s67 = sadd.s32 %s66, 1
    %p70 = scmp.eq.s32.totalorder %s11, 1
    %p71 = scmp.ne.s32.totalorder %s66, %s68
    %p72 = scmp.eq.s32.totalorder %s11, 0
    %p73 = por %p71, %p72
    %p74 = scmp.ne.s32.totalorder %s66, %s68
    %p75 = scmp.eq.s32.totalorder %s16, 1
    %p76 = por %p74, %p75
    %p77 = scmp.ne.s32.totalorder %s68, %s69
    %p78 = scmp.eq.s32.totalorder %s16, 0
    %p79 = por %p77, %p78
    %p80 = scmp.ne.s32.totalorder %s68, %s69
    %p81 = scmp.eq.s32.totalorder %s17, 1
    %p82 = por %p80, %p81
    %p84 = scmp.ne.s32.totalorder %s69, %s83
    %p85 = scmp.eq.s32.totalorder %s17, 0
    %p86 = por %p84, %p85
    %s88 = sadd.s32 %s87, 1
    %p91 = scmp.eq.s32.totalorder %s11, 1
    %p92 = scmp.ne.s32.totalorder %s87, %s89
    %p93 = scmp.eq.s32.totalorder %s11, 0
    %p94 = por %p92, %p93
    %p95 = scmp.ne.s32.totalorder %s87, %s89
    %p96 = scmp.eq.s32.totalorder %s16, 1
    %p97 = por %p95, %p96
    %p98 = scmp.ne.s32.totalorder %s89, %s90
    %p99 = scmp.eq.s32.totalorder %s16, 0
    %p100 = por %p98, %p99
    %p101 = scmp.ne.s32.totalorder %s89, %s90
    %p102 = scmp.eq.s32.totalorder %s17, 1
    %p103 = por %p101, %p102
    %p105 = scmp.ne.s32.totalorder %s90, %s104
    %p106 = scmp.eq.s32.totalorder %s17, 0
    %p107 = por %p105, %p106
    %s109 = sadd.s32 %s108, 1
    %p112 = scmp.eq.s32.totalorder %s11, 1
    %p113 = scmp.ne.s32.totalorder %s108, %s110
    %p114 = scmp.eq.s32.totalorder %s11, 0
    %p115 = por %p113, %p114
    %p116 = scmp.ne.s32.totalorder %s108, %s110
    %p117 = scmp.eq.s32.totalorder %s16, 1
    %p118 = por %p116, %p117
    %p119 = scmp.ne.s32.totalorder %s110, %s111
    %p120 = scmp.eq.s32.totalorder %s16, 0
    %p121 = por %p119, %p120
    %p122 = scmp.ne.s32.totalorder %s110, %s111
    %p123 = scmp.eq.s32.totalorder %s17, 1
    %p124 = por %p122, %p123
    %p126 = scmp.ne.s32.totalorder %s111, %s125
    %p127 = scmp.eq.s32.totalorder %s17, 0
    %p128 = por %p126, %p127
    %s129 = ssub.s32 %s11, %s18
    %p130 = scmp.eq.s32.totalorder %s129, 0
    %s132 = sadd.s32 %s131, 1
    %s133 = scalar_select %p130, %s131, %s132
    %p136 = pneg %p130
    %p137 = scmp.eq.s32.totalorder %s11, 1
    %p138 = por %p136, %p137
    %p139 = scmp.ne.s32.totalorder %s131, %s134
    %p140 = scmp.eq.s32.totalorder %s11, 0
    %p141 = por %p139, %p140
    %p142 = scmp.ne.s32.totalorder %s131, %s134
    %p143 = scmp.eq.s32.totalorder %s16, 1
    %p144 = por %p142, %p143
    %p145 = scmp.ne.s32.totalorder %s134, %s135
    %p146 = scmp.eq.s32.totalorder %s16, 0
    %p147 = por %p145, %p146
    %p148 = scmp.ne.s32.totalorder %s134, %s135
    %p149 = scmp.eq.s32.totalorder %s17, 1
    %p150 = por %p148, %p149
    %p152 = scmp.ne.s32.totalorder %s135, %s151
    %p153 = scmp.eq.s32.totalorder %s17, 0
    %p154 = por %p152, %p153
    %p155 = scmp.le.s32.totalorder 1, %s11
    %p156 = scmp.lt.s32.totalorder %s11, 3
    %p157 = pnand %p155, %p156
    %p158 = pneg %p157
    // Predicated region
    $region9: #{conv_encoder.1} parent=5 // pred_check
      _
    $region10: #{conv_encoder.1} parent=5 // pred_check_branch
      %160 = sbr.rel (%p157) target = $region12
    $region11: #{conv_encoder.1} parent=5 // pred_region
      %s161 = ssub.s32 %s11, 1
      // Predicated region
      $region13: #{conv_encoder.1} parent=11 // pred_check
        %p162 = pneg %p58
      $region14: #{conv_encoder.1} parent=11 // pred_check_branch
        %164 = sbr.rel (%p162) target = $region16
      $region15: #{conv_encoder.1} parent=11 // pred_region
        _
      $region16: #{conv_encoder.1} parent=11 // pred_fallthru
        _
      // Predicated region
      $region17: #{conv_encoder.1} parent=11 // pred_check
        %p165 = pneg %p79
      $region18: #{conv_encoder.1} parent=11 // pred_check_branch
        %167 = sbr.rel (%p165) target = $region20
      $region19: #{conv_encoder.1} parent=11 // pred_region
        _
      $region20: #{conv_encoder.1} parent=11 // pred_fallthru
        _
      // Predicated region
      $region21: #{conv_encoder.1} parent=11 // pred_check
        %p168 = pneg %p100
      $region22: #{conv_encoder.1} parent=11 // pred_check_branch
        %170 = sbr.rel (%p168) target = $region24
      $region23: #{conv_encoder.1} parent=11 // pred_region
        _
      $region24: #{conv_encoder.1} parent=11 // pred_fallthru
        _
      // Predicated region
      $region25: #{conv_encoder.1} parent=11 // pred_check
        %p171 = pneg %p121
      $region26: #{conv_encoder.1} parent=11 // pred_check_branch
        %173 = sbr.rel (%p171) target = $region28
      $region27: #{conv_encoder.1} parent=11 // pred_region
        _
      $region28: #{conv_encoder.1} parent=11 // pred_fallthru
        _
    $region12: #{conv_encoder.1} parent=5 // pred_fallthru
      _
    %p174 = scmp.lt.s32.totalorder %s11, 2
    // Predicated region
    $region29: #{conv_encoder.1} parent=5 // pred_check
      %p175 = pneg %p174
    $region30: #{conv_encoder.1} parent=5 // pred_check_branch
      %177 = sbr.rel (%p175) target = $region32
    $region31: #{conv_encoder.1} parent=5 // pred_region
      // Predicated region
      $region33: #{conv_encoder.1} parent=31 // pred_check
        %p178 = pneg %p31
      $region34: #{conv_encoder.1} parent=31 // pred_check_branch
        %180 = sbr.rel (%p178) target = $region36
      $region35: #{conv_encoder.1} parent=31 // pred_region
        %s181 = smul.u32 32, %s11
        %p182 = scmp.lt.s32.totalorder %s181, 63
        %s183 = scalar_select %p182, %s181, 63
        %s184 = smul.addr %s183, 8
        %s185 = scalar_lea.vmem %s0, %s184
        %s186 = smul.u32 32, %s11
      $region36: #{conv_encoder.1} parent=31 // pred_fallthru
        _
    $region32: #{conv_encoder.1} parent=5 // pred_fallthru
      _
    %p187 = scmp.le.s32.totalorder 1, %s11
    %p188 = scmp.lt.s32.totalorder %s11, 3
    %p189 = pnand %p187, %p188
    %p190 = pneg %p189
    // Predicated region
    $region37: #{conv_encoder.1} parent=5 // pred_check
      _
    $region38: #{conv_encoder.1} parent=5 // pred_check_branch
      %192 = sbr.rel (%p189) target = $region40
    $region39: #{conv_encoder.1} parent=5 // pred_region
      %s193 = ssub.s32 %s11, 1
      %s194 = smul.u32 32, %s16
      %p195 = scmp.lt.s32.totalorder %s194, 63
      %s196 = scalar_select %p195, %s194, 63
      %s197 = smul.addr %s196, 8
      %s198 = scalar_lea.vmem %s0, %s197
      %p199 = pneg %p37
      %p200 = pneg %p34
      %p201 = pneg %p58
      %p202 = pneg %p55
      %p203 = pneg %p79
      %p204 = pneg %p76
      %p205 = pneg %p100
      %p206 = pneg %p97
      %p207 = pneg %p121
      %p208 = pneg %p118
      %p209 = pneg %p147
      %p210 = pneg %p144
      %s211 = smul.u32 8, %s16
      %p212 = scmp.lt.s32.totalorder %s211, 15
      %s213 = scalar_select %p212, %s211, 15
      %s214 = smul.addr %s213, 8
      %s215 = scalar_lea.vmem %s5, %s214
      %s216 = smul.u32 32, %s16
      %p217 = scmp.lt.s32.totalorder %s216, 63
      %s218 = scalar_select %p217, %s216, 63
      %s219 = smul.addr %s218, 8
      %s220 = scalar_lea.vmem %s0, %s219
      %s221 = smul.u32 32, %s16
      %s222 = smul.u32 8, %s16
      %p223 = scmp.lt.s32.totalorder %s222, 15
      %s224 = scalar_select %p223, %s222, 15
      %s225 = smul.addr %s224, 8
      %s226 = scalar_lea.vmem %s5, %s225
      %s227 = smul.u32 8, %s16
      %v228 = vld [vmem:[%s220] sm:$0xff]
      %v229 = vld [vmem:[%s220 + $0x8] sm:$0xff]
      %v230 = vld [vmem:[%s220 + $0x10] sm:$0xff]
      %v231 = vld [vmem:[%s220 + $0x18] sm:$0xff]
      %v232 = vld [vmem:[%s220 + $0x20] sm:$0xff]
      %v233 = vld [vmem:[%s220 + $0x28] sm:$0xff]
      %v234 = vld [vmem:[%s220 + $0x30] sm:$0xff]
      %v235 = vld [vmem:[%s220 + $0x38] sm:$0xff]
      %v236 = vld [vmem:[%s220 + $0x40] sm:$0xff]
      %v237 = vld [vmem:[%s220 + $0x48] sm:$0xff]
      %v238 = vld [vmem:[%s220 + $0x50] sm:$0xff]
      %v239 = vld [vmem:[%s220 + $0x58] sm:$0xff]
      %v240 = vld [vmem:[%s220 + $0x60] sm:$0xff]
      %v241 = vld [vmem:[%s220 + $0x68] sm:$0xff]
      %v242 = vld [vmem:[%s220 + $0x70] sm:$0xff]
      %v243 = vld [vmem:[%s220 + $0x78] sm:$0xff]
      %v244 = vld [vmem:[%s220 + $0x80] sm:$0xff]
      %v245 = vld [vmem:[%s220 + $0x88] sm:$0xff]
      %v246 = vld [vmem:[%s220 + $0x90] sm:$0xff]
      %v247 = vld [vmem:[%s220 + $0x98] sm:$0xff]
      %v248 = vld [vmem:[%s220 + $0xa0] sm:$0xff]
      %v249 = vld [vmem:[%s220 + $0xa8] sm:$0xff]
      %v250 = vld [vmem:[%s220 + $0xb0] sm:$0xff]
      %v251 = vld [vmem:[%s220 + $0xb8] sm:$0xff]
      %v252 = vld [vmem:[%s220 + $0xc0] sm:$0xff]
      %v253 = vld [vmem:[%s220 + $0xc8] sm:$0xff]
      %v254 = vld [vmem:[%s220 + $0xd0] sm:$0xff]
      %v255 = vld [vmem:[%s220 + $0xd8] sm:$0xff]
      %v256 = vld [vmem:[%s220 + $0xe0] sm:$0xff]
      %v257 = vld [vmem:[%s220 + $0xe8] sm:$0xff]
      %v258 = vld [vmem:[%s220 + $0xf0] sm:$0xff]
      %v259 = vld [vmem:[%s220 + $0xf8] sm:$0xff]
      %vm260 = vcmask 31744
      %261 = vst.msk [vmem:[#allocation2] sm:$0xff] %vm260, %v228
      %262 = vst.msk [vmem:[#allocation2 + $0x8] sm:$0xff] %vm260, %v229
      %263 = vst.msk [vmem:[#allocation2 + $0x10] sm:$0xff] %vm260, %v230
      %264 = vst.msk [vmem:[#allocation2 + $0x18] sm:$0xff] %vm260, %v231
      %265 = vst.msk [vmem:[#allocation2 + $0x20] sm:$0xff] %vm260, %v232
      %266 = vst.msk [vmem:[#allocation2 + $0x28] sm:$0xff] %vm260, %v233
      %267 = vst.msk [vmem:[#allocation2 + $0x30] sm:$0xff] %vm260, %v234
      %268 = vst.msk [vmem:[#allocation2 + $0x38] sm:$0xff] %vm260, %v235
      %269 = vst.msk [vmem:[#allocation2 + $0x40] sm:$0xff] %vm260, %v236
      %270 = vst.msk [vmem:[#allocation2 + $0x48] sm:$0xff] %vm260, %v237
      %271 = vst.msk [vmem:[#allocation2 + $0x50] sm:$0xff] %vm260, %v238
      %272 = vst.msk [vmem:[#allocation2 + $0x58] sm:$0xff] %vm260, %v239
      %273 = vst.msk [vmem:[#allocation2 + $0x60] sm:$0xff] %vm260, %v240
      %274 = vst.msk [vmem:[#allocation2 + $0x68] sm:$0xff] %vm260, %v241
      %275 = vst.msk [vmem:[#allocation2 + $0x70] sm:$0xff] %vm260, %v242
      %276 = vst.msk [vmem:[#allocation2 + $0x78] sm:$0xff] %vm260, %v243
      %277 = vst.msk [vmem:[#allocation2 + $0x80] sm:$0xff] %vm260, %v244
      %278 = vst.msk [vmem:[#allocation2 + $0x88] sm:$0xff] %vm260, %v245
      %279 = vst.msk [vmem:[#allocation2 + $0x90] sm:$0xff] %vm260, %v246
      %280 = vst.msk [vmem:[#allocation2 + $0x98] sm:$0xff] %vm260, %v247
      %281 = vst.msk [vmem:[#allocation2 + $0xa0] sm:$0xff] %vm260, %v248
      %282 = vst.msk [vmem:[#allocation2 + $0xa8] sm:$0xff] %vm260, %v249
      %283 = vst.msk [vmem:[#allocation2 + $0xb0] sm:$0xff] %vm260, %v250
      %284 = vst.msk [vmem:[#allocation2 + $0xb8] sm:$0xff] %vm260, %v251
      %285 = vst.msk [vmem:[#allocation2 + $0xc0] sm:$0xff] %vm260, %v252
      %286 = vst.msk [vmem:[#allocation2 + $0xc8] sm:$0xff] %vm260, %v253
      %287 = vst.msk [vmem:[#allocation2 + $0xd0] sm:$0xff] %vm260, %v254
      %288 = vst.msk [vmem:[#allocation2 + $0xd8] sm:$0xff] %vm260, %v255
      %289 = vst.msk [vmem:[#allocation2 + $0xe0] sm:$0xff] %vm260, %v256
      %290 = vst.msk [vmem:[#allocation2 + $0xe8] sm:$0xff] %vm260, %v257
      %291 = vst.msk [vmem:[#allocation2 + $0xf0] sm:$0xff] %vm260, %v258
      %292 = vst.msk [vmem:[#allocation2 + $0xf8] sm:$0xff] %vm260, %v259
      %293 = vst.msk [vmem:[#allocation2 + $0x100] sm:$0xff] %vm260, 0.0
      %v294 = vld [vmem:[%s2] sm:$0x1]
      %v295 = vld [vmem:[%s1] sm:$0xf]
      %v297 = vsel %vm260, %v228, 0
      %v300 = vsel %vm260, %v229, 0
      %v303 = vsel %vm260, %v230, 0
      %v306 = vsel %vm260, %v231, 0
      %v309 = vsel %vm260, %v232, 0
      %v312 = vsel %vm260, %v233, 0
      %v315 = vsel %vm260, %v234, 0
      %v318 = vsel %vm260, %v235, 0
      %v321 = vsel %vm260, %v236, 0
      %v324 = vsel %vm260, %v237, 0
      %v327 = vsel %vm260, %v238, 0
      %v330 = vsel %vm260, %v239, 0
      %v333 = vsel %vm260, %v240, 0
      %v336 = vsel %vm260, %v241, 0
      %v339 = vsel %vm260, %v242, 0
      %v342 = vsel %vm260, %v243, 0
      %v345 = vsel %vm260, %v244, 0
      %v348 = vsel %vm260, %v245, 0
      %v351 = vsel %vm260, %v246, 0
      %v354 = vsel %vm260, %v247, 0
      %v357 = vsel %vm260, %v248, 0
      %v360 = vsel %vm260, %v249, 0
      %v363 = vsel %vm260, %v250, 0
      %v366 = vsel %vm260, %v251, 0
      %v369 = vsel %vm260, %v252, 0
      %v372 = vsel %vm260, %v253, 0
      %v375 = vsel %vm260, %v254, 0
      %v378 = vsel %vm260, %v255, 0
      %v381 = vsel %vm260, %v256, 0
      %v384 = vsel %vm260, %v257, 0
      %v387 = vsel %vm260, %v258, 0
      %v390 = vsel %vm260, %v259, 0
      %vm392 = vcmask 1043456
      %v394 = vsel %vm392, %v295, 0
      %396 = vmatprep.subr.mxu0 0.0
      %397 = vmatpush1.msra.mxu0 0.0
      %398 = vmatprep.subr.mxu0 0.0
      %399 = vmatpush1.msra.mxu0 0.0
      %400 = vmatprep.subr.mxu0 0.0
      %401 = vmatpush1.msra.mxu0 0.0
      %402 = vmatprep.subr.mxu0 0.0
      %403 = vmatpush1.msra.mxu0 0.0
      %404 = vmatprep.subr.mxu0 0.0
      %405 = vmatpush1.msra.mxu0 0.0
      %406 = vmatprep.subr.mxu0 0.0
      %407 = vmatpush1.msra.mxu0 0.0
      %408 = vmatprep.subr.mxu0 0.0
      %409 = vmatpush1.msra.mxu0 0.0
      %410 = vmatprep.subr.mxu0 0.0
      %411 = vmatpush1.msra.mxu0 0.0
      %412 = vmatprep.subr.mxu0 0.0
      %413 = vmatpush1.msra.mxu0 0.0
      %414 = vmatprep.subr.mxu0 0.0
      %415 = vmatpush1.msra.mxu0 0.0
      %416 = vmatprep.subr.mxu0 0.0
      %417 = vmatpush1.msra.mxu0 0.0
      %418 = vmatprep.subr.mxu0 0.0
      %419 = vmatpush1.msra.mxu0 0.0
      %420 = vmatprep.subr.mxu0 0.0
      %421 = vmatpush1.msra.mxu0 0.0
      %422 = vmatprep.subr.mxu0 0.0
      %423 = vmatpush1.msra.mxu0 0.0
      %424 = vmatprep.subr.mxu0 0.0
      %425 = vmatpush1.msra.mxu0 0.0
      %426 = vmatprep.subr.mxu0 0.0
      %v427 = vand.u32 %v394, 4294901760
      %428 = vmatpush1.msra.mxu0 %v427
      %429 = vmatprep.subr.mxu0 0.0
      %430 = vmatpush2.msra.mxu0 0.0
      %431 = vmatprep.subr.mxu0 0.0
      %432 = vmatpush2.msra.mxu0 0.0
      %433 = vmatprep.subr.mxu0 0.0
      %434 = vmatpush2.msra.mxu0 0.0
      %435 = vmatprep.subr.mxu0 0.0
      %436 = vmatpush2.msra.mxu0 0.0
      %437 = vmatprep.subr.mxu0 0.0
      %438 = vmatpush2.msra.mxu0 0.0
      %439 = vmatprep.subr.mxu0 0.0
      %440 = vmatpush2.msra.mxu0 0.0
      %441 = vmatprep.subr.mxu0 0.0
      %442 = vmatpush2.msra.mxu0 0.0
      %443 = vmatprep.subr.mxu0 0.0
      %444 = vmatpush2.msra.mxu0 0.0
      %445 = vmatprep.subr.mxu0 0.0
      %446 = vmatpush2.msra.mxu0 0.0
      %447 = vmatprep.subr.mxu0 0.0
      %448 = vmatpush2.msra.mxu0 0.0
      %449 = vmatprep.subr.mxu0 0.0
      %450 = vmatpush2.msra.mxu0 0.0
      %451 = vmatprep.subr.mxu0 0.0
      %452 = vmatpush2.msra.mxu0 0.0
      %453 = vmatprep.subr.mxu0 0.0
      %454 = vmatpush2.msra.mxu0 0.0
      %455 = vmatprep.subr.mxu0 0.0
      %456 = vmatpush2.msra.mxu0 0.0
      %457 = vmatprep.subr.mxu0 0.0
      %458 = vmatpush2.msra.mxu0 0.0
      %459 = vmatprep.subr.mxu0 0.0
      %460 = vmatpush2.msra.mxu0 0.0
      %461 = vmatprep.mubr.f32.mxu0 0.0
      %v462 = vand.u32 %v297, 4294901760
      %v463 = vsub.f32 %v297, %v462
      %v464 = vand.u32 %v463, 4294901760
      %v465 = vsub.f32 %v463, %v464
      %v466 = vand.u32 %v465, 4294901760
      %467 = vmatmul.mubr.f32.gmra.mxu0 %v466
      %v468 = vpop.f32.mrf.mxu0
      %v469 = vadd.f32 0.0, %v468
      %v470 = vpop.f32.mrf.mxu0
      %471 = vmatprep.mubr.f32.mxu0 0.0
      %v472 = vand.u32 %v300, 4294901760
      %v473 = vsub.f32 %v300, %v472
      %v474 = vand.u32 %v473, 4294901760
      %v475 = vsub.f32 %v473, %v474
      %v476 = vand.u32 %v475, 4294901760
      %477 = vmatmul.mubr.f32.gmra.mxu0 %v476
      %v478 = vpop.f32.mrf.mxu0
      %v479 = vadd.f32 0.0, %v478
      %v480 = vpop.f32.mrf.mxu0
      %481 = vmatprep.mubr.f32.mxu0 0.0
      %v482 = vand.u32 %v303, 4294901760
      %v483 = vsub.f32 %v303, %v482
      %v484 = vand.u32 %v483, 4294901760
      %v485 = vsub.f32 %v483, %v484
      %v486 = vand.u32 %v485, 4294901760
      %487 = vmatmul.mubr.f32.gmra.mxu0 %v486
      %v488 = vpop.f32.mrf.mxu0
      %v489 = vadd.f32 0.0, %v488
      %v490 = vpop.f32.mrf.mxu0
      %491 = vmatprep.mubr.f32.mxu0 0.0
      %v492 = vand.u32 %v306, 4294901760
      %v493 = vsub.f32 %v306, %v492
      %v494 = vand.u32 %v493, 4294901760
      %v495 = vsub.f32 %v493, %v494
      %v496 = vand.u32 %v495, 4294901760
      %497 = vmatmul.mubr.f32.gmra.mxu0 %v496
      %v498 = vpop.f32.mrf.mxu0
      %v499 = vadd.f32 0.0, %v498
      %v500 = vpop.f32.mrf.mxu0
      %501 = vmatprep.mubr.f32.mxu0 0.0
      %v502 = vand.u32 %v309, 4294901760
      %v503 = vsub.f32 %v309, %v502
      %v504 = vand.u32 %v503, 4294901760
      %v505 = vsub.f32 %v503, %v504
      %v506 = vand.u32 %v505, 4294901760
      %507 = vmatmul.mubr.f32.gmra.mxu0 %v506
      %v508 = vpop.f32.mrf.mxu0
      %v509 = vadd.f32 0.0, %v508
      %v510 = vpop.f32.mrf.mxu0
      %511 = vmatprep.mubr.f32.mxu0 0.0
      %v512 = vand.u32 %v312, 4294901760
      %v513 = vsub.f32 %v312, %v512
      %v514 = vand.u32 %v513, 4294901760
      %v515 = vsub.f32 %v513, %v514
      %v516 = vand.u32 %v515, 4294901760
      %517 = vmatmul.mubr.f32.gmra.mxu0 %v516
      %v518 = vpop.f32.mrf.mxu0
      %v519 = vadd.f32 0.0, %v518
      %v520 = vpop.f32.mrf.mxu0
      %521 = vmatprep.mubr.f32.mxu0 0.0
      %v522 = vand.u32 %v315, 4294901760
      %v523 = vsub.f32 %v315, %v522
      %v524 = vand.u32 %v523, 4294901760
      %v525 = vsub.f32 %v523, %v524
      %v526 = vand.u32 %v525, 4294901760
      %527 = vmatmul.mubr.f32.gmra.mxu0 %v526
      %v528 = vpop.f32.mrf.mxu0
      %v529 = vadd.f32 0.0, %v528
      %v530 = vpop.f32.mrf.mxu0
      %531 = vmatprep.mubr.f32.mxu0 0.0
      %v532 = vand.u32 %v318, 4294901760
      %v533 = vsub.f32 %v318, %v532
      %v534 = vand.u32 %v533, 4294901760
      %v535 = vsub.f32 %v533, %v534
      %v536 = vand.u32 %v535, 4294901760
      %537 = vmatmul.mubr.f32.gmra.mxu0 %v536
      %v538 = vpop.f32.mrf.mxu0
      %v539 = vadd.f32 0.0, %v538
      %v540 = vpop.f32.mrf.mxu0
      %541 = vmatprep.mubr.f32.mxu0 0.0
      %v542 = vand.u32 %v321, 4294901760
      %v543 = vsub.f32 %v321, %v542
      %v544 = vand.u32 %v543, 4294901760
      %v545 = vsub.f32 %v543, %v544
      %v546 = vand.u32 %v545, 4294901760
      %547 = vmatmul.mubr.f32.gmra.mxu0 %v546
      %v548 = vpop.f32.mrf.mxu0
      %v549 = vadd.f32 0.0, %v548
      %v550 = vpop.f32.mrf.mxu0
      %551 = vmatprep.mubr.f32.mxu0 0.0
      %v552 = vand.u32 %v324, 4294901760
      %v553 = vsub.f32 %v324, %v552
      %v554 = vand.u32 %v553, 4294901760
      %v555 = vsub.f32 %v553, %v554
      %v556 = vand.u32 %v555, 4294901760
      %557 = vmatmul.mubr.f32.gmra.mxu0 %v556
      %v558 = vpop.f32.mrf.mxu0
      %v559 = vadd.f32 0.0, %v558
      %v560 = vpop.f32.mrf.mxu0
      %561 = vmatprep.mubr.f32.mxu0 0.0
      %v562 = vand.u32 %v327, 4294901760
      %v563 = vsub.f32 %v327, %v562
      %v564 = vand.u32 %v563, 4294901760
      %v565 = vsub.f32 %v563, %v564
      %v566 = vand.u32 %v565, 4294901760
      %567 = vmatmul.mubr.f32.gmra.mxu0 %v566
      %v568 = vpop.f32.mrf.mxu0
      %v569 = vadd.f32 0.0, %v568
      %v570 = vpop.f32.mrf.mxu0
      %571 = vmatprep.mubr.f32.mxu0 0.0
      %v572 = vand.u32 %v330, 4294901760
      %v573 = vsub.f32 %v330, %v572
      %v574 = vand.u32 %v573, 4294901760
      %v575 = vsub.f32 %v573, %v574
      %v576 = vand.u32 %v575, 4294901760
      %577 = vmatmul.mubr.f32.gmra.mxu0 %v576
      %v578 = vpop.f32.mrf.mxu0
      %v579 = vadd.f32 0.0, %v578
      %v580 = vpop.f32.mrf.mxu0
      %581 = vmatprep.mubr.f32.mxu0 0.0
      %v582 = vand.u32 %v333, 4294901760
      %v583 = vsub.f32 %v333, %v582
      %v584 = vand.u32 %v583, 4294901760
      %v585 = vsub.f32 %v583, %v584
      %v586 = vand.u32 %v585, 4294901760
      %587 = vmatmul.mubr.f32.gmra.mxu0 %v586
      %v588 = vpop.f32.mrf.mxu0
      %v589 = vadd.f32 0.0, %v588
      %v590 = vpop.f32.mrf.mxu0
      %591 = vmatprep.mubr.f32.mxu0 0.0
      %v592 = vand.u32 %v336, 4294901760
      %v593 = vsub.f32 %v336, %v592
      %v594 = vand.u32 %v593, 4294901760
      %v595 = vsub.f32 %v593, %v594
      %v596 = vand.u32 %v595, 4294901760
      %597 = vmatmul.mubr.f32.gmra.mxu0 %v596
      %v598 = vpop.f32.mrf.mxu0
      %v599 = vadd.f32 0.0, %v598
      %v600 = vpop.f32.mrf.mxu0
      %601 = vmatprep.mubr.f32.mxu0 0.0
      %v602 = vand.u32 %v339, 4294901760
      %v603 = vsub.f32 %v339, %v602
      %v604 = vand.u32 %v603, 4294901760
      %v605 = vsub.f32 %v603, %v604
      %v606 = vand.u32 %v605, 4294901760
      %607 = vmatmul.mubr.f32.gmra.mxu0 %v606
      %v608 = vpop.f32.mrf.mxu0
      %v609 = vadd.f32 0.0, %v608
      %v610 = vpop.f32.mrf.mxu0
      %611 = vmatprep.mubr.f32.mxu0 0.0
      %v612 = vand.u32 %v342, 4294901760
      %v613 = vsub.f32 %v342, %v612
      %v614 = vand.u32 %v613, 4294901760
      %v615 = vsub.f32 %v613, %v614
      %v616 = vand.u32 %v615, 4294901760
      %617 = vmatmul.mubr.f32.gmra.mxu0 %v616
      %v618 = vpop.f32.mrf.mxu0
      %v619 = vadd.f32 0.0, %v618
      %v620 = vpop.f32.mrf.mxu0
      %621 = vmatprep.mubr.f32.mxu0 0.0
      %v622 = vand.u32 %v345, 4294901760
      %v623 = vsub.f32 %v345, %v622
      %v624 = vand.u32 %v623, 4294901760
      %v625 = vsub.f32 %v623, %v624
      %v626 = vand.u32 %v625, 4294901760
      %627 = vmatmul.mubr.f32.gmra.mxu0 %v626
      %v628 = vpop.f32.mrf.mxu0
      %v629 = vadd.f32 0.0, %v628
      %v630 = vpop.f32.mrf.mxu0
      %631 = vmatprep.mubr.f32.mxu0 0.0
      %v632 = vand.u32 %v348, 4294901760
      %v633 = vsub.f32 %v348, %v632
      %v634 = vand.u32 %v633, 4294901760
      %v635 = vsub.f32 %v633, %v634
      %v636 = vand.u32 %v635, 4294901760
      %637 = vmatmul.mubr.f32.gmra.mxu0 %v636
      %v638 = vpop.f32.mrf.mxu0
      %v639 = vadd.f32 0.0, %v638
      %v640 = vpop.f32.mrf.mxu0
      %641 = vmatprep.mubr.f32.mxu0 0.0
      %v642 = vand.u32 %v351, 4294901760
      %v643 = vsub.f32 %v351, %v642
      %v644 = vand.u32 %v643, 4294901760
      %v645 = vsub.f32 %v643, %v644
      %v646 = vand.u32 %v645, 4294901760
      %647 = vmatmul.mubr.f32.gmra.mxu0 %v646
      %v648 = vpop.f32.mrf.mxu0
      %v649 = vadd.f32 0.0, %v648
      %v650 = vpop.f32.mrf.mxu0
      %651 = vmatprep.mubr.f32.mxu0 0.0
      %v652 = vand.u32 %v354, 4294901760
      %v653 = vsub.f32 %v354, %v652
      %v654 = vand.u32 %v653, 4294901760
      %v655 = vsub.f32 %v653, %v654
      %v656 = vand.u32 %v655, 4294901760
      %657 = vmatmul.mubr.f32.gmra.mxu0 %v656
      %v658 = vpop.f32.mrf.mxu0
      %v659 = vadd.f32 0.0, %v658
      %v660 = vpop.f32.mrf.mxu0
      %661 = vmatprep.mubr.f32.mxu0 0.0
      %v662 = vand.u32 %v357, 4294901760
      %v663 = vsub.f32 %v357, %v662
      %v664 = vand.u32 %v663, 4294901760
      %v665 = vsub.f32 %v663, %v664
      %v666 = vand.u32 %v665, 4294901760
      %667 = vmatmul.mubr.f32.gmra.mxu0 %v666
      %v668 = vpop.f32.mrf.mxu0
      %v669 = vadd.f32 0.0, %v668
      %v670 = vpop.f32.mrf.mxu0
      %671 = vmatprep.mubr.f32.mxu0 0.0
      %v672 = vand.u32 %v360, 4294901760
      %v673 = vsub.f32 %v360, %v672
      %v674 = vand.u32 %v673, 4294901760
      %v675 = vsub.f32 %v673, %v674
      %v676 = vand.u32 %v675, 4294901760
      %677 = vmatmul.mubr.f32.gmra.mxu0 %v676
      %v678 = vpop.f32.mrf.mxu0
      %v679 = vadd.f32 0.0, %v678
      %v680 = vpop.f32.mrf.mxu0
      %681 = vmatprep.mubr.f32.mxu0 0.0
      %v682 = vand.u32 %v363, 4294901760
      %v683 = vsub.f32 %v363, %v682
      %v684 = vand.u32 %v683, 4294901760
      %v685 = vsub.f32 %v683, %v684
      %v686 = vand.u32 %v685, 4294901760
      %687 = vmatmul.mubr.f32.gmra.mxu0 %v686
      %v688 = vpop.f32.mrf.mxu0
      %v689 = vadd.f32 0.0, %v688
      %v690 = vpop.f32.mrf.mxu0
      %691 = vmatprep.mubr.f32.mxu0 0.0
      %v692 = vand.u32 %v366, 4294901760
      %v693 = vsub.f32 %v366, %v692
      %v694 = vand.u32 %v693, 4294901760
      %v695 = vsub.f32 %v693, %v694
      %v696 = vand.u32 %v695, 4294901760
      %697 = vmatmul.mubr.f32.gmra.mxu0 %v696
      %v698 = vpop.f32.mrf.mxu0
      %v699 = vadd.f32 0.0, %v698
      %v700 = vpop.f32.mrf.mxu0
      %701 = vmatprep.mubr.f32.mxu0 0.0
      %v702 = vand.u32 %v369, 4294901760
      %v703 = vsub.f32 %v369, %v702
      %v704 = vand.u32 %v703, 4294901760
      %v705 = vsub.f32 %v703, %v704
      %v706 = vand.u32 %v705, 4294901760
      %707 = vmatmul.mubr.f32.gmra.mxu0 %v706
      %v708 = vpop.f32.mrf.mxu0
      %v709 = vadd.f32 0.0, %v708
      %v710 = vpop.f32.mrf.mxu0
      %711 = vmatprep.mubr.f32.mxu0 0.0
      %v712 = vand.u32 %v372, 4294901760
      %v713 = vsub.f32 %v372, %v712
      %v714 = vand.u32 %v713, 4294901760
      %v715 = vsub.f32 %v713, %v714
      %v716 = vand.u32 %v715, 4294901760
      %717 = vmatmul.mubr.f32.gmra.mxu0 %v716
      %v718 = vpop.f32.mrf.mxu0
      %v719 = vadd.f32 0.0, %v718
      %v720 = vpop.f32.mrf.mxu0
      %721 = vmatprep.mubr.f32.mxu0 0.0
      %v722 = vand.u32 %v375, 4294901760
      %v723 = vsub.f32 %v375, %v722
      %v724 = vand.u32 %v723, 4294901760
      %v725 = vsub.f32 %v723, %v724
      %v726 = vand.u32 %v725, 4294901760
      %727 = vmatmul.mubr.f32.gmra.mxu0 %v726
      %v728 = vpop.f32.mrf.mxu0
      %v729 = vadd.f32 0.0, %v728
      %v730 = vpop.f32.mrf.mxu0
      %731 = vmatprep.mubr.f32.mxu0 0.0
      %v732 = vand.u32 %v378, 4294901760
      %v733 = vsub.f32 %v378, %v732
      %v734 = vand.u32 %v733, 4294901760
      %v735 = vsub.f32 %v733, %v734
      %v736 = vand.u32 %v735, 4294901760
      %737 = vmatmul.mubr.f32.gmra.mxu0 %v736
      %v738 = vpop.f32.mrf.mxu0
      %v739 = vadd.f32 0.0, %v738
      %v740 = vpop.f32.mrf.mxu0
      %741 = vmatprep.mubr.f32.mxu0 0.0
      %v742 = vand.u32 %v381, 4294901760
      %v743 = vsub.f32 %v381, %v742
      %v744 = vand.u32 %v743, 4294901760
      %v745 = vsub.f32 %v743, %v744
      %v746 = vand.u32 %v745, 4294901760
      %747 = vmatmul.mubr.f32.gmra.mxu0 %v746
      %v748 = vpop.f32.mrf.mxu0
      %v749 = vadd.f32 0.0, %v748
      %v750 = vpop.f32.mrf.mxu0
      %751 = vmatprep.mubr.f32.mxu0 0.0
      %v752 = vand.u32 %v384, 4294901760
      %v753 = vsub.f32 %v384, %v752
      %v754 = vand.u32 %v753, 4294901760
      %v755 = vsub.f32 %v753, %v754
      %v756 = vand.u32 %v755, 4294901760
      %757 = vmatmul.mubr.f32.gmra.mxu0 %v756
      %v758 = vpop.f32.mrf.mxu0
      %v759 = vadd.f32 0.0, %v758
      %v760 = vpop.f32.mrf.mxu0
      %761 = vmatprep.mubr.f32.mxu0 0.0
      %v762 = vand.u32 %v387, 4294901760
      %v763 = vsub.f32 %v387, %v762
      %v764 = vand.u32 %v763, 4294901760
      %v765 = vsub.f32 %v763, %v764
      %v766 = vand.u32 %v765, 4294901760
      %767 = vmatmul.mubr.f32.gmra.mxu0 %v766
      %v768 = vpop.f32.mrf.mxu0
      %v769 = vadd.f32 0.0, %v768
      %v770 = vpop.f32.mrf.mxu0
      %771 = vmatprep.mubr.f32.mxu0 0.0
      %v772 = vand.u32 %v390, 4294901760
      %v773 = vsub.f32 %v390, %v772
      %v774 = vand.u32 %v773, 4294901760
      %v775 = vsub.f32 %v773, %v774
      %v776 = vand.u32 %v775, 4294901760
      %777 = vmatmul.mubr.f32.gmra.mxu0 %v776
      %v778 = vpop.f32.mrf.mxu0
      %v779 = vadd.f32 0.0, %v778
      %v780 = vpop.f32.mrf.mxu0
      %781 = vdwg.mxu0
      %782 = vmatprep.subr.mxu0 0.0
      %783 = vmatpush1.msra.mxu0 0.0
      %784 = vmatprep.subr.mxu0 0.0
      %785 = vmatpush1.msra.mxu0 0.0
      %786 = vmatprep.subr.mxu0 0.0
      %787 = vmatpush1.msra.mxu0 0.0
      %788 = vmatprep.subr.mxu0 0.0
      %789 = vmatpush1.msra.mxu0 0.0
      %790 = vmatprep.subr.mxu0 0.0
      %791 = vmatpush1.msra.mxu0 0.0
      %792 = vmatprep.subr.mxu0 0.0
      %793 = vmatpush1.msra.mxu0 0.0
      %794 = vmatprep.subr.mxu0 0.0
      %795 = vmatpush1.msra.mxu0 0.0
      %796 = vmatprep.subr.mxu0 0.0
      %797 = vmatpush1.msra.mxu0 0.0
      %798 = vmatprep.subr.mxu0 0.0
      %799 = vmatpush1.msra.mxu0 0.0
      %800 = vmatprep.subr.mxu0 0.0
      %801 = vmatpush1.msra.mxu0 0.0
      %802 = vmatprep.subr.mxu0 0.0
      %803 = vmatpush1.msra.mxu0 0.0
      %804 = vmatprep.subr.mxu0 0.0
      %805 = vmatpush1.msra.mxu0 0.0
      %806 = vmatprep.subr.mxu0 0.0
      %807 = vmatpush1.msra.mxu0 0.0
      %808 = vmatprep.subr.mxu0 0.0
      %809 = vmatpush1.msra.mxu0 0.0
      %810 = vmatprep.subr.mxu0 0.0
      %811 = vmatpush1.msra.mxu0 0.0
      %812 = vmatprep.subr.mxu0 0.0
      %v813 = vand.u32 %v394, 4294901760
      %v814 = vsub.f32 %v394, %v813
      %v815 = vand.u32 %v814, 4294901760
      %v816 = vsub.f32 %v814, %v815
      %v817 = vand.u32 %v816, 4294901760
      %818 = vmatpush1.msra.mxu0 %v817
      %819 = vmatprep.subr.mxu0 0.0
      %820 = vmatpush2.msra.mxu0 0.0
      %821 = vmatprep.subr.mxu0 0.0
      %822 = vmatpush2.msra.mxu0 0.0
      %823 = vmatprep.subr.mxu0 0.0
      %824 = vmatpush2.msra.mxu0 0.0
      %825 = vmatprep.subr.mxu0 0.0
      %826 = vmatpush2.msra.mxu0 0.0
      %827 = vmatprep.subr.mxu0 0.0
      %828 = vmatpush2.msra.mxu0 0.0
      %829 = vmatprep.subr.mxu0 0.0
      %830 = vmatpush2.msra.mxu0 0.0
      %831 = vmatprep.subr.mxu0 0.0
      %832 = vmatpush2.msra.mxu0 0.0
      %833 = vmatprep.subr.mxu0 0.0
      %834 = vmatpush2.msra.mxu0 0.0
      %835 = vmatprep.subr.mxu0 0.0
      %836 = vmatpush2.msra.mxu0 0.0
      %837 = vmatprep.subr.mxu0 0.0
      %838 = vmatpush2.msra.mxu0 0.0
      %839 = vmatprep.subr.mxu0 0.0
      %840 = vmatpush2.msra.mxu0 0.0
      %841 = vmatprep.subr.mxu0 0.0
      %842 = vmatpush2.msra.mxu0 0.0
      %843 = vmatprep.subr.mxu0 0.0
      %844 = vmatpush2.msra.mxu0 0.0
      %845 = vmatprep.subr.mxu0 0.0
      %846 = vmatpush2.msra.mxu0 0.0
      %847 = vmatprep.subr.mxu0 0.0
      %848 = vmatpush2.msra.mxu0 0.0
      %849 = vmatprep.subr.mxu0 0.0
      %850 = vmatpush2.msra.mxu0 0.0
      %851 = vmatprep.mubr.f32.mxu0 0.0
      %v852 = vand.u32 %v297, 4294901760
      %853 = vmatmul.mubr.f32.gmra.mxu0 %v852
      %v854 = vpop.f32.mrf.mxu0
      %v855 = vadd.f32 %v469, %v854
      %v856 = vpop.f32.mrf.mxu0
      %857 = vmatprep.mubr.f32.mxu0 0.0
      %v858 = vand.u32 %v300, 4294901760
      %859 = vmatmul.mubr.f32.gmra.mxu0 %v858
      %v860 = vpop.f32.mrf.mxu0
      %v861 = vadd.f32 %v479, %v860
      %v862 = vpop.f32.mrf.mxu0
      %863 = vmatprep.mubr.f32.mxu0 0.0
      %v864 = vand.u32 %v303, 4294901760
      %865 = vmatmul.mubr.f32.gmra.mxu0 %v864
      %v866 = vpop.f32.mrf.mxu0
      %v867 = vadd.f32 %v489, %v866
      %v868 = vpop.f32.mrf.mxu0
      %869 = vmatprep.mubr.f32.mxu0 0.0
      %v870 = vand.u32 %v306, 4294901760
      %871 = vmatmul.mubr.f32.gmra.mxu0 %v870
      %v872 = vpop.f32.mrf.mxu0
      %v873 = vadd.f32 %v499, %v872
      %v874 = vpop.f32.mrf.mxu0
      %875 = vmatprep.mubr.f32.mxu0 0.0
      %v876 = vand.u32 %v309, 4294901760
      %877 = vmatmul.mubr.f32.gmra.mxu0 %v876
      %v878 = vpop.f32.mrf.mxu0
      %v879 = vadd.f32 %v509, %v878
      %v880 = vpop.f32.mrf.mxu0
      %881 = vmatprep.mubr.f32.mxu0 0.0
      %v882 = vand.u32 %v312, 4294901760
      %883 = vmatmul.mubr.f32.gmra.mxu0 %v882
      %v884 = vpop.f32.mrf.mxu0
      %v885 = vadd.f32 %v519, %v884
      %v886 = vpop.f32.mrf.mxu0
      %887 = vmatprep.mubr.f32.mxu0 0.0
      %v888 = vand.u32 %v315, 4294901760
      %889 = vmatmul.mubr.f32.gmra.mxu0 %v888
      %v890 = vpop.f32.mrf.mxu0
      %v891 = vadd.f32 %v529, %v890
      %v892 = vpop.f32.mrf.mxu0
      %893 = vmatprep.mubr.f32.mxu0 0.0
      %v894 = vand.u32 %v318, 4294901760
      %895 = vmatmul.mubr.f32.gmra.mxu0 %v894
      %v896 = vpop.f32.mrf.mxu0
      %v897 = vadd.f32 %v539, %v896
      %v898 = vpop.f32.mrf.mxu0
      %899 = vmatprep.mubr.f32.mxu0 0.0
      %v900 = vand.u32 %v321, 4294901760
      %901 = vmatmul.mubr.f32.gmra.mxu0 %v900
      %v902 = vpop.f32.mrf.mxu0
      %v903 = vadd.f32 %v549, %v902
      %v904 = vpop.f32.mrf.mxu0
      %905 = vmatprep.mubr.f32.mxu0 0.0
      %v906 = vand.u32 %v324, 4294901760
      %907 = vmatmul.mubr.f32.gmra.mxu0 %v906
      %v908 = vpop.f32.mrf.mxu0
      %v909 = vadd.f32 %v559, %v908
      %v910 = vpop.f32.mrf.mxu0
      %911 = vmatprep.mubr.f32.mxu0 0.0
      %v912 = vand.u32 %v327, 4294901760
      %913 = vmatmul.mubr.f32.gmra.mxu0 %v912
      %v914 = vpop.f32.mrf.mxu0
      %v915 = vadd.f32 %v569, %v914
      %v916 = vpop.f32.mrf.mxu0
      %917 = vmatprep.mubr.f32.mxu0 0.0
      %v918 = vand.u32 %v330, 4294901760
      %919 = vmatmul.mubr.f32.gmra.mxu0 %v918
      %v920 = vpop.f32.mrf.mxu0
      %v921 = vadd.f32 %v579, %v920
      %v922 = vpop.f32.mrf.mxu0
      %923 = vmatprep.mubr.f32.mxu0 0.0
      %v924 = vand.u32 %v333, 4294901760
      %925 = vmatmul.mubr.f32.gmra.mxu0 %v924
      %v926 = vpop.f32.mrf.mxu0
      %v927 = vadd.f32 %v589, %v926
      %v928 = vpop.f32.mrf.mxu0
      %929 = vmatprep.mubr.f32.mxu0 0.0
      %v930 = vand.u32 %v336, 4294901760
      %931 = vmatmul.mubr.f32.gmra.mxu0 %v930
      %v932 = vpop.f32.mrf.mxu0
      %v933 = vadd.f32 %v599, %v932
      %v934 = vpop.f32.mrf.mxu0
      %935 = vmatprep.mubr.f32.mxu0 0.0
      %v936 = vand.u32 %v339, 4294901760
      %937 = vmatmul.mubr.f32.gmra.mxu0 %v936
      %v938 = vpop.f32.mrf.mxu0
      %v939 = vadd.f32 %v609, %v938
      %v940 = vpop.f32.mrf.mxu0
      %941 = vmatprep.mubr.f32.mxu0 0.0
      %v942 = vand.u32 %v342, 4294901760
      %943 = vmatmul.mubr.f32.gmra.mxu0 %v942
      %v944 = vpop.f32.mrf.mxu0
      %v945 = vadd.f32 %v619, %v944
      %v946 = vpop.f32.mrf.mxu0
      %947 = vmatprep.mubr.f32.mxu0 0.0
      %v948 = vand.u32 %v345, 4294901760
      %949 = vmatmul.mubr.f32.gmra.mxu0 %v948
      %v950 = vpop.f32.mrf.mxu0
      %v951 = vadd.f32 %v629, %v950
      %v952 = vpop.f32.mrf.mxu0
      %953 = vmatprep.mubr.f32.mxu0 0.0
      %v954 = vand.u32 %v348, 4294901760
      %955 = vmatmul.mubr.f32.gmra.mxu0 %v954
      %v956 = vpop.f32.mrf.mxu0
      %v957 = vadd.f32 %v639, %v956
      %v958 = vpop.f32.mrf.mxu0
      %959 = vmatprep.mubr.f32.mxu0 0.0
      %v960 = vand.u32 %v351, 4294901760
      %961 = vmatmul.mubr.f32.gmra.mxu0 %v960
      %v962 = vpop.f32.mrf.mxu0
      %v963 = vadd.f32 %v649, %v962
      %v964 = vpop.f32.mrf.mxu0
      %965 = vmatprep.mubr.f32.mxu0 0.0
      %v966 = vand.u32 %v354, 4294901760
      %967 = vmatmul.mubr.f32.gmra.mxu0 %v966
      %v968 = vpop.f32.mrf.mxu0
      %v969 = vadd.f32 %v659, %v968
      %v970 = vpop.f32.mrf.mxu0
      %971 = vmatprep.mubr.f32.mxu0 0.0
      %v972 = vand.u32 %v357, 4294901760
      %973 = vmatmul.mubr.f32.gmra.mxu0 %v972
      %v974 = vpop.f32.mrf.mxu0
      %v975 = vadd.f32 %v669, %v974
      %v976 = vpop.f32.mrf.mxu0
      %977 = vmatprep.mubr.f32.mxu0 0.0
      %v978 = vand.u32 %v360, 4294901760
      %979 = vmatmul.mubr.f32.gmra.mxu0 %v978
      %v980 = vpop.f32.mrf.mxu0
      %v981 = vadd.f32 %v679, %v980
      %v982 = vpop.f32.mrf.mxu0
      %983 = vmatprep.mubr.f32.mxu0 0.0
      %v984 = vand.u32 %v363, 4294901760
      %985 = vmatmul.mubr.f32.gmra.mxu0 %v984
      %v986 = vpop.f32.mrf.mxu0
      %v987 = vadd.f32 %v689, %v986
      %v988 = vpop.f32.mrf.mxu0
      %989 = vmatprep.mubr.f32.mxu0 0.0
      %v990 = vand.u32 %v366, 4294901760
      %991 = vmatmul.mubr.f32.gmra.mxu0 %v990
      %v992 = vpop.f32.mrf.mxu0
      %v993 = vadd.f32 %v699, %v992
      %v994 = vpop.f32.mrf.mxu0
      %995 = vmatprep.mubr.f32.mxu0 0.0
      %v996 = vand.u32 %v369, 4294901760
      %997 = vmatmul.mubr.f32.gmra.mxu0 %v996
      %v998 = vpop.f32.mrf.mxu0
      %v999 = vadd.f32 %v709, %v998
      %v1000 = vpop.f32.mrf.mxu0
      %1001 = vmatprep.mubr.f32.mxu0 0.0
      %v1002 = vand.u32 %v372, 4294901760
      %1003 = vmatmul.mubr.f32.gmra.mxu0 %v1002
      %v1004 = vpop.f32.mrf.mxu0
      %v1005 = vadd.f32 %v719, %v1004
      %v1006 = vpop.f32.mrf.mxu0
      %1007 = vmatprep.mubr.f32.mxu0 0.0
      %v1008 = vand.u32 %v375, 4294901760
      %1009 = vmatmul.mubr.f32.gmra.mxu0 %v1008
      %v1010 = vpop.f32.mrf.mxu0
      %v1011 = vadd.f32 %v729, %v1010
      %v1012 = vpop.f32.mrf.mxu0
      %1013 = vmatprep.mubr.f32.mxu0 0.0
      %v1014 = vand.u32 %v378, 4294901760
      %1015 = vmatmul.mubr.f32.gmra.mxu0 %v1014
      %v1016 = vpop.f32.mrf.mxu0
      %v1017 = vadd.f32 %v739, %v1016
      %v1018 = vpop.f32.mrf.mxu0
      %1019 = vmatprep.mubr.f32.mxu0 0.0
      %v1020 = vand.u32 %v381, 4294901760
      %1021 = vmatmul.mubr.f32.gmra.mxu0 %v1020
      %v1022 = vpop.f32.mrf.mxu0
      %v1023 = vadd.f32 %v749, %v1022
      %v1024 = vpop.f32.mrf.mxu0
      %1025 = vmatprep.mubr.f32.mxu0 0.0
      %v1026 = vand.u32 %v384, 4294901760
      %1027 = vmatmul.mubr.f32.gmra.mxu0 %v1026
      %v1028 = vpop.f32.mrf.mxu0
      %v1029 = vadd.f32 %v759, %v1028
      %v1030 = vpop.f32.mrf.mxu0
      %1031 = vmatprep.mubr.f32.mxu0 0.0
      %v1032 = vand.u32 %v387, 4294901760
      %1033 = vmatmul.mubr.f32.gmra.mxu0 %v1032
      %v1034 = vpop.f32.mrf.mxu0
      %v1035 = vadd.f32 %v769, %v1034
      %v1036 = vpop.f32.mrf.mxu0
      %1037 = vmatprep.mubr.f32.mxu0 0.0
      %v1038 = vand.u32 %v390, 4294901760
      %1039 = vmatmul.mubr.f32.gmra.mxu0 %v1038
      %v1040 = vpop.f32.mrf.mxu0
      %v1041 = vadd.f32 %v779, %v1040
      %v1042 = vpop.f32.mrf.mxu0
      %1043 = vdwg.mxu0
      %1044 = vmatprep.subr.mxu0 0.0
      %1045 = vmatpush1.msra.mxu0 0.0
      %1046 = vmatprep.subr.mxu0 0.0
      %1047 = vmatpush1.msra.mxu0 0.0
      %1048 = vmatprep.subr.mxu0 0.0
      %1049 = vmatpush1.msra.mxu0 0.0
      %1050 = vmatprep.subr.mxu0 0.0
      %1051 = vmatpush1.msra.mxu0 0.0
      %1052 = vmatprep.subr.mxu0 0.0
      %1053 = vmatpush1.msra.mxu0 0.0
      %1054 = vmatprep.subr.mxu0 0.0
      %1055 = vmatpush1.msra.mxu0 0.0
      %1056 = vmatprep.subr.mxu0 0.0
      %1057 = vmatpush1.msra.mxu0 0.0
      %1058 = vmatprep.subr.mxu0 0.0
      %1059 = vmatpush1.msra.mxu0 0.0
      %1060 = vmatprep.subr.mxu0 0.0
      %1061 = vmatpush1.msra.mxu0 0.0
      %1062 = vmatprep.subr.mxu0 0.0
      %1063 = vmatpush1.msra.mxu0 0.0
      %1064 = vmatprep.subr.mxu0 0.0
      %1065 = vmatpush1.msra.mxu0 0.0
      %1066 = vmatprep.subr.mxu0 0.0
      %1067 = vmatpush1.msra.mxu0 0.0
      %1068 = vmatprep.subr.mxu0 0.0
      %1069 = vmatpush1.msra.mxu0 0.0
      %1070 = vmatprep.subr.mxu0 0.0
      %1071 = vmatpush1.msra.mxu0 0.0
      %1072 = vmatprep.subr.mxu0 0.0
      %1073 = vmatpush1.msra.mxu0 0.0
      %1074 = vmatprep.subr.mxu0 0.0
      %v1075 = vand.u32 %v394, 4294901760
      %v1076 = vsub.f32 %v394, %v1075
      %1077 = vmatpush1.msra.mxu0 %v1076
      %1078 = vmatprep.subr.mxu0 0.0
      %1079 = vmatpush2.msra.mxu0 0.0
      %1080 = vmatprep.subr.mxu0 0.0
      %1081 = vmatpush2.msra.mxu0 0.0
      %1082 = vmatprep.subr.mxu0 0.0
      %1083 = vmatpush2.msra.mxu0 0.0
      %1084 = vmatprep.subr.mxu0 0.0
      %1085 = vmatpush2.msra.mxu0 0.0
      %1086 = vmatprep.subr.mxu0 0.0
      %1087 = vmatpush2.msra.mxu0 0.0
      %1088 = vmatprep.subr.mxu0 0.0
      %1089 = vmatpush2.msra.mxu0 0.0
      %1090 = vmatprep.subr.mxu0 0.0
      %1091 = vmatpush2.msra.mxu0 0.0
      %1092 = vmatprep.subr.mxu0 0.0
      %1093 = vmatpush2.msra.mxu0 0.0
      %1094 = vmatprep.subr.mxu0 0.0
      %1095 = vmatpush2.msra.mxu0 0.0
      %1096 = vmatprep.subr.mxu0 0.0
      %1097 = vmatpush2.msra.mxu0 0.0
      %1098 = vmatprep.subr.mxu0 0.0
      %1099 = vmatpush2.msra.mxu0 0.0
      %1100 = vmatprep.subr.mxu0 0.0
      %1101 = vmatpush2.msra.mxu0 0.0
      %1102 = vmatprep.subr.mxu0 0.0
      %1103 = vmatpush2.msra.mxu0 0.0
      %1104 = vmatprep.subr.mxu0 0.0
      %1105 = vmatpush2.msra.mxu0 0.0
      %1106 = vmatprep.subr.mxu0 0.0
      %1107 = vmatpush2.msra.mxu0 0.0
      %1108 = vmatprep.subr.mxu0 0.0
      %1109 = vmatpush2.msra.mxu0 0.0
      %1110 = vmatprep.mubr.f32.mxu0 0.0
      %v1111 = vand.u32 %v297, 4294901760
      %v1112 = vsub.f32 %v297, %v1111
      %1113 = vmatmul.mubr.f32.gmra.mxu0 %v1112
      %v1114 = vpop.f32.mrf.mxu0
      %v1115 = vadd.f32 %v855, %v1114
      %v1116 = vpop.f32.mrf.mxu0
      %1117 = vmatprep.mubr.f32.mxu0 0.0
      %v1118 = vand.u32 %v300, 4294901760
      %v1119 = vsub.f32 %v300, %v1118
      %1120 = vmatmul.mubr.f32.gmra.mxu0 %v1119
      %v1121 = vpop.f32.mrf.mxu0
      %v1122 = vadd.f32 %v861, %v1121
      %v1123 = vpop.f32.mrf.mxu0
      %1124 = vmatprep.mubr.f32.mxu0 0.0
      %v1125 = vand.u32 %v303, 4294901760
      %v1126 = vsub.f32 %v303, %v1125
      %1127 = vmatmul.mubr.f32.gmra.mxu0 %v1126
      %v1128 = vpop.f32.mrf.mxu0
      %v1129 = vadd.f32 %v867, %v1128
      %v1130 = vpop.f32.mrf.mxu0
      %1131 = vmatprep.mubr.f32.mxu0 0.0
      %v1132 = vand.u32 %v306, 4294901760
      %v1133 = vsub.f32 %v306, %v1132
      %1134 = vmatmul.mubr.f32.gmra.mxu0 %v1133
      %v1135 = vpop.f32.mrf.mxu0
      %v1136 = vadd.f32 %v873, %v1135
      %v1137 = vpop.f32.mrf.mxu0
      %1138 = vmatprep.mubr.f32.mxu0 0.0
      %v1139 = vand.u32 %v309, 4294901760
      %v1140 = vsub.f32 %v309, %v1139
      %1141 = vmatmul.mubr.f32.gmra.mxu0 %v1140
      %v1142 = vpop.f32.mrf.mxu0
      %v1143 = vadd.f32 %v879, %v1142
      %v1144 = vpop.f32.mrf.mxu0
      %1145 = vmatprep.mubr.f32.mxu0 0.0
      %v1146 = vand.u32 %v312, 4294901760
      %v1147 = vsub.f32 %v312, %v1146
      %1148 = vmatmul.mubr.f32.gmra.mxu0 %v1147
      %v1149 = vpop.f32.mrf.mxu0
      %v1150 = vadd.f32 %v885, %v1149
      %v1151 = vpop.f32.mrf.mxu0
      %1152 = vmatprep.mubr.f32.mxu0 0.0
      %v1153 = vand.u32 %v315, 4294901760
      %v1154 = vsub.f32 %v315, %v1153
      %1155 = vmatmul.mubr.f32.gmra.mxu0 %v1154
      %v1156 = vpop.f32.mrf.mxu0
      %v1157 = vadd.f32 %v891, %v1156
      %v1158 = vpop.f32.mrf.mxu0
      %1159 = vmatprep.mubr.f32.mxu0 0.0
      %v1160 = vand.u32 %v318, 4294901760
      %v1161 = vsub.f32 %v318, %v1160
      %1162 = vmatmul.mubr.f32.gmra.mxu0 %v1161
      %v1163 = vpop.f32.mrf.mxu0
      %v1164 = vadd.f32 %v897, %v1163
      %v1165 = vpop.f32.mrf.mxu0
      %1166 = vmatprep.mubr.f32.mxu0 0.0
      %v1167 = vand.u32 %v321, 4294901760
      %v1168 = vsub.f32 %v321, %v1167
      %1169 = vmatmul.mubr.f32.gmra.mxu0 %v1168
      %v1170 = vpop.f32.mrf.mxu0
      %v1171 = vadd.f32 %v903, %v1170
      %v1172 = vpop.f32.mrf.mxu0
      %1173 = vmatprep.mubr.f32.mxu0 0.0
      %v1174 = vand.u32 %v324, 4294901760
      %v1175 = vsub.f32 %v324, %v1174
      %1176 = vmatmul.mubr.f32.gmra.mxu0 %v1175
      %v1177 = vpop.f32.mrf.mxu0
      %v1178 = vadd.f32 %v909, %v1177
      %v1179 = vpop.f32.mrf.mxu0
      %1180 = vmatprep.mubr.f32.mxu0 0.0
      %v1181 = vand.u32 %v327, 4294901760
      %v1182 = vsub.f32 %v327, %v1181
      %1183 = vmatmul.mubr.f32.gmra.mxu0 %v1182
      %v1184 = vpop.f32.mrf.mxu0
      %v1185 = vadd.f32 %v915, %v1184
      %v1186 = vpop.f32.mrf.mxu0
      %1187 = vmatprep.mubr.f32.mxu0 0.0
      %v1188 = vand.u32 %v330, 4294901760
      %v1189 = vsub.f32 %v330, %v1188
      %1190 = vmatmul.mubr.f32.gmra.mxu0 %v1189
      %v1191 = vpop.f32.mrf.mxu0
      %v1192 = vadd.f32 %v921, %v1191
      %v1193 = vpop.f32.mrf.mxu0
      %1194 = vmatprep.mubr.f32.mxu0 0.0
      %v1195 = vand.u32 %v333, 4294901760
      %v1196 = vsub.f32 %v333, %v1195
      %1197 = vmatmul.mubr.f32.gmra.mxu0 %v1196
      %v1198 = vpop.f32.mrf.mxu0
      %v1199 = vadd.f32 %v927, %v1198
      %v1200 = vpop.f32.mrf.mxu0
      %1201 = vmatprep.mubr.f32.mxu0 0.0
      %v1202 = vand.u32 %v336, 4294901760
      %v1203 = vsub.f32 %v336, %v1202
      %1204 = vmatmul.mubr.f32.gmra.mxu0 %v1203
      %v1205 = vpop.f32.mrf.mxu0
      %v1206 = vadd.f32 %v933, %v1205
      %v1207 = vpop.f32.mrf.mxu0
      %1208 = vmatprep.mubr.f32.mxu0 0.0
      %v1209 = vand.u32 %v339, 4294901760
      %v1210 = vsub.f32 %v339, %v1209
      %1211 = vmatmul.mubr.f32.gmra.mxu0 %v1210
      %v1212 = vpop.f32.mrf.mxu0
      %v1213 = vadd.f32 %v939, %v1212
      %v1214 = vpop.f32.mrf.mxu0
      %1215 = vmatprep.mubr.f32.mxu0 0.0
      %v1216 = vand.u32 %v342, 4294901760
      %v1217 = vsub.f32 %v342, %v1216
      %1218 = vmatmul.mubr.f32.gmra.mxu0 %v1217
      %v1219 = vpop.f32.mrf.mxu0
      %v1220 = vadd.f32 %v945, %v1219
      %v1221 = vpop.f32.mrf.mxu0
      %1222 = vmatprep.mubr.f32.mxu0 0.0
      %v1223 = vand.u32 %v345, 4294901760
      %v1224 = vsub.f32 %v345, %v1223
      %1225 = vmatmul.mubr.f32.gmra.mxu0 %v1224
      %v1226 = vpop.f32.mrf.mxu0
      %v1227 = vadd.f32 %v951, %v1226
      %v1228 = vpop.f32.mrf.mxu0
      %1229 = vmatprep.mubr.f32.mxu0 0.0
      %v1230 = vand.u32 %v348, 4294901760
      %v1231 = vsub.f32 %v348, %v1230
      %1232 = vmatmul.mubr.f32.gmra.mxu0 %v1231
      %v1233 = vpop.f32.mrf.mxu0
      %v1234 = vadd.f32 %v957, %v1233
      %v1235 = vpop.f32.mrf.mxu0
      %1236 = vmatprep.mubr.f32.mxu0 0.0
      %v1237 = vand.u32 %v351, 4294901760
      %v1238 = vsub.f32 %v351, %v1237
      %1239 = vmatmul.mubr.f32.gmra.mxu0 %v1238
      %v1240 = vpop.f32.mrf.mxu0
      %v1241 = vadd.f32 %v963, %v1240
      %v1242 = vpop.f32.mrf.mxu0
      %1243 = vmatprep.mubr.f32.mxu0 0.0
      %v1244 = vand.u32 %v354, 4294901760
      %v1245 = vsub.f32 %v354, %v1244
      %1246 = vmatmul.mubr.f32.gmra.mxu0 %v1245
      %v1247 = vpop.f32.mrf.mxu0
      %v1248 = vadd.f32 %v969, %v1247
      %v1249 = vpop.f32.mrf.mxu0
      %1250 = vmatprep.mubr.f32.mxu0 0.0
      %v1251 = vand.u32 %v357, 4294901760
      %v1252 = vsub.f32 %v357, %v1251
      %1253 = vmatmul.mubr.f32.gmra.mxu0 %v1252
      %v1254 = vpop.f32.mrf.mxu0
      %v1255 = vadd.f32 %v975, %v1254
      %v1256 = vpop.f32.mrf.mxu0
      %1257 = vmatprep.mubr.f32.mxu0 0.0
      %v1258 = vand.u32 %v360, 4294901760
      %v1259 = vsub.f32 %v360, %v1258
      %1260 = vmatmul.mubr.f32.gmra.mxu0 %v1259
      %v1261 = vpop.f32.mrf.mxu0
      %v1262 = vadd.f32 %v981, %v1261
      %v1263 = vpop.f32.mrf.mxu0
      %1264 = vmatprep.mubr.f32.mxu0 0.0
      %v1265 = vand.u32 %v363, 4294901760
      %v1266 = vsub.f32 %v363, %v1265
      %1267 = vmatmul.mubr.f32.gmra.mxu0 %v1266
      %v1268 = vpop.f32.mrf.mxu0
      %v1269 = vadd.f32 %v987, %v1268
      %v1270 = vpop.f32.mrf.mxu0
      %1271 = vmatprep.mubr.f32.mxu0 0.0
      %v1272 = vand.u32 %v366, 4294901760
      %v1273 = vsub.f32 %v366, %v1272
      %1274 = vmatmul.mubr.f32.gmra.mxu0 %v1273
      %v1275 = vpop.f32.mrf.mxu0
      %v1276 = vadd.f32 %v993, %v1275
      %v1277 = vpop.f32.mrf.mxu0
      %1278 = vmatprep.mubr.f32.mxu0 0.0
      %v1279 = vand.u32 %v369, 4294901760
      %v1280 = vsub.f32 %v369, %v1279
      %1281 = vmatmul.mubr.f32.gmra.mxu0 %v1280
      %v1282 = vpop.f32.mrf.mxu0
      %v1283 = vadd.f32 %v999, %v1282
      %v1284 = vpop.f32.mrf.mxu0
      %1285 = vmatprep.mubr.f32.mxu0 0.0
      %v1286 = vand.u32 %v372, 4294901760
      %v1287 = vsub.f32 %v372, %v1286
      %1288 = vmatmul.mubr.f32.gmra.mxu0 %v1287
      %v1289 = vpop.f32.mrf.mxu0
      %v1290 = vadd.f32 %v1005, %v1289
      %v1291 = vpop.f32.mrf.mxu0
      %1292 = vmatprep.mubr.f32.mxu0 0.0
      %v1293 = vand.u32 %v375, 4294901760
      %v1294 = vsub.f32 %v375, %v1293
      %1295 = vmatmul.mubr.f32.gmra.mxu0 %v1294
      %v1296 = vpop.f32.mrf.mxu0
      %v1297 = vadd.f32 %v1011, %v1296
      %v1298 = vpop.f32.mrf.mxu0
      %1299 = vmatprep.mubr.f32.mxu0 0.0
      %v1300 = vand.u32 %v378, 4294901760
      %v1301 = vsub.f32 %v378, %v1300
      %1302 = vmatmul.mubr.f32.gmra.mxu0 %v1301
      %v1303 = vpop.f32.mrf.mxu0
      %v1304 = vadd.f32 %v1017, %v1303
      %v1305 = vpop.f32.mrf.mxu0
      %1306 = vmatprep.mubr.f32.mxu0 0.0
      %v1307 = vand.u32 %v381, 4294901760
      %v1308 = vsub.f32 %v381, %v1307
      %1309 = vmatmul.mubr.f32.gmra.mxu0 %v1308
      %v1310 = vpop.f32.mrf.mxu0
      %v1311 = vadd.f32 %v1023, %v1310
      %v1312 = vpop.f32.mrf.mxu0
      %1313 = vmatprep.mubr.f32.mxu0 0.0
      %v1314 = vand.u32 %v384, 4294901760
      %v1315 = vsub.f32 %v384, %v1314
      %1316 = vmatmul.mubr.f32.gmra.mxu0 %v1315
      %v1317 = vpop.f32.mrf.mxu0
      %v1318 = vadd.f32 %v1029, %v1317
      %v1319 = vpop.f32.mrf.mxu0
      %1320 = vmatprep.mubr.f32.mxu0 0.0
      %v1321 = vand.u32 %v387, 4294901760
      %v1322 = vsub.f32 %v387, %v1321
      %1323 = vmatmul.mubr.f32.gmra.mxu0 %v1322
      %v1324 = vpop.f32.mrf.mxu0
      %v1325 = vadd.f32 %v1035, %v1324
      %v1326 = vpop.f32.mrf.mxu0
      %1327 = vmatprep.mubr.f32.mxu0 0.0
      %v1328 = vand.u32 %v390, 4294901760
      %v1329 = vsub.f32 %v390, %v1328
      %1330 = vmatmul.mubr.f32.gmra.mxu0 %v1329
      %v1331 = vpop.f32.mrf.mxu0
      %v1332 = vadd.f32 %v1041, %v1331
      %v1333 = vpop.f32.mrf.mxu0
      %1334 = vdwg.mxu0
      %1335 = vmatprep.subr.mxu0 0.0
      %1336 = vmatpush1.msra.mxu0 0.0
      %1337 = vmatprep.subr.mxu0 0.0
      %1338 = vmatpush1.msra.mxu0 0.0
      %1339 = vmatprep.subr.mxu0 0.0
      %1340 = vmatpush1.msra.mxu0 0.0
      %1341 = vmatprep.subr.mxu0 0.0
      %1342 = vmatpush1.msra.mxu0 0.0
      %1343 = vmatprep.subr.mxu0 0.0
      %1344 = vmatpush1.msra.mxu0 0.0
      %1345 = vmatprep.subr.mxu0 0.0
      %1346 = vmatpush1.msra.mxu0 0.0
      %1347 = vmatprep.subr.mxu0 0.0
      %1348 = vmatpush1.msra.mxu0 0.0
      %1349 = vmatprep.subr.mxu0 0.0
      %1350 = vmatpush1.msra.mxu0 0.0
      %1351 = vmatprep.subr.mxu0 0.0
      %1352 = vmatpush1.msra.mxu0 0.0
      %1353 = vmatprep.subr.mxu0 0.0
      %1354 = vmatpush1.msra.mxu0 0.0
      %1355 = vmatprep.subr.mxu0 0.0
      %1356 = vmatpush1.msra.mxu0 0.0
      %1357 = vmatprep.subr.mxu0 0.0
      %1358 = vmatpush1.msra.mxu0 0.0
      %1359 = vmatprep.subr.mxu0 0.0
      %1360 = vmatpush1.msra.mxu0 0.0
      %1361 = vmatprep.subr.mxu0 0.0
      %1362 = vmatpush1.msra.mxu0 0.0
      %1363 = vmatprep.subr.mxu0 0.0
      %1364 = vmatpush1.msra.mxu0 0.0
      %1365 = vmatprep.subr.mxu0 0.0
      %v1366 = vand.u32 %v394, 4294901760
      %1367 = vmatpush1.msra.mxu0 %v1366
      %1368 = vmatprep.subr.mxu0 0.0
      %1369 = vmatpush2.msra.mxu0 0.0
      %1370 = vmatprep.subr.mxu0 0.0
      %1371 = vmatpush2.msra.mxu0 0.0
      %1372 = vmatprep.subr.mxu0 0.0
      %1373 = vmatpush2.msra.mxu0 0.0
      %1374 = vmatprep.subr.mxu0 0.0
      %1375 = vmatpush2.msra.mxu0 0.0
      %1376 = vmatprep.subr.mxu0 0.0
      %1377 = vmatpush2.msra.mxu0 0.0
      %1378 = vmatprep.subr.mxu0 0.0
      %1379 = vmatpush2.msra.mxu0 0.0
      %1380 = vmatprep.subr.mxu0 0.0
      %1381 = vmatpush2.msra.mxu0 0.0
      %1382 = vmatprep.subr.mxu0 0.0
      %1383 = vmatpush2.msra.mxu0 0.0
      %1384 = vmatprep.subr.mxu0 0.0
      %1385 = vmatpush2.msra.mxu0 0.0
      %1386 = vmatprep.subr.mxu0 0.0
      %1387 = vmatpush2.msra.mxu0 0.0
      %1388 = vmatprep.subr.mxu0 0.0
      %1389 = vmatpush2.msra.mxu0 0.0
      %1390 = vmatprep.subr.mxu0 0.0
      %1391 = vmatpush2.msra.mxu0 0.0
      %1392 = vmatprep.subr.mxu0 0.0
      %1393 = vmatpush2.msra.mxu0 0.0
      %1394 = vmatprep.subr.mxu0 0.0
      %1395 = vmatpush2.msra.mxu0 0.0
      %1396 = vmatprep.subr.mxu0 0.0
      %1397 = vmatpush2.msra.mxu0 0.0
      %1398 = vmatprep.subr.mxu0 0.0
      %1399 = vmatpush2.msra.mxu0 0.0
      %1400 = vmatprep.mubr.f32.mxu0 0.0
      %v1401 = vand.u32 %v297, 4294901760
      %v1402 = vsub.f32 %v297, %v1401
      %v1403 = vand.u32 %v1402, 4294901760
      %1404 = vmatmul.mubr.f32.gmra.mxu0 %v1403
      %v1405 = vpop.f32.mrf.mxu0
      %v1406 = vadd.f32 %v1115, %v1405
      %v1407 = vpop.f32.mrf.mxu0
      %1408 = vmatprep.mubr.f32.mxu0 0.0
      %v1409 = vand.u32 %v300, 4294901760
      %v1410 = vsub.f32 %v300, %v1409
      %v1411 = vand.u32 %v1410, 4294901760
      %1412 = vmatmul.mubr.f32.gmra.mxu0 %v1411
      %v1413 = vpop.f32.mrf.mxu0
      %v1414 = vadd.f32 %v1122, %v1413
      %v1415 = vpop.f32.mrf.mxu0
      %1416 = vmatprep.mubr.f32.mxu0 0.0
      %v1417 = vand.u32 %v303, 4294901760
      %v1418 = vsub.f32 %v303, %v1417
      %v1419 = vand.u32 %v1418, 4294901760
      %1420 = vmatmul.mubr.f32.gmra.mxu0 %v1419
      %v1421 = vpop.f32.mrf.mxu0
      %v1422 = vadd.f32 %v1129, %v1421
      %v1423 = vpop.f32.mrf.mxu0
      %1424 = vmatprep.mubr.f32.mxu0 0.0
      %v1425 = vand.u32 %v306, 4294901760
      %v1426 = vsub.f32 %v306, %v1425
      %v1427 = vand.u32 %v1426, 4294901760
      %1428 = vmatmul.mubr.f32.gmra.mxu0 %v1427
      %v1429 = vpop.f32.mrf.mxu0
      %v1430 = vadd.f32 %v1136, %v1429
      %v1431 = vpop.f32.mrf.mxu0
      %1432 = vmatprep.mubr.f32.mxu0 0.0
      %v1433 = vand.u32 %v309, 4294901760
      %v1434 = vsub.f32 %v309, %v1433
      %v1435 = vand.u32 %v1434, 4294901760
      %1436 = vmatmul.mubr.f32.gmra.mxu0 %v1435
      %v1437 = vpop.f32.mrf.mxu0
      %v1438 = vadd.f32 %v1143, %v1437
      %v1439 = vpop.f32.mrf.mxu0
      %1440 = vmatprep.mubr.f32.mxu0 0.0
      %v1441 = vand.u32 %v312, 4294901760
      %v1442 = vsub.f32 %v312, %v1441
      %v1443 = vand.u32 %v1442, 4294901760
      %1444 = vmatmul.mubr.f32.gmra.mxu0 %v1443
      %v1445 = vpop.f32.mrf.mxu0
      %v1446 = vadd.f32 %v1150, %v1445
      %v1447 = vpop.f32.mrf.mxu0
      %1448 = vmatprep.mubr.f32.mxu0 0.0
      %v1449 = vand.u32 %v315, 4294901760
      %v1450 = vsub.f32 %v315, %v1449
      %v1451 = vand.u32 %v1450, 4294901760
      %1452 = vmatmul.mubr.f32.gmra.mxu0 %v1451
      %v1453 = vpop.f32.mrf.mxu0
      %v1454 = vadd.f32 %v1157, %v1453
      %v1455 = vpop.f32.mrf.mxu0
      %1456 = vmatprep.mubr.f32.mxu0 0.0
      %v1457 = vand.u32 %v318, 4294901760
      %v1458 = vsub.f32 %v318, %v1457
      %v1459 = vand.u32 %v1458, 4294901760
      %1460 = vmatmul.mubr.f32.gmra.mxu0 %v1459
      %v1461 = vpop.f32.mrf.mxu0
      %v1462 = vadd.f32 %v1164, %v1461
      %v1463 = vpop.f32.mrf.mxu0
      %1464 = vmatprep.mubr.f32.mxu0 0.0
      %v1465 = vand.u32 %v321, 4294901760
      %v1466 = vsub.f32 %v321, %v1465
      %v1467 = vand.u32 %v1466, 4294901760
      %1468 = vmatmul.mubr.f32.gmra.mxu0 %v1467
      %v1469 = vpop.f32.mrf.mxu0
      %v1470 = vadd.f32 %v1171, %v1469
      %v1471 = vpop.f32.mrf.mxu0
      %1472 = vmatprep.mubr.f32.mxu0 0.0
      %v1473 = vand.u32 %v324, 4294901760
      %v1474 = vsub.f32 %v324, %v1473
      %v1475 = vand.u32 %v1474, 4294901760
      %1476 = vmatmul.mubr.f32.gmra.mxu0 %v1475
      %v1477 = vpop.f32.mrf.mxu0
      %v1478 = vadd.f32 %v1178, %v1477
      %v1479 = vpop.f32.mrf.mxu0
      %1480 = vmatprep.mubr.f32.mxu0 0.0
      %v1481 = vand.u32 %v327, 4294901760
      %v1482 = vsub.f32 %v327, %v1481
      %v1483 = vand.u32 %v1482, 4294901760
      %1484 = vmatmul.mubr.f32.gmra.mxu0 %v1483
      %v1485 = vpop.f32.mrf.mxu0
      %v1486 = vadd.f32 %v1185, %v1485
      %v1487 = vpop.f32.mrf.mxu0
      %1488 = vmatprep.mubr.f32.mxu0 0.0
      %v1489 = vand.u32 %v330, 4294901760
      %v1490 = vsub.f32 %v330, %v1489
      %v1491 = vand.u32 %v1490, 4294901760
      %1492 = vmatmul.mubr.f32.gmra.mxu0 %v1491
      %v1493 = vpop.f32.mrf.mxu0
      %v1494 = vadd.f32 %v1192, %v1493
      %v1495 = vpop.f32.mrf.mxu0
      %1496 = vmatprep.mubr.f32.mxu0 0.0
      %v1497 = vand.u32 %v333, 4294901760
      %v1498 = vsub.f32 %v333, %v1497
      %v1499 = vand.u32 %v1498, 4294901760
      %1500 = vmatmul.mubr.f32.gmra.mxu0 %v1499
      %v1501 = vpop.f32.mrf.mxu0
      %v1502 = vadd.f32 %v1199, %v1501
      %v1503 = vpop.f32.mrf.mxu0
      %1504 = vmatprep.mubr.f32.mxu0 0.0
      %v1505 = vand.u32 %v336, 4294901760
      %v1506 = vsub.f32 %v336, %v1505
      %v1507 = vand.u32 %v1506, 4294901760
      %1508 = vmatmul.mubr.f32.gmra.mxu0 %v1507
      %v1509 = vpop.f32.mrf.mxu0
      %v1510 = vadd.f32 %v1206, %v1509
      %v1511 = vpop.f32.mrf.mxu0
      %1512 = vmatprep.mubr.f32.mxu0 0.0
      %v1513 = vand.u32 %v339, 4294901760
      %v1514 = vsub.f32 %v339, %v1513
      %v1515 = vand.u32 %v1514, 4294901760
      %1516 = vmatmul.mubr.f32.gmra.mxu0 %v1515
      %v1517 = vpop.f32.mrf.mxu0
      %v1518 = vadd.f32 %v1213, %v1517
      %v1519 = vpop.f32.mrf.mxu0
      %1520 = vmatprep.mubr.f32.mxu0 0.0
      %v1521 = vand.u32 %v342, 4294901760
      %v1522 = vsub.f32 %v342, %v1521
      %v1523 = vand.u32 %v1522, 4294901760
      %1524 = vmatmul.mubr.f32.gmra.mxu0 %v1523
      %v1525 = vpop.f32.mrf.mxu0
      %v1526 = vadd.f32 %v1220, %v1525
      %v1527 = vpop.f32.mrf.mxu0
      %1528 = vmatprep.mubr.f32.mxu0 0.0
      %v1529 = vand.u32 %v345, 4294901760
      %v1530 = vsub.f32 %v345, %v1529
      %v1531 = vand.u32 %v1530, 4294901760
      %1532 = vmatmul.mubr.f32.gmra.mxu0 %v1531
      %v1533 = vpop.f32.mrf.mxu0
      %v1534 = vadd.f32 %v1227, %v1533
      %v1535 = vpop.f32.mrf.mxu0
      %1536 = vmatprep.mubr.f32.mxu0 0.0
      %v1537 = vand.u32 %v348, 4294901760
      %v1538 = vsub.f32 %v348, %v1537
      %v1539 = vand.u32 %v1538, 4294901760
      %1540 = vmatmul.mubr.f32.gmra.mxu0 %v1539
      %v1541 = vpop.f32.mrf.mxu0
      %v1542 = vadd.f32 %v1234, %v1541
      %v1543 = vpop.f32.mrf.mxu0
      %1544 = vmatprep.mubr.f32.mxu0 0.0
      %v1545 = vand.u32 %v351, 4294901760
      %v1546 = vsub.f32 %v351, %v1545
      %v1547 = vand.u32 %v1546, 4294901760
      %1548 = vmatmul.mubr.f32.gmra.mxu0 %v1547
      %v1549 = vpop.f32.mrf.mxu0
      %v1550 = vadd.f32 %v1241, %v1549
      %v1551 = vpop.f32.mrf.mxu0
      %1552 = vmatprep.mubr.f32.mxu0 0.0
      %v1553 = vand.u32 %v354, 4294901760
      %v1554 = vsub.f32 %v354, %v1553
      %v1555 = vand.u32 %v1554, 4294901760
      %1556 = vmatmul.mubr.f32.gmra.mxu0 %v1555
      %v1557 = vpop.f32.mrf.mxu0
      %v1558 = vadd.f32 %v1248, %v1557
      %v1559 = vpop.f32.mrf.mxu0
      %1560 = vmatprep.mubr.f32.mxu0 0.0
      %v1561 = vand.u32 %v357, 4294901760
      %v1562 = vsub.f32 %v357, %v1561
      %v1563 = vand.u32 %v1562, 4294901760
      %1564 = vmatmul.mubr.f32.gmra.mxu0 %v1563
      %v1565 = vpop.f32.mrf.mxu0
      %v1566 = vadd.f32 %v1255, %v1565
      %v1567 = vpop.f32.mrf.mxu0
      %1568 = vmatprep.mubr.f32.mxu0 0.0
      %v1569 = vand.u32 %v360, 4294901760
      %v1570 = vsub.f32 %v360, %v1569
      %v1571 = vand.u32 %v1570, 4294901760
      %1572 = vmatmul.mubr.f32.gmra.mxu0 %v1571
      %v1573 = vpop.f32.mrf.mxu0
      %v1574 = vadd.f32 %v1262, %v1573
      %v1575 = vpop.f32.mrf.mxu0
      %1576 = vmatprep.mubr.f32.mxu0 0.0
      %v1577 = vand.u32 %v363, 4294901760
      %v1578 = vsub.f32 %v363, %v1577
      %v1579 = vand.u32 %v1578, 4294901760
      %1580 = vmatmul.mubr.f32.gmra.mxu0 %v1579
      %v1581 = vpop.f32.mrf.mxu0
      %v1582 = vadd.f32 %v1269, %v1581
      %v1583 = vpop.f32.mrf.mxu0
      %1584 = vmatprep.mubr.f32.mxu0 0.0
      %v1585 = vand.u32 %v366, 4294901760
      %v1586 = vsub.f32 %v366, %v1585
      %v1587 = vand.u32 %v1586, 4294901760
      %1588 = vmatmul.mubr.f32.gmra.mxu0 %v1587
      %v1589 = vpop.f32.mrf.mxu0
      %v1590 = vadd.f32 %v1276, %v1589
      %v1591 = vpop.f32.mrf.mxu0
      %1592 = vmatprep.mubr.f32.mxu0 0.0
      %v1593 = vand.u32 %v369, 4294901760
      %v1594 = vsub.f32 %v369, %v1593
      %v1595 = vand.u32 %v1594, 4294901760
      %1596 = vmatmul.mubr.f32.gmra.mxu0 %v1595
      %v1597 = vpop.f32.mrf.mxu0
      %v1598 = vadd.f32 %v1283, %v1597
      %v1599 = vpop.f32.mrf.mxu0
      %1600 = vmatprep.mubr.f32.mxu0 0.0
      %v1601 = vand.u32 %v372, 4294901760
      %v1602 = vsub.f32 %v372, %v1601
      %v1603 = vand.u32 %v1602, 4294901760
      %1604 = vmatmul.mubr.f32.gmra.mxu0 %v1603
      %v1605 = vpop.f32.mrf.mxu0
      %v1606 = vadd.f32 %v1290, %v1605
      %v1607 = vpop.f32.mrf.mxu0
      %1608 = vmatprep.mubr.f32.mxu0 0.0
      %v1609 = vand.u32 %v375, 4294901760
      %v1610 = vsub.f32 %v375, %v1609
      %v1611 = vand.u32 %v1610, 4294901760
      %1612 = vmatmul.mubr.f32.gmra.mxu0 %v1611
      %v1613 = vpop.f32.mrf.mxu0
      %v1614 = vadd.f32 %v1297, %v1613
      %v1615 = vpop.f32.mrf.mxu0
      %1616 = vmatprep.mubr.f32.mxu0 0.0
      %v1617 = vand.u32 %v378, 4294901760
      %v1618 = vsub.f32 %v378, %v1617
      %v1619 = vand.u32 %v1618, 4294901760
      %1620 = vmatmul.mubr.f32.gmra.mxu0 %v1619
      %v1621 = vpop.f32.mrf.mxu0
      %v1622 = vadd.f32 %v1304, %v1621
      %v1623 = vpop.f32.mrf.mxu0
      %1624 = vmatprep.mubr.f32.mxu0 0.0
      %v1625 = vand.u32 %v381, 4294901760
      %v1626 = vsub.f32 %v381, %v1625
      %v1627 = vand.u32 %v1626, 4294901760
      %1628 = vmatmul.mubr.f32.gmra.mxu0 %v1627
      %v1629 = vpop.f32.mrf.mxu0
      %v1630 = vadd.f32 %v1311, %v1629
      %v1631 = vpop.f32.mrf.mxu0
      %1632 = vmatprep.mubr.f32.mxu0 0.0
      %v1633 = vand.u32 %v384, 4294901760
      %v1634 = vsub.f32 %v384, %v1633
      %v1635 = vand.u32 %v1634, 4294901760
      %1636 = vmatmul.mubr.f32.gmra.mxu0 %v1635
      %v1637 = vpop.f32.mrf.mxu0
      %v1638 = vadd.f32 %v1318, %v1637
      %v1639 = vpop.f32.mrf.mxu0
      %1640 = vmatprep.mubr.f32.mxu0 0.0
      %v1641 = vand.u32 %v387, 4294901760
      %v1642 = vsub.f32 %v387, %v1641
      %v1643 = vand.u32 %v1642, 4294901760
      %1644 = vmatmul.mubr.f32.gmra.mxu0 %v1643
      %v1645 = vpop.f32.mrf.mxu0
      %v1646 = vadd.f32 %v1325, %v1645
      %v1647 = vpop.f32.mrf.mxu0
      %1648 = vmatprep.mubr.f32.mxu0 0.0
      %v1649 = vand.u32 %v390, 4294901760
      %v1650 = vsub.f32 %v390, %v1649
      %v1651 = vand.u32 %v1650, 4294901760
      %1652 = vmatmul.mubr.f32.gmra.mxu0 %v1651
      %v1653 = vpop.f32.mrf.mxu0
      %v1654 = vadd.f32 %v1332, %v1653
      %v1655 = vpop.f32.mrf.mxu0
      %1656 = vdwg.mxu0
      %1657 = vmatprep.subr.mxu0 0.0
      %1658 = vmatpush1.msra.mxu0 0.0
      %1659 = vmatprep.subr.mxu0 0.0
      %1660 = vmatpush1.msra.mxu0 0.0
      %1661 = vmatprep.subr.mxu0 0.0
      %1662 = vmatpush1.msra.mxu0 0.0
      %1663 = vmatprep.subr.mxu0 0.0
      %1664 = vmatpush1.msra.mxu0 0.0
      %1665 = vmatprep.subr.mxu0 0.0
      %1666 = vmatpush1.msra.mxu0 0.0
      %1667 = vmatprep.subr.mxu0 0.0
      %1668 = vmatpush1.msra.mxu0 0.0
      %1669 = vmatprep.subr.mxu0 0.0
      %1670 = vmatpush1.msra.mxu0 0.0
      %1671 = vmatprep.subr.mxu0 0.0
      %1672 = vmatpush1.msra.mxu0 0.0
      %1673 = vmatprep.subr.mxu0 0.0
      %1674 = vmatpush1.msra.mxu0 0.0
      %1675 = vmatprep.subr.mxu0 0.0
      %1676 = vmatpush1.msra.mxu0 0.0
      %1677 = vmatprep.subr.mxu0 0.0
      %1678 = vmatpush1.msra.mxu0 0.0
      %1679 = vmatprep.subr.mxu0 0.0
      %1680 = vmatpush1.msra.mxu0 0.0
      %1681 = vmatprep.subr.mxu0 0.0
      %1682 = vmatpush1.msra.mxu0 0.0
      %1683 = vmatprep.subr.mxu0 0.0
      %1684 = vmatpush1.msra.mxu0 0.0
      %1685 = vmatprep.subr.mxu0 0.0
      %1686 = vmatpush1.msra.mxu0 0.0
      %1687 = vmatprep.subr.mxu0 0.0
      %v1688 = vand.u32 %v394, 4294901760
      %v1689 = vsub.f32 %v394, %v1688
      %v1690 = vand.u32 %v1689, 4294901760
      %1691 = vmatpush1.msra.mxu0 %v1690
      %1692 = vmatprep.subr.mxu0 0.0
      %1693 = vmatpush2.msra.mxu0 0.0
      %1694 = vmatprep.subr.mxu0 0.0
      %1695 = vmatpush2.msra.mxu0 0.0
      %1696 = vmatprep.subr.mxu0 0.0
      %1697 = vmatpush2.msra.mxu0 0.0
      %1698 = vmatprep.subr.mxu0 0.0
      %1699 = vmatpush2.msra.mxu0 0.0
      %1700 = vmatprep.subr.mxu0 0.0
      %1701 = vmatpush2.msra.mxu0 0.0
      %1702 = vmatprep.subr.mxu0 0.0
      %1703 = vmatpush2.msra.mxu0 0.0
      %1704 = vmatprep.subr.mxu0 0.0
      %1705 = vmatpush2.msra.mxu0 0.0
      %1706 = vmatprep.subr.mxu0 0.0
      %1707 = vmatpush2.msra.mxu0 0.0
      %1708 = vmatprep.subr.mxu0 0.0
      %1709 = vmatpush2.msra.mxu0 0.0
      %1710 = vmatprep.subr.mxu0 0.0
      %1711 = vmatpush2.msra.mxu0 0.0
      %1712 = vmatprep.subr.mxu0 0.0
      %1713 = vmatpush2.msra.mxu0 0.0
      %1714 = vmatprep.subr.mxu0 0.0
      %1715 = vmatpush2.msra.mxu0 0.0
      %1716 = vmatprep.subr.mxu0 0.0
      %1717 = vmatpush2.msra.mxu0 0.0
      %1718 = vmatprep.subr.mxu0 0.0
      %1719 = vmatpush2.msra.mxu0 0.0
      %1720 = vmatprep.subr.mxu0 0.0
      %1721 = vmatpush2.msra.mxu0 0.0
      %1722 = vmatprep.subr.mxu0 0.0
      %1723 = vmatpush2.msra.mxu0 0.0
      %1724 = vmatprep.mubr.f32.mxu0 0.0
      %v1725 = vand.u32 %v297, 4294901760
      %1726 = vmatmul.mubr.f32.gmra.mxu0 %v1725
      %v1727 = vpop.f32.mrf.mxu0
      %v1728 = vadd.f32 %v1406, %v1727
      %v1729 = vpop.f32.mrf.mxu0
      %1730 = vmatprep.mubr.f32.mxu0 0.0
      %v1731 = vand.u32 %v300, 4294901760
      %1732 = vmatmul.mubr.f32.gmra.mxu0 %v1731
      %v1733 = vpop.f32.mrf.mxu0
      %v1734 = vadd.f32 %v1414, %v1733
      %v1735 = vpop.f32.mrf.mxu0
      %1736 = vmatprep.mubr.f32.mxu0 0.0
      %v1737 = vand.u32 %v303, 4294901760
      %1738 = vmatmul.mubr.f32.gmra.mxu0 %v1737
      %v1739 = vpop.f32.mrf.mxu0
      %v1740 = vadd.f32 %v1422, %v1739
      %v1741 = vpop.f32.mrf.mxu0
      %1742 = vmatprep.mubr.f32.mxu0 0.0
      %v1743 = vand.u32 %v306, 4294901760
      %1744 = vmatmul.mubr.f32.gmra.mxu0 %v1743
      %v1745 = vpop.f32.mrf.mxu0
      %v1746 = vadd.f32 %v1430, %v1745
      %v1747 = vpop.f32.mrf.mxu0
      %1748 = vmatprep.mubr.f32.mxu0 0.0
      %v1749 = vand.u32 %v309, 4294901760
      %1750 = vmatmul.mubr.f32.gmra.mxu0 %v1749
      %v1751 = vpop.f32.mrf.mxu0
      %v1752 = vadd.f32 %v1438, %v1751
      %v1753 = vpop.f32.mrf.mxu0
      %1754 = vmatprep.mubr.f32.mxu0 0.0
      %v1755 = vand.u32 %v312, 4294901760
      %1756 = vmatmul.mubr.f32.gmra.mxu0 %v1755
      %v1757 = vpop.f32.mrf.mxu0
      %v1758 = vadd.f32 %v1446, %v1757
      %v1759 = vpop.f32.mrf.mxu0
      %1760 = vmatprep.mubr.f32.mxu0 0.0
      %v1761 = vand.u32 %v315, 4294901760
      %1762 = vmatmul.mubr.f32.gmra.mxu0 %v1761
      %v1763 = vpop.f32.mrf.mxu0
      %v1764 = vadd.f32 %v1454, %v1763
      %v1765 = vpop.f32.mrf.mxu0
      %1766 = vmatprep.mubr.f32.mxu0 0.0
      %v1767 = vand.u32 %v318, 4294901760
      %1768 = vmatmul.mubr.f32.gmra.mxu0 %v1767
      %v1769 = vpop.f32.mrf.mxu0
      %v1770 = vadd.f32 %v1462, %v1769
      %v1771 = vpop.f32.mrf.mxu0
      %1772 = vmatprep.mubr.f32.mxu0 0.0
      %v1773 = vand.u32 %v321, 4294901760
      %1774 = vmatmul.mubr.f32.gmra.mxu0 %v1773
      %v1775 = vpop.f32.mrf.mxu0
      %v1776 = vadd.f32 %v1470, %v1775
      %v1777 = vpop.f32.mrf.mxu0
      %1778 = vmatprep.mubr.f32.mxu0 0.0
      %v1779 = vand.u32 %v324, 4294901760
      %1780 = vmatmul.mubr.f32.gmra.mxu0 %v1779
      %v1781 = vpop.f32.mrf.mxu0
      %v1782 = vadd.f32 %v1478, %v1781
      %v1783 = vpop.f32.mrf.mxu0
      %1784 = vmatprep.mubr.f32.mxu0 0.0
      %v1785 = vand.u32 %v327, 4294901760
      %1786 = vmatmul.mubr.f32.gmra.mxu0 %v1785
      %v1787 = vpop.f32.mrf.mxu0
      %v1788 = vadd.f32 %v1486, %v1787
      %v1789 = vpop.f32.mrf.mxu0
      %1790 = vmatprep.mubr.f32.mxu0 0.0
      %v1791 = vand.u32 %v330, 4294901760
      %1792 = vmatmul.mubr.f32.gmra.mxu0 %v1791
      %v1793 = vpop.f32.mrf.mxu0
      %v1794 = vadd.f32 %v1494, %v1793
      %v1795 = vpop.f32.mrf.mxu0
      %1796 = vmatprep.mubr.f32.mxu0 0.0
      %v1797 = vand.u32 %v333, 4294901760
      %1798 = vmatmul.mubr.f32.gmra.mxu0 %v1797
      %v1799 = vpop.f32.mrf.mxu0
      %v1800 = vadd.f32 %v1502, %v1799
      %v1801 = vpop.f32.mrf.mxu0
      %1802 = vmatprep.mubr.f32.mxu0 0.0
      %v1803 = vand.u32 %v336, 4294901760
      %1804 = vmatmul.mubr.f32.gmra.mxu0 %v1803
      %v1805 = vpop.f32.mrf.mxu0
      %v1806 = vadd.f32 %v1510, %v1805
      %v1807 = vpop.f32.mrf.mxu0
      %1808 = vmatprep.mubr.f32.mxu0 0.0
      %v1809 = vand.u32 %v339, 4294901760
      %1810 = vmatmul.mubr.f32.gmra.mxu0 %v1809
      %v1811 = vpop.f32.mrf.mxu0
      %v1812 = vadd.f32 %v1518, %v1811
      %v1813 = vpop.f32.mrf.mxu0
      %1814 = vmatprep.mubr.f32.mxu0 0.0
      %v1815 = vand.u32 %v342, 4294901760
      %1816 = vmatmul.mubr.f32.gmra.mxu0 %v1815
      %v1817 = vpop.f32.mrf.mxu0
      %v1818 = vadd.f32 %v1526, %v1817
      %v1819 = vpop.f32.mrf.mxu0
      %1820 = vmatprep.mubr.f32.mxu0 0.0
      %v1821 = vand.u32 %v345, 4294901760
      %1822 = vmatmul.mubr.f32.gmra.mxu0 %v1821
      %v1823 = vpop.f32.mrf.mxu0
      %v1824 = vadd.f32 %v1534, %v1823
      %v1825 = vpop.f32.mrf.mxu0
      %1826 = vmatprep.mubr.f32.mxu0 0.0
      %v1827 = vand.u32 %v348, 4294901760
      %1828 = vmatmul.mubr.f32.gmra.mxu0 %v1827
      %v1829 = vpop.f32.mrf.mxu0
      %v1830 = vadd.f32 %v1542, %v1829
      %v1831 = vpop.f32.mrf.mxu0
      %1832 = vmatprep.mubr.f32.mxu0 0.0
      %v1833 = vand.u32 %v351, 4294901760
      %1834 = vmatmul.mubr.f32.gmra.mxu0 %v1833
      %v1835 = vpop.f32.mrf.mxu0
      %v1836 = vadd.f32 %v1550, %v1835
      %v1837 = vpop.f32.mrf.mxu0
      %1838 = vmatprep.mubr.f32.mxu0 0.0
      %v1839 = vand.u32 %v354, 4294901760
      %1840 = vmatmul.mubr.f32.gmra.mxu0 %v1839
      %v1841 = vpop.f32.mrf.mxu0
      %v1842 = vadd.f32 %v1558, %v1841
      %v1843 = vpop.f32.mrf.mxu0
      %1844 = vmatprep.mubr.f32.mxu0 0.0
      %v1845 = vand.u32 %v357, 4294901760
      %1846 = vmatmul.mubr.f32.gmra.mxu0 %v1845
      %v1847 = vpop.f32.mrf.mxu0
      %v1848 = vadd.f32 %v1566, %v1847
      %v1849 = vpop.f32.mrf.mxu0
      %1850 = vmatprep.mubr.f32.mxu0 0.0
      %v1851 = vand.u32 %v360, 4294901760
      %1852 = vmatmul.mubr.f32.gmra.mxu0 %v1851
      %v1853 = vpop.f32.mrf.mxu0
      %v1854 = vadd.f32 %v1574, %v1853
      %v1855 = vpop.f32.mrf.mxu0
      %1856 = vmatprep.mubr.f32.mxu0 0.0
      %v1857 = vand.u32 %v363, 4294901760
      %1858 = vmatmul.mubr.f32.gmra.mxu0 %v1857
      %v1859 = vpop.f32.mrf.mxu0
      %v1860 = vadd.f32 %v1582, %v1859
      %v1861 = vpop.f32.mrf.mxu0
      %1862 = vmatprep.mubr.f32.mxu0 0.0
      %v1863 = vand.u32 %v366, 4294901760
      %1864 = vmatmul.mubr.f32.gmra.mxu0 %v1863
      %v1865 = vpop.f32.mrf.mxu0
      %v1866 = vadd.f32 %v1590, %v1865
      %v1867 = vpop.f32.mrf.mxu0
      %1868 = vmatprep.mubr.f32.mxu0 0.0
      %v1869 = vand.u32 %v369, 4294901760
      %1870 = vmatmul.mubr.f32.gmra.mxu0 %v1869
      %v1871 = vpop.f32.mrf.mxu0
      %v1872 = vadd.f32 %v1598, %v1871
      %v1873 = vpop.f32.mrf.mxu0
      %1874 = vmatprep.mubr.f32.mxu0 0.0
      %v1875 = vand.u32 %v372, 4294901760
      %1876 = vmatmul.mubr.f32.gmra.mxu0 %v1875
      %v1877 = vpop.f32.mrf.mxu0
      %v1878 = vadd.f32 %v1606, %v1877
      %v1879 = vpop.f32.mrf.mxu0
      %1880 = vmatprep.mubr.f32.mxu0 0.0
      %v1881 = vand.u32 %v375, 4294901760
      %1882 = vmatmul.mubr.f32.gmra.mxu0 %v1881
      %v1883 = vpop.f32.mrf.mxu0
      %v1884 = vadd.f32 %v1614, %v1883
      %v1885 = vpop.f32.mrf.mxu0
      %1886 = vmatprep.mubr.f32.mxu0 0.0
      %v1887 = vand.u32 %v378, 4294901760
      %1888 = vmatmul.mubr.f32.gmra.mxu0 %v1887
      %v1889 = vpop.f32.mrf.mxu0
      %v1890 = vadd.f32 %v1622, %v1889
      %v1891 = vpop.f32.mrf.mxu0
      %1892 = vmatprep.mubr.f32.mxu0 0.0
      %v1893 = vand.u32 %v381, 4294901760
      %1894 = vmatmul.mubr.f32.gmra.mxu0 %v1893
      %v1895 = vpop.f32.mrf.mxu0
      %v1896 = vadd.f32 %v1630, %v1895
      %v1897 = vpop.f32.mrf.mxu0
      %1898 = vmatprep.mubr.f32.mxu0 0.0
      %v1899 = vand.u32 %v384, 4294901760
      %1900 = vmatmul.mubr.f32.gmra.mxu0 %v1899
      %v1901 = vpop.f32.mrf.mxu0
      %v1902 = vadd.f32 %v1638, %v1901
      %v1903 = vpop.f32.mrf.mxu0
      %1904 = vmatprep.mubr.f32.mxu0 0.0
      %v1905 = vand.u32 %v387, 4294901760
      %1906 = vmatmul.mubr.f32.gmra.mxu0 %v1905
      %v1907 = vpop.f32.mrf.mxu0
      %v1908 = vadd.f32 %v1646, %v1907
      %v1909 = vpop.f32.mrf.mxu0
      %1910 = vmatprep.mubr.f32.mxu0 0.0
      %v1911 = vand.u32 %v390, 4294901760
      %1912 = vmatmul.mubr.f32.gmra.mxu0 %v1911
      %v1913 = vpop.f32.mrf.mxu0
      %v1914 = vadd.f32 %v1654, %v1913
      %v1915 = vpop.f32.mrf.mxu0
      %1916 = vdwg.mxu0
      %1917 = vmatprep.subr.mxu0 0.0
      %1918 = vmatpush1.msra.mxu0 0.0
      %1919 = vmatprep.subr.mxu0 0.0
      %1920 = vmatpush1.msra.mxu0 0.0
      %1921 = vmatprep.subr.mxu0 0.0
      %1922 = vmatpush1.msra.mxu0 0.0
      %1923 = vmatprep.subr.mxu0 0.0
      %1924 = vmatpush1.msra.mxu0 0.0
      %1925 = vmatprep.subr.mxu0 0.0
      %1926 = vmatpush1.msra.mxu0 0.0
      %1927 = vmatprep.subr.mxu0 0.0
      %1928 = vmatpush1.msra.mxu0 0.0
      %1929 = vmatprep.subr.mxu0 0.0
      %1930 = vmatpush1.msra.mxu0 0.0
      %1931 = vmatprep.subr.mxu0 0.0
      %1932 = vmatpush1.msra.mxu0 0.0
      %1933 = vmatprep.subr.mxu0 0.0
      %1934 = vmatpush1.msra.mxu0 0.0
      %1935 = vmatprep.subr.mxu0 0.0
      %1936 = vmatpush1.msra.mxu0 0.0
      %1937 = vmatprep.subr.mxu0 0.0
      %1938 = vmatpush1.msra.mxu0 0.0
      %1939 = vmatprep.subr.mxu0 0.0
      %1940 = vmatpush1.msra.mxu0 0.0
      %1941 = vmatprep.subr.mxu0 0.0
      %1942 = vmatpush1.msra.mxu0 0.0
      %1943 = vmatprep.subr.mxu0 0.0
      %1944 = vmatpush1.msra.mxu0 0.0
      %1945 = vmatprep.subr.mxu0 0.0
      %1946 = vmatpush1.msra.mxu0 0.0
      %1947 = vmatprep.subr.mxu0 0.0
      %v1948 = vand.u32 %v394, 4294901760
      %1949 = vmatpush1.msra.mxu0 %v1948
      %1950 = vmatprep.subr.mxu0 0.0
      %1951 = vmatpush2.msra.mxu0 0.0
      %1952 = vmatprep.subr.mxu0 0.0
      %1953 = vmatpush2.msra.mxu0 0.0
      %1954 = vmatprep.subr.mxu0 0.0
      %1955 = vmatpush2.msra.mxu0 0.0
      %1956 = vmatprep.subr.mxu0 0.0
      %1957 = vmatpush2.msra.mxu0 0.0
      %1958 = vmatprep.subr.mxu0 0.0
      %1959 = vmatpush2.msra.mxu0 0.0
      %1960 = vmatprep.subr.mxu0 0.0
      %1961 = vmatpush2.msra.mxu0 0.0
      %1962 = vmatprep.subr.mxu0 0.0
      %1963 = vmatpush2.msra.mxu0 0.0
      %1964 = vmatprep.subr.mxu0 0.0
      %1965 = vmatpush2.msra.mxu0 0.0
      %1966 = vmatprep.subr.mxu0 0.0
      %1967 = vmatpush2.msra.mxu0 0.0
      %1968 = vmatprep.subr.mxu0 0.0
      %1969 = vmatpush2.msra.mxu0 0.0
      %1970 = vmatprep.subr.mxu0 0.0
      %1971 = vmatpush2.msra.mxu0 0.0
      %1972 = vmatprep.subr.mxu0 0.0
      %1973 = vmatpush2.msra.mxu0 0.0
      %1974 = vmatprep.subr.mxu0 0.0
      %1975 = vmatpush2.msra.mxu0 0.0
      %1976 = vmatprep.subr.mxu0 0.0
      %1977 = vmatpush2.msra.mxu0 0.0
      %1978 = vmatprep.subr.mxu0 0.0
      %1979 = vmatpush2.msra.mxu0 0.0
      %1980 = vmatprep.subr.mxu0 0.0
      %1981 = vmatpush2.msra.mxu0 0.0
      %1982 = vmatprep.mubr.f32.mxu0 0.0
      %v1983 = vand.u32 %v297, 4294901760
      %1984 = vmatmul.mubr.f32.gmra.mxu0 %v1983
      %v1985 = vpop.f32.mrf.mxu0
      %v1986 = vadd.f32 %v1728, %v1985
      %v1987 = vpop.f32.mrf.mxu0
      %1988 = vmatprep.mubr.f32.mxu0 0.0
      %v1989 = vand.u32 %v300, 4294901760
      %1990 = vmatmul.mubr.f32.gmra.mxu0 %v1989
      %v1991 = vpop.f32.mrf.mxu0
      %v1992 = vadd.f32 %v1734, %v1991
      %v1993 = vpop.f32.mrf.mxu0
      %1994 = vmatprep.mubr.f32.mxu0 0.0
      %v1995 = vand.u32 %v303, 4294901760
      %1996 = vmatmul.mubr.f32.gmra.mxu0 %v1995
      %v1997 = vpop.f32.mrf.mxu0
      %v1998 = vadd.f32 %v1740, %v1997
      %v1999 = vpop.f32.mrf.mxu0
      %2000 = vmatprep.mubr.f32.mxu0 0.0
      %v2001 = vand.u32 %v306, 4294901760
      %2002 = vmatmul.mubr.f32.gmra.mxu0 %v2001
      %v2003 = vpop.f32.mrf.mxu0
      %v2004 = vadd.f32 %v1746, %v2003
      %v2005 = vpop.f32.mrf.mxu0
      %2006 = vmatprep.mubr.f32.mxu0 0.0
      %v2007 = vand.u32 %v309, 4294901760
      %2008 = vmatmul.mubr.f32.gmra.mxu0 %v2007
      %v2009 = vpop.f32.mrf.mxu0
      %v2010 = vadd.f32 %v1752, %v2009
      %v2011 = vpop.f32.mrf.mxu0
      %2012 = vmatprep.mubr.f32.mxu0 0.0
      %v2013 = vand.u32 %v312, 4294901760
      %2014 = vmatmul.mubr.f32.gmra.mxu0 %v2013
      %v2015 = vpop.f32.mrf.mxu0
      %v2016 = vadd.f32 %v1758, %v2015
      %v2017 = vpop.f32.mrf.mxu0
      %2018 = vmatprep.mubr.f32.mxu0 0.0
      %v2019 = vand.u32 %v315, 4294901760
      %2020 = vmatmul.mubr.f32.gmra.mxu0 %v2019
      %v2021 = vpop.f32.mrf.mxu0
      %v2022 = vadd.f32 %v1764, %v2021
      %v2023 = vpop.f32.mrf.mxu0
      %2024 = vmatprep.mubr.f32.mxu0 0.0
      %v2025 = vand.u32 %v318, 4294901760
      %2026 = vmatmul.mubr.f32.gmra.mxu0 %v2025
      %v2027 = vpop.f32.mrf.mxu0
      %v2028 = vadd.f32 %v1770, %v2027
      %v2029 = vpop.f32.mrf.mxu0
      %2030 = vmatprep.mubr.f32.mxu0 0.0
      %v2031 = vand.u32 %v321, 4294901760
      %2032 = vmatmul.mubr.f32.gmra.mxu0 %v2031
      %v2033 = vpop.f32.mrf.mxu0
      %v2034 = vadd.f32 %v1776, %v2033
      %v2035 = vpop.f32.mrf.mxu0
      %2036 = vmatprep.mubr.f32.mxu0 0.0
      %v2037 = vand.u32 %v324, 4294901760
      %2038 = vmatmul.mubr.f32.gmra.mxu0 %v2037
      %v2039 = vpop.f32.mrf.mxu0
      %v2040 = vadd.f32 %v1782, %v2039
      %v2041 = vpop.f32.mrf.mxu0
      %2042 = vmatprep.mubr.f32.mxu0 0.0
      %v2043 = vand.u32 %v327, 4294901760
      %2044 = vmatmul.mubr.f32.gmra.mxu0 %v2043
      %v2045 = vpop.f32.mrf.mxu0
      %v2046 = vadd.f32 %v1788, %v2045
      %v2047 = vpop.f32.mrf.mxu0
      %2048 = vmatprep.mubr.f32.mxu0 0.0
      %v2049 = vand.u32 %v330, 4294901760
      %2050 = vmatmul.mubr.f32.gmra.mxu0 %v2049
      %v2051 = vpop.f32.mrf.mxu0
      %v2052 = vadd.f32 %v1794, %v2051
      %v2053 = vpop.f32.mrf.mxu0
      %2054 = vmatprep.mubr.f32.mxu0 0.0
      %v2055 = vand.u32 %v333, 4294901760
      %2056 = vmatmul.mubr.f32.gmra.mxu0 %v2055
      %v2057 = vpop.f32.mrf.mxu0
      %v2058 = vadd.f32 %v1800, %v2057
      %v2059 = vpop.f32.mrf.mxu0
      %2060 = vmatprep.mubr.f32.mxu0 0.0
      %v2061 = vand.u32 %v336, 4294901760
      %2062 = vmatmul.mubr.f32.gmra.mxu0 %v2061
      %v2063 = vpop.f32.mrf.mxu0
      %v2064 = vadd.f32 %v1806, %v2063
      %v2065 = vpop.f32.mrf.mxu0
      %2066 = vmatprep.mubr.f32.mxu0 0.0
      %v2067 = vand.u32 %v339, 4294901760
      %2068 = vmatmul.mubr.f32.gmra.mxu0 %v2067
      %v2069 = vpop.f32.mrf.mxu0
      %v2070 = vadd.f32 %v1812, %v2069
      %v2071 = vpop.f32.mrf.mxu0
      %2072 = vmatprep.mubr.f32.mxu0 0.0
      %v2073 = vand.u32 %v342, 4294901760
      %2074 = vmatmul.mubr.f32.gmra.mxu0 %v2073
      %v2075 = vpop.f32.mrf.mxu0
      %v2076 = vadd.f32 %v1818, %v2075
      %v2077 = vpop.f32.mrf.mxu0
      %2078 = vmatprep.mubr.f32.mxu0 0.0
      %v2079 = vand.u32 %v345, 4294901760
      %2080 = vmatmul.mubr.f32.gmra.mxu0 %v2079
      %v2081 = vpop.f32.mrf.mxu0
      %v2082 = vadd.f32 %v1824, %v2081
      %v2083 = vpop.f32.mrf.mxu0
      %2084 = vmatprep.mubr.f32.mxu0 0.0
      %v2085 = vand.u32 %v348, 4294901760
      %2086 = vmatmul.mubr.f32.gmra.mxu0 %v2085
      %v2087 = vpop.f32.mrf.mxu0
      %v2088 = vadd.f32 %v1830, %v2087
      %v2089 = vpop.f32.mrf.mxu0
      %2090 = vmatprep.mubr.f32.mxu0 0.0
      %v2091 = vand.u32 %v351, 4294901760
      %2092 = vmatmul.mubr.f32.gmra.mxu0 %v2091
      %v2093 = vpop.f32.mrf.mxu0
      %v2094 = vadd.f32 %v1836, %v2093
      %v2095 = vpop.f32.mrf.mxu0
      %2096 = vmatprep.mubr.f32.mxu0 0.0
      %v2097 = vand.u32 %v354, 4294901760
      %2098 = vmatmul.mubr.f32.gmra.mxu0 %v2097
      %v2099 = vpop.f32.mrf.mxu0
      %v2100 = vadd.f32 %v1842, %v2099
      %v2101 = vpop.f32.mrf.mxu0
      %2102 = vmatprep.mubr.f32.mxu0 0.0
      %v2103 = vand.u32 %v357, 4294901760
      %2104 = vmatmul.mubr.f32.gmra.mxu0 %v2103
      %v2105 = vpop.f32.mrf.mxu0
      %v2106 = vadd.f32 %v1848, %v2105
      %v2107 = vpop.f32.mrf.mxu0
      %2108 = vmatprep.mubr.f32.mxu0 0.0
      %v2109 = vand.u32 %v360, 4294901760
      %2110 = vmatmul.mubr.f32.gmra.mxu0 %v2109
      %v2111 = vpop.f32.mrf.mxu0
      %v2112 = vadd.f32 %v1854, %v2111
      %v2113 = vpop.f32.mrf.mxu0
      %2114 = vmatprep.mubr.f32.mxu0 0.0
      %v2115 = vand.u32 %v363, 4294901760
      %2116 = vmatmul.mubr.f32.gmra.mxu0 %v2115
      %v2117 = vpop.f32.mrf.mxu0
      %v2118 = vadd.f32 %v1860, %v2117
      %v2119 = vpop.f32.mrf.mxu0
      %2120 = vmatprep.mubr.f32.mxu0 0.0
      %v2121 = vand.u32 %v366, 4294901760
      %2122 = vmatmul.mubr.f32.gmra.mxu0 %v2121
      %v2123 = vpop.f32.mrf.mxu0
      %v2124 = vadd.f32 %v1866, %v2123
      %v2125 = vpop.f32.mrf.mxu0
      %2126 = vmatprep.mubr.f32.mxu0 0.0
      %v2127 = vand.u32 %v369, 4294901760
      %2128 = vmatmul.mubr.f32.gmra.mxu0 %v2127
      %v2129 = vpop.f32.mrf.mxu0
      %v2130 = vadd.f32 %v1872, %v2129
      %v2131 = vpop.f32.mrf.mxu0
      %2132 = vmatprep.mubr.f32.mxu0 0.0
      %v2133 = vand.u32 %v372, 4294901760
      %2134 = vmatmul.mubr.f32.gmra.mxu0 %v2133
      %v2135 = vpop.f32.mrf.mxu0
      %v2136 = vadd.f32 %v1878, %v2135
      %v2137 = vpop.f32.mrf.mxu0
      %2138 = vmatprep.mubr.f32.mxu0 0.0
      %v2139 = vand.u32 %v375, 4294901760
      %2140 = vmatmul.mubr.f32.gmra.mxu0 %v2139
      %v2141 = vpop.f32.mrf.mxu0
      %v2142 = vadd.f32 %v1884, %v2141
      %v2143 = vpop.f32.mrf.mxu0
      %2144 = vmatprep.mubr.f32.mxu0 0.0
      %v2145 = vand.u32 %v378, 4294901760
      %2146 = vmatmul.mubr.f32.gmra.mxu0 %v2145
      %v2147 = vpop.f32.mrf.mxu0
      %v2148 = vadd.f32 %v1890, %v2147
      %v2149 = vpop.f32.mrf.mxu0
      %2150 = vmatprep.mubr.f32.mxu0 0.0
      %v2151 = vand.u32 %v381, 4294901760
      %2152 = vmatmul.mubr.f32.gmra.mxu0 %v2151
      %v2153 = vpop.f32.mrf.mxu0
      %v2154 = vadd.f32 %v1896, %v2153
      %v2155 = vpop.f32.mrf.mxu0
      %2156 = vmatprep.mubr.f32.mxu0 0.0
      %v2157 = vand.u32 %v384, 4294901760
      %2158 = vmatmul.mubr.f32.gmra.mxu0 %v2157
      %v2159 = vpop.f32.mrf.mxu0
      %v2160 = vadd.f32 %v1902, %v2159
      %v2161 = vpop.f32.mrf.mxu0
      %2162 = vmatprep.mubr.f32.mxu0 0.0
      %v2163 = vand.u32 %v387, 4294901760
      %2164 = vmatmul.mubr.f32.gmra.mxu0 %v2163
      %v2165 = vpop.f32.mrf.mxu0
      %v2166 = vadd.f32 %v1908, %v2165
      %v2167 = vpop.f32.mrf.mxu0
      %2168 = vmatprep.mubr.f32.mxu0 0.0
      %v2169 = vand.u32 %v390, 4294901760
      %2170 = vmatmul.mubr.f32.gmra.mxu0 %v2169
      %v2171 = vpop.f32.mrf.mxu0
      %v2172 = vadd.f32 %v1914, %v2171
      %v2173 = vpop.f32.mrf.mxu0
      %2174 = vdwg.mxu0
      %v2176 = vlaneseq
      %v2177 = vshrl.u32 %v2176, 7
      %v2178 = vsub.s32 0, %v2177
      %v2179 = vrot.slane %v294, %v2178
      %v2181 = vadd.f32 %v2179, %v1986
      %v2182 = vadd.f32 %v2179, %v1992
      %v2183 = vadd.f32 %v2179, %v1998
      %v2184 = vadd.f32 %v2179, %v2004
      %v2185 = vadd.f32 %v2179, %v2010
      %v2186 = vadd.f32 %v2179, %v2016
      %v2187 = vadd.f32 %v2179, %v2022
      %v2188 = vadd.f32 %v2179, %v2028
      %v2189 = vadd.f32 %v2179, %v2034
      %v2190 = vadd.f32 %v2179, %v2040
      %v2191 = vadd.f32 %v2179, %v2046
      %v2192 = vadd.f32 %v2179, %v2052
      %v2193 = vadd.f32 %v2179, %v2058
      %v2194 = vadd.f32 %v2179, %v2064
      %v2195 = vadd.f32 %v2179, %v2070
      %v2196 = vadd.f32 %v2179, %v2076
      %v2197 = vadd.f32 %v2179, %v2082
      %v2198 = vadd.f32 %v2179, %v2088
      %v2199 = vadd.f32 %v2179, %v2094
      %v2200 = vadd.f32 %v2179, %v2100
      %v2201 = vadd.f32 %v2179, %v2106
      %v2202 = vadd.f32 %v2179, %v2112
      %v2203 = vadd.f32 %v2179, %v2118
      %v2204 = vadd.f32 %v2179, %v2124
      %v2205 = vadd.f32 %v2179, %v2130
      %v2206 = vadd.f32 %v2179, %v2136
      %v2207 = vadd.f32 %v2179, %v2142
      %v2208 = vadd.f32 %v2179, %v2148
      %v2209 = vadd.f32 %v2179, %v2154
      %v2210 = vadd.f32 %v2179, %v2160
      %v2211 = vadd.f32 %v2179, %v2166
      %v2212 = vadd.f32 %v2179, %v2172
      %v2213 = vld [vmem:[#allocation2 + $0x1] sm:$0xff]
      %v2214 = vld [vmem:[#allocation2 + $0x9] sm:$0xff]
      %v2215 = vld [vmem:[#allocation2 + $0x11] sm:$0xff]
      %v2216 = vld [vmem:[#allocation2 + $0x19] sm:$0xff]
      %v2217 = vld [vmem:[#allocation2 + $0x21] sm:$0xff]
      %v2218 = vld [vmem:[#allocation2 + $0x29] sm:$0xff]
      %v2219 = vld [vmem:[#allocation2 + $0x31] sm:$0xff]
      %v2220 = vld [vmem:[#allocation2 + $0x39] sm:$0xff]
      %v2221 = vld [vmem:[#allocation2 + $0x41] sm:$0xff]
      %v2222 = vld [vmem:[#allocation2 + $0x49] sm:$0xff]
      %v2223 = vld [vmem:[#allocation2 + $0x51] sm:$0xff]
      %v2224 = vld [vmem:[#allocation2 + $0x59] sm:$0xff]
      %v2225 = vld [vmem:[#allocation2 + $0x61] sm:$0xff]
      %v2226 = vld [vmem:[#allocation2 + $0x69] sm:$0xff]
      %v2227 = vld [vmem:[#allocation2 + $0x71] sm:$0xff]
      %v2228 = vld [vmem:[#allocation2 + $0x79] sm:$0xff]
      %v2229 = vld [vmem:[#allocation2 + $0x81] sm:$0xff]
      %v2230 = vld [vmem:[#allocation2 + $0x89] sm:$0xff]
      %v2231 = vld [vmem:[#allocation2 + $0x91] sm:$0xff]
      %v2232 = vld [vmem:[#allocation2 + $0x99] sm:$0xff]
      %v2233 = vld [vmem:[#allocation2 + $0xa1] sm:$0xff]
      %v2234 = vld [vmem:[#allocation2 + $0xa9] sm:$0xff]
      %v2235 = vld [vmem:[#allocation2 + $0xb1] sm:$0xff]
      %v2236 = vld [vmem:[#allocation2 + $0xb9] sm:$0xff]
      %v2237 = vld [vmem:[#allocation2 + $0xc1] sm:$0xff]
      %v2238 = vld [vmem:[#allocation2 + $0xc9] sm:$0xff]
      %v2239 = vld [vmem:[#allocation2 + $0xd1] sm:$0xff]
      %v2240 = vld [vmem:[#allocation2 + $0xd9] sm:$0xff]
      %v2241 = vld [vmem:[#allocation2 + $0xe1] sm:$0xff]
      %v2242 = vld [vmem:[#allocation2 + $0xe9] sm:$0xff]
      %v2243 = vld [vmem:[#allocation2 + $0xf1] sm:$0xff]
      %v2244 = vld [vmem:[#allocation2 + $0xf9] sm:$0xff]
      %s2245 = scalar_lea.vmem %s1, 4
      %v2246 = vld [vmem:[%s2245] sm:$0xf]
      %v2248 = vsel %vm260, %v2213, 0
      %v2251 = vsel %vm260, %v2214, 0
      %v2254 = vsel %vm260, %v2215, 0
      %v2257 = vsel %vm260, %v2216, 0
      %v2260 = vsel %vm260, %v2217, 0
      %v2263 = vsel %vm260, %v2218, 0
      %v2266 = vsel %vm260, %v2219, 0
      %v2269 = vsel %vm260, %v2220, 0
      %v2272 = vsel %vm260, %v2221, 0
      %v2275 = vsel %vm260, %v2222, 0
      %v2278 = vsel %vm260, %v2223, 0
      %v2281 = vsel %vm260, %v2224, 0
      %v2284 = vsel %vm260, %v2225, 0
      %v2287 = vsel %vm260, %v2226, 0
      %v2290 = vsel %vm260, %v2227, 0
      %v2293 = vsel %vm260, %v2228, 0
      %v2296 = vsel %vm260, %v2229, 0
      %v2299 = vsel %vm260, %v2230, 0
      %v2302 = vsel %vm260, %v2231, 0
      %v2305 = vsel %vm260, %v2232, 0
      %v2308 = vsel %vm260, %v2233, 0
      %v2311 = vsel %vm260, %v2234, 0
      %v2314 = vsel %vm260, %v2235, 0
      %v2317 = vsel %vm260, %v2236, 0
      %v2320 = vsel %vm260, %v2237, 0
      %v2323 = vsel %vm260, %v2238, 0
      %v2326 = vsel %vm260, %v2239, 0
      %v2329 = vsel %vm260, %v2240, 0
      %v2332 = vsel %vm260, %v2241, 0
      %v2335 = vsel %vm260, %v2242, 0
      %v2338 = vsel %vm260, %v2243, 0
      %v2341 = vsel %vm260, %v2244, 0
      %v2344 = vsel %vm392, %v2246, 0
      %2346 = vmatprep.subr.mxu0 0.0
      %2347 = vmatpush1.msra.mxu0 0.0
      %2348 = vmatprep.subr.mxu0 0.0
      %2349 = vmatpush1.msra.mxu0 0.0
      %2350 = vmatprep.subr.mxu0 0.0
      %2351 = vmatpush1.msra.mxu0 0.0
      %2352 = vmatprep.subr.mxu0 0.0
      %2353 = vmatpush1.msra.mxu0 0.0
      %2354 = vmatprep.subr.mxu0 0.0
      %2355 = vmatpush1.msra.mxu0 0.0
      %2356 = vmatprep.subr.mxu0 0.0
      %2357 = vmatpush1.msra.mxu0 0.0
      %2358 = vmatprep.subr.mxu0 0.0
      %2359 = vmatpush1.msra.mxu0 0.0
      %2360 = vmatprep.subr.mxu0 0.0
      %2361 = vmatpush1.msra.mxu0 0.0
      %2362 = vmatprep.subr.mxu0 0.0
      %2363 = vmatpush1.msra.mxu0 0.0
      %2364 = vmatprep.subr.mxu0 0.0
      %2365 = vmatpush1.msra.mxu0 0.0
      %2366 = vmatprep.subr.mxu0 0.0
      %2367 = vmatpush1.msra.mxu0 0.0
      %2368 = vmatprep.subr.mxu0 0.0
      %2369 = vmatpush1.msra.mxu0 0.0
      %2370 = vmatprep.subr.mxu0 0.0
      %2371 = vmatpush1.msra.mxu0 0.0
      %2372 = vmatprep.subr.mxu0 0.0
      %2373 = vmatpush1.msra.mxu0 0.0
      %2374 = vmatprep.subr.mxu0 0.0
      %2375 = vmatpush1.msra.mxu0 0.0
      %2376 = vmatprep.subr.mxu0 0.0
      %v2377 = vand.u32 %v2344, 4294901760
      %2378 = vmatpush1.msra.mxu0 %v2377
      %2379 = vmatprep.subr.mxu0 0.0
      %2380 = vmatpush2.msra.mxu0 0.0
      %2381 = vmatprep.subr.mxu0 0.0
      %2382 = vmatpush2.msra.mxu0 0.0
      %2383 = vmatprep.subr.mxu0 0.0
      %2384 = vmatpush2.msra.mxu0 0.0
      %2385 = vmatprep.subr.mxu0 0.0
      %2386 = vmatpush2.msra.mxu0 0.0
      %2387 = vmatprep.subr.mxu0 0.0
      %2388 = vmatpush2.msra.mxu0 0.0
      %2389 = vmatprep.subr.mxu0 0.0
      %2390 = vmatpush2.msra.mxu0 0.0
      %2391 = vmatprep.subr.mxu0 0.0
      %2392 = vmatpush2.msra.mxu0 0.0
      %2393 = vmatprep.subr.mxu0 0.0
      %2394 = vmatpush2.msra.mxu0 0.0
      %2395 = vmatprep.subr.mxu0 0.0
      %2396 = vmatpush2.msra.mxu0 0.0
      %2397 = vmatprep.subr.mxu0 0.0
      %2398 = vmatpush2.msra.mxu0 0.0
      %2399 = vmatprep.subr.mxu0 0.0
      %2400 = vmatpush2.msra.mxu0 0.0
      %2401 = vmatprep.subr.mxu0 0.0
      %2402 = vmatpush2.msra.mxu0 0.0
      %2403 = vmatprep.subr.mxu0 0.0
      %2404 = vmatpush2.msra.mxu0 0.0
      %2405 = vmatprep.subr.mxu0 0.0
      %2406 = vmatpush2.msra.mxu0 0.0
      %2407 = vmatprep.subr.mxu0 0.0
      %2408 = vmatpush2.msra.mxu0 0.0
      %2409 = vmatprep.subr.mxu0 0.0
      %2410 = vmatpush2.msra.mxu0 0.0
      %2411 = vmatprep.mubr.f32.mxu0 0.0
      %v2412 = vand.u32 %v2248, 4294901760
      %v2413 = vsub.f32 %v2248, %v2412
      %v2414 = vand.u32 %v2413, 4294901760
      %v2415 = vsub.f32 %v2413, %v2414
      %v2416 = vand.u32 %v2415, 4294901760
      %2417 = vmatmul.mubr.f32.gmra.mxu0 %v2416
      %v2418 = vpop.f32.mrf.mxu0
      %v2419 = vadd.f32 0.0, %v2418
      %v2420 = vpop.f32.mrf.mxu0
      %2421 = vmatprep.mubr.f32.mxu0 0.0
      %v2422 = vand.u32 %v2251, 4294901760
      %v2423 = vsub.f32 %v2251, %v2422
      %v2424 = vand.u32 %v2423, 4294901760
      %v2425 = vsub.f32 %v2423, %v2424
      %v2426 = vand.u32 %v2425, 4294901760
      %2427 = vmatmul.mubr.f32.gmra.mxu0 %v2426
      %v2428 = vpop.f32.mrf.mxu0
      %v2429 = vadd.f32 0.0, %v2428
      %v2430 = vpop.f32.mrf.mxu0
      %2431 = vmatprep.mubr.f32.mxu0 0.0
      %v2432 = vand.u32 %v2254, 4294901760
      %v2433 = vsub.f32 %v2254, %v2432
      %v2434 = vand.u32 %v2433, 4294901760
      %v2435 = vsub.f32 %v2433, %v2434
      %v2436 = vand.u32 %v2435, 4294901760
      %2437 = vmatmul.mubr.f32.gmra.mxu0 %v2436
      %v2438 = vpop.f32.mrf.mxu0
      %v2439 = vadd.f32 0.0, %v2438
      %v2440 = vpop.f32.mrf.mxu0
      %2441 = vmatprep.mubr.f32.mxu0 0.0
      %v2442 = vand.u32 %v2257, 4294901760
      %v2443 = vsub.f32 %v2257, %v2442
      %v2444 = vand.u32 %v2443, 4294901760
      %v2445 = vsub.f32 %v2443, %v2444
      %v2446 = vand.u32 %v2445, 4294901760
      %2447 = vmatmul.mubr.f32.gmra.mxu0 %v2446
      %v2448 = vpop.f32.mrf.mxu0
      %v2449 = vadd.f32 0.0, %v2448
      %v2450 = vpop.f32.mrf.mxu0
      %2451 = vmatprep.mubr.f32.mxu0 0.0
      %v2452 = vand.u32 %v2260, 4294901760
      %v2453 = vsub.f32 %v2260, %v2452
      %v2454 = vand.u32 %v2453, 4294901760
      %v2455 = vsub.f32 %v2453, %v2454
      %v2456 = vand.u32 %v2455, 4294901760
      %2457 = vmatmul.mubr.f32.gmra.mxu0 %v2456
      %v2458 = vpop.f32.mrf.mxu0
      %v2459 = vadd.f32 0.0, %v2458
      %v2460 = vpop.f32.mrf.mxu0
      %2461 = vmatprep.mubr.f32.mxu0 0.0
      %v2462 = vand.u32 %v2263, 4294901760
      %v2463 = vsub.f32 %v2263, %v2462
      %v2464 = vand.u32 %v2463, 4294901760
      %v2465 = vsub.f32 %v2463, %v2464
      %v2466 = vand.u32 %v2465, 4294901760
      %2467 = vmatmul.mubr.f32.gmra.mxu0 %v2466
      %v2468 = vpop.f32.mrf.mxu0
      %v2469 = vadd.f32 0.0, %v2468
      %v2470 = vpop.f32.mrf.mxu0
      %2471 = vmatprep.mubr.f32.mxu0 0.0
      %v2472 = vand.u32 %v2266, 4294901760
      %v2473 = vsub.f32 %v2266, %v2472
      %v2474 = vand.u32 %v2473, 4294901760
      %v2475 = vsub.f32 %v2473, %v2474
      %v2476 = vand.u32 %v2475, 4294901760
      %2477 = vmatmul.mubr.f32.gmra.mxu0 %v2476
      %v2478 = vpop.f32.mrf.mxu0
      %v2479 = vadd.f32 0.0, %v2478
      %v2480 = vpop.f32.mrf.mxu0
      %2481 = vmatprep.mubr.f32.mxu0 0.0
      %v2482 = vand.u32 %v2269, 4294901760
      %v2483 = vsub.f32 %v2269, %v2482
      %v2484 = vand.u32 %v2483, 4294901760
      %v2485 = vsub.f32 %v2483, %v2484
      %v2486 = vand.u32 %v2485, 4294901760
      %2487 = vmatmul.mubr.f32.gmra.mxu0 %v2486
      %v2488 = vpop.f32.mrf.mxu0
      %v2489 = vadd.f32 0.0, %v2488
      %v2490 = vpop.f32.mrf.mxu0
      %2491 = vmatprep.mubr.f32.mxu0 0.0
      %v2492 = vand.u32 %v2272, 4294901760
      %v2493 = vsub.f32 %v2272, %v2492
      %v2494 = vand.u32 %v2493, 4294901760
      %v2495 = vsub.f32 %v2493, %v2494
      %v2496 = vand.u32 %v2495, 4294901760
      %2497 = vmatmul.mubr.f32.gmra.mxu0 %v2496
      %v2498 = vpop.f32.mrf.mxu0
      %v2499 = vadd.f32 0.0, %v2498
      %v2500 = vpop.f32.mrf.mxu0
      %2501 = vmatprep.mubr.f32.mxu0 0.0
      %v2502 = vand.u32 %v2275, 4294901760
      %v2503 = vsub.f32 %v2275, %v2502
      %v2504 = vand.u32 %v2503, 4294901760
      %v2505 = vsub.f32 %v2503, %v2504
      %v2506 = vand.u32 %v2505, 4294901760
      %2507 = vmatmul.mubr.f32.gmra.mxu0 %v2506
      %v2508 = vpop.f32.mrf.mxu0
      %v2509 = vadd.f32 0.0, %v2508
      %v2510 = vpop.f32.mrf.mxu0
      %2511 = vmatprep.mubr.f32.mxu0 0.0
      %v2512 = vand.u32 %v2278, 4294901760
      %v2513 = vsub.f32 %v2278, %v2512
      %v2514 = vand.u32 %v2513, 4294901760
      %v2515 = vsub.f32 %v2513, %v2514
      %v2516 = vand.u32 %v2515, 4294901760
      %2517 = vmatmul.mubr.f32.gmra.mxu0 %v2516
      %v2518 = vpop.f32.mrf.mxu0
      %v2519 = vadd.f32 0.0, %v2518
      %v2520 = vpop.f32.mrf.mxu0
      %2521 = vmatprep.mubr.f32.mxu0 0.0
      %v2522 = vand.u32 %v2281, 4294901760
      %v2523 = vsub.f32 %v2281, %v2522
      %v2524 = vand.u32 %v2523, 4294901760
      %v2525 = vsub.f32 %v2523, %v2524
      %v2526 = vand.u32 %v2525, 4294901760
      %2527 = vmatmul.mubr.f32.gmra.mxu0 %v2526
      %v2528 = vpop.f32.mrf.mxu0
      %v2529 = vadd.f32 0.0, %v2528
      %v2530 = vpop.f32.mrf.mxu0
      %2531 = vmatprep.mubr.f32.mxu0 0.0
      %v2532 = vand.u32 %v2284, 4294901760
      %v2533 = vsub.f32 %v2284, %v2532
      %v2534 = vand.u32 %v2533, 4294901760
      %v2535 = vsub.f32 %v2533, %v2534
      %v2536 = vand.u32 %v2535, 4294901760
      %2537 = vmatmul.mubr.f32.gmra.mxu0 %v2536
      %v2538 = vpop.f32.mrf.mxu0
      %v2539 = vadd.f32 0.0, %v2538
      %v2540 = vpop.f32.mrf.mxu0
      %2541 = vmatprep.mubr.f32.mxu0 0.0
      %v2542 = vand.u32 %v2287, 4294901760
      %v2543 = vsub.f32 %v2287, %v2542
      %v2544 = vand.u32 %v2543, 4294901760
      %v2545 = vsub.f32 %v2543, %v2544
      %v2546 = vand.u32 %v2545, 4294901760
      %2547 = vmatmul.mubr.f32.gmra.mxu0 %v2546
      %v2548 = vpop.f32.mrf.mxu0
      %v2549 = vadd.f32 0.0, %v2548
      %v2550 = vpop.f32.mrf.mxu0
      %2551 = vmatprep.mubr.f32.mxu0 0.0
      %v2552 = vand.u32 %v2290, 4294901760
      %v2553 = vsub.f32 %v2290, %v2552
      %v2554 = vand.u32 %v2553, 4294901760
      %v2555 = vsub.f32 %v2553, %v2554
      %v2556 = vand.u32 %v2555, 4294901760
      %2557 = vmatmul.mubr.f32.gmra.mxu0 %v2556
      %v2558 = vpop.f32.mrf.mxu0
      %v2559 = vadd.f32 0.0, %v2558
      %v2560 = vpop.f32.mrf.mxu0
      %2561 = vmatprep.mubr.f32.mxu0 0.0
      %v2562 = vand.u32 %v2293, 4294901760
      %v2563 = vsub.f32 %v2293, %v2562
      %v2564 = vand.u32 %v2563, 4294901760
      %v2565 = vsub.f32 %v2563, %v2564
      %v2566 = vand.u32 %v2565, 4294901760
      %2567 = vmatmul.mubr.f32.gmra.mxu0 %v2566
      %v2568 = vpop.f32.mrf.mxu0
      %v2569 = vadd.f32 0.0, %v2568
      %v2570 = vpop.f32.mrf.mxu0
      %2571 = vmatprep.mubr.f32.mxu0 0.0
      %v2572 = vand.u32 %v2296, 4294901760
      %v2573 = vsub.f32 %v2296, %v2572
      %v2574 = vand.u32 %v2573, 4294901760
      %v2575 = vsub.f32 %v2573, %v2574
      %v2576 = vand.u32 %v2575, 4294901760
      %2577 = vmatmul.mubr.f32.gmra.mxu0 %v2576
      %v2578 = vpop.f32.mrf.mxu0
      %v2579 = vadd.f32 0.0, %v2578
      %v2580 = vpop.f32.mrf.mxu0
      %2581 = vmatprep.mubr.f32.mxu0 0.0
      %v2582 = vand.u32 %v2299, 4294901760
      %v2583 = vsub.f32 %v2299, %v2582
      %v2584 = vand.u32 %v2583, 4294901760
      %v2585 = vsub.f32 %v2583, %v2584
      %v2586 = vand.u32 %v2585, 4294901760
      %2587 = vmatmul.mubr.f32.gmra.mxu0 %v2586
      %v2588 = vpop.f32.mrf.mxu0
      %v2589 = vadd.f32 0.0, %v2588
      %v2590 = vpop.f32.mrf.mxu0
      %2591 = vmatprep.mubr.f32.mxu0 0.0
      %v2592 = vand.u32 %v2302, 4294901760
      %v2593 = vsub.f32 %v2302, %v2592
      %v2594 = vand.u32 %v2593, 4294901760
      %v2595 = vsub.f32 %v2593, %v2594
      %v2596 = vand.u32 %v2595, 4294901760
      %2597 = vmatmul.mubr.f32.gmra.mxu0 %v2596
      %v2598 = vpop.f32.mrf.mxu0
      %v2599 = vadd.f32 0.0, %v2598
      %v2600 = vpop.f32.mrf.mxu0
      %2601 = vmatprep.mubr.f32.mxu0 0.0
      %v2602 = vand.u32 %v2305, 4294901760
      %v2603 = vsub.f32 %v2305, %v2602
      %v2604 = vand.u32 %v2603, 4294901760
      %v2605 = vsub.f32 %v2603, %v2604
      %v2606 = vand.u32 %v2605, 4294901760
      %2607 = vmatmul.mubr.f32.gmra.mxu0 %v2606
      %v2608 = vpop.f32.mrf.mxu0
      %v2609 = vadd.f32 0.0, %v2608
      %v2610 = vpop.f32.mrf.mxu0
      %2611 = vmatprep.mubr.f32.mxu0 0.0
      %v2612 = vand.u32 %v2308, 4294901760
      %v2613 = vsub.f32 %v2308, %v2612
      %v2614 = vand.u32 %v2613, 4294901760
      %v2615 = vsub.f32 %v2613, %v2614
      %v2616 = vand.u32 %v2615, 4294901760
      %2617 = vmatmul.mubr.f32.gmra.mxu0 %v2616
      %v2618 = vpop.f32.mrf.mxu0
      %v2619 = vadd.f32 0.0, %v2618
      %v2620 = vpop.f32.mrf.mxu0
      %2621 = vmatprep.mubr.f32.mxu0 0.0
      %v2622 = vand.u32 %v2311, 4294901760
      %v2623 = vsub.f32 %v2311, %v2622
      %v2624 = vand.u32 %v2623, 4294901760
      %v2625 = vsub.f32 %v2623, %v2624
      %v2626 = vand.u32 %v2625, 4294901760
      %2627 = vmatmul.mubr.f32.gmra.mxu0 %v2626
      %v2628 = vpop.f32.mrf.mxu0
      %v2629 = vadd.f32 0.0, %v2628
      %v2630 = vpop.f32.mrf.mxu0
      %2631 = vmatprep.mubr.f32.mxu0 0.0
      %v2632 = vand.u32 %v2314, 4294901760
      %v2633 = vsub.f32 %v2314, %v2632
      %v2634 = vand.u32 %v2633, 4294901760
      %v2635 = vsub.f32 %v2633, %v2634
      %v2636 = vand.u32 %v2635, 4294901760
      %2637 = vmatmul.mubr.f32.gmra.mxu0 %v2636
      %v2638 = vpop.f32.mrf.mxu0
      %v2639 = vadd.f32 0.0, %v2638
      %v2640 = vpop.f32.mrf.mxu0
      %2641 = vmatprep.mubr.f32.mxu0 0.0
      %v2642 = vand.u32 %v2317, 4294901760
      %v2643 = vsub.f32 %v2317, %v2642
      %v2644 = vand.u32 %v2643, 4294901760
      %v2645 = vsub.f32 %v2643, %v2644
      %v2646 = vand.u32 %v2645, 4294901760
      %2647 = vmatmul.mubr.f32.gmra.mxu0 %v2646
      %v2648 = vpop.f32.mrf.mxu0
      %v2649 = vadd.f32 0.0, %v2648
      %v2650 = vpop.f32.mrf.mxu0
      %2651 = vmatprep.mubr.f32.mxu0 0.0
      %v2652 = vand.u32 %v2320, 4294901760
      %v2653 = vsub.f32 %v2320, %v2652
      %v2654 = vand.u32 %v2653, 4294901760
      %v2655 = vsub.f32 %v2653, %v2654
      %v2656 = vand.u32 %v2655, 4294901760
      %2657 = vmatmul.mubr.f32.gmra.mxu0 %v2656
      %v2658 = vpop.f32.mrf.mxu0
      %v2659 = vadd.f32 0.0, %v2658
      %v2660 = vpop.f32.mrf.mxu0
      %2661 = vmatprep.mubr.f32.mxu0 0.0
      %v2662 = vand.u32 %v2323, 4294901760
      %v2663 = vsub.f32 %v2323, %v2662
      %v2664 = vand.u32 %v2663, 4294901760
      %v2665 = vsub.f32 %v2663, %v2664
      %v2666 = vand.u32 %v2665, 4294901760
      %2667 = vmatmul.mubr.f32.gmra.mxu0 %v2666
      %v2668 = vpop.f32.mrf.mxu0
      %v2669 = vadd.f32 0.0, %v2668
      %v2670 = vpop.f32.mrf.mxu0
      %2671 = vmatprep.mubr.f32.mxu0 0.0
      %v2672 = vand.u32 %v2326, 4294901760
      %v2673 = vsub.f32 %v2326, %v2672
      %v2674 = vand.u32 %v2673, 4294901760
      %v2675 = vsub.f32 %v2673, %v2674
      %v2676 = vand.u32 %v2675, 4294901760
      %2677 = vmatmul.mubr.f32.gmra.mxu0 %v2676
      %v2678 = vpop.f32.mrf.mxu0
      %v2679 = vadd.f32 0.0, %v2678
      %v2680 = vpop.f32.mrf.mxu0
      %2681 = vmatprep.mubr.f32.mxu0 0.0
      %v2682 = vand.u32 %v2329, 4294901760
      %v2683 = vsub.f32 %v2329, %v2682
      %v2684 = vand.u32 %v2683, 4294901760
      %v2685 = vsub.f32 %v2683, %v2684
      %v2686 = vand.u32 %v2685, 4294901760
      %2687 = vmatmul.mubr.f32.gmra.mxu0 %v2686
      %v2688 = vpop.f32.mrf.mxu0
      %v2689 = vadd.f32 0.0, %v2688
      %v2690 = vpop.f32.mrf.mxu0
      %2691 = vmatprep.mubr.f32.mxu0 0.0
      %v2692 = vand.u32 %v2332, 4294901760
      %v2693 = vsub.f32 %v2332, %v2692
      %v2694 = vand.u32 %v2693, 4294901760
      %v2695 = vsub.f32 %v2693, %v2694
      %v2696 = vand.u32 %v2695, 4294901760
      %2697 = vmatmul.mubr.f32.gmra.mxu0 %v2696
      %v2698 = vpop.f32.mrf.mxu0
      %v2699 = vadd.f32 0.0, %v2698
      %v2700 = vpop.f32.mrf.mxu0
      %2701 = vmatprep.mubr.f32.mxu0 0.0
      %v2702 = vand.u32 %v2335, 4294901760
      %v2703 = vsub.f32 %v2335, %v2702
      %v2704 = vand.u32 %v2703, 4294901760
      %v2705 = vsub.f32 %v2703, %v2704
      %v2706 = vand.u32 %v2705, 4294901760
      %2707 = vmatmul.mubr.f32.gmra.mxu0 %v2706
      %v2708 = vpop.f32.mrf.mxu0
      %v2709 = vadd.f32 0.0, %v2708
      %v2710 = vpop.f32.mrf.mxu0
      %2711 = vmatprep.mubr.f32.mxu0 0.0
      %v2712 = vand.u32 %v2338, 4294901760
      %v2713 = vsub.f32 %v2338, %v2712
      %v2714 = vand.u32 %v2713, 4294901760
      %v2715 = vsub.f32 %v2713, %v2714
      %v2716 = vand.u32 %v2715, 4294901760
      %2717 = vmatmul.mubr.f32.gmra.mxu0 %v2716
      %v2718 = vpop.f32.mrf.mxu0
      %v2719 = vadd.f32 0.0, %v2718
      %v2720 = vpop.f32.mrf.mxu0
      %2721 = vmatprep.mubr.f32.mxu0 0.0
      %v2722 = vand.u32 %v2341, 4294901760
      %v2723 = vsub.f32 %v2341, %v2722
      %v2724 = vand.u32 %v2723, 4294901760
      %v2725 = vsub.f32 %v2723, %v2724
      %v2726 = vand.u32 %v2725, 4294901760
      %2727 = vmatmul.mubr.f32.gmra.mxu0 %v2726
      %v2728 = vpop.f32.mrf.mxu0
      %v2729 = vadd.f32 0.0, %v2728
      %v2730 = vpop.f32.mrf.mxu0
      %2731 = vdwg.mxu0
      %2732 = vmatprep.subr.mxu0 0.0
      %2733 = vmatpush1.msra.mxu0 0.0
      %2734 = vmatprep.subr.mxu0 0.0
      %2735 = vmatpush1.msra.mxu0 0.0
      %2736 = vmatprep.subr.mxu0 0.0
      %2737 = vmatpush1.msra.mxu0 0.0
      %2738 = vmatprep.subr.mxu0 0.0
      %2739 = vmatpush1.msra.mxu0 0.0
      %2740 = vmatprep.subr.mxu0 0.0
      %2741 = vmatpush1.msra.mxu0 0.0
      %2742 = vmatprep.subr.mxu0 0.0
      %2743 = vmatpush1.msra.mxu0 0.0
      %2744 = vmatprep.subr.mxu0 0.0
      %2745 = vmatpush1.msra.mxu0 0.0
      %2746 = vmatprep.subr.mxu0 0.0
      %2747 = vmatpush1.msra.mxu0 0.0
      %2748 = vmatprep.subr.mxu0 0.0
      %2749 = vmatpush1.msra.mxu0 0.0
      %2750 = vmatprep.subr.mxu0 0.0
      %2751 = vmatpush1.msra.mxu0 0.0
      %2752 = vmatprep.subr.mxu0 0.0
      %2753 = vmatpush1.msra.mxu0 0.0
      %2754 = vmatprep.subr.mxu0 0.0
      %2755 = vmatpush1.msra.mxu0 0.0
      %2756 = vmatprep.subr.mxu0 0.0
      %2757 = vmatpush1.msra.mxu0 0.0
      %2758 = vmatprep.subr.mxu0 0.0
      %2759 = vmatpush1.msra.mxu0 0.0
      %2760 = vmatprep.subr.mxu0 0.0
      %2761 = vmatpush1.msra.mxu0 0.0
      %2762 = vmatprep.subr.mxu0 0.0
      %v2763 = vand.u32 %v2344, 4294901760
      %v2764 = vsub.f32 %v2344, %v2763
      %v2765 = vand.u32 %v2764, 4294901760
      %v2766 = vsub.f32 %v2764, %v2765
      %v2767 = vand.u32 %v2766, 4294901760
      %2768 = vmatpush1.msra.mxu0 %v2767
      %2769 = vmatprep.subr.mxu0 0.0
      %2770 = vmatpush2.msra.mxu0 0.0
      %2771 = vmatprep.subr.mxu0 0.0
      %2772 = vmatpush2.msra.mxu0 0.0
      %2773 = vmatprep.subr.mxu0 0.0
      %2774 = vmatpush2.msra.mxu0 0.0
      %2775 = vmatprep.subr.mxu0 0.0
      %2776 = vmatpush2.msra.mxu0 0.0
      %2777 = vmatprep.subr.mxu0 0.0
      %2778 = vmatpush2.msra.mxu0 0.0
      %2779 = vmatprep.subr.mxu0 0.0
      %2780 = vmatpush2.msra.mxu0 0.0
      %2781 = vmatprep.subr.mxu0 0.0
      %2782 = vmatpush2.msra.mxu0 0.0
      %2783 = vmatprep.subr.mxu0 0.0
      %2784 = vmatpush2.msra.mxu0 0.0
      %2785 = vmatprep.subr.mxu0 0.0
      %2786 = vmatpush2.msra.mxu0 0.0
      %2787 = vmatprep.subr.mxu0 0.0
      %2788 = vmatpush2.msra.mxu0 0.0
      %2789 = vmatprep.subr.mxu0 0.0
      %2790 = vmatpush2.msra.mxu0 0.0
      %2791 = vmatprep.subr.mxu0 0.0
      %2792 = vmatpush2.msra.mxu0 0.0
      %2793 = vmatprep.subr.mxu0 0.0
      %2794 = vmatpush2.msra.mxu0 0.0
      %2795 = vmatprep.subr.mxu0 0.0
      %2796 = vmatpush2.msra.mxu0 0.0
      %2797 = vmatprep.subr.mxu0 0.0
      %2798 = vmatpush2.msra.mxu0 0.0
      %2799 = vmatprep.subr.mxu0 0.0
      %2800 = vmatpush2.msra.mxu0 0.0
      %2801 = vmatprep.mubr.f32.mxu0 0.0
      %v2802 = vand.u32 %v2248, 4294901760
      %2803 = vmatmul.mubr.f32.gmra.mxu0 %v2802
      %v2804 = vpop.f32.mrf.mxu0
      %v2805 = vadd.f32 %v2419, %v2804
      %v2806 = vpop.f32.mrf.mxu0
      %2807 = vmatprep.mubr.f32.mxu0 0.0
      %v2808 = vand.u32 %v2251, 4294901760
      %2809 = vmatmul.mubr.f32.gmra.mxu0 %v2808
      %v2810 = vpop.f32.mrf.mxu0
      %v2811 = vadd.f32 %v2429, %v2810
      %v2812 = vpop.f32.mrf.mxu0
      %2813 = vmatprep.mubr.f32.mxu0 0.0
      %v2814 = vand.u32 %v2254, 4294901760
      %2815 = vmatmul.mubr.f32.gmra.mxu0 %v2814
      %v2816 = vpop.f32.mrf.mxu0
      %v2817 = vadd.f32 %v2439, %v2816
      %v2818 = vpop.f32.mrf.mxu0
      %2819 = vmatprep.mubr.f32.mxu0 0.0
      %v2820 = vand.u32 %v2257, 4294901760
      %2821 = vmatmul.mubr.f32.gmra.mxu0 %v2820
      %v2822 = vpop.f32.mrf.mxu0
      %v2823 = vadd.f32 %v2449, %v2822
      %v2824 = vpop.f32.mrf.mxu0
      %2825 = vmatprep.mubr.f32.mxu0 0.0
      %v2826 = vand.u32 %v2260, 4294901760
      %2827 = vmatmul.mubr.f32.gmra.mxu0 %v2826
      %v2828 = vpop.f32.mrf.mxu0
      %v2829 = vadd.f32 %v2459, %v2828
      %v2830 = vpop.f32.mrf.mxu0
      %2831 = vmatprep.mubr.f32.mxu0 0.0
      %v2832 = vand.u32 %v2263, 4294901760
      %2833 = vmatmul.mubr.f32.gmra.mxu0 %v2832
      %v2834 = vpop.f32.mrf.mxu0
      %v2835 = vadd.f32 %v2469, %v2834
      %v2836 = vpop.f32.mrf.mxu0
      %2837 = vmatprep.mubr.f32.mxu0 0.0
      %v2838 = vand.u32 %v2266, 4294901760
      %2839 = vmatmul.mubr.f32.gmra.mxu0 %v2838
      %v2840 = vpop.f32.mrf.mxu0
      %v2841 = vadd.f32 %v2479, %v2840
      %v2842 = vpop.f32.mrf.mxu0
      %2843 = vmatprep.mubr.f32.mxu0 0.0
      %v2844 = vand.u32 %v2269, 4294901760
      %2845 = vmatmul.mubr.f32.gmra.mxu0 %v2844
      %v2846 = vpop.f32.mrf.mxu0
      %v2847 = vadd.f32 %v2489, %v2846
      %v2848 = vpop.f32.mrf.mxu0
      %2849 = vmatprep.mubr.f32.mxu0 0.0
      %v2850 = vand.u32 %v2272, 4294901760
      %2851 = vmatmul.mubr.f32.gmra.mxu0 %v2850
      %v2852 = vpop.f32.mrf.mxu0
      %v2853 = vadd.f32 %v2499, %v2852
      %v2854 = vpop.f32.mrf.mxu0
      %2855 = vmatprep.mubr.f32.mxu0 0.0
      %v2856 = vand.u32 %v2275, 4294901760
      %2857 = vmatmul.mubr.f32.gmra.mxu0 %v2856
      %v2858 = vpop.f32.mrf.mxu0
      %v2859 = vadd.f32 %v2509, %v2858
      %v2860 = vpop.f32.mrf.mxu0
      %2861 = vmatprep.mubr.f32.mxu0 0.0
      %v2862 = vand.u32 %v2278, 4294901760
      %2863 = vmatmul.mubr.f32.gmra.mxu0 %v2862
      %v2864 = vpop.f32.mrf.mxu0
      %v2865 = vadd.f32 %v2519, %v2864
      %v2866 = vpop.f32.mrf.mxu0
      %2867 = vmatprep.mubr.f32.mxu0 0.0
      %v2868 = vand.u32 %v2281, 4294901760
      %2869 = vmatmul.mubr.f32.gmra.mxu0 %v2868
      %v2870 = vpop.f32.mrf.mxu0
      %v2871 = vadd.f32 %v2529, %v2870
      %v2872 = vpop.f32.mrf.mxu0
      %2873 = vmatprep.mubr.f32.mxu0 0.0
      %v2874 = vand.u32 %v2284, 4294901760
      %2875 = vmatmul.mubr.f32.gmra.mxu0 %v2874
      %v2876 = vpop.f32.mrf.mxu0
      %v2877 = vadd.f32 %v2539, %v2876
      %v2878 = vpop.f32.mrf.mxu0
      %2879 = vmatprep.mubr.f32.mxu0 0.0
      %v2880 = vand.u32 %v2287, 4294901760
      %2881 = vmatmul.mubr.f32.gmra.mxu0 %v2880
      %v2882 = vpop.f32.mrf.mxu0
      %v2883 = vadd.f32 %v2549, %v2882
      %v2884 = vpop.f32.mrf.mxu0
      %2885 = vmatprep.mubr.f32.mxu0 0.0
      %v2886 = vand.u32 %v2290, 4294901760
      %2887 = vmatmul.mubr.f32.gmra.mxu0 %v2886
      %v2888 = vpop.f32.mrf.mxu0
      %v2889 = vadd.f32 %v2559, %v2888
      %v2890 = vpop.f32.mrf.mxu0
      %2891 = vmatprep.mubr.f32.mxu0 0.0
      %v2892 = vand.u32 %v2293, 4294901760
      %2893 = vmatmul.mubr.f32.gmra.mxu0 %v2892
      %v2894 = vpop.f32.mrf.mxu0
      %v2895 = vadd.f32 %v2569, %v2894
      %v2896 = vpop.f32.mrf.mxu0
      %2897 = vmatprep.mubr.f32.mxu0 0.0
      %v2898 = vand.u32 %v2296, 4294901760
      %2899 = vmatmul.mubr.f32.gmra.mxu0 %v2898
      %v2900 = vpop.f32.mrf.mxu0
      %v2901 = vadd.f32 %v2579, %v2900
      %v2902 = vpop.f32.mrf.mxu0
      %2903 = vmatprep.mubr.f32.mxu0 0.0
      %v2904 = vand.u32 %v2299, 4294901760
      %2905 = vmatmul.mubr.f32.gmra.mxu0 %v2904
      %v2906 = vpop.f32.mrf.mxu0
      %v2907 = vadd.f32 %v2589, %v2906
      %v2908 = vpop.f32.mrf.mxu0
      %2909 = vmatprep.mubr.f32.mxu0 0.0
      %v2910 = vand.u32 %v2302, 4294901760
      %2911 = vmatmul.mubr.f32.gmra.mxu0 %v2910
      %v2912 = vpop.f32.mrf.mxu0
      %v2913 = vadd.f32 %v2599, %v2912
      %v2914 = vpop.f32.mrf.mxu0
      %2915 = vmatprep.mubr.f32.mxu0 0.0
      %v2916 = vand.u32 %v2305, 4294901760
      %2917 = vmatmul.mubr.f32.gmra.mxu0 %v2916
      %v2918 = vpop.f32.mrf.mxu0
      %v2919 = vadd.f32 %v2609, %v2918
      %v2920 = vpop.f32.mrf.mxu0
      %2921 = vmatprep.mubr.f32.mxu0 0.0
      %v2922 = vand.u32 %v2308, 4294901760
      %2923 = vmatmul.mubr.f32.gmra.mxu0 %v2922
      %v2924 = vpop.f32.mrf.mxu0
      %v2925 = vadd.f32 %v2619, %v2924
      %v2926 = vpop.f32.mrf.mxu0
      %2927 = vmatprep.mubr.f32.mxu0 0.0
      %v2928 = vand.u32 %v2311, 4294901760
      %2929 = vmatmul.mubr.f32.gmra.mxu0 %v2928
      %v2930 = vpop.f32.mrf.mxu0
      %v2931 = vadd.f32 %v2629, %v2930
      %v2932 = vpop.f32.mrf.mxu0
      %2933 = vmatprep.mubr.f32.mxu0 0.0
      %v2934 = vand.u32 %v2314, 4294901760
      %2935 = vmatmul.mubr.f32.gmra.mxu0 %v2934
      %v2936 = vpop.f32.mrf.mxu0
      %v2937 = vadd.f32 %v2639, %v2936
      %v2938 = vpop.f32.mrf.mxu0
      %2939 = vmatprep.mubr.f32.mxu0 0.0
      %v2940 = vand.u32 %v2317, 4294901760
      %2941 = vmatmul.mubr.f32.gmra.mxu0 %v2940
      %v2942 = vpop.f32.mrf.mxu0
      %v2943 = vadd.f32 %v2649, %v2942
      %v2944 = vpop.f32.mrf.mxu0
      %2945 = vmatprep.mubr.f32.mxu0 0.0
      %v2946 = vand.u32 %v2320, 4294901760
      %2947 = vmatmul.mubr.f32.gmra.mxu0 %v2946
      %v2948 = vpop.f32.mrf.mxu0
      %v2949 = vadd.f32 %v2659, %v2948
      %v2950 = vpop.f32.mrf.mxu0
      %2951 = vmatprep.mubr.f32.mxu0 0.0
      %v2952 = vand.u32 %v2323, 4294901760
      %2953 = vmatmul.mubr.f32.gmra.mxu0 %v2952
      %v2954 = vpop.f32.mrf.mxu0
      %v2955 = vadd.f32 %v2669, %v2954
      %v2956 = vpop.f32.mrf.mxu0
      %2957 = vmatprep.mubr.f32.mxu0 0.0
      %v2958 = vand.u32 %v2326, 4294901760
      %2959 = vmatmul.mubr.f32.gmra.mxu0 %v2958
      %v2960 = vpop.f32.mrf.mxu0
      %v2961 = vadd.f32 %v2679, %v2960
      %v2962 = vpop.f32.mrf.mxu0
      %2963 = vmatprep.mubr.f32.mxu0 0.0
      %v2964 = vand.u32 %v2329, 4294901760
      %2965 = vmatmul.mubr.f32.gmra.mxu0 %v2964
      %v2966 = vpop.f32.mrf.mxu0
      %v2967 = vadd.f32 %v2689, %v2966
      %v2968 = vpop.f32.mrf.mxu0
      %2969 = vmatprep.mubr.f32.mxu0 0.0
      %v2970 = vand.u32 %v2332, 4294901760
      %2971 = vmatmul.mubr.f32.gmra.mxu0 %v2970
      %v2972 = vpop.f32.mrf.mxu0
      %v2973 = vadd.f32 %v2699, %v2972
      %v2974 = vpop.f32.mrf.mxu0
      %2975 = vmatprep.mubr.f32.mxu0 0.0
      %v2976 = vand.u32 %v2335, 4294901760
      %2977 = vmatmul.mubr.f32.gmra.mxu0 %v2976
      %v2978 = vpop.f32.mrf.mxu0
      %v2979 = vadd.f32 %v2709, %v2978
      %v2980 = vpop.f32.mrf.mxu0
      %2981 = vmatprep.mubr.f32.mxu0 0.0
      %v2982 = vand.u32 %v2338, 4294901760
      %2983 = vmatmul.mubr.f32.gmra.mxu0 %v2982
      %v2984 = vpop.f32.mrf.mxu0
      %v2985 = vadd.f32 %v2719, %v2984
      %v2986 = vpop.f32.mrf.mxu0
      %2987 = vmatprep.mubr.f32.mxu0 0.0
      %v2988 = vand.u32 %v2341, 4294901760
      %2989 = vmatmul.mubr.f32.gmra.mxu0 %v2988
      %v2990 = vpop.f32.mrf.mxu0
      %v2991 = vadd.f32 %v2729, %v2990
      %v2992 = vpop.f32.mrf.mxu0
      %2993 = vdwg.mxu0
      %2994 = vmatprep.subr.mxu0 0.0
      %2995 = vmatpush1.msra.mxu0 0.0
      %2996 = vmatprep.subr.mxu0 0.0
      %2997 = vmatpush1.msra.mxu0 0.0
      %2998 = vmatprep.subr.mxu0 0.0
      %2999 = vmatpush1.msra.mxu0 0.0
      %3000 = vmatprep.subr.mxu0 0.0
      %3001 = vmatpush1.msra.mxu0 0.0
      %3002 = vmatprep.subr.mxu0 0.0
      %3003 = vmatpush1.msra.mxu0 0.0
      %3004 = vmatprep.subr.mxu0 0.0
      %3005 = vmatpush1.msra.mxu0 0.0
      %3006 = vmatprep.subr.mxu0 0.0
      %3007 = vmatpush1.msra.mxu0 0.0
      %3008 = vmatprep.subr.mxu0 0.0
      %3009 = vmatpush1.msra.mxu0 0.0
      %3010 = vmatprep.subr.mxu0 0.0
      %3011 = vmatpush1.msra.mxu0 0.0
      %3012 = vmatprep.subr.mxu0 0.0
      %3013 = vmatpush1.msra.mxu0 0.0
      %3014 = vmatprep.subr.mxu0 0.0
      %3015 = vmatpush1.msra.mxu0 0.0
      %3016 = vmatprep.subr.mxu0 0.0
      %3017 = vmatpush1.msra.mxu0 0.0
      %3018 = vmatprep.subr.mxu0 0.0
      %3019 = vmatpush1.msra.mxu0 0.0
      %3020 = vmatprep.subr.mxu0 0.0
      %3021 = vmatpush1.msra.mxu0 0.0
      %3022 = vmatprep.subr.mxu0 0.0
      %3023 = vmatpush1.msra.mxu0 0.0
      %3024 = vmatprep.subr.mxu0 0.0
      %v3025 = vand.u32 %v2344, 4294901760
      %v3026 = vsub.f32 %v2344, %v3025
      %3027 = vmatpush1.msra.mxu0 %v3026
      %3028 = vmatprep.subr.mxu0 0.0
      %3029 = vmatpush2.msra.mxu0 0.0
      %3030 = vmatprep.subr.mxu0 0.0
      %3031 = vmatpush2.msra.mxu0 0.0
      %3032 = vmatprep.subr.mxu0 0.0
      %3033 = vmatpush2.msra.mxu0 0.0
      %3034 = vmatprep.subr.mxu0 0.0
      %3035 = vmatpush2.msra.mxu0 0.0
      %3036 = vmatprep.subr.mxu0 0.0
      %3037 = vmatpush2.msra.mxu0 0.0
      %3038 = vmatprep.subr.mxu0 0.0
      %3039 = vmatpush2.msra.mxu0 0.0
      %3040 = vmatprep.subr.mxu0 0.0
      %3041 = vmatpush2.msra.mxu0 0.0
      %3042 = vmatprep.subr.mxu0 0.0
      %3043 = vmatpush2.msra.mxu0 0.0
      %3044 = vmatprep.subr.mxu0 0.0
      %3045 = vmatpush2.msra.mxu0 0.0
      %3046 = vmatprep.subr.mxu0 0.0
      %3047 = vmatpush2.msra.mxu0 0.0
      %3048 = vmatprep.subr.mxu0 0.0
      %3049 = vmatpush2.msra.mxu0 0.0
      %3050 = vmatprep.subr.mxu0 0.0
      %3051 = vmatpush2.msra.mxu0 0.0
      %3052 = vmatprep.subr.mxu0 0.0
      %3053 = vmatpush2.msra.mxu0 0.0
      %3054 = vmatprep.subr.mxu0 0.0
      %3055 = vmatpush2.msra.mxu0 0.0
      %3056 = vmatprep.subr.mxu0 0.0
      %3057 = vmatpush2.msra.mxu0 0.0
      %3058 = vmatprep.subr.mxu0 0.0
      %3059 = vmatpush2.msra.mxu0 0.0
      %3060 = vmatprep.mubr.f32.mxu0 0.0
      %v3061 = vand.u32 %v2248, 4294901760
      %v3062 = vsub.f32 %v2248, %v3061
      %3063 = vmatmul.mubr.f32.gmra.mxu0 %v3062
      %v3064 = vpop.f32.mrf.mxu0
      %v3065 = vadd.f32 %v2805, %v3064
      %v3066 = vpop.f32.mrf.mxu0
      %3067 = vmatprep.mubr.f32.mxu0 0.0
      %v3068 = vand.u32 %v2251, 4294901760
      %v3069 = vsub.f32 %v2251, %v3068
      %3070 = vmatmul.mubr.f32.gmra.mxu0 %v3069
      %v3071 = vpop.f32.mrf.mxu0
      %v3072 = vadd.f32 %v2811, %v3071
      %v3073 = vpop.f32.mrf.mxu0
      %3074 = vmatprep.mubr.f32.mxu0 0.0
      %v3075 = vand.u32 %v2254, 4294901760
      %v3076 = vsub.f32 %v2254, %v3075
      %3077 = vmatmul.mubr.f32.gmra.mxu0 %v3076
      %v3078 = vpop.f32.mrf.mxu0
      %v3079 = vadd.f32 %v2817, %v3078
      %v3080 = vpop.f32.mrf.mxu0
      %3081 = vmatprep.mubr.f32.mxu0 0.0
      %v3082 = vand.u32 %v2257, 4294901760
      %v3083 = vsub.f32 %v2257, %v3082
      %3084 = vmatmul.mubr.f32.gmra.mxu0 %v3083
      %v3085 = vpop.f32.mrf.mxu0
      %v3086 = vadd.f32 %v2823, %v3085
      %v3087 = vpop.f32.mrf.mxu0
      %3088 = vmatprep.mubr.f32.mxu0 0.0
      %v3089 = vand.u32 %v2260, 4294901760
      %v3090 = vsub.f32 %v2260, %v3089
      %3091 = vmatmul.mubr.f32.gmra.mxu0 %v3090
      %v3092 = vpop.f32.mrf.mxu0
      %v3093 = vadd.f32 %v2829, %v3092
      %v3094 = vpop.f32.mrf.mxu0
      %3095 = vmatprep.mubr.f32.mxu0 0.0
      %v3096 = vand.u32 %v2263, 4294901760
      %v3097 = vsub.f32 %v2263, %v3096
      %3098 = vmatmul.mubr.f32.gmra.mxu0 %v3097
      %v3099 = vpop.f32.mrf.mxu0
      %v3100 = vadd.f32 %v2835, %v3099
      %v3101 = vpop.f32.mrf.mxu0
      %3102 = vmatprep.mubr.f32.mxu0 0.0
      %v3103 = vand.u32 %v2266, 4294901760
      %v3104 = vsub.f32 %v2266, %v3103
      %3105 = vmatmul.mubr.f32.gmra.mxu0 %v3104
      %v3106 = vpop.f32.mrf.mxu0
      %v3107 = vadd.f32 %v2841, %v3106
      %v3108 = vpop.f32.mrf.mxu0
      %3109 = vmatprep.mubr.f32.mxu0 0.0
      %v3110 = vand.u32 %v2269, 4294901760
      %v3111 = vsub.f32 %v2269, %v3110
      %3112 = vmatmul.mubr.f32.gmra.mxu0 %v3111
      %v3113 = vpop.f32.mrf.mxu0
      %v3114 = vadd.f32 %v2847, %v3113
      %v3115 = vpop.f32.mrf.mxu0
      %3116 = vmatprep.mubr.f32.mxu0 0.0
      %v3117 = vand.u32 %v2272, 4294901760
      %v3118 = vsub.f32 %v2272, %v3117
      %3119 = vmatmul.mubr.f32.gmra.mxu0 %v3118
      %v3120 = vpop.f32.mrf.mxu0
      %v3121 = vadd.f32 %v2853, %v3120
      %v3122 = vpop.f32.mrf.mxu0
      %3123 = vmatprep.mubr.f32.mxu0 0.0
      %v3124 = vand.u32 %v2275, 4294901760
      %v3125 = vsub.f32 %v2275, %v3124
      %3126 = vmatmul.mubr.f32.gmra.mxu0 %v3125
      %v3127 = vpop.f32.mrf.mxu0
      %v3128 = vadd.f32 %v2859, %v3127
      %v3129 = vpop.f32.mrf.mxu0
      %3130 = vmatprep.mubr.f32.mxu0 0.0
      %v3131 = vand.u32 %v2278, 4294901760
      %v3132 = vsub.f32 %v2278, %v3131
      %3133 = vmatmul.mubr.f32.gmra.mxu0 %v3132
      %v3134 = vpop.f32.mrf.mxu0
      %v3135 = vadd.f32 %v2865, %v3134
      %v3136 = vpop.f32.mrf.mxu0
      %3137 = vmatprep.mubr.f32.mxu0 0.0
      %v3138 = vand.u32 %v2281, 4294901760
      %v3139 = vsub.f32 %v2281, %v3138
      %3140 = vmatmul.mubr.f32.gmra.mxu0 %v3139
      %v3141 = vpop.f32.mrf.mxu0
      %v3142 = vadd.f32 %v2871, %v3141
      %v3143 = vpop.f32.mrf.mxu0
      %3144 = vmatprep.mubr.f32.mxu0 0.0
      %v3145 = vand.u32 %v2284, 4294901760
      %v3146 = vsub.f32 %v2284, %v3145
      %3147 = vmatmul.mubr.f32.gmra.mxu0 %v3146
      %v3148 = vpop.f32.mrf.mxu0
      %v3149 = vadd.f32 %v2877, %v3148
      %v3150 = vpop.f32.mrf.mxu0
      %3151 = vmatprep.mubr.f32.mxu0 0.0
      %v3152 = vand.u32 %v2287, 4294901760
      %v3153 = vsub.f32 %v2287, %v3152
      %3154 = vmatmul.mubr.f32.gmra.mxu0 %v3153
      %v3155 = vpop.f32.mrf.mxu0
      %v3156 = vadd.f32 %v2883, %v3155
      %v3157 = vpop.f32.mrf.mxu0
      %3158 = vmatprep.mubr.f32.mxu0 0.0
      %v3159 = vand.u32 %v2290, 4294901760
      %v3160 = vsub.f32 %v2290, %v3159
      %3161 = vmatmul.mubr.f32.gmra.mxu0 %v3160
      %v3162 = vpop.f32.mrf.mxu0
      %v3163 = vadd.f32 %v2889, %v3162
      %v3164 = vpop.f32.mrf.mxu0
      %3165 = vmatprep.mubr.f32.mxu0 0.0
      %v3166 = vand.u32 %v2293, 4294901760
      %v3167 = vsub.f32 %v2293, %v3166
      %3168 = vmatmul.mubr.f32.gmra.mxu0 %v3167
      %v3169 = vpop.f32.mrf.mxu0
      %v3170 = vadd.f32 %v2895, %v3169
      %v3171 = vpop.f32.mrf.mxu0
      %3172 = vmatprep.mubr.f32.mxu0 0.0
      %v3173 = vand.u32 %v2296, 4294901760
      %v3174 = vsub.f32 %v2296, %v3173
      %3175 = vmatmul.mubr.f32.gmra.mxu0 %v3174
      %v3176 = vpop.f32.mrf.mxu0
      %v3177 = vadd.f32 %v2901, %v3176
      %v3178 = vpop.f32.mrf.mxu0
      %3179 = vmatprep.mubr.f32.mxu0 0.0
      %v3180 = vand.u32 %v2299, 4294901760
      %v3181 = vsub.f32 %v2299, %v3180
      %3182 = vmatmul.mubr.f32.gmra.mxu0 %v3181
      %v3183 = vpop.f32.mrf.mxu0
      %v3184 = vadd.f32 %v2907, %v3183
      %v3185 = vpop.f32.mrf.mxu0
      %3186 = vmatprep.mubr.f32.mxu0 0.0
      %v3187 = vand.u32 %v2302, 4294901760
      %v3188 = vsub.f32 %v2302, %v3187
      %3189 = vmatmul.mubr.f32.gmra.mxu0 %v3188
      %v3190 = vpop.f32.mrf.mxu0
      %v3191 = vadd.f32 %v2913, %v3190
      %v3192 = vpop.f32.mrf.mxu0
      %3193 = vmatprep.mubr.f32.mxu0 0.0
      %v3194 = vand.u32 %v2305, 4294901760
      %v3195 = vsub.f32 %v2305, %v3194
      %3196 = vmatmul.mubr.f32.gmra.mxu0 %v3195
      %v3197 = vpop.f32.mrf.mxu0
      %v3198 = vadd.f32 %v2919, %v3197
      %v3199 = vpop.f32.mrf.mxu0
      %3200 = vmatprep.mubr.f32.mxu0 0.0
      %v3201 = vand.u32 %v2308, 4294901760
      %v3202 = vsub.f32 %v2308, %v3201
      %3203 = vmatmul.mubr.f32.gmra.mxu0 %v3202
      %v3204 = vpop.f32.mrf.mxu0
      %v3205 = vadd.f32 %v2925, %v3204
      %v3206 = vpop.f32.mrf.mxu0
      %3207 = vmatprep.mubr.f32.mxu0 0.0
      %v3208 = vand.u32 %v2311, 4294901760
      %v3209 = vsub.f32 %v2311, %v3208
      %3210 = vmatmul.mubr.f32.gmra.mxu0 %v3209
      %v3211 = vpop.f32.mrf.mxu0
      %v3212 = vadd.f32 %v2931, %v3211
      %v3213 = vpop.f32.mrf.mxu0
      %3214 = vmatprep.mubr.f32.mxu0 0.0
      %v3215 = vand.u32 %v2314, 4294901760
      %v3216 = vsub.f32 %v2314, %v3215
      %3217 = vmatmul.mubr.f32.gmra.mxu0 %v3216
      %v3218 = vpop.f32.mrf.mxu0
      %v3219 = vadd.f32 %v2937, %v3218
      %v3220 = vpop.f32.mrf.mxu0
      %3221 = vmatprep.mubr.f32.mxu0 0.0
      %v3222 = vand.u32 %v2317, 4294901760
      %v3223 = vsub.f32 %v2317, %v3222
      %3224 = vmatmul.mubr.f32.gmra.mxu0 %v3223
      %v3225 = vpop.f32.mrf.mxu0
      %v3226 = vadd.f32 %v2943, %v3225
      %v3227 = vpop.f32.mrf.mxu0
      %3228 = vmatprep.mubr.f32.mxu0 0.0
      %v3229 = vand.u32 %v2320, 4294901760
      %v3230 = vsub.f32 %v2320, %v3229
      %3231 = vmatmul.mubr.f32.gmra.mxu0 %v3230
      %v3232 = vpop.f32.mrf.mxu0
      %v3233 = vadd.f32 %v2949, %v3232
      %v3234 = vpop.f32.mrf.mxu0
      %3235 = vmatprep.mubr.f32.mxu0 0.0
      %v3236 = vand.u32 %v2323, 4294901760
      %v3237 = vsub.f32 %v2323, %v3236
      %3238 = vmatmul.mubr.f32.gmra.mxu0 %v3237
      %v3239 = vpop.f32.mrf.mxu0
      %v3240 = vadd.f32 %v2955, %v3239
      %v3241 = vpop.f32.mrf.mxu0
      %3242 = vmatprep.mubr.f32.mxu0 0.0
      %v3243 = vand.u32 %v2326, 4294901760
      %v3244 = vsub.f32 %v2326, %v3243
      %3245 = vmatmul.mubr.f32.gmra.mxu0 %v3244
      %v3246 = vpop.f32.mrf.mxu0
      %v3247 = vadd.f32 %v2961, %v3246
      %v3248 = vpop.f32.mrf.mxu0
      %3249 = vmatprep.mubr.f32.mxu0 0.0
      %v3250 = vand.u32 %v2329, 4294901760
      %v3251 = vsub.f32 %v2329, %v3250
      %3252 = vmatmul.mubr.f32.gmra.mxu0 %v3251
      %v3253 = vpop.f32.mrf.mxu0
      %v3254 = vadd.f32 %v2967, %v3253
      %v3255 = vpop.f32.mrf.mxu0
      %3256 = vmatprep.mubr.f32.mxu0 0.0
      %v3257 = vand.u32 %v2332, 4294901760
      %v3258 = vsub.f32 %v2332, %v3257
      %3259 = vmatmul.mubr.f32.gmra.mxu0 %v3258
      %v3260 = vpop.f32.mrf.mxu0
      %v3261 = vadd.f32 %v2973, %v3260
      %v3262 = vpop.f32.mrf.mxu0
      %3263 = vmatprep.mubr.f32.mxu0 0.0
      %v3264 = vand.u32 %v2335, 4294901760
      %v3265 = vsub.f32 %v2335, %v3264
      %3266 = vmatmul.mubr.f32.gmra.mxu0 %v3265
      %v3267 = vpop.f32.mrf.mxu0
      %v3268 = vadd.f32 %v2979, %v3267
      %v3269 = vpop.f32.mrf.mxu0
      %3270 = vmatprep.mubr.f32.mxu0 0.0
      %v3271 = vand.u32 %v2338, 4294901760
      %v3272 = vsub.f32 %v2338, %v3271
      %3273 = vmatmul.mubr.f32.gmra.mxu0 %v3272
      %v3274 = vpop.f32.mrf.mxu0
      %v3275 = vadd.f32 %v2985, %v3274
      %v3276 = vpop.f32.mrf.mxu0
      %3277 = vmatprep.mubr.f32.mxu0 0.0
      %v3278 = vand.u32 %v2341, 4294901760
      %v3279 = vsub.f32 %v2341, %v3278
      %3280 = vmatmul.mubr.f32.gmra.mxu0 %v3279
      %v3281 = vpop.f32.mrf.mxu0
      %v3282 = vadd.f32 %v2991, %v3281
      %v3283 = vpop.f32.mrf.mxu0
      %3284 = vdwg.mxu0
      %3285 = vmatprep.subr.mxu0 0.0
      %3286 = vmatpush1.msra.mxu0 0.0
      %3287 = vmatprep.subr.mxu0 0.0
      %3288 = vmatpush1.msra.mxu0 0.0
      %3289 = vmatprep.subr.mxu0 0.0
      %3290 = vmatpush1.msra.mxu0 0.0
      %3291 = vmatprep.subr.mxu0 0.0
      %3292 = vmatpush1.msra.mxu0 0.0
      %3293 = vmatprep.subr.mxu0 0.0
      %3294 = vmatpush1.msra.mxu0 0.0
      %3295 = vmatprep.subr.mxu0 0.0
      %3296 = vmatpush1.msra.mxu0 0.0
      %3297 = vmatprep.subr.mxu0 0.0
      %3298 = vmatpush1.msra.mxu0 0.0
      %3299 = vmatprep.subr.mxu0 0.0
      %3300 = vmatpush1.msra.mxu0 0.0
      %3301 = vmatprep.subr.mxu0 0.0
      %3302 = vmatpush1.msra.mxu0 0.0
      %3303 = vmatprep.subr.mxu0 0.0
      %3304 = vmatpush1.msra.mxu0 0.0
      %3305 = vmatprep.subr.mxu0 0.0
      %3306 = vmatpush1.msra.mxu0 0.0
      %3307 = vmatprep.subr.mxu0 0.0
      %3308 = vmatpush1.msra.mxu0 0.0
      %3309 = vmatprep.subr.mxu0 0.0
      %3310 = vmatpush1.msra.mxu0 0.0
      %3311 = vmatprep.subr.mxu0 0.0
      %3312 = vmatpush1.msra.mxu0 0.0
      %3313 = vmatprep.subr.mxu0 0.0
      %3314 = vmatpush1.msra.mxu0 0.0
      %3315 = vmatprep.subr.mxu0 0.0
      %v3316 = vand.u32 %v2344, 4294901760
      %3317 = vmatpush1.msra.mxu0 %v3316
      %3318 = vmatprep.subr.mxu0 0.0
      %3319 = vmatpush2.msra.mxu0 0.0
      %3320 = vmatprep.subr.mxu0 0.0
      %3321 = vmatpush2.msra.mxu0 0.0
      %3322 = vmatprep.subr.mxu0 0.0
      %3323 = vmatpush2.msra.mxu0 0.0
      %3324 = vmatprep.subr.mxu0 0.0
      %3325 = vmatpush2.msra.mxu0 0.0
      %3326 = vmatprep.subr.mxu0 0.0
      %3327 = vmatpush2.msra.mxu0 0.0
      %3328 = vmatprep.subr.mxu0 0.0
      %3329 = vmatpush2.msra.mxu0 0.0
      %3330 = vmatprep.subr.mxu0 0.0
      %3331 = vmatpush2.msra.mxu0 0.0
      %3332 = vmatprep.subr.mxu0 0.0
      %3333 = vmatpush2.msra.mxu0 0.0
      %3334 = vmatprep.subr.mxu0 0.0
      %3335 = vmatpush2.msra.mxu0 0.0
      %3336 = vmatprep.subr.mxu0 0.0
      %3337 = vmatpush2.msra.mxu0 0.0
      %3338 = vmatprep.subr.mxu0 0.0
      %3339 = vmatpush2.msra.mxu0 0.0
      %3340 = vmatprep.subr.mxu0 0.0
      %3341 = vmatpush2.msra.mxu0 0.0
      %3342 = vmatprep.subr.mxu0 0.0
      %3343 = vmatpush2.msra.mxu0 0.0
      %3344 = vmatprep.subr.mxu0 0.0
      %3345 = vmatpush2.msra.mxu0 0.0
      %3346 = vmatprep.subr.mxu0 0.0
      %3347 = vmatpush2.msra.mxu0 0.0
      %3348 = vmatprep.subr.mxu0 0.0
      %3349 = vmatpush2.msra.mxu0 0.0
      %3350 = vmatprep.mubr.f32.mxu0 0.0
      %v3351 = vand.u32 %v2248, 4294901760
      %v3352 = vsub.f32 %v2248, %v3351
      %v3353 = vand.u32 %v3352, 4294901760
      %3354 = vmatmul.mubr.f32.gmra.mxu0 %v3353
      %v3355 = vpop.f32.mrf.mxu0
      %v3356 = vadd.f32 %v3065, %v3355
      %v3357 = vpop.f32.mrf.mxu0
      %3358 = vmatprep.mubr.f32.mxu0 0.0
      %v3359 = vand.u32 %v2251, 4294901760
      %v3360 = vsub.f32 %v2251, %v3359
      %v3361 = vand.u32 %v3360, 4294901760
      %3362 = vmatmul.mubr.f32.gmra.mxu0 %v3361
      %v3363 = vpop.f32.mrf.mxu0
      %v3364 = vadd.f32 %v3072, %v3363
      %v3365 = vpop.f32.mrf.mxu0
      %3366 = vmatprep.mubr.f32.mxu0 0.0
      %v3367 = vand.u32 %v2254, 4294901760
      %v3368 = vsub.f32 %v2254, %v3367
      %v3369 = vand.u32 %v3368, 4294901760
      %3370 = vmatmul.mubr.f32.gmra.mxu0 %v3369
      %v3371 = vpop.f32.mrf.mxu0
      %v3372 = vadd.f32 %v3079, %v3371
      %v3373 = vpop.f32.mrf.mxu0
      %3374 = vmatprep.mubr.f32.mxu0 0.0
      %v3375 = vand.u32 %v2257, 4294901760
      %v3376 = vsub.f32 %v2257, %v3375
      %v3377 = vand.u32 %v3376, 4294901760
      %3378 = vmatmul.mubr.f32.gmra.mxu0 %v3377
      %v3379 = vpop.f32.mrf.mxu0
      %v3380 = vadd.f32 %v3086, %v3379
      %v3381 = vpop.f32.mrf.mxu0
      %3382 = vmatprep.mubr.f32.mxu0 0.0
      %v3383 = vand.u32 %v2260, 4294901760
      %v3384 = vsub.f32 %v2260, %v3383
      %v3385 = vand.u32 %v3384, 4294901760
      %3386 = vmatmul.mubr.f32.gmra.mxu0 %v3385
      %v3387 = vpop.f32.mrf.mxu0
      %v3388 = vadd.f32 %v3093, %v3387
      %v3389 = vpop.f32.mrf.mxu0
      %3390 = vmatprep.mubr.f32.mxu0 0.0
      %v3391 = vand.u32 %v2263, 4294901760
      %v3392 = vsub.f32 %v2263, %v3391
      %v3393 = vand.u32 %v3392, 4294901760
      %3394 = vmatmul.mubr.f32.gmra.mxu0 %v3393
      %v3395 = vpop.f32.mrf.mxu0
      %v3396 = vadd.f32 %v3100, %v3395
      %v3397 = vpop.f32.mrf.mxu0
      %3398 = vmatprep.mubr.f32.mxu0 0.0
      %v3399 = vand.u32 %v2266, 4294901760
      %v3400 = vsub.f32 %v2266, %v3399
      %v3401 = vand.u32 %v3400, 4294901760
      %3402 = vmatmul.mubr.f32.gmra.mxu0 %v3401
      %v3403 = vpop.f32.mrf.mxu0
      %v3404 = vadd.f32 %v3107, %v3403
      %v3405 = vpop.f32.mrf.mxu0
      %3406 = vmatprep.mubr.f32.mxu0 0.0
      %v3407 = vand.u32 %v2269, 4294901760
      %v3408 = vsub.f32 %v2269, %v3407
      %v3409 = vand.u32 %v3408, 4294901760
      %3410 = vmatmul.mubr.f32.gmra.mxu0 %v3409
      %v3411 = vpop.f32.mrf.mxu0
      %v3412 = vadd.f32 %v3114, %v3411
      %v3413 = vpop.f32.mrf.mxu0
      %3414 = vmatprep.mubr.f32.mxu0 0.0
      %v3415 = vand.u32 %v2272, 4294901760
      %v3416 = vsub.f32 %v2272, %v3415
      %v3417 = vand.u32 %v3416, 4294901760
      %3418 = vmatmul.mubr.f32.gmra.mxu0 %v3417
      %v3419 = vpop.f32.mrf.mxu0
      %v3420 = vadd.f32 %v3121, %v3419
      %v3421 = vpop.f32.mrf.mxu0
      %3422 = vmatprep.mubr.f32.mxu0 0.0
      %v3423 = vand.u32 %v2275, 4294901760
      %v3424 = vsub.f32 %v2275, %v3423
      %v3425 = vand.u32 %v3424, 4294901760
      %3426 = vmatmul.mubr.f32.gmra.mxu0 %v3425
      %v3427 = vpop.f32.mrf.mxu0
      %v3428 = vadd.f32 %v3128, %v3427
      %v3429 = vpop.f32.mrf.mxu0
      %3430 = vmatprep.mubr.f32.mxu0 0.0
      %v3431 = vand.u32 %v2278, 4294901760
      %v3432 = vsub.f32 %v2278, %v3431
      %v3433 = vand.u32 %v3432, 4294901760
      %3434 = vmatmul.mubr.f32.gmra.mxu0 %v3433
      %v3435 = vpop.f32.mrf.mxu0
      %v3436 = vadd.f32 %v3135, %v3435
      %v3437 = vpop.f32.mrf.mxu0
      %3438 = vmatprep.mubr.f32.mxu0 0.0
      %v3439 = vand.u32 %v2281, 4294901760
      %v3440 = vsub.f32 %v2281, %v3439
      %v3441 = vand.u32 %v3440, 4294901760
      %3442 = vmatmul.mubr.f32.gmra.mxu0 %v3441
      %v3443 = vpop.f32.mrf.mxu0
      %v3444 = vadd.f32 %v3142, %v3443
      %v3445 = vpop.f32.mrf.mxu0
      %3446 = vmatprep.mubr.f32.mxu0 0.0
      %v3447 = vand.u32 %v2284, 4294901760
      %v3448 = vsub.f32 %v2284, %v3447
      %v3449 = vand.u32 %v3448, 4294901760
      %3450 = vmatmul.mubr.f32.gmra.mxu0 %v3449
      %v3451 = vpop.f32.mrf.mxu0
      %v3452 = vadd.f32 %v3149, %v3451
      %v3453 = vpop.f32.mrf.mxu0
      %3454 = vmatprep.mubr.f32.mxu0 0.0
      %v3455 = vand.u32 %v2287, 4294901760
      %v3456 = vsub.f32 %v2287, %v3455
      %v3457 = vand.u32 %v3456, 4294901760
      %3458 = vmatmul.mubr.f32.gmra.mxu0 %v3457
      %v3459 = vpop.f32.mrf.mxu0
      %v3460 = vadd.f32 %v3156, %v3459
      %v3461 = vpop.f32.mrf.mxu0
      %3462 = vmatprep.mubr.f32.mxu0 0.0
      %v3463 = vand.u32 %v2290, 4294901760
      %v3464 = vsub.f32 %v2290, %v3463
      %v3465 = vand.u32 %v3464, 4294901760
      %3466 = vmatmul.mubr.f32.gmra.mxu0 %v3465
      %v3467 = vpop.f32.mrf.mxu0
      %v3468 = vadd.f32 %v3163, %v3467
      %v3469 = vpop.f32.mrf.mxu0
      %3470 = vmatprep.mubr.f32.mxu0 0.0
      %v3471 = vand.u32 %v2293, 4294901760
      %v3472 = vsub.f32 %v2293, %v3471
      %v3473 = vand.u32 %v3472, 4294901760
      %3474 = vmatmul.mubr.f32.gmra.mxu0 %v3473
      %v3475 = vpop.f32.mrf.mxu0
      %v3476 = vadd.f32 %v3170, %v3475
      %v3477 = vpop.f32.mrf.mxu0
      %3478 = vmatprep.mubr.f32.mxu0 0.0
      %v3479 = vand.u32 %v2296, 4294901760
      %v3480 = vsub.f32 %v2296, %v3479
      %v3481 = vand.u32 %v3480, 4294901760
      %3482 = vmatmul.mubr.f32.gmra.mxu0 %v3481
      %v3483 = vpop.f32.mrf.mxu0
      %v3484 = vadd.f32 %v3177, %v3483
      %v3485 = vpop.f32.mrf.mxu0
      %3486 = vmatprep.mubr.f32.mxu0 0.0
      %v3487 = vand.u32 %v2299, 4294901760
      %v3488 = vsub.f32 %v2299, %v3487
      %v3489 = vand.u32 %v3488, 4294901760
      %3490 = vmatmul.mubr.f32.gmra.mxu0 %v3489
      %v3491 = vpop.f32.mrf.mxu0
      %v3492 = vadd.f32 %v3184, %v3491
      %v3493 = vpop.f32.mrf.mxu0
      %3494 = vmatprep.mubr.f32.mxu0 0.0
      %v3495 = vand.u32 %v2302, 4294901760
      %v3496 = vsub.f32 %v2302, %v3495
      %v3497 = vand.u32 %v3496, 4294901760
      %3498 = vmatmul.mubr.f32.gmra.mxu0 %v3497
      %v3499 = vpop.f32.mrf.mxu0
      %v3500 = vadd.f32 %v3191, %v3499
      %v3501 = vpop.f32.mrf.mxu0
      %3502 = vmatprep.mubr.f32.mxu0 0.0
      %v3503 = vand.u32 %v2305, 4294901760
      %v3504 = vsub.f32 %v2305, %v3503
      %v3505 = vand.u32 %v3504, 4294901760
      %3506 = vmatmul.mubr.f32.gmra.mxu0 %v3505
      %v3507 = vpop.f32.mrf.mxu0
      %v3508 = vadd.f32 %v3198, %v3507
      %v3509 = vpop.f32.mrf.mxu0
      %3510 = vmatprep.mubr.f32.mxu0 0.0
      %v3511 = vand.u32 %v2308, 4294901760
      %v3512 = vsub.f32 %v2308, %v3511
      %v3513 = vand.u32 %v3512, 4294901760
      %3514 = vmatmul.mubr.f32.gmra.mxu0 %v3513
      %v3515 = vpop.f32.mrf.mxu0
      %v3516 = vadd.f32 %v3205, %v3515
      %v3517 = vpop.f32.mrf.mxu0
      %3518 = vmatprep.mubr.f32.mxu0 0.0
      %v3519 = vand.u32 %v2311, 4294901760
      %v3520 = vsub.f32 %v2311, %v3519
      %v3521 = vand.u32 %v3520, 4294901760
      %3522 = vmatmul.mubr.f32.gmra.mxu0 %v3521
      %v3523 = vpop.f32.mrf.mxu0
      %v3524 = vadd.f32 %v3212, %v3523
      %v3525 = vpop.f32.mrf.mxu0
      %3526 = vmatprep.mubr.f32.mxu0 0.0
      %v3527 = vand.u32 %v2314, 4294901760
      %v3528 = vsub.f32 %v2314, %v3527
      %v3529 = vand.u32 %v3528, 4294901760
      %3530 = vmatmul.mubr.f32.gmra.mxu0 %v3529
      %v3531 = vpop.f32.mrf.mxu0
      %v3532 = vadd.f32 %v3219, %v3531
      %v3533 = vpop.f32.mrf.mxu0
      %3534 = vmatprep.mubr.f32.mxu0 0.0
      %v3535 = vand.u32 %v2317, 4294901760
      %v3536 = vsub.f32 %v2317, %v3535
      %v3537 = vand.u32 %v3536, 4294901760
      %3538 = vmatmul.mubr.f32.gmra.mxu0 %v3537
      %v3539 = vpop.f32.mrf.mxu0
      %v3540 = vadd.f32 %v3226, %v3539
      %v3541 = vpop.f32.mrf.mxu0
      %3542 = vmatprep.mubr.f32.mxu0 0.0
      %v3543 = vand.u32 %v2320, 4294901760
      %v3544 = vsub.f32 %v2320, %v3543
      %v3545 = vand.u32 %v3544, 4294901760
      %3546 = vmatmul.mubr.f32.gmra.mxu0 %v3545
      %v3547 = vpop.f32.mrf.mxu0
      %v3548 = vadd.f32 %v3233, %v3547
      %v3549 = vpop.f32.mrf.mxu0
      %3550 = vmatprep.mubr.f32.mxu0 0.0
      %v3551 = vand.u32 %v2323, 4294901760
      %v3552 = vsub.f32 %v2323, %v3551
      %v3553 = vand.u32 %v3552, 4294901760
      %3554 = vmatmul.mubr.f32.gmra.mxu0 %v3553
      %v3555 = vpop.f32.mrf.mxu0
      %v3556 = vadd.f32 %v3240, %v3555
      %v3557 = vpop.f32.mrf.mxu0
      %3558 = vmatprep.mubr.f32.mxu0 0.0
      %v3559 = vand.u32 %v2326, 4294901760
      %v3560 = vsub.f32 %v2326, %v3559
      %v3561 = vand.u32 %v3560, 4294901760
      %3562 = vmatmul.mubr.f32.gmra.mxu0 %v3561
      %v3563 = vpop.f32.mrf.mxu0
      %v3564 = vadd.f32 %v3247, %v3563
      %v3565 = vpop.f32.mrf.mxu0
      %3566 = vmatprep.mubr.f32.mxu0 0.0
      %v3567 = vand.u32 %v2329, 4294901760
      %v3568 = vsub.f32 %v2329, %v3567
      %v3569 = vand.u32 %v3568, 4294901760
      %3570 = vmatmul.mubr.f32.gmra.mxu0 %v3569
      %v3571 = vpop.f32.mrf.mxu0
      %v3572 = vadd.f32 %v3254, %v3571
      %v3573 = vpop.f32.mrf.mxu0
      %3574 = vmatprep.mubr.f32.mxu0 0.0
      %v3575 = vand.u32 %v2332, 4294901760
      %v3576 = vsub.f32 %v2332, %v3575
      %v3577 = vand.u32 %v3576, 4294901760
      %3578 = vmatmul.mubr.f32.gmra.mxu0 %v3577
      %v3579 = vpop.f32.mrf.mxu0
      %v3580 = vadd.f32 %v3261, %v3579
      %v3581 = vpop.f32.mrf.mxu0
      %3582 = vmatprep.mubr.f32.mxu0 0.0
      %v3583 = vand.u32 %v2335, 4294901760
      %v3584 = vsub.f32 %v2335, %v3583
      %v3585 = vand.u32 %v3584, 4294901760
      %3586 = vmatmul.mubr.f32.gmra.mxu0 %v3585
      %v3587 = vpop.f32.mrf.mxu0
      %v3588 = vadd.f32 %v3268, %v3587
      %v3589 = vpop.f32.mrf.mxu0
      %3590 = vmatprep.mubr.f32.mxu0 0.0
      %v3591 = vand.u32 %v2338, 4294901760
      %v3592 = vsub.f32 %v2338, %v3591
      %v3593 = vand.u32 %v3592, 4294901760
      %3594 = vmatmul.mubr.f32.gmra.mxu0 %v3593
      %v3595 = vpop.f32.mrf.mxu0
      %v3596 = vadd.f32 %v3275, %v3595
      %v3597 = vpop.f32.mrf.mxu0
      %3598 = vmatprep.mubr.f32.mxu0 0.0
      %v3599 = vand.u32 %v2341, 4294901760
      %v3600 = vsub.f32 %v2341, %v3599
      %v3601 = vand.u32 %v3600, 4294901760
      %3602 = vmatmul.mubr.f32.gmra.mxu0 %v3601
      %v3603 = vpop.f32.mrf.mxu0
      %v3604 = vadd.f32 %v3282, %v3603
      %v3605 = vpop.f32.mrf.mxu0
      %3606 = vdwg.mxu0
      %3607 = vmatprep.subr.mxu0 0.0
      %3608 = vmatpush1.msra.mxu0 0.0
      %3609 = vmatprep.subr.mxu0 0.0
      %3610 = vmatpush1.msra.mxu0 0.0
      %3611 = vmatprep.subr.mxu0 0.0
      %3612 = vmatpush1.msra.mxu0 0.0
      %3613 = vmatprep.subr.mxu0 0.0
      %3614 = vmatpush1.msra.mxu0 0.0
      %3615 = vmatprep.subr.mxu0 0.0
      %3616 = vmatpush1.msra.mxu0 0.0
      %3617 = vmatprep.subr.mxu0 0.0
      %3618 = vmatpush1.msra.mxu0 0.0
      %3619 = vmatprep.subr.mxu0 0.0
      %3620 = vmatpush1.msra.mxu0 0.0
      %3621 = vmatprep.subr.mxu0 0.0
      %3622 = vmatpush1.msra.mxu0 0.0
      %3623 = vmatprep.subr.mxu0 0.0
      %3624 = vmatpush1.msra.mxu0 0.0
      %3625 = vmatprep.subr.mxu0 0.0
      %3626 = vmatpush1.msra.mxu0 0.0
      %3627 = vmatprep.subr.mxu0 0.0
      %3628 = vmatpush1.msra.mxu0 0.0
      %3629 = vmatprep.subr.mxu0 0.0
      %3630 = vmatpush1.msra.mxu0 0.0
      %3631 = vmatprep.subr.mxu0 0.0
      %3632 = vmatpush1.msra.mxu0 0.0
      %3633 = vmatprep.subr.mxu0 0.0
      %3634 = vmatpush1.msra.mxu0 0.0
      %3635 = vmatprep.subr.mxu0 0.0
      %3636 = vmatpush1.msra.mxu0 0.0
      %3637 = vmatprep.subr.mxu0 0.0
      %v3638 = vand.u32 %v2344, 4294901760
      %v3639 = vsub.f32 %v2344, %v3638
      %v3640 = vand.u32 %v3639, 4294901760
      %3641 = vmatpush1.msra.mxu0 %v3640
      %3642 = vmatprep.subr.mxu0 0.0
      %3643 = vmatpush2.msra.mxu0 0.0
      %3644 = vmatprep.subr.mxu0 0.0
      %3645 = vmatpush2.msra.mxu0 0.0
      %3646 = vmatprep.subr.mxu0 0.0
      %3647 = vmatpush2.msra.mxu0 0.0
      %3648 = vmatprep.subr.mxu0 0.0
      %3649 = vmatpush2.msra.mxu0 0.0
      %3650 = vmatprep.subr.mxu0 0.0
      %3651 = vmatpush2.msra.mxu0 0.0
      %3652 = vmatprep.subr.mxu0 0.0
      %3653 = vmatpush2.msra.mxu0 0.0
      %3654 = vmatprep.subr.mxu0 0.0
      %3655 = vmatpush2.msra.mxu0 0.0
      %3656 = vmatprep.subr.mxu0 0.0
      %3657 = vmatpush2.msra.mxu0 0.0
      %3658 = vmatprep.subr.mxu0 0.0
      %3659 = vmatpush2.msra.mxu0 0.0
      %3660 = vmatprep.subr.mxu0 0.0
      %3661 = vmatpush2.msra.mxu0 0.0
      %3662 = vmatprep.subr.mxu0 0.0
      %3663 = vmatpush2.msra.mxu0 0.0
      %3664 = vmatprep.subr.mxu0 0.0
      %3665 = vmatpush2.msra.mxu0 0.0
      %3666 = vmatprep.subr.mxu0 0.0
      %3667 = vmatpush2.msra.mxu0 0.0
      %3668 = vmatprep.subr.mxu0 0.0
      %3669 = vmatpush2.msra.mxu0 0.0
      %3670 = vmatprep.subr.mxu0 0.0
      %3671 = vmatpush2.msra.mxu0 0.0
      %3672 = vmatprep.subr.mxu0 0.0
      %3673 = vmatpush2.msra.mxu0 0.0
      %3674 = vmatprep.mubr.f32.mxu0 0.0
      %v3675 = vand.u32 %v2248, 4294901760
      %3676 = vmatmul.mubr.f32.gmra.mxu0 %v3675
      %v3677 = vpop.f32.mrf.mxu0
      %v3678 = vadd.f32 %v3356, %v3677
      %v3679 = vpop.f32.mrf.mxu0
      %3680 = vmatprep.mubr.f32.mxu0 0.0
      %v3681 = vand.u32 %v2251, 4294901760
      %3682 = vmatmul.mubr.f32.gmra.mxu0 %v3681
      %v3683 = vpop.f32.mrf.mxu0
      %v3684 = vadd.f32 %v3364, %v3683
      %v3685 = vpop.f32.mrf.mxu0
      %3686 = vmatprep.mubr.f32.mxu0 0.0
      %v3687 = vand.u32 %v2254, 4294901760
      %3688 = vmatmul.mubr.f32.gmra.mxu0 %v3687
      %v3689 = vpop.f32.mrf.mxu0
      %v3690 = vadd.f32 %v3372, %v3689
      %v3691 = vpop.f32.mrf.mxu0
      %3692 = vmatprep.mubr.f32.mxu0 0.0
      %v3693 = vand.u32 %v2257, 4294901760
      %3694 = vmatmul.mubr.f32.gmra.mxu0 %v3693
      %v3695 = vpop.f32.mrf.mxu0
      %v3696 = vadd.f32 %v3380, %v3695
      %v3697 = vpop.f32.mrf.mxu0
      %3698 = vmatprep.mubr.f32.mxu0 0.0
      %v3699 = vand.u32 %v2260, 4294901760
      %3700 = vmatmul.mubr.f32.gmra.mxu0 %v3699
      %v3701 = vpop.f32.mrf.mxu0
      %v3702 = vadd.f32 %v3388, %v3701
      %v3703 = vpop.f32.mrf.mxu0
      %3704 = vmatprep.mubr.f32.mxu0 0.0
      %v3705 = vand.u32 %v2263, 4294901760
      %3706 = vmatmul.mubr.f32.gmra.mxu0 %v3705
      %v3707 = vpop.f32.mrf.mxu0
      %v3708 = vadd.f32 %v3396, %v3707
      %v3709 = vpop.f32.mrf.mxu0
      %3710 = vmatprep.mubr.f32.mxu0 0.0
      %v3711 = vand.u32 %v2266, 4294901760
      %3712 = vmatmul.mubr.f32.gmra.mxu0 %v3711
      %v3713 = vpop.f32.mrf.mxu0
      %v3714 = vadd.f32 %v3404, %v3713
      %v3715 = vpop.f32.mrf.mxu0
      %3716 = vmatprep.mubr.f32.mxu0 0.0
      %v3717 = vand.u32 %v2269, 4294901760
      %3718 = vmatmul.mubr.f32.gmra.mxu0 %v3717
      %v3719 = vpop.f32.mrf.mxu0
      %v3720 = vadd.f32 %v3412, %v3719
      %v3721 = vpop.f32.mrf.mxu0
      %3722 = vmatprep.mubr.f32.mxu0 0.0
      %v3723 = vand.u32 %v2272, 4294901760
      %3724 = vmatmul.mubr.f32.gmra.mxu0 %v3723
      %v3725 = vpop.f32.mrf.mxu0
      %v3726 = vadd.f32 %v3420, %v3725
      %v3727 = vpop.f32.mrf.mxu0
      %3728 = vmatprep.mubr.f32.mxu0 0.0
      %v3729 = vand.u32 %v2275, 4294901760
      %3730 = vmatmul.mubr.f32.gmra.mxu0 %v3729
      %v3731 = vpop.f32.mrf.mxu0
      %v3732 = vadd.f32 %v3428, %v3731
      %v3733 = vpop.f32.mrf.mxu0
      %3734 = vmatprep.mubr.f32.mxu0 0.0
      %v3735 = vand.u32 %v2278, 4294901760
      %3736 = vmatmul.mubr.f32.gmra.mxu0 %v3735
      %v3737 = vpop.f32.mrf.mxu0
      %v3738 = vadd.f32 %v3436, %v3737
      %v3739 = vpop.f32.mrf.mxu0
      %3740 = vmatprep.mubr.f32.mxu0 0.0
      %v3741 = vand.u32 %v2281, 4294901760
      %3742 = vmatmul.mubr.f32.gmra.mxu0 %v3741
      %v3743 = vpop.f32.mrf.mxu0
      %v3744 = vadd.f32 %v3444, %v3743
      %v3745 = vpop.f32.mrf.mxu0
      %3746 = vmatprep.mubr.f32.mxu0 0.0
      %v3747 = vand.u32 %v2284, 4294901760
      %3748 = vmatmul.mubr.f32.gmra.mxu0 %v3747
      %v3749 = vpop.f32.mrf.mxu0
      %v3750 = vadd.f32 %v3452, %v3749
      %v3751 = vpop.f32.mrf.mxu0
      %3752 = vmatprep.mubr.f32.mxu0 0.0
      %v3753 = vand.u32 %v2287, 4294901760
      %3754 = vmatmul.mubr.f32.gmra.mxu0 %v3753
      %v3755 = vpop.f32.mrf.mxu0
      %v3756 = vadd.f32 %v3460, %v3755
      %v3757 = vpop.f32.mrf.mxu0
      %3758 = vmatprep.mubr.f32.mxu0 0.0
      %v3759 = vand.u32 %v2290, 4294901760
      %3760 = vmatmul.mubr.f32.gmra.mxu0 %v3759
      %v3761 = vpop.f32.mrf.mxu0
      %v3762 = vadd.f32 %v3468, %v3761
      %v3763 = vpop.f32.mrf.mxu0
      %3764 = vmatprep.mubr.f32.mxu0 0.0
      %v3765 = vand.u32 %v2293, 4294901760
      %3766 = vmatmul.mubr.f32.gmra.mxu0 %v3765
      %v3767 = vpop.f32.mrf.mxu0
      %v3768 = vadd.f32 %v3476, %v3767
      %v3769 = vpop.f32.mrf.mxu0
      %3770 = vmatprep.mubr.f32.mxu0 0.0
      %v3771 = vand.u32 %v2296, 4294901760
      %3772 = vmatmul.mubr.f32.gmra.mxu0 %v3771
      %v3773 = vpop.f32.mrf.mxu0
      %v3774 = vadd.f32 %v3484, %v3773
      %v3775 = vpop.f32.mrf.mxu0
      %3776 = vmatprep.mubr.f32.mxu0 0.0
      %v3777 = vand.u32 %v2299, 4294901760
      %3778 = vmatmul.mubr.f32.gmra.mxu0 %v3777
      %v3779 = vpop.f32.mrf.mxu0
      %v3780 = vadd.f32 %v3492, %v3779
      %v3781 = vpop.f32.mrf.mxu0
      %3782 = vmatprep.mubr.f32.mxu0 0.0
      %v3783 = vand.u32 %v2302, 4294901760
      %3784 = vmatmul.mubr.f32.gmra.mxu0 %v3783
      %v3785 = vpop.f32.mrf.mxu0
      %v3786 = vadd.f32 %v3500, %v3785
      %v3787 = vpop.f32.mrf.mxu0
      %3788 = vmatprep.mubr.f32.mxu0 0.0
      %v3789 = vand.u32 %v2305, 4294901760
      %3790 = vmatmul.mubr.f32.gmra.mxu0 %v3789
      %v3791 = vpop.f32.mrf.mxu0
      %v3792 = vadd.f32 %v3508, %v3791
      %v3793 = vpop.f32.mrf.mxu0
      %3794 = vmatprep.mubr.f32.mxu0 0.0
      %v3795 = vand.u32 %v2308, 4294901760
      %3796 = vmatmul.mubr.f32.gmra.mxu0 %v3795
      %v3797 = vpop.f32.mrf.mxu0
      %v3798 = vadd.f32 %v3516, %v3797
      %v3799 = vpop.f32.mrf.mxu0
      %3800 = vmatprep.mubr.f32.mxu0 0.0
      %v3801 = vand.u32 %v2311, 4294901760
      %3802 = vmatmul.mubr.f32.gmra.mxu0 %v3801
      %v3803 = vpop.f32.mrf.mxu0
      %v3804 = vadd.f32 %v3524, %v3803
      %v3805 = vpop.f32.mrf.mxu0
      %3806 = vmatprep.mubr.f32.mxu0 0.0
      %v3807 = vand.u32 %v2314, 4294901760
      %3808 = vmatmul.mubr.f32.gmra.mxu0 %v3807
      %v3809 = vpop.f32.mrf.mxu0
      %v3810 = vadd.f32 %v3532, %v3809
      %v3811 = vpop.f32.mrf.mxu0
      %3812 = vmatprep.mubr.f32.mxu0 0.0
      %v3813 = vand.u32 %v2317, 4294901760
      %3814 = vmatmul.mubr.f32.gmra.mxu0 %v3813
      %v3815 = vpop.f32.mrf.mxu0
      %v3816 = vadd.f32 %v3540, %v3815
      %v3817 = vpop.f32.mrf.mxu0
      %3818 = vmatprep.mubr.f32.mxu0 0.0
      %v3819 = vand.u32 %v2320, 4294901760
      %3820 = vmatmul.mubr.f32.gmra.mxu0 %v3819
      %v3821 = vpop.f32.mrf.mxu0
      %v3822 = vadd.f32 %v3548, %v3821
      %v3823 = vpop.f32.mrf.mxu0
      %3824 = vmatprep.mubr.f32.mxu0 0.0
      %v3825 = vand.u32 %v2323, 4294901760
      %3826 = vmatmul.mubr.f32.gmra.mxu0 %v3825
      %v3827 = vpop.f32.mrf.mxu0
      %v3828 = vadd.f32 %v3556, %v3827
      %v3829 = vpop.f32.mrf.mxu0
      %3830 = vmatprep.mubr.f32.mxu0 0.0
      %v3831 = vand.u32 %v2326, 4294901760
      %3832 = vmatmul.mubr.f32.gmra.mxu0 %v3831
      %v3833 = vpop.f32.mrf.mxu0
      %v3834 = vadd.f32 %v3564, %v3833
      %v3835 = vpop.f32.mrf.mxu0
      %3836 = vmatprep.mubr.f32.mxu0 0.0
      %v3837 = vand.u32 %v2329, 4294901760
      %3838 = vmatmul.mubr.f32.gmra.mxu0 %v3837
      %v3839 = vpop.f32.mrf.mxu0
      %v3840 = vadd.f32 %v3572, %v3839
      %v3841 = vpop.f32.mrf.mxu0
      %3842 = vmatprep.mubr.f32.mxu0 0.0
      %v3843 = vand.u32 %v2332, 4294901760
      %3844 = vmatmul.mubr.f32.gmra.mxu0 %v3843
      %v3845 = vpop.f32.mrf.mxu0
      %v3846 = vadd.f32 %v3580, %v3845
      %v3847 = vpop.f32.mrf.mxu0
      %3848 = vmatprep.mubr.f32.mxu0 0.0
      %v3849 = vand.u32 %v2335, 4294901760
      %3850 = vmatmul.mubr.f32.gmra.mxu0 %v3849
      %v3851 = vpop.f32.mrf.mxu0
      %v3852 = vadd.f32 %v3588, %v3851
      %v3853 = vpop.f32.mrf.mxu0
      %3854 = vmatprep.mubr.f32.mxu0 0.0
      %v3855 = vand.u32 %v2338, 4294901760
      %3856 = vmatmul.mubr.f32.gmra.mxu0 %v3855
      %v3857 = vpop.f32.mrf.mxu0
      %v3858 = vadd.f32 %v3596, %v3857
      %v3859 = vpop.f32.mrf.mxu0
      %3860 = vmatprep.mubr.f32.mxu0 0.0
      %v3861 = vand.u32 %v2341, 4294901760
      %3862 = vmatmul.mubr.f32.gmra.mxu0 %v3861
      %v3863 = vpop.f32.mrf.mxu0
      %v3864 = vadd.f32 %v3604, %v3863
      %v3865 = vpop.f32.mrf.mxu0
      %3866 = vdwg.mxu0
      %3867 = vmatprep.subr.mxu0 0.0
      %3868 = vmatpush1.msra.mxu0 0.0
      %3869 = vmatprep.subr.mxu0 0.0
      %3870 = vmatpush1.msra.mxu0 0.0
      %3871 = vmatprep.subr.mxu0 0.0
      %3872 = vmatpush1.msra.mxu0 0.0
      %3873 = vmatprep.subr.mxu0 0.0
      %3874 = vmatpush1.msra.mxu0 0.0
      %3875 = vmatprep.subr.mxu0 0.0
      %3876 = vmatpush1.msra.mxu0 0.0
      %3877 = vmatprep.subr.mxu0 0.0
      %3878 = vmatpush1.msra.mxu0 0.0
      %3879 = vmatprep.subr.mxu0 0.0
      %3880 = vmatpush1.msra.mxu0 0.0
      %3881 = vmatprep.subr.mxu0 0.0
      %3882 = vmatpush1.msra.mxu0 0.0
      %3883 = vmatprep.subr.mxu0 0.0
      %3884 = vmatpush1.msra.mxu0 0.0
      %3885 = vmatprep.subr.mxu0 0.0
      %3886 = vmatpush1.msra.mxu0 0.0
      %3887 = vmatprep.subr.mxu0 0.0
      %3888 = vmatpush1.msra.mxu0 0.0
      %3889 = vmatprep.subr.mxu0 0.0
      %3890 = vmatpush1.msra.mxu0 0.0
      %3891 = vmatprep.subr.mxu0 0.0
      %3892 = vmatpush1.msra.mxu0 0.0
      %3893 = vmatprep.subr.mxu0 0.0
      %3894 = vmatpush1.msra.mxu0 0.0
      %3895 = vmatprep.subr.mxu0 0.0
      %3896 = vmatpush1.msra.mxu0 0.0
      %3897 = vmatprep.subr.mxu0 0.0
      %v3898 = vand.u32 %v2344, 4294901760
      %3899 = vmatpush1.msra.mxu0 %v3898
      %3900 = vmatprep.subr.mxu0 0.0
      %3901 = vmatpush2.msra.mxu0 0.0
      %3902 = vmatprep.subr.mxu0 0.0
      %3903 = vmatpush2.msra.mxu0 0.0
      %3904 = vmatprep.subr.mxu0 0.0
      %3905 = vmatpush2.msra.mxu0 0.0
      %3906 = vmatprep.subr.mxu0 0.0
      %3907 = vmatpush2.msra.mxu0 0.0
      %3908 = vmatprep.subr.mxu0 0.0
      %3909 = vmatpush2.msra.mxu0 0.0
      %3910 = vmatprep.subr.mxu0 0.0
      %3911 = vmatpush2.msra.mxu0 0.0
      %3912 = vmatprep.subr.mxu0 0.0
      %3913 = vmatpush2.msra.mxu0 0.0
      %3914 = vmatprep.subr.mxu0 0.0
      %3915 = vmatpush2.msra.mxu0 0.0
      %3916 = vmatprep.subr.mxu0 0.0
      %3917 = vmatpush2.msra.mxu0 0.0
      %3918 = vmatprep.subr.mxu0 0.0
      %3919 = vmatpush2.msra.mxu0 0.0
      %3920 = vmatprep.subr.mxu0 0.0
      %3921 = vmatpush2.msra.mxu0 0.0
      %3922 = vmatprep.subr.mxu0 0.0
      %3923 = vmatpush2.msra.mxu0 0.0
      %3924 = vmatprep.subr.mxu0 0.0
      %3925 = vmatpush2.msra.mxu0 0.0
      %3926 = vmatprep.subr.mxu0 0.0
      %3927 = vmatpush2.msra.mxu0 0.0
      %3928 = vmatprep.subr.mxu0 0.0
      %3929 = vmatpush2.msra.mxu0 0.0
      %3930 = vmatprep.subr.mxu0 0.0
      %3931 = vmatpush2.msra.mxu0 0.0
      %3932 = vmatprep.mubr.f32.mxu0 0.0
      %v3933 = vand.u32 %v2248, 4294901760
      %3934 = vmatmul.mubr.f32.gmra.mxu0 %v3933
      %v3935 = vpop.f32.mrf.mxu0
      %v3936 = vadd.f32 %v3678, %v3935
      %v3937 = vpop.f32.mrf.mxu0
      %3938 = vmatprep.mubr.f32.mxu0 0.0
      %v3939 = vand.u32 %v2251, 4294901760
      %3940 = vmatmul.mubr.f32.gmra.mxu0 %v3939
      %v3941 = vpop.f32.mrf.mxu0
      %v3942 = vadd.f32 %v3684, %v3941
      %v3943 = vpop.f32.mrf.mxu0
      %3944 = vmatprep.mubr.f32.mxu0 0.0
      %v3945 = vand.u32 %v2254, 4294901760
      %3946 = vmatmul.mubr.f32.gmra.mxu0 %v3945
      %v3947 = vpop.f32.mrf.mxu0
      %v3948 = vadd.f32 %v3690, %v3947
      %v3949 = vpop.f32.mrf.mxu0
      %3950 = vmatprep.mubr.f32.mxu0 0.0
      %v3951 = vand.u32 %v2257, 4294901760
      %3952 = vmatmul.mubr.f32.gmra.mxu0 %v3951
      %v3953 = vpop.f32.mrf.mxu0
      %v3954 = vadd.f32 %v3696, %v3953
      %v3955 = vpop.f32.mrf.mxu0
      %3956 = vmatprep.mubr.f32.mxu0 0.0
      %v3957 = vand.u32 %v2260, 4294901760
      %3958 = vmatmul.mubr.f32.gmra.mxu0 %v3957
      %v3959 = vpop.f32.mrf.mxu0
      %v3960 = vadd.f32 %v3702, %v3959
      %v3961 = vpop.f32.mrf.mxu0
      %3962 = vmatprep.mubr.f32.mxu0 0.0
      %v3963 = vand.u32 %v2263, 4294901760
      %3964 = vmatmul.mubr.f32.gmra.mxu0 %v3963
      %v3965 = vpop.f32.mrf.mxu0
      %v3966 = vadd.f32 %v3708, %v3965
      %v3967 = vpop.f32.mrf.mxu0
      %3968 = vmatprep.mubr.f32.mxu0 0.0
      %v3969 = vand.u32 %v2266, 4294901760
      %3970 = vmatmul.mubr.f32.gmra.mxu0 %v3969
      %v3971 = vpop.f32.mrf.mxu0
      %v3972 = vadd.f32 %v3714, %v3971
      %v3973 = vpop.f32.mrf.mxu0
      %3974 = vmatprep.mubr.f32.mxu0 0.0
      %v3975 = vand.u32 %v2269, 4294901760
      %3976 = vmatmul.mubr.f32.gmra.mxu0 %v3975
      %v3977 = vpop.f32.mrf.mxu0
      %v3978 = vadd.f32 %v3720, %v3977
      %v3979 = vpop.f32.mrf.mxu0
      %3980 = vmatprep.mubr.f32.mxu0 0.0
      %v3981 = vand.u32 %v2272, 4294901760
      %3982 = vmatmul.mubr.f32.gmra.mxu0 %v3981
      %v3983 = vpop.f32.mrf.mxu0
      %v3984 = vadd.f32 %v3726, %v3983
      %v3985 = vpop.f32.mrf.mxu0
      %3986 = vmatprep.mubr.f32.mxu0 0.0
      %v3987 = vand.u32 %v2275, 4294901760
      %3988 = vmatmul.mubr.f32.gmra.mxu0 %v3987
      %v3989 = vpop.f32.mrf.mxu0
      %v3990 = vadd.f32 %v3732, %v3989
      %v3991 = vpop.f32.mrf.mxu0
      %3992 = vmatprep.mubr.f32.mxu0 0.0
      %v3993 = vand.u32 %v2278, 4294901760
      %3994 = vmatmul.mubr.f32.gmra.mxu0 %v3993
      %v3995 = vpop.f32.mrf.mxu0
      %v3996 = vadd.f32 %v3738, %v3995
      %v3997 = vpop.f32.mrf.mxu0
      %3998 = vmatprep.mubr.f32.mxu0 0.0
      %v3999 = vand.u32 %v2281, 4294901760
      %4000 = vmatmul.mubr.f32.gmra.mxu0 %v3999
      %v4001 = vpop.f32.mrf.mxu0
      %v4002 = vadd.f32 %v3744, %v4001
      %v4003 = vpop.f32.mrf.mxu0
      %4004 = vmatprep.mubr.f32.mxu0 0.0
      %v4005 = vand.u32 %v2284, 4294901760
      %4006 = vmatmul.mubr.f32.gmra.mxu0 %v4005
      %v4007 = vpop.f32.mrf.mxu0
      %v4008 = vadd.f32 %v3750, %v4007
      %v4009 = vpop.f32.mrf.mxu0
      %4010 = vmatprep.mubr.f32.mxu0 0.0
      %v4011 = vand.u32 %v2287, 4294901760
      %4012 = vmatmul.mubr.f32.gmra.mxu0 %v4011
      %v4013 = vpop.f32.mrf.mxu0
      %v4014 = vadd.f32 %v3756, %v4013
      %v4015 = vpop.f32.mrf.mxu0
      %4016 = vmatprep.mubr.f32.mxu0 0.0
      %v4017 = vand.u32 %v2290, 4294901760
      %4018 = vmatmul.mubr.f32.gmra.mxu0 %v4017
      %v4019 = vpop.f32.mrf.mxu0
      %v4020 = vadd.f32 %v3762, %v4019
      %v4021 = vpop.f32.mrf.mxu0
      %4022 = vmatprep.mubr.f32.mxu0 0.0
      %v4023 = vand.u32 %v2293, 4294901760
      %4024 = vmatmul.mubr.f32.gmra.mxu0 %v4023
      %v4025 = vpop.f32.mrf.mxu0
      %v4026 = vadd.f32 %v3768, %v4025
      %v4027 = vpop.f32.mrf.mxu0
      %4028 = vmatprep.mubr.f32.mxu0 0.0
      %v4029 = vand.u32 %v2296, 4294901760
      %4030 = vmatmul.mubr.f32.gmra.mxu0 %v4029
      %v4031 = vpop.f32.mrf.mxu0
      %v4032 = vadd.f32 %v3774, %v4031
      %v4033 = vpop.f32.mrf.mxu0
      %4034 = vmatprep.mubr.f32.mxu0 0.0
      %v4035 = vand.u32 %v2299, 4294901760
      %4036 = vmatmul.mubr.f32.gmra.mxu0 %v4035
      %v4037 = vpop.f32.mrf.mxu0
      %v4038 = vadd.f32 %v3780, %v4037
      %v4039 = vpop.f32.mrf.mxu0
      %4040 = vmatprep.mubr.f32.mxu0 0.0
      %v4041 = vand.u32 %v2302, 4294901760
      %4042 = vmatmul.mubr.f32.gmra.mxu0 %v4041
      %v4043 = vpop.f32.mrf.mxu0
      %v4044 = vadd.f32 %v3786, %v4043
      %v4045 = vpop.f32.mrf.mxu0
      %4046 = vmatprep.mubr.f32.mxu0 0.0
      %v4047 = vand.u32 %v2305, 4294901760
      %4048 = vmatmul.mubr.f32.gmra.mxu0 %v4047
      %v4049 = vpop.f32.mrf.mxu0
      %v4050 = vadd.f32 %v3792, %v4049
      %v4051 = vpop.f32.mrf.mxu0
      %4052 = vmatprep.mubr.f32.mxu0 0.0
      %v4053 = vand.u32 %v2308, 4294901760
      %4054 = vmatmul.mubr.f32.gmra.mxu0 %v4053
      %v4055 = vpop.f32.mrf.mxu0
      %v4056 = vadd.f32 %v3798, %v4055
      %v4057 = vpop.f32.mrf.mxu0
      %4058 = vmatprep.mubr.f32.mxu0 0.0
      %v4059 = vand.u32 %v2311, 4294901760
      %4060 = vmatmul.mubr.f32.gmra.mxu0 %v4059
      %v4061 = vpop.f32.mrf.mxu0
      %v4062 = vadd.f32 %v3804, %v4061
      %v4063 = vpop.f32.mrf.mxu0
      %4064 = vmatprep.mubr.f32.mxu0 0.0
      %v4065 = vand.u32 %v2314, 4294901760
      %4066 = vmatmul.mubr.f32.gmra.mxu0 %v4065
      %v4067 = vpop.f32.mrf.mxu0
      %v4068 = vadd.f32 %v3810, %v4067
      %v4069 = vpop.f32.mrf.mxu0
      %4070 = vmatprep.mubr.f32.mxu0 0.0
      %v4071 = vand.u32 %v2317, 4294901760
      %4072 = vmatmul.mubr.f32.gmra.mxu0 %v4071
      %v4073 = vpop.f32.mrf.mxu0
      %v4074 = vadd.f32 %v3816, %v4073
      %v4075 = vpop.f32.mrf.mxu0
      %4076 = vmatprep.mubr.f32.mxu0 0.0
      %v4077 = vand.u32 %v2320, 4294901760
      %4078 = vmatmul.mubr.f32.gmra.mxu0 %v4077
      %v4079 = vpop.f32.mrf.mxu0
      %v4080 = vadd.f32 %v3822, %v4079
      %v4081 = vpop.f32.mrf.mxu0
      %4082 = vmatprep.mubr.f32.mxu0 0.0
      %v4083 = vand.u32 %v2323, 4294901760
      %4084 = vmatmul.mubr.f32.gmra.mxu0 %v4083
      %v4085 = vpop.f32.mrf.mxu0
      %v4086 = vadd.f32 %v3828, %v4085
      %v4087 = vpop.f32.mrf.mxu0
      %4088 = vmatprep.mubr.f32.mxu0 0.0
      %v4089 = vand.u32 %v2326, 4294901760
      %4090 = vmatmul.mubr.f32.gmra.mxu0 %v4089
      %v4091 = vpop.f32.mrf.mxu0
      %v4092 = vadd.f32 %v3834, %v4091
      %v4093 = vpop.f32.mrf.mxu0
      %4094 = vmatprep.mubr.f32.mxu0 0.0
      %v4095 = vand.u32 %v2329, 4294901760
      %4096 = vmatmul.mubr.f32.gmra.mxu0 %v4095
      %v4097 = vpop.f32.mrf.mxu0
      %v4098 = vadd.f32 %v3840, %v4097
      %v4099 = vpop.f32.mrf.mxu0
      %4100 = vmatprep.mubr.f32.mxu0 0.0
      %v4101 = vand.u32 %v2332, 4294901760
      %4102 = vmatmul.mubr.f32.gmra.mxu0 %v4101
      %v4103 = vpop.f32.mrf.mxu0
      %v4104 = vadd.f32 %v3846, %v4103
      %v4105 = vpop.f32.mrf.mxu0
      %4106 = vmatprep.mubr.f32.mxu0 0.0
      %v4107 = vand.u32 %v2335, 4294901760
      %4108 = vmatmul.mubr.f32.gmra.mxu0 %v4107
      %v4109 = vpop.f32.mrf.mxu0
      %v4110 = vadd.f32 %v3852, %v4109
      %v4111 = vpop.f32.mrf.mxu0
      %4112 = vmatprep.mubr.f32.mxu0 0.0
      %v4113 = vand.u32 %v2338, 4294901760
      %4114 = vmatmul.mubr.f32.gmra.mxu0 %v4113
      %v4115 = vpop.f32.mrf.mxu0
      %v4116 = vadd.f32 %v3858, %v4115
      %v4117 = vpop.f32.mrf.mxu0
      %4118 = vmatprep.mubr.f32.mxu0 0.0
      %v4119 = vand.u32 %v2341, 4294901760
      %4120 = vmatmul.mubr.f32.gmra.mxu0 %v4119
      %v4121 = vpop.f32.mrf.mxu0
      %v4122 = vadd.f32 %v3864, %v4121
      %v4123 = vpop.f32.mrf.mxu0
      %4124 = vdwg.mxu0
      %v4125 = vadd.f32 %v2181, %v3936
      %v4126 = vadd.f32 %v2182, %v3942
      %v4127 = vadd.f32 %v2183, %v3948
      %v4128 = vadd.f32 %v2184, %v3954
      %v4129 = vadd.f32 %v2185, %v3960
      %v4130 = vadd.f32 %v2186, %v3966
      %v4131 = vadd.f32 %v2187, %v3972
      %v4132 = vadd.f32 %v2188, %v3978
      %v4133 = vadd.f32 %v2189, %v3984
      %v4134 = vadd.f32 %v2190, %v3990
      %v4135 = vadd.f32 %v2191, %v3996
      %v4136 = vadd.f32 %v2192, %v4002
      %v4137 = vadd.f32 %v2193, %v4008
      %v4138 = vadd.f32 %v2194, %v4014
      %v4139 = vadd.f32 %v2195, %v4020
      %v4140 = vadd.f32 %v2196, %v4026
      %v4141 = vadd.f32 %v2197, %v4032
      %v4142 = vadd.f32 %v2198, %v4038
      %v4143 = vadd.f32 %v2199, %v4044
      %v4144 = vadd.f32 %v2200, %v4050
      %v4145 = vadd.f32 %v2201, %v4056
      %v4146 = vadd.f32 %v2202, %v4062
      %v4147 = vadd.f32 %v2203, %v4068
      %v4148 = vadd.f32 %v2204, %v4074
      %v4149 = vadd.f32 %v2205, %v4080
      %v4150 = vadd.f32 %v2206, %v4086
      %v4151 = vadd.f32 %v2207, %v4092
      %v4152 = vadd.f32 %v2208, %v4098
      %v4153 = vadd.f32 %v2209, %v4104
      %v4154 = vadd.f32 %v2210, %v4110
      %v4155 = vadd.f32 %v2211, %v4116
      %v4156 = vadd.f32 %v2212, %v4122
      %v4157 = vld [vmem:[#allocation2 + $0x2] sm:$0xff]
      %v4158 = vld [vmem:[#allocation2 + $0xa] sm:$0xff]
      %v4159 = vld [vmem:[#allocation2 + $0x12] sm:$0xff]
      %v4160 = vld [vmem:[#allocation2 + $0x1a] sm:$0xff]
      %v4161 = vld [vmem:[#allocation2 + $0x22] sm:$0xff]
      %v4162 = vld [vmem:[#allocation2 + $0x2a] sm:$0xff]
      %v4163 = vld [vmem:[#allocation2 + $0x32] sm:$0xff]
      %v4164 = vld [vmem:[#allocation2 + $0x3a] sm:$0xff]
      %v4165 = vld [vmem:[#allocation2 + $0x42] sm:$0xff]
      %v4166 = vld [vmem:[#allocation2 + $0x4a] sm:$0xff]
      %v4167 = vld [vmem:[#allocation2 + $0x52] sm:$0xff]
      %v4168 = vld [vmem:[#allocation2 + $0x5a] sm:$0xff]
      %v4169 = vld [vmem:[#allocation2 + $0x62] sm:$0xff]
      %v4170 = vld [vmem:[#allocation2 + $0x6a] sm:$0xff]
      %v4171 = vld [vmem:[#allocation2 + $0x72] sm:$0xff]
      %v4172 = vld [vmem:[#allocation2 + $0x7a] sm:$0xff]
      %v4173 = vld [vmem:[#allocation2 + $0x82] sm:$0xff]
      %v4174 = vld [vmem:[#allocation2 + $0x8a] sm:$0xff]
      %v4175 = vld [vmem:[#allocation2 + $0x92] sm:$0xff]
      %v4176 = vld [vmem:[#allocation2 + $0x9a] sm:$0xff]
      %v4177 = vld [vmem:[#allocation2 + $0xa2] sm:$0xff]
      %v4178 = vld [vmem:[#allocation2 + $0xaa] sm:$0xff]
      %v4179 = vld [vmem:[#allocation2 + $0xb2] sm:$0xff]
      %v4180 = vld [vmem:[#allocation2 + $0xba] sm:$0xff]
      %v4181 = vld [vmem:[#allocation2 + $0xc2] sm:$0xff]
      %v4182 = vld [vmem:[#allocation2 + $0xca] sm:$0xff]
      %v4183 = vld [vmem:[#allocation2 + $0xd2] sm:$0xff]
      %v4184 = vld [vmem:[#allocation2 + $0xda] sm:$0xff]
      %v4185 = vld [vmem:[#allocation2 + $0xe2] sm:$0xff]
      %v4186 = vld [vmem:[#allocation2 + $0xea] sm:$0xff]
      %v4187 = vld [vmem:[#allocation2 + $0xf2] sm:$0xff]
      %v4188 = vld [vmem:[#allocation2 + $0xfa] sm:$0xff]
      %s4189 = scalar_lea.vmem %s1, 8
      %v4190 = vld [vmem:[%s4189] sm:$0xf]
      %v4192 = vsel %vm260, %v4157, 0
      %v4195 = vsel %vm260, %v4158, 0
      %v4198 = vsel %vm260, %v4159, 0
      %v4201 = vsel %vm260, %v4160, 0
      %v4204 = vsel %vm260, %v4161, 0
      %v4207 = vsel %vm260, %v4162, 0
      %v4210 = vsel %vm260, %v4163, 0
      %v4213 = vsel %vm260, %v4164, 0
      %v4216 = vsel %vm260, %v4165, 0
      %v4219 = vsel %vm260, %v4166, 0
      %v4222 = vsel %vm260, %v4167, 0
      %v4225 = vsel %vm260, %v4168, 0
      %v4228 = vsel %vm260, %v4169, 0
      %v4231 = vsel %vm260, %v4170, 0
      %v4234 = vsel %vm260, %v4171, 0
      %v4237 = vsel %vm260, %v4172, 0
      %v4240 = vsel %vm260, %v4173, 0
      %v4243 = vsel %vm260, %v4174, 0
      %v4246 = vsel %vm260, %v4175, 0
      %v4249 = vsel %vm260, %v4176, 0
      %v4252 = vsel %vm260, %v4177, 0
      %v4255 = vsel %vm260, %v4178, 0
      %v4258 = vsel %vm260, %v4179, 0
      %v4261 = vsel %vm260, %v4180, 0
      %v4264 = vsel %vm260, %v4181, 0
      %v4267 = vsel %vm260, %v4182, 0
      %v4270 = vsel %vm260, %v4183, 0
      %v4273 = vsel %vm260, %v4184, 0
      %v4276 = vsel %vm260, %v4185, 0
      %v4279 = vsel %vm260, %v4186, 0
      %v4282 = vsel %vm260, %v4187, 0
      %v4285 = vsel %vm260, %v4188, 0
      %v4288 = vsel %vm392, %v4190, 0
      %4290 = vmatprep.subr.mxu0 0.0
      %4291 = vmatpush1.msra.mxu0 0.0
      %4292 = vmatprep.subr.mxu0 0.0
      %4293 = vmatpush1.msra.mxu0 0.0
      %4294 = vmatprep.subr.mxu0 0.0
      %4295 = vmatpush1.msra.mxu0 0.0
      %4296 = vmatprep.subr.mxu0 0.0
      %4297 = vmatpush1.msra.mxu0 0.0
      %4298 = vmatprep.subr.mxu0 0.0
      %4299 = vmatpush1.msra.mxu0 0.0
      %4300 = vmatprep.subr.mxu0 0.0
      %4301 = vmatpush1.msra.mxu0 0.0
      %4302 = vmatprep.subr.mxu0 0.0
      %4303 = vmatpush1.msra.mxu0 0.0
      %4304 = vmatprep.subr.mxu0 0.0
      %4305 = vmatpush1.msra.mxu0 0.0
      %4306 = vmatprep.subr.mxu0 0.0
      %4307 = vmatpush1.msra.mxu0 0.0
      %4308 = vmatprep.subr.mxu0 0.0
      %4309 = vmatpush1.msra.mxu0 0.0
      %4310 = vmatprep.subr.mxu0 0.0
      %4311 = vmatpush1.msra.mxu0 0.0
      %4312 = vmatprep.subr.mxu0 0.0
      %4313 = vmatpush1.msra.mxu0 0.0
      %4314 = vmatprep.subr.mxu0 0.0
      %4315 = vmatpush1.msra.mxu0 0.0
      %4316 = vmatprep.subr.mxu0 0.0
      %4317 = vmatpush1.msra.mxu0 0.0
      %4318 = vmatprep.subr.mxu0 0.0
      %4319 = vmatpush1.msra.mxu0 0.0
      %4320 = vmatprep.subr.mxu0 0.0
      %v4321 = vand.u32 %v4288, 4294901760
      %4322 = vmatpush1.msra.mxu0 %v4321
      %4323 = vmatprep.subr.mxu0 0.0
      %4324 = vmatpush2.msra.mxu0 0.0
      %4325 = vmatprep.subr.mxu0 0.0
      %4326 = vmatpush2.msra.mxu0 0.0
      %4327 = vmatprep.subr.mxu0 0.0
      %4328 = vmatpush2.msra.mxu0 0.0
      %4329 = vmatprep.subr.mxu0 0.0
      %4330 = vmatpush2.msra.mxu0 0.0
      %4331 = vmatprep.subr.mxu0 0.0
      %4332 = vmatpush2.msra.mxu0 0.0
      %4333 = vmatprep.subr.mxu0 0.0
      %4334 = vmatpush2.msra.mxu0 0.0
      %4335 = vmatprep.subr.mxu0 0.0
      %4336 = vmatpush2.msra.mxu0 0.0
      %4337 = vmatprep.subr.mxu0 0.0
      %4338 = vmatpush2.msra.mxu0 0.0
      %4339 = vmatprep.subr.mxu0 0.0
      %4340 = vmatpush2.msra.mxu0 0.0
      %4341 = vmatprep.subr.mxu0 0.0
      %4342 = vmatpush2.msra.mxu0 0.0
      %4343 = vmatprep.subr.mxu0 0.0
      %4344 = vmatpush2.msra.mxu0 0.0
      %4345 = vmatprep.subr.mxu0 0.0
      %4346 = vmatpush2.msra.mxu0 0.0
      %4347 = vmatprep.subr.mxu0 0.0
      %4348 = vmatpush2.msra.mxu0 0.0
      %4349 = vmatprep.subr.mxu0 0.0
      %4350 = vmatpush2.msra.mxu0 0.0
      %4351 = vmatprep.subr.mxu0 0.0
      %4352 = vmatpush2.msra.mxu0 0.0
      %4353 = vmatprep.subr.mxu0 0.0
      %4354 = vmatpush2.msra.mxu0 0.0
      %4355 = vmatprep.mubr.f32.mxu0 0.0
      %v4356 = vand.u32 %v4192, 4294901760
      %v4357 = vsub.f32 %v4192, %v4356
      %v4358 = vand.u32 %v4357, 4294901760
      %v4359 = vsub.f32 %v4357, %v4358
      %v4360 = vand.u32 %v4359, 4294901760
      %4361 = vmatmul.mubr.f32.gmra.mxu0 %v4360
      %v4362 = vpop.f32.mrf.mxu0
      %v4363 = vadd.f32 0.0, %v4362
      %v4364 = vpop.f32.mrf.mxu0
      %4365 = vmatprep.mubr.f32.mxu0 0.0
      %v4366 = vand.u32 %v4195, 4294901760
      %v4367 = vsub.f32 %v4195, %v4366
      %v4368 = vand.u32 %v4367, 4294901760
      %v4369 = vsub.f32 %v4367, %v4368
      %v4370 = vand.u32 %v4369, 4294901760
      %4371 = vmatmul.mubr.f32.gmra.mxu0 %v4370
      %v4372 = vpop.f32.mrf.mxu0
      %v4373 = vadd.f32 0.0, %v4372
      %v4374 = vpop.f32.mrf.mxu0
      %4375 = vmatprep.mubr.f32.mxu0 0.0
      %v4376 = vand.u32 %v4198, 4294901760
      %v4377 = vsub.f32 %v4198, %v4376
      %v4378 = vand.u32 %v4377, 4294901760
      %v4379 = vsub.f32 %v4377, %v4378
      %v4380 = vand.u32 %v4379, 4294901760
      %4381 = vmatmul.mubr.f32.gmra.mxu0 %v4380
      %v4382 = vpop.f32.mrf.mxu0
      %v4383 = vadd.f32 0.0, %v4382
      %v4384 = vpop.f32.mrf.mxu0
      %4385 = vmatprep.mubr.f32.mxu0 0.0
      %v4386 = vand.u32 %v4201, 4294901760
      %v4387 = vsub.f32 %v4201, %v4386
      %v4388 = vand.u32 %v4387, 4294901760
      %v4389 = vsub.f32 %v4387, %v4388
      %v4390 = vand.u32 %v4389, 4294901760
      %4391 = vmatmul.mubr.f32.gmra.mxu0 %v4390
      %v4392 = vpop.f32.mrf.mxu0
      %v4393 = vadd.f32 0.0, %v4392
      %v4394 = vpop.f32.mrf.mxu0
      %4395 = vmatprep.mubr.f32.mxu0 0.0
      %v4396 = vand.u32 %v4204, 4294901760
      %v4397 = vsub.f32 %v4204, %v4396
      %v4398 = vand.u32 %v4397, 4294901760
      %v4399 = vsub.f32 %v4397, %v4398
      %v4400 = vand.u32 %v4399, 4294901760
      %4401 = vmatmul.mubr.f32.gmra.mxu0 %v4400
      %v4402 = vpop.f32.mrf.mxu0
      %v4403 = vadd.f32 0.0, %v4402
      %v4404 = vpop.f32.mrf.mxu0
      %4405 = vmatprep.mubr.f32.mxu0 0.0
      %v4406 = vand.u32 %v4207, 4294901760
      %v4407 = vsub.f32 %v4207, %v4406
      %v4408 = vand.u32 %v4407, 4294901760
      %v4409 = vsub.f32 %v4407, %v4408
      %v4410 = vand.u32 %v4409, 4294901760
      %4411 = vmatmul.mubr.f32.gmra.mxu0 %v4410
      %v4412 = vpop.f32.mrf.mxu0
      %v4413 = vadd.f32 0.0, %v4412
      %v4414 = vpop.f32.mrf.mxu0
      %4415 = vmatprep.mubr.f32.mxu0 0.0
      %v4416 = vand.u32 %v4210, 4294901760
      %v4417 = vsub.f32 %v4210, %v4416
      %v4418 = vand.u32 %v4417, 4294901760
      %v4419 = vsub.f32 %v4417, %v4418
      %v4420 = vand.u32 %v4419, 4294901760
      %4421 = vmatmul.mubr.f32.gmra.mxu0 %v4420
      %v4422 = vpop.f32.mrf.mxu0
      %v4423 = vadd.f32 0.0, %v4422
      %v4424 = vpop.f32.mrf.mxu0
      %4425 = vmatprep.mubr.f32.mxu0 0.0
      %v4426 = vand.u32 %v4213, 4294901760
      %v4427 = vsub.f32 %v4213, %v4426
      %v4428 = vand.u32 %v4427, 4294901760
      %v4429 = vsub.f32 %v4427, %v4428
      %v4430 = vand.u32 %v4429, 4294901760
      %4431 = vmatmul.mubr.f32.gmra.mxu0 %v4430
      %v4432 = vpop.f32.mrf.mxu0
      %v4433 = vadd.f32 0.0, %v4432
      %v4434 = vpop.f32.mrf.mxu0
      %4435 = vmatprep.mubr.f32.mxu0 0.0
      %v4436 = vand.u32 %v4216, 4294901760
      %v4437 = vsub.f32 %v4216, %v4436
      %v4438 = vand.u32 %v4437, 4294901760
      %v4439 = vsub.f32 %v4437, %v4438
      %v4440 = vand.u32 %v4439, 4294901760
      %4441 = vmatmul.mubr.f32.gmra.mxu0 %v4440
      %v4442 = vpop.f32.mrf.mxu0
      %v4443 = vadd.f32 0.0, %v4442
      %v4444 = vpop.f32.mrf.mxu0
      %4445 = vmatprep.mubr.f32.mxu0 0.0
      %v4446 = vand.u32 %v4219, 4294901760
      %v4447 = vsub.f32 %v4219, %v4446
      %v4448 = vand.u32 %v4447, 4294901760
      %v4449 = vsub.f32 %v4447, %v4448
      %v4450 = vand.u32 %v4449, 4294901760
      %4451 = vmatmul.mubr.f32.gmra.mxu0 %v4450
      %v4452 = vpop.f32.mrf.mxu0
      %v4453 = vadd.f32 0.0, %v4452
      %v4454 = vpop.f32.mrf.mxu0
      %4455 = vmatprep.mubr.f32.mxu0 0.0
      %v4456 = vand.u32 %v4222, 4294901760
      %v4457 = vsub.f32 %v4222, %v4456
      %v4458 = vand.u32 %v4457, 4294901760
      %v4459 = vsub.f32 %v4457, %v4458
      %v4460 = vand.u32 %v4459, 4294901760
      %4461 = vmatmul.mubr.f32.gmra.mxu0 %v4460
      %v4462 = vpop.f32.mrf.mxu0
      %v4463 = vadd.f32 0.0, %v4462
      %v4464 = vpop.f32.mrf.mxu0
      %4465 = vmatprep.mubr.f32.mxu0 0.0
      %v4466 = vand.u32 %v4225, 4294901760
      %v4467 = vsub.f32 %v4225, %v4466
      %v4468 = vand.u32 %v4467, 4294901760
      %v4469 = vsub.f32 %v4467, %v4468
      %v4470 = vand.u32 %v4469, 4294901760
      %4471 = vmatmul.mubr.f32.gmra.mxu0 %v4470
      %v4472 = vpop.f32.mrf.mxu0
      %v4473 = vadd.f32 0.0, %v4472
      %v4474 = vpop.f32.mrf.mxu0
      %4475 = vmatprep.mubr.f32.mxu0 0.0
      %v4476 = vand.u32 %v4228, 4294901760
      %v4477 = vsub.f32 %v4228, %v4476
      %v4478 = vand.u32 %v4477, 4294901760
      %v4479 = vsub.f32 %v4477, %v4478
      %v4480 = vand.u32 %v4479, 4294901760
      %4481 = vmatmul.mubr.f32.gmra.mxu0 %v4480
      %v4482 = vpop.f32.mrf.mxu0
      %v4483 = vadd.f32 0.0, %v4482
      %v4484 = vpop.f32.mrf.mxu0
      %4485 = vmatprep.mubr.f32.mxu0 0.0
      %v4486 = vand.u32 %v4231, 4294901760
      %v4487 = vsub.f32 %v4231, %v4486
      %v4488 = vand.u32 %v4487, 4294901760
      %v4489 = vsub.f32 %v4487, %v4488
      %v4490 = vand.u32 %v4489, 4294901760
      %4491 = vmatmul.mubr.f32.gmra.mxu0 %v4490
      %v4492 = vpop.f32.mrf.mxu0
      %v4493 = vadd.f32 0.0, %v4492
      %v4494 = vpop.f32.mrf.mxu0
      %4495 = vmatprep.mubr.f32.mxu0 0.0
      %v4496 = vand.u32 %v4234, 4294901760
      %v4497 = vsub.f32 %v4234, %v4496
      %v4498 = vand.u32 %v4497, 4294901760
      %v4499 = vsub.f32 %v4497, %v4498
      %v4500 = vand.u32 %v4499, 4294901760
      %4501 = vmatmul.mubr.f32.gmra.mxu0 %v4500
      %v4502 = vpop.f32.mrf.mxu0
      %v4503 = vadd.f32 0.0, %v4502
      %v4504 = vpop.f32.mrf.mxu0
      %4505 = vmatprep.mubr.f32.mxu0 0.0
      %v4506 = vand.u32 %v4237, 4294901760
      %v4507 = vsub.f32 %v4237, %v4506
      %v4508 = vand.u32 %v4507, 4294901760
      %v4509 = vsub.f32 %v4507, %v4508
      %v4510 = vand.u32 %v4509, 4294901760
      %4511 = vmatmul.mubr.f32.gmra.mxu0 %v4510
      %v4512 = vpop.f32.mrf.mxu0
      %v4513 = vadd.f32 0.0, %v4512
      %v4514 = vpop.f32.mrf.mxu0
      %4515 = vmatprep.mubr.f32.mxu0 0.0
      %v4516 = vand.u32 %v4240, 4294901760
      %v4517 = vsub.f32 %v4240, %v4516
      %v4518 = vand.u32 %v4517, 4294901760
      %v4519 = vsub.f32 %v4517, %v4518
      %v4520 = vand.u32 %v4519, 4294901760
      %4521 = vmatmul.mubr.f32.gmra.mxu0 %v4520
      %v4522 = vpop.f32.mrf.mxu0
      %v4523 = vadd.f32 0.0, %v4522
      %v4524 = vpop.f32.mrf.mxu0
      %4525 = vmatprep.mubr.f32.mxu0 0.0
      %v4526 = vand.u32 %v4243, 4294901760
      %v4527 = vsub.f32 %v4243, %v4526
      %v4528 = vand.u32 %v4527, 4294901760
      %v4529 = vsub.f32 %v4527, %v4528
      %v4530 = vand.u32 %v4529, 4294901760
      %4531 = vmatmul.mubr.f32.gmra.mxu0 %v4530
      %v4532 = vpop.f32.mrf.mxu0
      %v4533 = vadd.f32 0.0, %v4532
      %v4534 = vpop.f32.mrf.mxu0
      %4535 = vmatprep.mubr.f32.mxu0 0.0
      %v4536 = vand.u32 %v4246, 4294901760
      %v4537 = vsub.f32 %v4246, %v4536
      %v4538 = vand.u32 %v4537, 4294901760
      %v4539 = vsub.f32 %v4537, %v4538
      %v4540 = vand.u32 %v4539, 4294901760
      %4541 = vmatmul.mubr.f32.gmra.mxu0 %v4540
      %v4542 = vpop.f32.mrf.mxu0
      %v4543 = vadd.f32 0.0, %v4542
      %v4544 = vpop.f32.mrf.mxu0
      %4545 = vmatprep.mubr.f32.mxu0 0.0
      %v4546 = vand.u32 %v4249, 4294901760
      %v4547 = vsub.f32 %v4249, %v4546
      %v4548 = vand.u32 %v4547, 4294901760
      %v4549 = vsub.f32 %v4547, %v4548
      %v4550 = vand.u32 %v4549, 4294901760
      %4551 = vmatmul.mubr.f32.gmra.mxu0 %v4550
      %v4552 = vpop.f32.mrf.mxu0
      %v4553 = vadd.f32 0.0, %v4552
      %v4554 = vpop.f32.mrf.mxu0
      %4555 = vmatprep.mubr.f32.mxu0 0.0
      %v4556 = vand.u32 %v4252, 4294901760
      %v4557 = vsub.f32 %v4252, %v4556
      %v4558 = vand.u32 %v4557, 4294901760
      %v4559 = vsub.f32 %v4557, %v4558
      %v4560 = vand.u32 %v4559, 4294901760
      %4561 = vmatmul.mubr.f32.gmra.mxu0 %v4560
      %v4562 = vpop.f32.mrf.mxu0
      %v4563 = vadd.f32 0.0, %v4562
      %v4564 = vpop.f32.mrf.mxu0
      %4565 = vmatprep.mubr.f32.mxu0 0.0
      %v4566 = vand.u32 %v4255, 4294901760
      %v4567 = vsub.f32 %v4255, %v4566
      %v4568 = vand.u32 %v4567, 4294901760
      %v4569 = vsub.f32 %v4567, %v4568
      %v4570 = vand.u32 %v4569, 4294901760
      %4571 = vmatmul.mubr.f32.gmra.mxu0 %v4570
      %v4572 = vpop.f32.mrf.mxu0
      %v4573 = vadd.f32 0.0, %v4572
      %v4574 = vpop.f32.mrf.mxu0
      %4575 = vmatprep.mubr.f32.mxu0 0.0
      %v4576 = vand.u32 %v4258, 4294901760
      %v4577 = vsub.f32 %v4258, %v4576
      %v4578 = vand.u32 %v4577, 4294901760
      %v4579 = vsub.f32 %v4577, %v4578
      %v4580 = vand.u32 %v4579, 4294901760
      %4581 = vmatmul.mubr.f32.gmra.mxu0 %v4580
      %v4582 = vpop.f32.mrf.mxu0
      %v4583 = vadd.f32 0.0, %v4582
      %v4584 = vpop.f32.mrf.mxu0
      %4585 = vmatprep.mubr.f32.mxu0 0.0
      %v4586 = vand.u32 %v4261, 4294901760
      %v4587 = vsub.f32 %v4261, %v4586
      %v4588 = vand.u32 %v4587, 4294901760
      %v4589 = vsub.f32 %v4587, %v4588
      %v4590 = vand.u32 %v4589, 4294901760
      %4591 = vmatmul.mubr.f32.gmra.mxu0 %v4590
      %v4592 = vpop.f32.mrf.mxu0
      %v4593 = vadd.f32 0.0, %v4592
      %v4594 = vpop.f32.mrf.mxu0
      %4595 = vmatprep.mubr.f32.mxu0 0.0
      %v4596 = vand.u32 %v4264, 4294901760
      %v4597 = vsub.f32 %v4264, %v4596
      %v4598 = vand.u32 %v4597, 4294901760
      %v4599 = vsub.f32 %v4597, %v4598
      %v4600 = vand.u32 %v4599, 4294901760
      %4601 = vmatmul.mubr.f32.gmra.mxu0 %v4600
      %v4602 = vpop.f32.mrf.mxu0
      %v4603 = vadd.f32 0.0, %v4602
      %v4604 = vpop.f32.mrf.mxu0
      %4605 = vmatprep.mubr.f32.mxu0 0.0
      %v4606 = vand.u32 %v4267, 4294901760
      %v4607 = vsub.f32 %v4267, %v4606
      %v4608 = vand.u32 %v4607, 4294901760
      %v4609 = vsub.f32 %v4607, %v4608
      %v4610 = vand.u32 %v4609, 4294901760
      %4611 = vmatmul.mubr.f32.gmra.mxu0 %v4610
      %v4612 = vpop.f32.mrf.mxu0
      %v4613 = vadd.f32 0.0, %v4612
      %v4614 = vpop.f32.mrf.mxu0
      %4615 = vmatprep.mubr.f32.mxu0 0.0
      %v4616 = vand.u32 %v4270, 4294901760
      %v4617 = vsub.f32 %v4270, %v4616
      %v4618 = vand.u32 %v4617, 4294901760
      %v4619 = vsub.f32 %v4617, %v4618
      %v4620 = vand.u32 %v4619, 4294901760
      %4621 = vmatmul.mubr.f32.gmra.mxu0 %v4620
      %v4622 = vpop.f32.mrf.mxu0
      %v4623 = vadd.f32 0.0, %v4622
      %v4624 = vpop.f32.mrf.mxu0
      %4625 = vmatprep.mubr.f32.mxu0 0.0
      %v4626 = vand.u32 %v4273, 4294901760
      %v4627 = vsub.f32 %v4273, %v4626
      %v4628 = vand.u32 %v4627, 4294901760
      %v4629 = vsub.f32 %v4627, %v4628
      %v4630 = vand.u32 %v4629, 4294901760
      %4631 = vmatmul.mubr.f32.gmra.mxu0 %v4630
      %v4632 = vpop.f32.mrf.mxu0
      %v4633 = vadd.f32 0.0, %v4632
      %v4634 = vpop.f32.mrf.mxu0
      %4635 = vmatprep.mubr.f32.mxu0 0.0
      %v4636 = vand.u32 %v4276, 4294901760
      %v4637 = vsub.f32 %v4276, %v4636
      %v4638 = vand.u32 %v4637, 4294901760
      %v4639 = vsub.f32 %v4637, %v4638
      %v4640 = vand.u32 %v4639, 4294901760
      %4641 = vmatmul.mubr.f32.gmra.mxu0 %v4640
      %v4642 = vpop.f32.mrf.mxu0
      %v4643 = vadd.f32 0.0, %v4642
      %v4644 = vpop.f32.mrf.mxu0
      %4645 = vmatprep.mubr.f32.mxu0 0.0
      %v4646 = vand.u32 %v4279, 4294901760
      %v4647 = vsub.f32 %v4279, %v4646
      %v4648 = vand.u32 %v4647, 4294901760
      %v4649 = vsub.f32 %v4647, %v4648
      %v4650 = vand.u32 %v4649, 4294901760
      %4651 = vmatmul.mubr.f32.gmra.mxu0 %v4650
      %v4652 = vpop.f32.mrf.mxu0
      %v4653 = vadd.f32 0.0, %v4652
      %v4654 = vpop.f32.mrf.mxu0
      %4655 = vmatprep.mubr.f32.mxu0 0.0
      %v4656 = vand.u32 %v4282, 4294901760
      %v4657 = vsub.f32 %v4282, %v4656
      %v4658 = vand.u32 %v4657, 4294901760
      %v4659 = vsub.f32 %v4657, %v4658
      %v4660 = vand.u32 %v4659, 4294901760
      %4661 = vmatmul.mubr.f32.gmra.mxu0 %v4660
      %v4662 = vpop.f32.mrf.mxu0
      %v4663 = vadd.f32 0.0, %v4662
      %v4664 = vpop.f32.mrf.mxu0
      %4665 = vmatprep.mubr.f32.mxu0 0.0
      %v4666 = vand.u32 %v4285, 4294901760
      %v4667 = vsub.f32 %v4285, %v4666
      %v4668 = vand.u32 %v4667, 4294901760
      %v4669 = vsub.f32 %v4667, %v4668
      %v4670 = vand.u32 %v4669, 4294901760
      %4671 = vmatmul.mubr.f32.gmra.mxu0 %v4670
      %v4672 = vpop.f32.mrf.mxu0
      %v4673 = vadd.f32 0.0, %v4672
      %v4674 = vpop.f32.mrf.mxu0
      %4675 = vdwg.mxu0
      %4676 = vmatprep.subr.mxu0 0.0
      %4677 = vmatpush1.msra.mxu0 0.0
      %4678 = vmatprep.subr.mxu0 0.0
      %4679 = vmatpush1.msra.mxu0 0.0
      %4680 = vmatprep.subr.mxu0 0.0
      %4681 = vmatpush1.msra.mxu0 0.0
      %4682 = vmatprep.subr.mxu0 0.0
      %4683 = vmatpush1.msra.mxu0 0.0
      %4684 = vmatprep.subr.mxu0 0.0
      %4685 = vmatpush1.msra.mxu0 0.0
      %4686 = vmatprep.subr.mxu0 0.0
      %4687 = vmatpush1.msra.mxu0 0.0
      %4688 = vmatprep.subr.mxu0 0.0
      %4689 = vmatpush1.msra.mxu0 0.0
      %4690 = vmatprep.subr.mxu0 0.0
      %4691 = vmatpush1.msra.mxu0 0.0
      %4692 = vmatprep.subr.mxu0 0.0
      %4693 = vmatpush1.msra.mxu0 0.0
      %4694 = vmatprep.subr.mxu0 0.0
      %4695 = vmatpush1.msra.mxu0 0.0
      %4696 = vmatprep.subr.mxu0 0.0
      %4697 = vmatpush1.msra.mxu0 0.0
      %4698 = vmatprep.subr.mxu0 0.0
      %4699 = vmatpush1.msra.mxu0 0.0
      %4700 = vmatprep.subr.mxu0 0.0
      %4701 = vmatpush1.msra.mxu0 0.0
      %4702 = vmatprep.subr.mxu0 0.0
      %4703 = vmatpush1.msra.mxu0 0.0
      %4704 = vmatprep.subr.mxu0 0.0
      %4705 = vmatpush1.msra.mxu0 0.0
      %4706 = vmatprep.subr.mxu0 0.0
      %v4707 = vand.u32 %v4288, 4294901760
      %v4708 = vsub.f32 %v4288, %v4707
      %v4709 = vand.u32 %v4708, 4294901760
      %v4710 = vsub.f32 %v4708, %v4709
      %v4711 = vand.u32 %v4710, 4294901760
      %4712 = vmatpush1.msra.mxu0 %v4711
      %4713 = vmatprep.subr.mxu0 0.0
      %4714 = vmatpush2.msra.mxu0 0.0
      %4715 = vmatprep.subr.mxu0 0.0
      %4716 = vmatpush2.msra.mxu0 0.0
      %4717 = vmatprep.subr.mxu0 0.0
      %4718 = vmatpush2.msra.mxu0 0.0
      %4719 = vmatprep.subr.mxu0 0.0
      %4720 = vmatpush2.msra.mxu0 0.0
      %4721 = vmatprep.subr.mxu0 0.0
      %4722 = vmatpush2.msra.mxu0 0.0
      %4723 = vmatprep.subr.mxu0 0.0
      %4724 = vmatpush2.msra.mxu0 0.0
      %4725 = vmatprep.subr.mxu0 0.0
      %4726 = vmatpush2.msra.mxu0 0.0
      %4727 = vmatprep.subr.mxu0 0.0
      %4728 = vmatpush2.msra.mxu0 0.0
      %4729 = vmatprep.subr.mxu0 0.0
      %4730 = vmatpush2.msra.mxu0 0.0
      %4731 = vmatprep.subr.mxu0 0.0
      %4732 = vmatpush2.msra.mxu0 0.0
      %4733 = vmatprep.subr.mxu0 0.0
      %4734 = vmatpush2.msra.mxu0 0.0
      %4735 = vmatprep.subr.mxu0 0.0
      %4736 = vmatpush2.msra.mxu0 0.0
      %4737 = vmatprep.subr.mxu0 0.0
      %4738 = vmatpush2.msra.mxu0 0.0
      %4739 = vmatprep.subr.mxu0 0.0
      %4740 = vmatpush2.msra.mxu0 0.0
      %4741 = vmatprep.subr.mxu0 0.0
      %4742 = vmatpush2.msra.mxu0 0.0
      %4743 = vmatprep.subr.mxu0 0.0
      %4744 = vmatpush2.msra.mxu0 0.0
      %4745 = vmatprep.mubr.f32.mxu0 0.0
      %v4746 = vand.u32 %v4192, 4294901760
      %4747 = vmatmul.mubr.f32.gmra.mxu0 %v4746
      %v4748 = vpop.f32.mrf.mxu0
      %v4749 = vadd.f32 %v4363, %v4748
      %v4750 = vpop.f32.mrf.mxu0
      %4751 = vmatprep.mubr.f32.mxu0 0.0
      %v4752 = vand.u32 %v4195, 4294901760
      %4753 = vmatmul.mubr.f32.gmra.mxu0 %v4752
      %v4754 = vpop.f32.mrf.mxu0
      %v4755 = vadd.f32 %v4373, %v4754
      %v4756 = vpop.f32.mrf.mxu0
      %4757 = vmatprep.mubr.f32.mxu0 0.0
      %v4758 = vand.u32 %v4198, 4294901760
      %4759 = vmatmul.mubr.f32.gmra.mxu0 %v4758
      %v4760 = vpop.f32.mrf.mxu0
      %v4761 = vadd.f32 %v4383, %v4760
      %v4762 = vpop.f32.mrf.mxu0
      %4763 = vmatprep.mubr.f32.mxu0 0.0
      %v4764 = vand.u32 %v4201, 4294901760
      %4765 = vmatmul.mubr.f32.gmra.mxu0 %v4764
      %v4766 = vpop.f32.mrf.mxu0
      %v4767 = vadd.f32 %v4393, %v4766
      %v4768 = vpop.f32.mrf.mxu0
      %4769 = vmatprep.mubr.f32.mxu0 0.0
      %v4770 = vand.u32 %v4204, 4294901760
      %4771 = vmatmul.mubr.f32.gmra.mxu0 %v4770
      %v4772 = vpop.f32.mrf.mxu0
      %v4773 = vadd.f32 %v4403, %v4772
      %v4774 = vpop.f32.mrf.mxu0
      %4775 = vmatprep.mubr.f32.mxu0 0.0
      %v4776 = vand.u32 %v4207, 4294901760
      %4777 = vmatmul.mubr.f32.gmra.mxu0 %v4776
      %v4778 = vpop.f32.mrf.mxu0
      %v4779 = vadd.f32 %v4413, %v4778
      %v4780 = vpop.f32.mrf.mxu0
      %4781 = vmatprep.mubr.f32.mxu0 0.0
      %v4782 = vand.u32 %v4210, 4294901760
      %4783 = vmatmul.mubr.f32.gmra.mxu0 %v4782
      %v4784 = vpop.f32.mrf.mxu0
      %v4785 = vadd.f32 %v4423, %v4784
      %v4786 = vpop.f32.mrf.mxu0
      %4787 = vmatprep.mubr.f32.mxu0 0.0
      %v4788 = vand.u32 %v4213, 4294901760
      %4789 = vmatmul.mubr.f32.gmra.mxu0 %v4788
      %v4790 = vpop.f32.mrf.mxu0
      %v4791 = vadd.f32 %v4433, %v4790
      %v4792 = vpop.f32.mrf.mxu0
      %4793 = vmatprep.mubr.f32.mxu0 0.0
      %v4794 = vand.u32 %v4216, 4294901760
      %4795 = vmatmul.mubr.f32.gmra.mxu0 %v4794
      %v4796 = vpop.f32.mrf.mxu0
      %v4797 = vadd.f32 %v4443, %v4796
      %v4798 = vpop.f32.mrf.mxu0
      %4799 = vmatprep.mubr.f32.mxu0 0.0
      %v4800 = vand.u32 %v4219, 4294901760
      %4801 = vmatmul.mubr.f32.gmra.mxu0 %v4800
      %v4802 = vpop.f32.mrf.mxu0
      %v4803 = vadd.f32 %v4453, %v4802
      %v4804 = vpop.f32.mrf.mxu0
      %4805 = vmatprep.mubr.f32.mxu0 0.0
      %v4806 = vand.u32 %v4222, 4294901760
      %4807 = vmatmul.mubr.f32.gmra.mxu0 %v4806
      %v4808 = vpop.f32.mrf.mxu0
      %v4809 = vadd.f32 %v4463, %v4808
      %v4810 = vpop.f32.mrf.mxu0
      %4811 = vmatprep.mubr.f32.mxu0 0.0
      %v4812 = vand.u32 %v4225, 4294901760
      %4813 = vmatmul.mubr.f32.gmra.mxu0 %v4812
      %v4814 = vpop.f32.mrf.mxu0
      %v4815 = vadd.f32 %v4473, %v4814
      %v4816 = vpop.f32.mrf.mxu0
      %4817 = vmatprep.mubr.f32.mxu0 0.0
      %v4818 = vand.u32 %v4228, 4294901760
      %4819 = vmatmul.mubr.f32.gmra.mxu0 %v4818
      %v4820 = vpop.f32.mrf.mxu0
      %v4821 = vadd.f32 %v4483, %v4820
      %v4822 = vpop.f32.mrf.mxu0
      %4823 = vmatprep.mubr.f32.mxu0 0.0
      %v4824 = vand.u32 %v4231, 4294901760
      %4825 = vmatmul.mubr.f32.gmra.mxu0 %v4824
      %v4826 = vpop.f32.mrf.mxu0
      %v4827 = vadd.f32 %v4493, %v4826
      %v4828 = vpop.f32.mrf.mxu0
      %4829 = vmatprep.mubr.f32.mxu0 0.0
      %v4830 = vand.u32 %v4234, 4294901760
      %4831 = vmatmul.mubr.f32.gmra.mxu0 %v4830
      %v4832 = vpop.f32.mrf.mxu0
      %v4833 = vadd.f32 %v4503, %v4832
      %v4834 = vpop.f32.mrf.mxu0
      %4835 = vmatprep.mubr.f32.mxu0 0.0
      %v4836 = vand.u32 %v4237, 4294901760
      %4837 = vmatmul.mubr.f32.gmra.mxu0 %v4836
      %v4838 = vpop.f32.mrf.mxu0
      %v4839 = vadd.f32 %v4513, %v4838
      %v4840 = vpop.f32.mrf.mxu0
      %4841 = vmatprep.mubr.f32.mxu0 0.0
      %v4842 = vand.u32 %v4240, 4294901760
      %4843 = vmatmul.mubr.f32.gmra.mxu0 %v4842
      %v4844 = vpop.f32.mrf.mxu0
      %v4845 = vadd.f32 %v4523, %v4844
      %v4846 = vpop.f32.mrf.mxu0
      %4847 = vmatprep.mubr.f32.mxu0 0.0
      %v4848 = vand.u32 %v4243, 4294901760
      %4849 = vmatmul.mubr.f32.gmra.mxu0 %v4848
      %v4850 = vpop.f32.mrf.mxu0
      %v4851 = vadd.f32 %v4533, %v4850
      %v4852 = vpop.f32.mrf.mxu0
      %4853 = vmatprep.mubr.f32.mxu0 0.0
      %v4854 = vand.u32 %v4246, 4294901760
      %4855 = vmatmul.mubr.f32.gmra.mxu0 %v4854
      %v4856 = vpop.f32.mrf.mxu0
      %v4857 = vadd.f32 %v4543, %v4856
      %v4858 = vpop.f32.mrf.mxu0
      %4859 = vmatprep.mubr.f32.mxu0 0.0
      %v4860 = vand.u32 %v4249, 4294901760
      %4861 = vmatmul.mubr.f32.gmra.mxu0 %v4860
      %v4862 = vpop.f32.mrf.mxu0
      %v4863 = vadd.f32 %v4553, %v4862
      %v4864 = vpop.f32.mrf.mxu0
      %4865 = vmatprep.mubr.f32.mxu0 0.0
      %v4866 = vand.u32 %v4252, 4294901760
      %4867 = vmatmul.mubr.f32.gmra.mxu0 %v4866
      %v4868 = vpop.f32.mrf.mxu0
      %v4869 = vadd.f32 %v4563, %v4868
      %v4870 = vpop.f32.mrf.mxu0
      %4871 = vmatprep.mubr.f32.mxu0 0.0
      %v4872 = vand.u32 %v4255, 4294901760
      %4873 = vmatmul.mubr.f32.gmra.mxu0 %v4872
      %v4874 = vpop.f32.mrf.mxu0
      %v4875 = vadd.f32 %v4573, %v4874
      %v4876 = vpop.f32.mrf.mxu0
      %4877 = vmatprep.mubr.f32.mxu0 0.0
      %v4878 = vand.u32 %v4258, 4294901760
      %4879 = vmatmul.mubr.f32.gmra.mxu0 %v4878
      %v4880 = vpop.f32.mrf.mxu0
      %v4881 = vadd.f32 %v4583, %v4880
      %v4882 = vpop.f32.mrf.mxu0
      %4883 = vmatprep.mubr.f32.mxu0 0.0
      %v4884 = vand.u32 %v4261, 4294901760
      %4885 = vmatmul.mubr.f32.gmra.mxu0 %v4884
      %v4886 = vpop.f32.mrf.mxu0
      %v4887 = vadd.f32 %v4593, %v4886
      %v4888 = vpop.f32.mrf.mxu0
      %4889 = vmatprep.mubr.f32.mxu0 0.0
      %v4890 = vand.u32 %v4264, 4294901760
      %4891 = vmatmul.mubr.f32.gmra.mxu0 %v4890
      %v4892 = vpop.f32.mrf.mxu0
      %v4893 = vadd.f32 %v4603, %v4892
      %v4894 = vpop.f32.mrf.mxu0
      %4895 = vmatprep.mubr.f32.mxu0 0.0
      %v4896 = vand.u32 %v4267, 4294901760
      %4897 = vmatmul.mubr.f32.gmra.mxu0 %v4896
      %v4898 = vpop.f32.mrf.mxu0
      %v4899 = vadd.f32 %v4613, %v4898
      %v4900 = vpop.f32.mrf.mxu0
      %4901 = vmatprep.mubr.f32.mxu0 0.0
      %v4902 = vand.u32 %v4270, 4294901760
      %4903 = vmatmul.mubr.f32.gmra.mxu0 %v4902
      %v4904 = vpop.f32.mrf.mxu0
      %v4905 = vadd.f32 %v4623, %v4904
      %v4906 = vpop.f32.mrf.mxu0
      %4907 = vmatprep.mubr.f32.mxu0 0.0
      %v4908 = vand.u32 %v4273, 4294901760
      %4909 = vmatmul.mubr.f32.gmra.mxu0 %v4908
      %v4910 = vpop.f32.mrf.mxu0
      %v4911 = vadd.f32 %v4633, %v4910
      %v4912 = vpop.f32.mrf.mxu0
      %4913 = vmatprep.mubr.f32.mxu0 0.0
      %v4914 = vand.u32 %v4276, 4294901760
      %4915 = vmatmul.mubr.f32.gmra.mxu0 %v4914
      %v4916 = vpop.f32.mrf.mxu0
      %v4917 = vadd.f32 %v4643, %v4916
      %v4918 = vpop.f32.mrf.mxu0
      %4919 = vmatprep.mubr.f32.mxu0 0.0
      %v4920 = vand.u32 %v4279, 4294901760
      %4921 = vmatmul.mubr.f32.gmra.mxu0 %v4920
      %v4922 = vpop.f32.mrf.mxu0
      %v4923 = vadd.f32 %v4653, %v4922
      %v4924 = vpop.f32.mrf.mxu0
      %4925 = vmatprep.mubr.f32.mxu0 0.0
      %v4926 = vand.u32 %v4282, 4294901760
      %4927 = vmatmul.mubr.f32.gmra.mxu0 %v4926
      %v4928 = vpop.f32.mrf.mxu0
      %v4929 = vadd.f32 %v4663, %v4928
      %v4930 = vpop.f32.mrf.mxu0
      %4931 = vmatprep.mubr.f32.mxu0 0.0
      %v4932 = vand.u32 %v4285, 4294901760
      %4933 = vmatmul.mubr.f32.gmra.mxu0 %v4932
      %v4934 = vpop.f32.mrf.mxu0
      %v4935 = vadd.f32 %v4673, %v4934
      %v4936 = vpop.f32.mrf.mxu0
      %4937 = vdwg.mxu0
      %4938 = vmatprep.subr.mxu0 0.0
      %4939 = vmatpush1.msra.mxu0 0.0
      %4940 = vmatprep.subr.mxu0 0.0
      %4941 = vmatpush1.msra.mxu0 0.0
      %4942 = vmatprep.subr.mxu0 0.0
      %4943 = vmatpush1.msra.mxu0 0.0
      %4944 = vmatprep.subr.mxu0 0.0
      %4945 = vmatpush1.msra.mxu0 0.0
      %4946 = vmatprep.subr.mxu0 0.0
      %4947 = vmatpush1.msra.mxu0 0.0
      %4948 = vmatprep.subr.mxu0 0.0
      %4949 = vmatpush1.msra.mxu0 0.0
      %4950 = vmatprep.subr.mxu0 0.0
      %4951 = vmatpush1.msra.mxu0 0.0
      %4952 = vmatprep.subr.mxu0 0.0
      %4953 = vmatpush1.msra.mxu0 0.0
      %4954 = vmatprep.subr.mxu0 0.0
      %4955 = vmatpush1.msra.mxu0 0.0
      %4956 = vmatprep.subr.mxu0 0.0
      %4957 = vmatpush1.msra.mxu0 0.0
      %4958 = vmatprep.subr.mxu0 0.0
      %4959 = vmatpush1.msra.mxu0 0.0
      %4960 = vmatprep.subr.mxu0 0.0
      %4961 = vmatpush1.msra.mxu0 0.0
      %4962 = vmatprep.subr.mxu0 0.0
      %4963 = vmatpush1.msra.mxu0 0.0
      %4964 = vmatprep.subr.mxu0 0.0
      %4965 = vmatpush1.msra.mxu0 0.0
      %4966 = vmatprep.subr.mxu0 0.0
      %4967 = vmatpush1.msra.mxu0 0.0
      %4968 = vmatprep.subr.mxu0 0.0
      %v4969 = vand.u32 %v4288, 4294901760
      %v4970 = vsub.f32 %v4288, %v4969
      %4971 = vmatpush1.msra.mxu0 %v4970
      %4972 = vmatprep.subr.mxu0 0.0
      %4973 = vmatpush2.msra.mxu0 0.0
      %4974 = vmatprep.subr.mxu0 0.0
      %4975 = vmatpush2.msra.mxu0 0.0
      %4976 = vmatprep.subr.mxu0 0.0
      %4977 = vmatpush2.msra.mxu0 0.0
      %4978 = vmatprep.subr.mxu0 0.0
      %4979 = vmatpush2.msra.mxu0 0.0
      %4980 = vmatprep.subr.mxu0 0.0
      %4981 = vmatpush2.msra.mxu0 0.0
      %4982 = vmatprep.subr.mxu0 0.0
      %4983 = vmatpush2.msra.mxu0 0.0
      %4984 = vmatprep.subr.mxu0 0.0
      %4985 = vmatpush2.msra.mxu0 0.0
      %4986 = vmatprep.subr.mxu0 0.0
      %4987 = vmatpush2.msra.mxu0 0.0
      %4988 = vmatprep.subr.mxu0 0.0
      %4989 = vmatpush2.msra.mxu0 0.0
      %4990 = vmatprep.subr.mxu0 0.0
      %4991 = vmatpush2.msra.mxu0 0.0
      %4992 = vmatprep.subr.mxu0 0.0
      %4993 = vmatpush2.msra.mxu0 0.0
      %4994 = vmatprep.subr.mxu0 0.0
      %4995 = vmatpush2.msra.mxu0 0.0
      %4996 = vmatprep.subr.mxu0 0.0
      %4997 = vmatpush2.msra.mxu0 0.0
      %4998 = vmatprep.subr.mxu0 0.0
      %4999 = vmatpush2.msra.mxu0 0.0
      %5000 = vmatprep.subr.mxu0 0.0
      %5001 = vmatpush2.msra.mxu0 0.0
      %5002 = vmatprep.subr.mxu0 0.0
      %5003 = vmatpush2.msra.mxu0 0.0
      %5004 = vmatprep.mubr.f32.mxu0 0.0
      %v5005 = vand.u32 %v4192, 4294901760
      %v5006 = vsub.f32 %v4192, %v5005
      %5007 = vmatmul.mubr.f32.gmra.mxu0 %v5006
      %v5008 = vpop.f32.mrf.mxu0
      %v5009 = vadd.f32 %v4749, %v5008
      %v5010 = vpop.f32.mrf.mxu0
      %5011 = vmatprep.mubr.f32.mxu0 0.0
      %v5012 = vand.u32 %v4195, 4294901760
      %v5013 = vsub.f32 %v4195, %v5012
      %5014 = vmatmul.mubr.f32.gmra.mxu0 %v5013
      %v5015 = vpop.f32.mrf.mxu0
      %v5016 = vadd.f32 %v4755, %v5015
      %v5017 = vpop.f32.mrf.mxu0
      %5018 = vmatprep.mubr.f32.mxu0 0.0
      %v5019 = vand.u32 %v4198, 4294901760
      %v5020 = vsub.f32 %v4198, %v5019
      %5021 = vmatmul.mubr.f32.gmra.mxu0 %v5020
      %v5022 = vpop.f32.mrf.mxu0
      %v5023 = vadd.f32 %v4761, %v5022
      %v5024 = vpop.f32.mrf.mxu0
      %5025 = vmatprep.mubr.f32.mxu0 0.0
      %v5026 = vand.u32 %v4201, 4294901760
      %v5027 = vsub.f32 %v4201, %v5026
      %5028 = vmatmul.mubr.f32.gmra.mxu0 %v5027
      %v5029 = vpop.f32.mrf.mxu0
      %v5030 = vadd.f32 %v4767, %v5029
      %v5031 = vpop.f32.mrf.mxu0
      %5032 = vmatprep.mubr.f32.mxu0 0.0
      %v5033 = vand.u32 %v4204, 4294901760
      %v5034 = vsub.f32 %v4204, %v5033
      %5035 = vmatmul.mubr.f32.gmra.mxu0 %v5034
      %v5036 = vpop.f32.mrf.mxu0
      %v5037 = vadd.f32 %v4773, %v5036
      %v5038 = vpop.f32.mrf.mxu0
      %5039 = vmatprep.mubr.f32.mxu0 0.0
      %v5040 = vand.u32 %v4207, 4294901760
      %v5041 = vsub.f32 %v4207, %v5040
      %5042 = vmatmul.mubr.f32.gmra.mxu0 %v5041
      %v5043 = vpop.f32.mrf.mxu0
      %v5044 = vadd.f32 %v4779, %v5043
      %v5045 = vpop.f32.mrf.mxu0
      %5046 = vmatprep.mubr.f32.mxu0 0.0
      %v5047 = vand.u32 %v4210, 4294901760
      %v5048 = vsub.f32 %v4210, %v5047
      %5049 = vmatmul.mubr.f32.gmra.mxu0 %v5048
      %v5050 = vpop.f32.mrf.mxu0
      %v5051 = vadd.f32 %v4785, %v5050
      %v5052 = vpop.f32.mrf.mxu0
      %5053 = vmatprep.mubr.f32.mxu0 0.0
      %v5054 = vand.u32 %v4213, 4294901760
      %v5055 = vsub.f32 %v4213, %v5054
      %5056 = vmatmul.mubr.f32.gmra.mxu0 %v5055
      %v5057 = vpop.f32.mrf.mxu0
      %v5058 = vadd.f32 %v4791, %v5057
      %v5059 = vpop.f32.mrf.mxu0
      %5060 = vmatprep.mubr.f32.mxu0 0.0
      %v5061 = vand.u32 %v4216, 4294901760
      %v5062 = vsub.f32 %v4216, %v5061
      %5063 = vmatmul.mubr.f32.gmra.mxu0 %v5062
      %v5064 = vpop.f32.mrf.mxu0
      %v5065 = vadd.f32 %v4797, %v5064
      %v5066 = vpop.f32.mrf.mxu0
      %5067 = vmatprep.mubr.f32.mxu0 0.0
      %v5068 = vand.u32 %v4219, 4294901760
      %v5069 = vsub.f32 %v4219, %v5068
      %5070 = vmatmul.mubr.f32.gmra.mxu0 %v5069
      %v5071 = vpop.f32.mrf.mxu0
      %v5072 = vadd.f32 %v4803, %v5071
      %v5073 = vpop.f32.mrf.mxu0
      %5074 = vmatprep.mubr.f32.mxu0 0.0
      %v5075 = vand.u32 %v4222, 4294901760
      %v5076 = vsub.f32 %v4222, %v5075
      %5077 = vmatmul.mubr.f32.gmra.mxu0 %v5076
      %v5078 = vpop.f32.mrf.mxu0
      %v5079 = vadd.f32 %v4809, %v5078
      %v5080 = vpop.f32.mrf.mxu0
      %5081 = vmatprep.mubr.f32.mxu0 0.0
      %v5082 = vand.u32 %v4225, 4294901760
      %v5083 = vsub.f32 %v4225, %v5082
      %5084 = vmatmul.mubr.f32.gmra.mxu0 %v5083
      %v5085 = vpop.f32.mrf.mxu0
      %v5086 = vadd.f32 %v4815, %v5085
      %v5087 = vpop.f32.mrf.mxu0
      %5088 = vmatprep.mubr.f32.mxu0 0.0
      %v5089 = vand.u32 %v4228, 4294901760
      %v5090 = vsub.f32 %v4228, %v5089
      %5091 = vmatmul.mubr.f32.gmra.mxu0 %v5090
      %v5092 = vpop.f32.mrf.mxu0
      %v5093 = vadd.f32 %v4821, %v5092
      %v5094 = vpop.f32.mrf.mxu0
      %5095 = vmatprep.mubr.f32.mxu0 0.0
      %v5096 = vand.u32 %v4231, 4294901760
      %v5097 = vsub.f32 %v4231, %v5096
      %5098 = vmatmul.mubr.f32.gmra.mxu0 %v5097
      %v5099 = vpop.f32.mrf.mxu0
      %v5100 = vadd.f32 %v4827, %v5099
      %v5101 = vpop.f32.mrf.mxu0
      %5102 = vmatprep.mubr.f32.mxu0 0.0
      %v5103 = vand.u32 %v4234, 4294901760
      %v5104 = vsub.f32 %v4234, %v5103
      %5105 = vmatmul.mubr.f32.gmra.mxu0 %v5104
      %v5106 = vpop.f32.mrf.mxu0
      %v5107 = vadd.f32 %v4833, %v5106
      %v5108 = vpop.f32.mrf.mxu0
      %5109 = vmatprep.mubr.f32.mxu0 0.0
      %v5110 = vand.u32 %v4237, 4294901760
      %v5111 = vsub.f32 %v4237, %v5110
      %5112 = vmatmul.mubr.f32.gmra.mxu0 %v5111
      %v5113 = vpop.f32.mrf.mxu0
      %v5114 = vadd.f32 %v4839, %v5113
      %v5115 = vpop.f32.mrf.mxu0
      %5116 = vmatprep.mubr.f32.mxu0 0.0
      %v5117 = vand.u32 %v4240, 4294901760
      %v5118 = vsub.f32 %v4240, %v5117
      %5119 = vmatmul.mubr.f32.gmra.mxu0 %v5118
      %v5120 = vpop.f32.mrf.mxu0
      %v5121 = vadd.f32 %v4845, %v5120
      %v5122 = vpop.f32.mrf.mxu0
      %5123 = vmatprep.mubr.f32.mxu0 0.0
      %v5124 = vand.u32 %v4243, 4294901760
      %v5125 = vsub.f32 %v4243, %v5124
      %5126 = vmatmul.mubr.f32.gmra.mxu0 %v5125
      %v5127 = vpop.f32.mrf.mxu0
      %v5128 = vadd.f32 %v4851, %v5127
      %v5129 = vpop.f32.mrf.mxu0
      %5130 = vmatprep.mubr.f32.mxu0 0.0
      %v5131 = vand.u32 %v4246, 4294901760
      %v5132 = vsub.f32 %v4246, %v5131
      %5133 = vmatmul.mubr.f32.gmra.mxu0 %v5132
      %v5134 = vpop.f32.mrf.mxu0
      %v5135 = vadd.f32 %v4857, %v5134
      %v5136 = vpop.f32.mrf.mxu0
      %5137 = vmatprep.mubr.f32.mxu0 0.0
      %v5138 = vand.u32 %v4249, 4294901760
      %v5139 = vsub.f32 %v4249, %v5138
      %5140 = vmatmul.mubr.f32.gmra.mxu0 %v5139
      %v5141 = vpop.f32.mrf.mxu0
      %v5142 = vadd.f32 %v4863, %v5141
      %v5143 = vpop.f32.mrf.mxu0
      %5144 = vmatprep.mubr.f32.mxu0 0.0
      %v5145 = vand.u32 %v4252, 4294901760
      %v5146 = vsub.f32 %v4252, %v5145
      %5147 = vmatmul.mubr.f32.gmra.mxu0 %v5146
      %v5148 = vpop.f32.mrf.mxu0
      %v5149 = vadd.f32 %v4869, %v5148
      %v5150 = vpop.f32.mrf.mxu0
      %5151 = vmatprep.mubr.f32.mxu0 0.0
      %v5152 = vand.u32 %v4255, 4294901760
      %v5153 = vsub.f32 %v4255, %v5152
      %5154 = vmatmul.mubr.f32.gmra.mxu0 %v5153
      %v5155 = vpop.f32.mrf.mxu0
      %v5156 = vadd.f32 %v4875, %v5155
      %v5157 = vpop.f32.mrf.mxu0
      %5158 = vmatprep.mubr.f32.mxu0 0.0
      %v5159 = vand.u32 %v4258, 4294901760
      %v5160 = vsub.f32 %v4258, %v5159
      %5161 = vmatmul.mubr.f32.gmra.mxu0 %v5160
      %v5162 = vpop.f32.mrf.mxu0
      %v5163 = vadd.f32 %v4881, %v5162
      %v5164 = vpop.f32.mrf.mxu0
      %5165 = vmatprep.mubr.f32.mxu0 0.0
      %v5166 = vand.u32 %v4261, 4294901760
      %v5167 = vsub.f32 %v4261, %v5166
      %5168 = vmatmul.mubr.f32.gmra.mxu0 %v5167
      %v5169 = vpop.f32.mrf.mxu0
      %v5170 = vadd.f32 %v4887, %v5169
      %v5171 = vpop.f32.mrf.mxu0
      %5172 = vmatprep.mubr.f32.mxu0 0.0
      %v5173 = vand.u32 %v4264, 4294901760
      %v5174 = vsub.f32 %v4264, %v5173
      %5175 = vmatmul.mubr.f32.gmra.mxu0 %v5174
      %v5176 = vpop.f32.mrf.mxu0
      %v5177 = vadd.f32 %v4893, %v5176
      %v5178 = vpop.f32.mrf.mxu0
      %5179 = vmatprep.mubr.f32.mxu0 0.0
      %v5180 = vand.u32 %v4267, 4294901760
      %v5181 = vsub.f32 %v4267, %v5180
      %5182 = vmatmul.mubr.f32.gmra.mxu0 %v5181
      %v5183 = vpop.f32.mrf.mxu0
      %v5184 = vadd.f32 %v4899, %v5183
      %v5185 = vpop.f32.mrf.mxu0
      %5186 = vmatprep.mubr.f32.mxu0 0.0
      %v5187 = vand.u32 %v4270, 4294901760
      %v5188 = vsub.f32 %v4270, %v5187
      %5189 = vmatmul.mubr.f32.gmra.mxu0 %v5188
      %v5190 = vpop.f32.mrf.mxu0
      %v5191 = vadd.f32 %v4905, %v5190
      %v5192 = vpop.f32.mrf.mxu0
      %5193 = vmatprep.mubr.f32.mxu0 0.0
      %v5194 = vand.u32 %v4273, 4294901760
      %v5195 = vsub.f32 %v4273, %v5194
      %5196 = vmatmul.mubr.f32.gmra.mxu0 %v5195
      %v5197 = vpop.f32.mrf.mxu0
      %v5198 = vadd.f32 %v4911, %v5197
      %v5199 = vpop.f32.mrf.mxu0
      %5200 = vmatprep.mubr.f32.mxu0 0.0
      %v5201 = vand.u32 %v4276, 4294901760
      %v5202 = vsub.f32 %v4276, %v5201
      %5203 = vmatmul.mubr.f32.gmra.mxu0 %v5202
      %v5204 = vpop.f32.mrf.mxu0
      %v5205 = vadd.f32 %v4917, %v5204
      %v5206 = vpop.f32.mrf.mxu0
      %5207 = vmatprep.mubr.f32.mxu0 0.0
      %v5208 = vand.u32 %v4279, 4294901760
      %v5209 = vsub.f32 %v4279, %v5208
      %5210 = vmatmul.mubr.f32.gmra.mxu0 %v5209
      %v5211 = vpop.f32.mrf.mxu0
      %v5212 = vadd.f32 %v4923, %v5211
      %v5213 = vpop.f32.mrf.mxu0
      %5214 = vmatprep.mubr.f32.mxu0 0.0
      %v5215 = vand.u32 %v4282, 4294901760
      %v5216 = vsub.f32 %v4282, %v5215
      %5217 = vmatmul.mubr.f32.gmra.mxu0 %v5216
      %v5218 = vpop.f32.mrf.mxu0
      %v5219 = vadd.f32 %v4929, %v5218
      %v5220 = vpop.f32.mrf.mxu0
      %5221 = vmatprep.mubr.f32.mxu0 0.0
      %v5222 = vand.u32 %v4285, 4294901760
      %v5223 = vsub.f32 %v4285, %v5222
      %5224 = vmatmul.mubr.f32.gmra.mxu0 %v5223
      %v5225 = vpop.f32.mrf.mxu0
      %v5226 = vadd.f32 %v4935, %v5225
      %v5227 = vpop.f32.mrf.mxu0
      %5228 = vdwg.mxu0
      %5229 = vmatprep.subr.mxu0 0.0
      %5230 = vmatpush1.msra.mxu0 0.0
      %5231 = vmatprep.subr.mxu0 0.0
      %5232 = vmatpush1.msra.mxu0 0.0
      %5233 = vmatprep.subr.mxu0 0.0
      %5234 = vmatpush1.msra.mxu0 0.0
      %5235 = vmatprep.subr.mxu0 0.0
      %5236 = vmatpush1.msra.mxu0 0.0
      %5237 = vmatprep.subr.mxu0 0.0
      %5238 = vmatpush1.msra.mxu0 0.0
      %5239 = vmatprep.subr.mxu0 0.0
      %5240 = vmatpush1.msra.mxu0 0.0
      %5241 = vmatprep.subr.mxu0 0.0
      %5242 = vmatpush1.msra.mxu0 0.0
      %5243 = vmatprep.subr.mxu0 0.0
      %5244 = vmatpush1.msra.mxu0 0.0
      %5245 = vmatprep.subr.mxu0 0.0
      %5246 = vmatpush1.msra.mxu0 0.0
      %5247 = vmatprep.subr.mxu0 0.0
      %5248 = vmatpush1.msra.mxu0 0.0
      %5249 = vmatprep.subr.mxu0 0.0
      %5250 = vmatpush1.msra.mxu0 0.0
      %5251 = vmatprep.subr.mxu0 0.0
      %5252 = vmatpush1.msra.mxu0 0.0
      %5253 = vmatprep.subr.mxu0 0.0
      %5254 = vmatpush1.msra.mxu0 0.0
      %5255 = vmatprep.subr.mxu0 0.0
      %5256 = vmatpush1.msra.mxu0 0.0
      %5257 = vmatprep.subr.mxu0 0.0
      %5258 = vmatpush1.msra.mxu0 0.0
      %5259 = vmatprep.subr.mxu0 0.0
      %v5260 = vand.u32 %v4288, 4294901760
      %5261 = vmatpush1.msra.mxu0 %v5260
      %5262 = vmatprep.subr.mxu0 0.0
      %5263 = vmatpush2.msra.mxu0 0.0
      %5264 = vmatprep.subr.mxu0 0.0
      %5265 = vmatpush2.msra.mxu0 0.0
      %5266 = vmatprep.subr.mxu0 0.0
      %5267 = vmatpush2.msra.mxu0 0.0
      %5268 = vmatprep.subr.mxu0 0.0
      %5269 = vmatpush2.msra.mxu0 0.0
      %5270 = vmatprep.subr.mxu0 0.0
      %5271 = vmatpush2.msra.mxu0 0.0
      %5272 = vmatprep.subr.mxu0 0.0
      %5273 = vmatpush2.msra.mxu0 0.0
      %5274 = vmatprep.subr.mxu0 0.0
      %5275 = vmatpush2.msra.mxu0 0.0
      %5276 = vmatprep.subr.mxu0 0.0
      %5277 = vmatpush2.msra.mxu0 0.0
      %5278 = vmatprep.subr.mxu0 0.0
      %5279 = vmatpush2.msra.mxu0 0.0
      %5280 = vmatprep.subr.mxu0 0.0
      %5281 = vmatpush2.msra.mxu0 0.0
      %5282 = vmatprep.subr.mxu0 0.0
      %5283 = vmatpush2.msra.mxu0 0.0
      %5284 = vmatprep.subr.mxu0 0.0
      %5285 = vmatpush2.msra.mxu0 0.0
      %5286 = vmatprep.subr.mxu0 0.0
      %5287 = vmatpush2.msra.mxu0 0.0
      %5288 = vmatprep.subr.mxu0 0.0
      %5289 = vmatpush2.msra.mxu0 0.0
      %5290 = vmatprep.subr.mxu0 0.0
      %5291 = vmatpush2.msra.mxu0 0.0
      %5292 = vmatprep.subr.mxu0 0.0
      %5293 = vmatpush2.msra.mxu0 0.0
      %5294 = vmatprep.mubr.f32.mxu0 0.0
      %v5295 = vand.u32 %v4192, 4294901760
      %v5296 = vsub.f32 %v4192, %v5295
      %v5297 = vand.u32 %v5296, 4294901760
      %5298 = vmatmul.mubr.f32.gmra.mxu0 %v5297
      %v5299 = vpop.f32.mrf.mxu0
      %v5300 = vadd.f32 %v5009, %v5299
      %v5301 = vpop.f32.mrf.mxu0
      %5302 = vmatprep.mubr.f32.mxu0 0.0
      %v5303 = vand.u32 %v4195, 4294901760
      %v5304 = vsub.f32 %v4195, %v5303
      %v5305 = vand.u32 %v5304, 4294901760
      %5306 = vmatmul.mubr.f32.gmra.mxu0 %v5305
      %v5307 = vpop.f32.mrf.mxu0
      %v5308 = vadd.f32 %v5016, %v5307
      %v5309 = vpop.f32.mrf.mxu0
      %5310 = vmatprep.mubr.f32.mxu0 0.0
      %v5311 = vand.u32 %v4198, 4294901760
      %v5312 = vsub.f32 %v4198, %v5311
      %v5313 = vand.u32 %v5312, 4294901760
      %5314 = vmatmul.mubr.f32.gmra.mxu0 %v5313
      %v5315 = vpop.f32.mrf.mxu0
      %v5316 = vadd.f32 %v5023, %v5315
      %v5317 = vpop.f32.mrf.mxu0
      %5318 = vmatprep.mubr.f32.mxu0 0.0
      %v5319 = vand.u32 %v4201, 4294901760
      %v5320 = vsub.f32 %v4201, %v5319
      %v5321 = vand.u32 %v5320, 4294901760
      %5322 = vmatmul.mubr.f32.gmra.mxu0 %v5321
      %v5323 = vpop.f32.mrf.mxu0
      %v5324 = vadd.f32 %v5030, %v5323
      %v5325 = vpop.f32.mrf.mxu0
      %5326 = vmatprep.mubr.f32.mxu0 0.0
      %v5327 = vand.u32 %v4204, 4294901760
      %v5328 = vsub.f32 %v4204, %v5327
      %v5329 = vand.u32 %v5328, 4294901760
      %5330 = vmatmul.mubr.f32.gmra.mxu0 %v5329
      %v5331 = vpop.f32.mrf.mxu0
      %v5332 = vadd.f32 %v5037, %v5331
      %v5333 = vpop.f32.mrf.mxu0
      %5334 = vmatprep.mubr.f32.mxu0 0.0
      %v5335 = vand.u32 %v4207, 4294901760
      %v5336 = vsub.f32 %v4207, %v5335
      %v5337 = vand.u32 %v5336, 4294901760
      %5338 = vmatmul.mubr.f32.gmra.mxu0 %v5337
      %v5339 = vpop.f32.mrf.mxu0
      %v5340 = vadd.f32 %v5044, %v5339
      %v5341 = vpop.f32.mrf.mxu0
      %5342 = vmatprep.mubr.f32.mxu0 0.0
      %v5343 = vand.u32 %v4210, 4294901760
      %v5344 = vsub.f32 %v4210, %v5343
      %v5345 = vand.u32 %v5344, 4294901760
      %5346 = vmatmul.mubr.f32.gmra.mxu0 %v5345
      %v5347 = vpop.f32.mrf.mxu0
      %v5348 = vadd.f32 %v5051, %v5347
      %v5349 = vpop.f32.mrf.mxu0
      %5350 = vmatprep.mubr.f32.mxu0 0.0
      %v5351 = vand.u32 %v4213, 4294901760
      %v5352 = vsub.f32 %v4213, %v5351
      %v5353 = vand.u32 %v5352, 4294901760
      %5354 = vmatmul.mubr.f32.gmra.mxu0 %v5353
      %v5355 = vpop.f32.mrf.mxu0
      %v5356 = vadd.f32 %v5058, %v5355
      %v5357 = vpop.f32.mrf.mxu0
      %5358 = vmatprep.mubr.f32.mxu0 0.0
      %v5359 = vand.u32 %v4216, 4294901760
      %v5360 = vsub.f32 %v4216, %v5359
      %v5361 = vand.u32 %v5360, 4294901760
      %5362 = vmatmul.mubr.f32.gmra.mxu0 %v5361
      %v5363 = vpop.f32.mrf.mxu0
      %v5364 = vadd.f32 %v5065, %v5363
      %v5365 = vpop.f32.mrf.mxu0
      %5366 = vmatprep.mubr.f32.mxu0 0.0
      %v5367 = vand.u32 %v4219, 4294901760
      %v5368 = vsub.f32 %v4219, %v5367
      %v5369 = vand.u32 %v5368, 4294901760
      %5370 = vmatmul.mubr.f32.gmra.mxu0 %v5369
      %v5371 = vpop.f32.mrf.mxu0
      %v5372 = vadd.f32 %v5072, %v5371
      %v5373 = vpop.f32.mrf.mxu0
      %5374 = vmatprep.mubr.f32.mxu0 0.0
      %v5375 = vand.u32 %v4222, 4294901760
      %v5376 = vsub.f32 %v4222, %v5375
      %v5377 = vand.u32 %v5376, 4294901760
      %5378 = vmatmul.mubr.f32.gmra.mxu0 %v5377
      %v5379 = vpop.f32.mrf.mxu0
      %v5380 = vadd.f32 %v5079, %v5379
      %v5381 = vpop.f32.mrf.mxu0
      %5382 = vmatprep.mubr.f32.mxu0 0.0
      %v5383 = vand.u32 %v4225, 4294901760
      %v5384 = vsub.f32 %v4225, %v5383
      %v5385 = vand.u32 %v5384, 4294901760
      %5386 = vmatmul.mubr.f32.gmra.mxu0 %v5385
      %v5387 = vpop.f32.mrf.mxu0
      %v5388 = vadd.f32 %v5086, %v5387
      %v5389 = vpop.f32.mrf.mxu0
      %5390 = vmatprep.mubr.f32.mxu0 0.0
      %v5391 = vand.u32 %v4228, 4294901760
      %v5392 = vsub.f32 %v4228, %v5391
      %v5393 = vand.u32 %v5392, 4294901760
      %5394 = vmatmul.mubr.f32.gmra.mxu0 %v5393
      %v5395 = vpop.f32.mrf.mxu0
      %v5396 = vadd.f32 %v5093, %v5395
      %v5397 = vpop.f32.mrf.mxu0
      %5398 = vmatprep.mubr.f32.mxu0 0.0
      %v5399 = vand.u32 %v4231, 4294901760
      %v5400 = vsub.f32 %v4231, %v5399
      %v5401 = vand.u32 %v5400, 4294901760
      %5402 = vmatmul.mubr.f32.gmra.mxu0 %v5401
      %v5403 = vpop.f32.mrf.mxu0
      %v5404 = vadd.f32 %v5100, %v5403
      %v5405 = vpop.f32.mrf.mxu0
      %5406 = vmatprep.mubr.f32.mxu0 0.0
      %v5407 = vand.u32 %v4234, 4294901760
      %v5408 = vsub.f32 %v4234, %v5407
      %v5409 = vand.u32 %v5408, 4294901760
      %5410 = vmatmul.mubr.f32.gmra.mxu0 %v5409
      %v5411 = vpop.f32.mrf.mxu0
      %v5412 = vadd.f32 %v5107, %v5411
      %v5413 = vpop.f32.mrf.mxu0
      %5414 = vmatprep.mubr.f32.mxu0 0.0
      %v5415 = vand.u32 %v4237, 4294901760
      %v5416 = vsub.f32 %v4237, %v5415
      %v5417 = vand.u32 %v5416, 4294901760
      %5418 = vmatmul.mubr.f32.gmra.mxu0 %v5417
      %v5419 = vpop.f32.mrf.mxu0
      %v5420 = vadd.f32 %v5114, %v5419
      %v5421 = vpop.f32.mrf.mxu0
      %5422 = vmatprep.mubr.f32.mxu0 0.0
      %v5423 = vand.u32 %v4240, 4294901760
      %v5424 = vsub.f32 %v4240, %v5423
      %v5425 = vand.u32 %v5424, 4294901760
      %5426 = vmatmul.mubr.f32.gmra.mxu0 %v5425
      %v5427 = vpop.f32.mrf.mxu0
      %v5428 = vadd.f32 %v5121, %v5427
      %v5429 = vpop.f32.mrf.mxu0
      %5430 = vmatprep.mubr.f32.mxu0 0.0
      %v5431 = vand.u32 %v4243, 4294901760
      %v5432 = vsub.f32 %v4243, %v5431
      %v5433 = vand.u32 %v5432, 4294901760
      %5434 = vmatmul.mubr.f32.gmra.mxu0 %v5433
      %v5435 = vpop.f32.mrf.mxu0
      %v5436 = vadd.f32 %v5128, %v5435
      %v5437 = vpop.f32.mrf.mxu0
      %5438 = vmatprep.mubr.f32.mxu0 0.0
      %v5439 = vand.u32 %v4246, 4294901760
      %v5440 = vsub.f32 %v4246, %v5439
      %v5441 = vand.u32 %v5440, 4294901760
      %5442 = vmatmul.mubr.f32.gmra.mxu0 %v5441
      %v5443 = vpop.f32.mrf.mxu0
      %v5444 = vadd.f32 %v5135, %v5443
      %v5445 = vpop.f32.mrf.mxu0
      %5446 = vmatprep.mubr.f32.mxu0 0.0
      %v5447 = vand.u32 %v4249, 4294901760
      %v5448 = vsub.f32 %v4249, %v5447
      %v5449 = vand.u32 %v5448, 4294901760
      %5450 = vmatmul.mubr.f32.gmra.mxu0 %v5449
      %v5451 = vpop.f32.mrf.mxu0
      %v5452 = vadd.f32 %v5142, %v5451
      %v5453 = vpop.f32.mrf.mxu0
      %5454 = vmatprep.mubr.f32.mxu0 0.0
      %v5455 = vand.u32 %v4252, 4294901760
      %v5456 = vsub.f32 %v4252, %v5455
      %v5457 = vand.u32 %v5456, 4294901760
      %5458 = vmatmul.mubr.f32.gmra.mxu0 %v5457
      %v5459 = vpop.f32.mrf.mxu0
      %v5460 = vadd.f32 %v5149, %v5459
      %v5461 = vpop.f32.mrf.mxu0
      %5462 = vmatprep.mubr.f32.mxu0 0.0
      %v5463 = vand.u32 %v4255, 4294901760
      %v5464 = vsub.f32 %v4255, %v5463
      %v5465 = vand.u32 %v5464, 4294901760
      %5466 = vmatmul.mubr.f32.gmra.mxu0 %v5465
      %v5467 = vpop.f32.mrf.mxu0
      %v5468 = vadd.f32 %v5156, %v5467
      %v5469 = vpop.f32.mrf.mxu0
      %5470 = vmatprep.mubr.f32.mxu0 0.0
      %v5471 = vand.u32 %v4258, 4294901760
      %v5472 = vsub.f32 %v4258, %v5471
      %v5473 = vand.u32 %v5472, 4294901760
      %5474 = vmatmul.mubr.f32.gmra.mxu0 %v5473
      %v5475 = vpop.f32.mrf.mxu0
      %v5476 = vadd.f32 %v5163, %v5475
      %v5477 = vpop.f32.mrf.mxu0
      %5478 = vmatprep.mubr.f32.mxu0 0.0
      %v5479 = vand.u32 %v4261, 4294901760
      %v5480 = vsub.f32 %v4261, %v5479
      %v5481 = vand.u32 %v5480, 4294901760
      %5482 = vmatmul.mubr.f32.gmra.mxu0 %v5481
      %v5483 = vpop.f32.mrf.mxu0
      %v5484 = vadd.f32 %v5170, %v5483
      %v5485 = vpop.f32.mrf.mxu0
      %5486 = vmatprep.mubr.f32.mxu0 0.0
      %v5487 = vand.u32 %v4264, 4294901760
      %v5488 = vsub.f32 %v4264, %v5487
      %v5489 = vand.u32 %v5488, 4294901760
      %5490 = vmatmul.mubr.f32.gmra.mxu0 %v5489
      %v5491 = vpop.f32.mrf.mxu0
      %v5492 = vadd.f32 %v5177, %v5491
      %v5493 = vpop.f32.mrf.mxu0
      %5494 = vmatprep.mubr.f32.mxu0 0.0
      %v5495 = vand.u32 %v4267, 4294901760
      %v5496 = vsub.f32 %v4267, %v5495
      %v5497 = vand.u32 %v5496, 4294901760
      %5498 = vmatmul.mubr.f32.gmra.mxu0 %v5497
      %v5499 = vpop.f32.mrf.mxu0
      %v5500 = vadd.f32 %v5184, %v5499
      %v5501 = vpop.f32.mrf.mxu0
      %5502 = vmatprep.mubr.f32.mxu0 0.0
      %v5503 = vand.u32 %v4270, 4294901760
      %v5504 = vsub.f32 %v4270, %v5503
      %v5505 = vand.u32 %v5504, 4294901760
      %5506 = vmatmul.mubr.f32.gmra.mxu0 %v5505
      %v5507 = vpop.f32.mrf.mxu0
      %v5508 = vadd.f32 %v5191, %v5507
      %v5509 = vpop.f32.mrf.mxu0
      %5510 = vmatprep.mubr.f32.mxu0 0.0
      %v5511 = vand.u32 %v4273, 4294901760
      %v5512 = vsub.f32 %v4273, %v5511
      %v5513 = vand.u32 %v5512, 4294901760
      %5514 = vmatmul.mubr.f32.gmra.mxu0 %v5513
      %v5515 = vpop.f32.mrf.mxu0
      %v5516 = vadd.f32 %v5198, %v5515
      %v5517 = vpop.f32.mrf.mxu0
      %5518 = vmatprep.mubr.f32.mxu0 0.0
      %v5519 = vand.u32 %v4276, 4294901760
      %v5520 = vsub.f32 %v4276, %v5519
      %v5521 = vand.u32 %v5520, 4294901760
      %5522 = vmatmul.mubr.f32.gmra.mxu0 %v5521
      %v5523 = vpop.f32.mrf.mxu0
      %v5524 = vadd.f32 %v5205, %v5523
      %v5525 = vpop.f32.mrf.mxu0
      %5526 = vmatprep.mubr.f32.mxu0 0.0
      %v5527 = vand.u32 %v4279, 4294901760
      %v5528 = vsub.f32 %v4279, %v5527
      %v5529 = vand.u32 %v5528, 4294901760
      %5530 = vmatmul.mubr.f32.gmra.mxu0 %v5529
      %v5531 = vpop.f32.mrf.mxu0
      %v5532 = vadd.f32 %v5212, %v5531
      %v5533 = vpop.f32.mrf.mxu0
      %5534 = vmatprep.mubr.f32.mxu0 0.0
      %v5535 = vand.u32 %v4282, 4294901760
      %v5536 = vsub.f32 %v4282, %v5535
      %v5537 = vand.u32 %v5536, 4294901760
      %5538 = vmatmul.mubr.f32.gmra.mxu0 %v5537
      %v5539 = vpop.f32.mrf.mxu0
      %v5540 = vadd.f32 %v5219, %v5539
      %v5541 = vpop.f32.mrf.mxu0
      %5542 = vmatprep.mubr.f32.mxu0 0.0
      %v5543 = vand.u32 %v4285, 4294901760
      %v5544 = vsub.f32 %v4285, %v5543
      %v5545 = vand.u32 %v5544, 4294901760
      %5546 = vmatmul.mubr.f32.gmra.mxu0 %v5545
      %v5547 = vpop.f32.mrf.mxu0
      %v5548 = vadd.f32 %v5226, %v5547
      %v5549 = vpop.f32.mrf.mxu0
      %5550 = vdwg.mxu0
      %5551 = vmatprep.subr.mxu0 0.0
      %5552 = vmatpush1.msra.mxu0 0.0
      %5553 = vmatprep.subr.mxu0 0.0
      %5554 = vmatpush1.msra.mxu0 0.0
      %5555 = vmatprep.subr.mxu0 0.0
      %5556 = vmatpush1.msra.mxu0 0.0
      %5557 = vmatprep.subr.mxu0 0.0
      %5558 = vmatpush1.msra.mxu0 0.0
      %5559 = vmatprep.subr.mxu0 0.0
      %5560 = vmatpush1.msra.mxu0 0.0
      %5561 = vmatprep.subr.mxu0 0.0
      %5562 = vmatpush1.msra.mxu0 0.0
      %5563 = vmatprep.subr.mxu0 0.0
      %5564 = vmatpush1.msra.mxu0 0.0
      %5565 = vmatprep.subr.mxu0 0.0
      %5566 = vmatpush1.msra.mxu0 0.0
      %5567 = vmatprep.subr.mxu0 0.0
      %5568 = vmatpush1.msra.mxu0 0.0
      %5569 = vmatprep.subr.mxu0 0.0
      %5570 = vmatpush1.msra.mxu0 0.0
      %5571 = vmatprep.subr.mxu0 0.0
      %5572 = vmatpush1.msra.mxu0 0.0
      %5573 = vmatprep.subr.mxu0 0.0
      %5574 = vmatpush1.msra.mxu0 0.0
      %5575 = vmatprep.subr.mxu0 0.0
      %5576 = vmatpush1.msra.mxu0 0.0
      %5577 = vmatprep.subr.mxu0 0.0
      %5578 = vmatpush1.msra.mxu0 0.0
      %5579 = vmatprep.subr.mxu0 0.0
      %5580 = vmatpush1.msra.mxu0 0.0
      %5581 = vmatprep.subr.mxu0 0.0
      %v5582 = vand.u32 %v4288, 4294901760
      %v5583 = vsub.f32 %v4288, %v5582
      %v5584 = vand.u32 %v5583, 4294901760
      %5585 = vmatpush1.msra.mxu0 %v5584
      %5586 = vmatprep.subr.mxu0 0.0
      %5587 = vmatpush2.msra.mxu0 0.0
      %5588 = vmatprep.subr.mxu0 0.0
      %5589 = vmatpush2.msra.mxu0 0.0
      %5590 = vmatprep.subr.mxu0 0.0
      %5591 = vmatpush2.msra.mxu0 0.0
      %5592 = vmatprep.subr.mxu0 0.0
      %5593 = vmatpush2.msra.mxu0 0.0
      %5594 = vmatprep.subr.mxu0 0.0
      %5595 = vmatpush2.msra.mxu0 0.0
      %5596 = vmatprep.subr.mxu0 0.0
      %5597 = vmatpush2.msra.mxu0 0.0
      %5598 = vmatprep.subr.mxu0 0.0
      %5599 = vmatpush2.msra.mxu0 0.0
      %5600 = vmatprep.subr.mxu0 0.0
      %5601 = vmatpush2.msra.mxu0 0.0
      %5602 = vmatprep.subr.mxu0 0.0
      %5603 = vmatpush2.msra.mxu0 0.0
      %5604 = vmatprep.subr.mxu0 0.0
      %5605 = vmatpush2.msra.mxu0 0.0
      %5606 = vmatprep.subr.mxu0 0.0
      %5607 = vmatpush2.msra.mxu0 0.0
      %5608 = vmatprep.subr.mxu0 0.0
      %5609 = vmatpush2.msra.mxu0 0.0
      %5610 = vmatprep.subr.mxu0 0.0
      %5611 = vmatpush2.msra.mxu0 0.0
      %5612 = vmatprep.subr.mxu0 0.0
      %5613 = vmatpush2.msra.mxu0 0.0
      %5614 = vmatprep.subr.mxu0 0.0
      %5615 = vmatpush2.msra.mxu0 0.0
      %5616 = vmatprep.subr.mxu0 0.0
      %5617 = vmatpush2.msra.mxu0 0.0
      %5618 = vmatprep.mubr.f32.mxu0 0.0
      %v5619 = vand.u32 %v4192, 4294901760
      %5620 = vmatmul.mubr.f32.gmra.mxu0 %v5619
      %v5621 = vpop.f32.mrf.mxu0
      %v5622 = vadd.f32 %v5300, %v5621
      %v5623 = vpop.f32.mrf.mxu0
      %5624 = vmatprep.mubr.f32.mxu0 0.0
      %v5625 = vand.u32 %v4195, 4294901760
      %5626 = vmatmul.mubr.f32.gmra.mxu0 %v5625
      %v5627 = vpop.f32.mrf.mxu0
      %v5628 = vadd.f32 %v5308, %v5627
      %v5629 = vpop.f32.mrf.mxu0
      %5630 = vmatprep.mubr.f32.mxu0 0.0
      %v5631 = vand.u32 %v4198, 4294901760
      %5632 = vmatmul.mubr.f32.gmra.mxu0 %v5631
      %v5633 = vpop.f32.mrf.mxu0
      %v5634 = vadd.f32 %v5316, %v5633
      %v5635 = vpop.f32.mrf.mxu0
      %5636 = vmatprep.mubr.f32.mxu0 0.0
      %v5637 = vand.u32 %v4201, 4294901760
      %5638 = vmatmul.mubr.f32.gmra.mxu0 %v5637
      %v5639 = vpop.f32.mrf.mxu0
      %v5640 = vadd.f32 %v5324, %v5639
      %v5641 = vpop.f32.mrf.mxu0
      %5642 = vmatprep.mubr.f32.mxu0 0.0
      %v5643 = vand.u32 %v4204, 4294901760
      %5644 = vmatmul.mubr.f32.gmra.mxu0 %v5643
      %v5645 = vpop.f32.mrf.mxu0
      %v5646 = vadd.f32 %v5332, %v5645
      %v5647 = vpop.f32.mrf.mxu0
      %5648 = vmatprep.mubr.f32.mxu0 0.0
      %v5649 = vand.u32 %v4207, 4294901760
      %5650 = vmatmul.mubr.f32.gmra.mxu0 %v5649
      %v5651 = vpop.f32.mrf.mxu0
      %v5652 = vadd.f32 %v5340, %v5651
      %v5653 = vpop.f32.mrf.mxu0
      %5654 = vmatprep.mubr.f32.mxu0 0.0
      %v5655 = vand.u32 %v4210, 4294901760
      %5656 = vmatmul.mubr.f32.gmra.mxu0 %v5655
      %v5657 = vpop.f32.mrf.mxu0
      %v5658 = vadd.f32 %v5348, %v5657
      %v5659 = vpop.f32.mrf.mxu0
      %5660 = vmatprep.mubr.f32.mxu0 0.0
      %v5661 = vand.u32 %v4213, 4294901760
      %5662 = vmatmul.mubr.f32.gmra.mxu0 %v5661
      %v5663 = vpop.f32.mrf.mxu0
      %v5664 = vadd.f32 %v5356, %v5663
      %v5665 = vpop.f32.mrf.mxu0
      %5666 = vmatprep.mubr.f32.mxu0 0.0
      %v5667 = vand.u32 %v4216, 4294901760
      %5668 = vmatmul.mubr.f32.gmra.mxu0 %v5667
      %v5669 = vpop.f32.mrf.mxu0
      %v5670 = vadd.f32 %v5364, %v5669
      %v5671 = vpop.f32.mrf.mxu0
      %5672 = vmatprep.mubr.f32.mxu0 0.0
      %v5673 = vand.u32 %v4219, 4294901760
      %5674 = vmatmul.mubr.f32.gmra.mxu0 %v5673
      %v5675 = vpop.f32.mrf.mxu0
      %v5676 = vadd.f32 %v5372, %v5675
      %v5677 = vpop.f32.mrf.mxu0
      %5678 = vmatprep.mubr.f32.mxu0 0.0
      %v5679 = vand.u32 %v4222, 4294901760
      %5680 = vmatmul.mubr.f32.gmra.mxu0 %v5679
      %v5681 = vpop.f32.mrf.mxu0
      %v5682 = vadd.f32 %v5380, %v5681
      %v5683 = vpop.f32.mrf.mxu0
      %5684 = vmatprep.mubr.f32.mxu0 0.0
      %v5685 = vand.u32 %v4225, 4294901760
      %5686 = vmatmul.mubr.f32.gmra.mxu0 %v5685
      %v5687 = vpop.f32.mrf.mxu0
      %v5688 = vadd.f32 %v5388, %v5687
      %v5689 = vpop.f32.mrf.mxu0
      %5690 = vmatprep.mubr.f32.mxu0 0.0
      %v5691 = vand.u32 %v4228, 4294901760
      %5692 = vmatmul.mubr.f32.gmra.mxu0 %v5691
      %v5693 = vpop.f32.mrf.mxu0
      %v5694 = vadd.f32 %v5396, %v5693
      %v5695 = vpop.f32.mrf.mxu0
      %5696 = vmatprep.mubr.f32.mxu0 0.0
      %v5697 = vand.u32 %v4231, 4294901760
      %5698 = vmatmul.mubr.f32.gmra.mxu0 %v5697
      %v5699 = vpop.f32.mrf.mxu0
      %v5700 = vadd.f32 %v5404, %v5699
      %v5701 = vpop.f32.mrf.mxu0
      %5702 = vmatprep.mubr.f32.mxu0 0.0
      %v5703 = vand.u32 %v4234, 4294901760
      %5704 = vmatmul.mubr.f32.gmra.mxu0 %v5703
      %v5705 = vpop.f32.mrf.mxu0
      %v5706 = vadd.f32 %v5412, %v5705
      %v5707 = vpop.f32.mrf.mxu0
      %5708 = vmatprep.mubr.f32.mxu0 0.0
      %v5709 = vand.u32 %v4237, 4294901760
      %5710 = vmatmul.mubr.f32.gmra.mxu0 %v5709
      %v5711 = vpop.f32.mrf.mxu0
      %v5712 = vadd.f32 %v5420, %v5711
      %v5713 = vpop.f32.mrf.mxu0
      %5714 = vmatprep.mubr.f32.mxu0 0.0
      %v5715 = vand.u32 %v4240, 4294901760
      %5716 = vmatmul.mubr.f32.gmra.mxu0 %v5715
      %v5717 = vpop.f32.mrf.mxu0
      %v5718 = vadd.f32 %v5428, %v5717
      %v5719 = vpop.f32.mrf.mxu0
      %5720 = vmatprep.mubr.f32.mxu0 0.0
      %v5721 = vand.u32 %v4243, 4294901760
      %5722 = vmatmul.mubr.f32.gmra.mxu0 %v5721
      %v5723 = vpop.f32.mrf.mxu0
      %v5724 = vadd.f32 %v5436, %v5723
      %v5725 = vpop.f32.mrf.mxu0
      %5726 = vmatprep.mubr.f32.mxu0 0.0
      %v5727 = vand.u32 %v4246, 4294901760
      %5728 = vmatmul.mubr.f32.gmra.mxu0 %v5727
      %v5729 = vpop.f32.mrf.mxu0
      %v5730 = vadd.f32 %v5444, %v5729
      %v5731 = vpop.f32.mrf.mxu0
      %5732 = vmatprep.mubr.f32.mxu0 0.0
      %v5733 = vand.u32 %v4249, 4294901760
      %5734 = vmatmul.mubr.f32.gmra.mxu0 %v5733
      %v5735 = vpop.f32.mrf.mxu0
      %v5736 = vadd.f32 %v5452, %v5735
      %v5737 = vpop.f32.mrf.mxu0
      %5738 = vmatprep.mubr.f32.mxu0 0.0
      %v5739 = vand.u32 %v4252, 4294901760
      %5740 = vmatmul.mubr.f32.gmra.mxu0 %v5739
      %v5741 = vpop.f32.mrf.mxu0
      %v5742 = vadd.f32 %v5460, %v5741
      %v5743 = vpop.f32.mrf.mxu0
      %5744 = vmatprep.mubr.f32.mxu0 0.0
      %v5745 = vand.u32 %v4255, 4294901760
      %5746 = vmatmul.mubr.f32.gmra.mxu0 %v5745
      %v5747 = vpop.f32.mrf.mxu0
      %v5748 = vadd.f32 %v5468, %v5747
      %v5749 = vpop.f32.mrf.mxu0
      %5750 = vmatprep.mubr.f32.mxu0 0.0
      %v5751 = vand.u32 %v4258, 4294901760
      %5752 = vmatmul.mubr.f32.gmra.mxu0 %v5751
      %v5753 = vpop.f32.mrf.mxu0
      %v5754 = vadd.f32 %v5476, %v5753
      %v5755 = vpop.f32.mrf.mxu0
      %5756 = vmatprep.mubr.f32.mxu0 0.0
      %v5757 = vand.u32 %v4261, 4294901760
      %5758 = vmatmul.mubr.f32.gmra.mxu0 %v5757
      %v5759 = vpop.f32.mrf.mxu0
      %v5760 = vadd.f32 %v5484, %v5759
      %v5761 = vpop.f32.mrf.mxu0
      %5762 = vmatprep.mubr.f32.mxu0 0.0
      %v5763 = vand.u32 %v4264, 4294901760
      %5764 = vmatmul.mubr.f32.gmra.mxu0 %v5763
      %v5765 = vpop.f32.mrf.mxu0
      %v5766 = vadd.f32 %v5492, %v5765
      %v5767 = vpop.f32.mrf.mxu0
      %5768 = vmatprep.mubr.f32.mxu0 0.0
      %v5769 = vand.u32 %v4267, 4294901760
      %5770 = vmatmul.mubr.f32.gmra.mxu0 %v5769
      %v5771 = vpop.f32.mrf.mxu0
      %v5772 = vadd.f32 %v5500, %v5771
      %v5773 = vpop.f32.mrf.mxu0
      %5774 = vmatprep.mubr.f32.mxu0 0.0
      %v5775 = vand.u32 %v4270, 4294901760
      %5776 = vmatmul.mubr.f32.gmra.mxu0 %v5775
      %v5777 = vpop.f32.mrf.mxu0
      %v5778 = vadd.f32 %v5508, %v5777
      %v5779 = vpop.f32.mrf.mxu0
      %5780 = vmatprep.mubr.f32.mxu0 0.0
      %v5781 = vand.u32 %v4273, 4294901760
      %5782 = vmatmul.mubr.f32.gmra.mxu0 %v5781
      %v5783 = vpop.f32.mrf.mxu0
      %v5784 = vadd.f32 %v5516, %v5783
      %v5785 = vpop.f32.mrf.mxu0
      %5786 = vmatprep.mubr.f32.mxu0 0.0
      %v5787 = vand.u32 %v4276, 4294901760
      %5788 = vmatmul.mubr.f32.gmra.mxu0 %v5787
      %v5789 = vpop.f32.mrf.mxu0
      %v5790 = vadd.f32 %v5524, %v5789
      %v5791 = vpop.f32.mrf.mxu0
      %5792 = vmatprep.mubr.f32.mxu0 0.0
      %v5793 = vand.u32 %v4279, 4294901760
      %5794 = vmatmul.mubr.f32.gmra.mxu0 %v5793
      %v5795 = vpop.f32.mrf.mxu0
      %v5796 = vadd.f32 %v5532, %v5795
      %v5797 = vpop.f32.mrf.mxu0
      %5798 = vmatprep.mubr.f32.mxu0 0.0
      %v5799 = vand.u32 %v4282, 4294901760
      %5800 = vmatmul.mubr.f32.gmra.mxu0 %v5799
      %v5801 = vpop.f32.mrf.mxu0
      %v5802 = vadd.f32 %v5540, %v5801
      %v5803 = vpop.f32.mrf.mxu0
      %5804 = vmatprep.mubr.f32.mxu0 0.0
      %v5805 = vand.u32 %v4285, 4294901760
      %5806 = vmatmul.mubr.f32.gmra.mxu0 %v5805
      %v5807 = vpop.f32.mrf.mxu0
      %v5808 = vadd.f32 %v5548, %v5807
      %v5809 = vpop.f32.mrf.mxu0
      %5810 = vdwg.mxu0
      %5811 = vmatprep.subr.mxu0 0.0
      %5812 = vmatpush1.msra.mxu0 0.0
      %5813 = vmatprep.subr.mxu0 0.0
      %5814 = vmatpush1.msra.mxu0 0.0
      %5815 = vmatprep.subr.mxu0 0.0
      %5816 = vmatpush1.msra.mxu0 0.0
      %5817 = vmatprep.subr.mxu0 0.0
      %5818 = vmatpush1.msra.mxu0 0.0
      %5819 = vmatprep.subr.mxu0 0.0
      %5820 = vmatpush1.msra.mxu0 0.0
      %5821 = vmatprep.subr.mxu0 0.0
      %5822 = vmatpush1.msra.mxu0 0.0
      %5823 = vmatprep.subr.mxu0 0.0
      %5824 = vmatpush1.msra.mxu0 0.0
      %5825 = vmatprep.subr.mxu0 0.0
      %5826 = vmatpush1.msra.mxu0 0.0
      %5827 = vmatprep.subr.mxu0 0.0
      %5828 = vmatpush1.msra.mxu0 0.0
      %5829 = vmatprep.subr.mxu0 0.0
      %5830 = vmatpush1.msra.mxu0 0.0
      %5831 = vmatprep.subr.mxu0 0.0
      %5832 = vmatpush1.msra.mxu0 0.0
      %5833 = vmatprep.subr.mxu0 0.0
      %5834 = vmatpush1.msra.mxu0 0.0
      %5835 = vmatprep.subr.mxu0 0.0
      %5836 = vmatpush1.msra.mxu0 0.0
      %5837 = vmatprep.subr.mxu0 0.0
      %5838 = vmatpush1.msra.mxu0 0.0
      %5839 = vmatprep.subr.mxu0 0.0
      %5840 = vmatpush1.msra.mxu0 0.0
      %5841 = vmatprep.subr.mxu0 0.0
      %v5842 = vand.u32 %v4288, 4294901760
      %5843 = vmatpush1.msra.mxu0 %v5842
      %5844 = vmatprep.subr.mxu0 0.0
      %5845 = vmatpush2.msra.mxu0 0.0
      %5846 = vmatprep.subr.mxu0 0.0
      %5847 = vmatpush2.msra.mxu0 0.0
      %5848 = vmatprep.subr.mxu0 0.0
      %5849 = vmatpush2.msra.mxu0 0.0
      %5850 = vmatprep.subr.mxu0 0.0
      %5851 = vmatpush2.msra.mxu0 0.0
      %5852 = vmatprep.subr.mxu0 0.0
      %5853 = vmatpush2.msra.mxu0 0.0
      %5854 = vmatprep.subr.mxu0 0.0
      %5855 = vmatpush2.msra.mxu0 0.0
      %5856 = vmatprep.subr.mxu0 0.0
      %5857 = vmatpush2.msra.mxu0 0.0
      %5858 = vmatprep.subr.mxu0 0.0
      %5859 = vmatpush2.msra.mxu0 0.0
      %5860 = vmatprep.subr.mxu0 0.0
      %5861 = vmatpush2.msra.mxu0 0.0
      %5862 = vmatprep.subr.mxu0 0.0
      %5863 = vmatpush2.msra.mxu0 0.0
      %5864 = vmatprep.subr.mxu0 0.0
      %5865 = vmatpush2.msra.mxu0 0.0
      %5866 = vmatprep.subr.mxu0 0.0
      %5867 = vmatpush2.msra.mxu0 0.0
      %5868 = vmatprep.subr.mxu0 0.0
      %5869 = vmatpush2.msra.mxu0 0.0
      %5870 = vmatprep.subr.mxu0 0.0
      %5871 = vmatpush2.msra.mxu0 0.0
      %5872 = vmatprep.subr.mxu0 0.0
      %5873 = vmatpush2.msra.mxu0 0.0
      %5874 = vmatprep.subr.mxu0 0.0
      %5875 = vmatpush2.msra.mxu0 0.0
      %5876 = vmatprep.mubr.f32.mxu0 0.0
      %v5877 = vand.u32 %v4192, 4294901760
      %5878 = vmatmul.mubr.f32.gmra.mxu0 %v5877
      %v5879 = vpop.f32.mrf.mxu0
      %v5880 = vadd.f32 %v5622, %v5879
      %v5881 = vpop.f32.mrf.mxu0
      %5882 = vmatprep.mubr.f32.mxu0 0.0
      %v5883 = vand.u32 %v4195, 4294901760
      %5884 = vmatmul.mubr.f32.gmra.mxu0 %v5883
      %v5885 = vpop.f32.mrf.mxu0
      %v5886 = vadd.f32 %v5628, %v5885
      %v5887 = vpop.f32.mrf.mxu0
      %5888 = vmatprep.mubr.f32.mxu0 0.0
      %v5889 = vand.u32 %v4198, 4294901760
      %5890 = vmatmul.mubr.f32.gmra.mxu0 %v5889
      %v5891 = vpop.f32.mrf.mxu0
      %v5892 = vadd.f32 %v5634, %v5891
      %v5893 = vpop.f32.mrf.mxu0
      %5894 = vmatprep.mubr.f32.mxu0 0.0
      %v5895 = vand.u32 %v4201, 4294901760
      %5896 = vmatmul.mubr.f32.gmra.mxu0 %v5895
      %v5897 = vpop.f32.mrf.mxu0
      %v5898 = vadd.f32 %v5640, %v5897
      %v5899 = vpop.f32.mrf.mxu0
      %5900 = vmatprep.mubr.f32.mxu0 0.0
      %v5901 = vand.u32 %v4204, 4294901760
      %5902 = vmatmul.mubr.f32.gmra.mxu0 %v5901
      %v5903 = vpop.f32.mrf.mxu0
      %v5904 = vadd.f32 %v5646, %v5903
      %v5905 = vpop.f32.mrf.mxu0
      %5906 = vmatprep.mubr.f32.mxu0 0.0
      %v5907 = vand.u32 %v4207, 4294901760
      %5908 = vmatmul.mubr.f32.gmra.mxu0 %v5907
      %v5909 = vpop.f32.mrf.mxu0
      %v5910 = vadd.f32 %v5652, %v5909
      %v5911 = vpop.f32.mrf.mxu0
      %5912 = vmatprep.mubr.f32.mxu0 0.0
      %v5913 = vand.u32 %v4210, 4294901760
      %5914 = vmatmul.mubr.f32.gmra.mxu0 %v5913
      %v5915 = vpop.f32.mrf.mxu0
      %v5916 = vadd.f32 %v5658, %v5915
      %v5917 = vpop.f32.mrf.mxu0
      %5918 = vmatprep.mubr.f32.mxu0 0.0
      %v5919 = vand.u32 %v4213, 4294901760
      %5920 = vmatmul.mubr.f32.gmra.mxu0 %v5919
      %v5921 = vpop.f32.mrf.mxu0
      %v5922 = vadd.f32 %v5664, %v5921
      %v5923 = vpop.f32.mrf.mxu0
      %5924 = vmatprep.mubr.f32.mxu0 0.0
      %v5925 = vand.u32 %v4216, 4294901760
      %5926 = vmatmul.mubr.f32.gmra.mxu0 %v5925
      %v5927 = vpop.f32.mrf.mxu0
      %v5928 = vadd.f32 %v5670, %v5927
      %v5929 = vpop.f32.mrf.mxu0
      %5930 = vmatprep.mubr.f32.mxu0 0.0
      %v5931 = vand.u32 %v4219, 4294901760
      %5932 = vmatmul.mubr.f32.gmra.mxu0 %v5931
      %v5933 = vpop.f32.mrf.mxu0
      %v5934 = vadd.f32 %v5676, %v5933
      %v5935 = vpop.f32.mrf.mxu0
      %5936 = vmatprep.mubr.f32.mxu0 0.0
      %v5937 = vand.u32 %v4222, 4294901760
      %5938 = vmatmul.mubr.f32.gmra.mxu0 %v5937
      %v5939 = vpop.f32.mrf.mxu0
      %v5940 = vadd.f32 %v5682, %v5939
      %v5941 = vpop.f32.mrf.mxu0
      %5942 = vmatprep.mubr.f32.mxu0 0.0
      %v5943 = vand.u32 %v4225, 4294901760
      %5944 = vmatmul.mubr.f32.gmra.mxu0 %v5943
      %v5945 = vpop.f32.mrf.mxu0
      %v5946 = vadd.f32 %v5688, %v5945
      %v5947 = vpop.f32.mrf.mxu0
      %5948 = vmatprep.mubr.f32.mxu0 0.0
      %v5949 = vand.u32 %v4228, 4294901760
      %5950 = vmatmul.mubr.f32.gmra.mxu0 %v5949
      %v5951 = vpop.f32.mrf.mxu0
      %v5952 = vadd.f32 %v5694, %v5951
      %v5953 = vpop.f32.mrf.mxu0
      %5954 = vmatprep.mubr.f32.mxu0 0.0
      %v5955 = vand.u32 %v4231, 4294901760
      %5956 = vmatmul.mubr.f32.gmra.mxu0 %v5955
      %v5957 = vpop.f32.mrf.mxu0
      %v5958 = vadd.f32 %v5700, %v5957
      %v5959 = vpop.f32.mrf.mxu0
      %5960 = vmatprep.mubr.f32.mxu0 0.0
      %v5961 = vand.u32 %v4234, 4294901760
      %5962 = vmatmul.mubr.f32.gmra.mxu0 %v5961
      %v5963 = vpop.f32.mrf.mxu0
      %v5964 = vadd.f32 %v5706, %v5963
      %v5965 = vpop.f32.mrf.mxu0
      %5966 = vmatprep.mubr.f32.mxu0 0.0
      %v5967 = vand.u32 %v4237, 4294901760
      %5968 = vmatmul.mubr.f32.gmra.mxu0 %v5967
      %v5969 = vpop.f32.mrf.mxu0
      %v5970 = vadd.f32 %v5712, %v5969
      %v5971 = vpop.f32.mrf.mxu0
      %5972 = vmatprep.mubr.f32.mxu0 0.0
      %v5973 = vand.u32 %v4240, 4294901760
      %5974 = vmatmul.mubr.f32.gmra.mxu0 %v5973
      %v5975 = vpop.f32.mrf.mxu0
      %v5976 = vadd.f32 %v5718, %v5975
      %v5977 = vpop.f32.mrf.mxu0
      %5978 = vmatprep.mubr.f32.mxu0 0.0
      %v5979 = vand.u32 %v4243, 4294901760
      %5980 = vmatmul.mubr.f32.gmra.mxu0 %v5979
      %v5981 = vpop.f32.mrf.mxu0
      %v5982 = vadd.f32 %v5724, %v5981
      %v5983 = vpop.f32.mrf.mxu0
      %5984 = vmatprep.mubr.f32.mxu0 0.0
      %v5985 = vand.u32 %v4246, 4294901760
      %5986 = vmatmul.mubr.f32.gmra.mxu0 %v5985
      %v5987 = vpop.f32.mrf.mxu0
      %v5988 = vadd.f32 %v5730, %v5987
      %v5989 = vpop.f32.mrf.mxu0
      %5990 = vmatprep.mubr.f32.mxu0 0.0
      %v5991 = vand.u32 %v4249, 4294901760
      %5992 = vmatmul.mubr.f32.gmra.mxu0 %v5991
      %v5993 = vpop.f32.mrf.mxu0
      %v5994 = vadd.f32 %v5736, %v5993
      %v5995 = vpop.f32.mrf.mxu0
      %5996 = vmatprep.mubr.f32.mxu0 0.0
      %v5997 = vand.u32 %v4252, 4294901760
      %5998 = vmatmul.mubr.f32.gmra.mxu0 %v5997
      %v5999 = vpop.f32.mrf.mxu0
      %v6000 = vadd.f32 %v5742, %v5999
      %v6001 = vpop.f32.mrf.mxu0
      %6002 = vmatprep.mubr.f32.mxu0 0.0
      %v6003 = vand.u32 %v4255, 4294901760
      %6004 = vmatmul.mubr.f32.gmra.mxu0 %v6003
      %v6005 = vpop.f32.mrf.mxu0
      %v6006 = vadd.f32 %v5748, %v6005
      %v6007 = vpop.f32.mrf.mxu0
      %6008 = vmatprep.mubr.f32.mxu0 0.0
      %v6009 = vand.u32 %v4258, 4294901760
      %6010 = vmatmul.mubr.f32.gmra.mxu0 %v6009
      %v6011 = vpop.f32.mrf.mxu0
      %v6012 = vadd.f32 %v5754, %v6011
      %v6013 = vpop.f32.mrf.mxu0
      %6014 = vmatprep.mubr.f32.mxu0 0.0
      %v6015 = vand.u32 %v4261, 4294901760
      %6016 = vmatmul.mubr.f32.gmra.mxu0 %v6015
      %v6017 = vpop.f32.mrf.mxu0
      %v6018 = vadd.f32 %v5760, %v6017
      %v6019 = vpop.f32.mrf.mxu0
      %6020 = vmatprep.mubr.f32.mxu0 0.0
      %v6021 = vand.u32 %v4264, 4294901760
      %6022 = vmatmul.mubr.f32.gmra.mxu0 %v6021
      %v6023 = vpop.f32.mrf.mxu0
      %v6024 = vadd.f32 %v5766, %v6023
      %v6025 = vpop.f32.mrf.mxu0
      %6026 = vmatprep.mubr.f32.mxu0 0.0
      %v6027 = vand.u32 %v4267, 4294901760
      %6028 = vmatmul.mubr.f32.gmra.mxu0 %v6027
      %v6029 = vpop.f32.mrf.mxu0
      %v6030 = vadd.f32 %v5772, %v6029
      %v6031 = vpop.f32.mrf.mxu0
      %6032 = vmatprep.mubr.f32.mxu0 0.0
      %v6033 = vand.u32 %v4270, 4294901760
      %6034 = vmatmul.mubr.f32.gmra.mxu0 %v6033
      %v6035 = vpop.f32.mrf.mxu0
      %v6036 = vadd.f32 %v5778, %v6035
      %v6037 = vpop.f32.mrf.mxu0
      %6038 = vmatprep.mubr.f32.mxu0 0.0
      %v6039 = vand.u32 %v4273, 4294901760
      %6040 = vmatmul.mubr.f32.gmra.mxu0 %v6039
      %v6041 = vpop.f32.mrf.mxu0
      %v6042 = vadd.f32 %v5784, %v6041
      %v6043 = vpop.f32.mrf.mxu0
      %6044 = vmatprep.mubr.f32.mxu0 0.0
      %v6045 = vand.u32 %v4276, 4294901760
      %6046 = vmatmul.mubr.f32.gmra.mxu0 %v6045
      %v6047 = vpop.f32.mrf.mxu0
      %v6048 = vadd.f32 %v5790, %v6047
      %v6049 = vpop.f32.mrf.mxu0
      %6050 = vmatprep.mubr.f32.mxu0 0.0
      %v6051 = vand.u32 %v4279, 4294901760
      %6052 = vmatmul.mubr.f32.gmra.mxu0 %v6051
      %v6053 = vpop.f32.mrf.mxu0
      %v6054 = vadd.f32 %v5796, %v6053
      %v6055 = vpop.f32.mrf.mxu0
      %6056 = vmatprep.mubr.f32.mxu0 0.0
      %v6057 = vand.u32 %v4282, 4294901760
      %6058 = vmatmul.mubr.f32.gmra.mxu0 %v6057
      %v6059 = vpop.f32.mrf.mxu0
      %v6060 = vadd.f32 %v5802, %v6059
      %v6061 = vpop.f32.mrf.mxu0
      %6062 = vmatprep.mubr.f32.mxu0 0.0
      %v6063 = vand.u32 %v4285, 4294901760
      %6064 = vmatmul.mubr.f32.gmra.mxu0 %v6063
      %v6065 = vpop.f32.mrf.mxu0
      %v6066 = vadd.f32 %v5808, %v6065
      %v6067 = vpop.f32.mrf.mxu0
      %6068 = vdwg.mxu0
      %v6069 = vadd.f32 %v4125, %v5880
      %v6070 = vadd.f32 %v4126, %v5886
      %v6071 = vadd.f32 %v4127, %v5892
      %v6072 = vadd.f32 %v4128, %v5898
      %v6073 = vadd.f32 %v4129, %v5904
      %v6074 = vadd.f32 %v4130, %v5910
      %v6075 = vadd.f32 %v4131, %v5916
      %v6076 = vadd.f32 %v4132, %v5922
      %v6077 = vadd.f32 %v4133, %v5928
      %v6078 = vadd.f32 %v4134, %v5934
      %v6079 = vadd.f32 %v4135, %v5940
      %v6080 = vadd.f32 %v4136, %v5946
      %v6081 = vadd.f32 %v4137, %v5952
      %v6082 = vadd.f32 %v4138, %v5958
      %v6083 = vadd.f32 %v4139, %v5964
      %v6084 = vadd.f32 %v4140, %v5970
      %v6085 = vadd.f32 %v4141, %v5976
      %v6086 = vadd.f32 %v4142, %v5982
      %v6087 = vadd.f32 %v4143, %v5988
      %v6088 = vadd.f32 %v4144, %v5994
      %v6089 = vadd.f32 %v4145, %v6000
      %v6090 = vadd.f32 %v4146, %v6006
      %v6091 = vadd.f32 %v4147, %v6012
      %v6092 = vadd.f32 %v4148, %v6018
      %v6093 = vadd.f32 %v4149, %v6024
      %v6094 = vadd.f32 %v4150, %v6030
      %v6095 = vadd.f32 %v4151, %v6036
      %v6096 = vadd.f32 %v4152, %v6042
      %v6097 = vadd.f32 %v4153, %v6048
      %v6098 = vadd.f32 %v4154, %v6054
      %v6099 = vadd.f32 %v4155, %v6060
      %v6100 = vadd.f32 %v4156, %v6066
      %vm6101 = vcmask 261120
      %6102 = vst.msk [vmem:[#allocation3] sm:$0xff] %vm6101, %v6069
      %6103 = vst.msk [vmem:[#allocation3 + $0x8] sm:$0xff] %vm6101, %v6070
      %6104 = vst.msk [vmem:[#allocation3 + $0x10] sm:$0xff] %vm6101, %v6071
      %6105 = vst.msk [vmem:[#allocation3 + $0x18] sm:$0xff] %vm6101, %v6072
      %6106 = vst.msk [vmem:[#allocation3 + $0x20] sm:$0xff] %vm6101, %v6073
      %6107 = vst.msk [vmem:[#allocation3 + $0x28] sm:$0xff] %vm6101, %v6074
      %6108 = vst.msk [vmem:[#allocation3 + $0x30] sm:$0xff] %vm6101, %v6075
      %6109 = vst.msk [vmem:[#allocation3 + $0x38] sm:$0xff] %vm6101, %v6076
      %6110 = vst.msk [vmem:[#allocation3 + $0x40] sm:$0xff] %vm6101, %v6077
      %6111 = vst.msk [vmem:[#allocation3 + $0x48] sm:$0xff] %vm6101, %v6078
      %6112 = vst.msk [vmem:[#allocation3 + $0x50] sm:$0xff] %vm6101, %v6079
      %6113 = vst.msk [vmem:[#allocation3 + $0x58] sm:$0xff] %vm6101, %v6080
      %6114 = vst.msk [vmem:[#allocation3 + $0x60] sm:$0xff] %vm6101, %v6081
      %6115 = vst.msk [vmem:[#allocation3 + $0x68] sm:$0xff] %vm6101, %v6082
      %6116 = vst.msk [vmem:[#allocation3 + $0x70] sm:$0xff] %vm6101, %v6083
      %6117 = vst.msk [vmem:[#allocation3 + $0x78] sm:$0xff] %vm6101, %v6084
      %6118 = vst.msk [vmem:[#allocation3 + $0x80] sm:$0xff] %vm6101, %v6085
      %6119 = vst.msk [vmem:[#allocation3 + $0x88] sm:$0xff] %vm6101, %v6086
      %6120 = vst.msk [vmem:[#allocation3 + $0x90] sm:$0xff] %vm6101, %v6087
      %6121 = vst.msk [vmem:[#allocation3 + $0x98] sm:$0xff] %vm6101, %v6088
      %6122 = vst.msk [vmem:[#allocation3 + $0xa0] sm:$0xff] %vm6101, %v6089
      %6123 = vst.msk [vmem:[#allocation3 + $0xa8] sm:$0xff] %vm6101, %v6090
      %6124 = vst.msk [vmem:[#allocation3 + $0xb0] sm:$0xff] %vm6101, %v6091
      %6125 = vst.msk [vmem:[#allocation3 + $0xb8] sm:$0xff] %vm6101, %v6092
      %6126 = vst.msk [vmem:[#allocation3 + $0xc0] sm:$0xff] %vm6101, %v6093
      %6127 = vst.msk [vmem:[#allocation3 + $0xc8] sm:$0xff] %vm6101, %v6094
      %6128 = vst.msk [vmem:[#allocation3 + $0xd0] sm:$0xff] %vm6101, %v6095
      %6129 = vst.msk [vmem:[#allocation3 + $0xd8] sm:$0xff] %vm6101, %v6096
      %6130 = vst.msk [vmem:[#allocation3 + $0xe0] sm:$0xff] %vm6101, %v6097
      %6131 = vst.msk [vmem:[#allocation3 + $0xe8] sm:$0xff] %vm6101, %v6098
      %6132 = vst.msk [vmem:[#allocation3 + $0xf0] sm:$0xff] %vm6101, %v6099
      %6133 = vst.msk [vmem:[#allocation3 + $0xf8] sm:$0xff] %vm6101, %v6100
      %v6134 = vld [vmem:[#allocation3] ss:$2 sm:$0xff]
      %s6135 = scalar_lea.vmem [#allocation3], 16
      %v6136 = vld [vmem:[%s6135] ss:$2 sm:$0xff]
      %s6137 = scalar_lea.vmem [#allocation3], 32
      %v6138 = vld [vmem:[%s6137] ss:$2 sm:$0xff]
      %s6139 = scalar_lea.vmem [#allocation3], 48
      %v6140 = vld [vmem:[%s6139] ss:$2 sm:$0xff]
      %s6141 = scalar_lea.vmem [#allocation3], 64
      %v6142 = vld [vmem:[%s6141] ss:$2 sm:$0xff]
      %s6143 = scalar_lea.vmem [#allocation3], 80
      %v6144 = vld [vmem:[%s6143] ss:$2 sm:$0xff]
      %s6145 = scalar_lea.vmem [#allocation3], 96
      %v6146 = vld [vmem:[%s6145] ss:$2 sm:$0xff]
      %s6147 = scalar_lea.vmem [#allocation3], 112
      %v6148 = vld [vmem:[%s6147] ss:$2 sm:$0xff]
      %s6149 = scalar_lea.vmem [#allocation3], 128
      %v6150 = vld [vmem:[%s6149] ss:$2 sm:$0xff]
      %s6151 = scalar_lea.vmem [#allocation3], 144
      %v6152 = vld [vmem:[%s6151] ss:$2 sm:$0xff]
      %s6153 = scalar_lea.vmem [#allocation3], 160
      %v6154 = vld [vmem:[%s6153] ss:$2 sm:$0xff]
      %s6155 = scalar_lea.vmem [#allocation3], 176
      %v6156 = vld [vmem:[%s6155] ss:$2 sm:$0xff]
      %s6157 = scalar_lea.vmem [#allocation3], 192
      %v6158 = vld [vmem:[%s6157] ss:$2 sm:$0xff]
      %s6159 = scalar_lea.vmem [#allocation3], 208
      %v6160 = vld [vmem:[%s6159] ss:$2 sm:$0xff]
      %s6161 = scalar_lea.vmem [#allocation3], 224
      %v6162 = vld [vmem:[%s6161] ss:$2 sm:$0xff]
      %s6163 = scalar_lea.vmem [#allocation3], 240
      %v6164 = vld [vmem:[%s6163] ss:$2 sm:$0xff]
      %s6165 = scalar_lea.vmem [#allocation3], 1
      %v6166 = vld [vmem:[%s6165] ss:$2 sm:$0xff]
      %s6167 = scalar_lea.vmem [#allocation3], 17
      %v6168 = vld [vmem:[%s6167] ss:$2 sm:$0xff]
      %s6169 = scalar_lea.vmem [#allocation3], 33
      %v6170 = vld [vmem:[%s6169] ss:$2 sm:$0xff]
      %s6171 = scalar_lea.vmem [#allocation3], 49
      %v6172 = vld [vmem:[%s6171] ss:$2 sm:$0xff]
      %s6173 = scalar_lea.vmem [#allocation3], 65
      %v6174 = vld [vmem:[%s6173] ss:$2 sm:$0xff]
      %s6175 = scalar_lea.vmem [#allocation3], 81
      %v6176 = vld [vmem:[%s6175] ss:$2 sm:$0xff]
      %s6177 = scalar_lea.vmem [#allocation3], 97
      %v6178 = vld [vmem:[%s6177] ss:$2 sm:$0xff]
      %s6179 = scalar_lea.vmem [#allocation3], 113
      %v6180 = vld [vmem:[%s6179] ss:$2 sm:$0xff]
      %s6181 = scalar_lea.vmem [#allocation3], 129
      %v6182 = vld [vmem:[%s6181] ss:$2 sm:$0xff]
      %s6183 = scalar_lea.vmem [#allocation3], 145
      %v6184 = vld [vmem:[%s6183] ss:$2 sm:$0xff]
      %s6185 = scalar_lea.vmem [#allocation3], 161
      %v6186 = vld [vmem:[%s6185] ss:$2 sm:$0xff]
      %s6187 = scalar_lea.vmem [#allocation3], 177
      %v6188 = vld [vmem:[%s6187] ss:$2 sm:$0xff]
      %s6189 = scalar_lea.vmem [#allocation3], 193
      %v6190 = vld [vmem:[%s6189] ss:$2 sm:$0xff]
      %s6191 = scalar_lea.vmem [#allocation3], 209
      %v6192 = vld [vmem:[%s6191] ss:$2 sm:$0xff]
      %s6193 = scalar_lea.vmem [#allocation3], 225
      %v6194 = vld [vmem:[%s6193] ss:$2 sm:$0xff]
      %s6195 = scalar_lea.vmem [#allocation3], 241
      %v6196 = vld [vmem:[%s6195] ss:$2 sm:$0xff]
      %v6197 = vmax.f32 %v6134, %v6166
      %v6198 = vmax.f32 %v6136, %v6168
      %v6199 = vmax.f32 %v6138, %v6170
      %v6200 = vmax.f32 %v6140, %v6172
      %v6201 = vmax.f32 %v6142, %v6174
      %v6202 = vmax.f32 %v6144, %v6176
      %v6203 = vmax.f32 %v6146, %v6178
      %v6204 = vmax.f32 %v6148, %v6180
      %v6205 = vmax.f32 %v6150, %v6182
      %v6206 = vmax.f32 %v6152, %v6184
      %v6207 = vmax.f32 %v6154, %v6186
      %v6208 = vmax.f32 %v6156, %v6188
      %v6209 = vmax.f32 %v6158, %v6190
      %v6210 = vmax.f32 %v6160, %v6192
      %v6211 = vmax.f32 %v6162, %v6194
      %v6212 = vmax.f32 %v6164, %v6196
      %vm6213 = vcmp.gt.f32.partialorder %v6197, 0.0
      %vm6214 = vcmp.gt.f32.partialorder %v6198, 0.0
      %vm6215 = vcmp.gt.f32.partialorder %v6199, 0.0
      %vm6216 = vcmp.gt.f32.partialorder %v6200, 0.0
      %vm6217 = vcmp.gt.f32.partialorder %v6201, 0.0
      %vm6218 = vcmp.gt.f32.partialorder %v6202, 0.0
      %vm6219 = vcmp.gt.f32.partialorder %v6203, 0.0
      %vm6220 = vcmp.gt.f32.partialorder %v6204, 0.0
      %vm6221 = vcmp.gt.f32.partialorder %v6205, 0.0
      %vm6222 = vcmp.gt.f32.partialorder %v6206, 0.0
      %vm6223 = vcmp.gt.f32.partialorder %v6207, 0.0
      %vm6224 = vcmp.gt.f32.partialorder %v6208, 0.0
      %vm6225 = vcmp.gt.f32.partialorder %v6209, 0.0
      %vm6226 = vcmp.gt.f32.partialorder %v6210, 0.0
      %vm6227 = vcmp.gt.f32.partialorder %v6211, 0.0
      %vm6228 = vcmp.gt.f32.partialorder %v6212, 0.0
      %v6229 = vmul.f32 %v6197, 1.442695
      %v6230 = vpow.pop %v6229
      %v6231 = vmul.f32 %v6198, 1.442695
      %v6232 = vpow.pop %v6231
      %v6233 = vmul.f32 %v6199, 1.442695
      %v6234 = vpow.pop %v6233
      %v6235 = vmul.f32 %v6200, 1.442695
      %v6236 = vpow.pop %v6235
      %v6237 = vmul.f32 %v6201, 1.442695
      %v6238 = vpow.pop %v6237
      %v6239 = vmul.f32 %v6202, 1.442695
      %v6240 = vpow.pop %v6239
      %v6241 = vmul.f32 %v6203, 1.442695
      %v6242 = vpow.pop %v6241
      %v6243 = vmul.f32 %v6204, 1.442695
      %v6244 = vpow.pop %v6243
      %v6245 = vmul.f32 %v6205, 1.442695
      %v6246 = vpow.pop %v6245
      %v6247 = vmul.f32 %v6206, 1.442695
      %v6248 = vpow.pop %v6247
      %v6249 = vmul.f32 %v6207, 1.442695
      %v6250 = vpow.pop %v6249
      %v6251 = vmul.f32 %v6208, 1.442695
      %v6252 = vpow.pop %v6251
      %v6253 = vmul.f32 %v6209, 1.442695
      %v6254 = vpow.pop %v6253
      %v6255 = vmul.f32 %v6210, 1.442695
      %v6256 = vpow.pop %v6255
      %v6257 = vmul.f32 %v6211, 1.442695
      %v6258 = vpow.pop %v6257
      %v6259 = vmul.f32 %v6212, 1.442695
      %v6260 = vpow.pop %v6259
      %v6261 = vsub.f32 %v6230, 1.0
      %v6262 = vsub.f32 %v6232, 1.0
      %v6263 = vsub.f32 %v6234, 1.0
      %v6264 = vsub.f32 %v6236, 1.0
      %v6265 = vsub.f32 %v6238, 1.0
      %v6266 = vsub.f32 %v6240, 1.0
      %v6267 = vsub.f32 %v6242, 1.0
      %v6268 = vsub.f32 %v6244, 1.0
      %v6269 = vsub.f32 %v6246, 1.0
      %v6270 = vsub.f32 %v6248, 1.0
      %v6271 = vsub.f32 %v6250, 1.0
      %v6272 = vsub.f32 %v6252, 1.0
      %v6273 = vsub.f32 %v6254, 1.0
      %v6274 = vsub.f32 %v6256, 1.0
      %v6275 = vsub.f32 %v6258, 1.0
      %v6276 = vsub.f32 %v6260, 1.0
      %v6277 = vsel %vm6213, %v6197, %v6261
      %v6278 = vsel %vm6214, %v6198, %v6262
      %v6279 = vsel %vm6215, %v6199, %v6263
      %v6280 = vsel %vm6216, %v6200, %v6264
      %v6281 = vsel %vm6217, %v6201, %v6265
      %v6282 = vsel %vm6218, %v6202, %v6266
      %v6283 = vsel %vm6219, %v6203, %v6267
      %v6284 = vsel %vm6220, %v6204, %v6268
      %v6285 = vsel %vm6221, %v6205, %v6269
      %v6286 = vsel %vm6222, %v6206, %v6270
      %v6287 = vsel %vm6223, %v6207, %v6271
      %v6288 = vsel %vm6224, %v6208, %v6272
      %v6289 = vsel %vm6225, %v6209, %v6273
      %v6290 = vsel %vm6226, %v6210, %v6274
      %v6291 = vsel %vm6227, %v6211, %v6275
      %v6292 = vsel %vm6228, %v6212, %v6276
      %6293 = vst.msk [vmem:[#allocation4] sm:$0xff] %vm6101, %v6277
      %6294 = vst.msk [vmem:[#allocation4 + $0x8] sm:$0xff] %vm6101, %v6278
      %6295 = vst.msk [vmem:[#allocation4 + $0x10] sm:$0xff] %vm6101, %v6279
      %6296 = vst.msk [vmem:[#allocation4 + $0x18] sm:$0xff] %vm6101, %v6280
      %6297 = vst.msk [vmem:[#allocation4 + $0x20] sm:$0xff] %vm6101, %v6281
      %6298 = vst.msk [vmem:[#allocation4 + $0x28] sm:$0xff] %vm6101, %v6282
      %6299 = vst.msk [vmem:[#allocation4 + $0x30] sm:$0xff] %vm6101, %v6283
      %6300 = vst.msk [vmem:[#allocation4 + $0x38] sm:$0xff] %vm6101, %v6284
      %6301 = vst.msk [vmem:[#allocation4 + $0x40] sm:$0xff] %vm6101, %v6285
      %6302 = vst.msk [vmem:[#allocation4 + $0x48] sm:$0xff] %vm6101, %v6286
      %6303 = vst.msk [vmem:[#allocation4 + $0x50] sm:$0xff] %vm6101, %v6287
      %6304 = vst.msk [vmem:[#allocation4 + $0x58] sm:$0xff] %vm6101, %v6288
      %6305 = vst.msk [vmem:[#allocation4 + $0x60] sm:$0xff] %vm6101, %v6289
      %6306 = vst.msk [vmem:[#allocation4 + $0x68] sm:$0xff] %vm6101, %v6290
      %6307 = vst.msk [vmem:[#allocation4 + $0x70] sm:$0xff] %vm6101, %v6291
      %6308 = vst.msk [vmem:[#allocation4 + $0x78] sm:$0xff] %vm6101, %v6292
      %6309 = vst.msk [vmem:[#allocation4 + $0x80] sm:$0xff] %vm6101, 0.0
      %v6310 = vld [vmem:[%s4] sm:$0x1]
      %v6311 = vld [vmem:[%s3] sm:$0xff]
      %v6312 = vld [vmem:[%s3 + $0x8] sm:$0xff]
      %v6313 = vld [vmem:[%s3 + $0x10] sm:$0xff]
      %v6314 = vld [vmem:[%s3 + $0x18] sm:$0xff]
      %v6316 = vsel %vm6101, %v6277, 0
      %v6319 = vsel %vm6101, %v6278, 0
      %v6322 = vsel %vm6101, %v6279, 0
      %v6325 = vsel %vm6101, %v6280, 0
      %v6328 = vsel %vm6101, %v6281, 0
      %v6331 = vsel %vm6101, %v6282, 0
      %v6334 = vsel %vm6101, %v6283, 0
      %v6337 = vsel %vm6101, %v6284, 0
      %v6340 = vsel %vm6101, %v6285, 0
      %v6343 = vsel %vm6101, %v6286, 0
      %v6346 = vsel %vm6101, %v6287, 0
      %v6349 = vsel %vm6101, %v6288, 0
      %v6352 = vsel %vm6101, %v6289, 0
      %v6355 = vsel %vm6101, %v6290, 0
      %v6358 = vsel %vm6101, %v6291, 0
      %v6361 = vsel %vm6101, %v6292, 0
      %6363 = vmatprep.subr.mxu0 0.0
      %6364 = vmatpush1.msra.mxu0 0.0
      %6365 = vmatprep.subr.mxu0 0.0
      %6366 = vmatpush1.msra.mxu0 0.0
      %6367 = vmatprep.subr.mxu0 0.0
      %6368 = vmatpush1.msra.mxu0 0.0
      %6369 = vmatprep.subr.mxu0 0.0
      %6370 = vmatpush1.msra.mxu0 0.0
      %6371 = vmatprep.subr.mxu0 0.0
      %6372 = vmatpush1.msra.mxu0 0.0
      %6373 = vmatprep.subr.mxu0 0.0
      %6374 = vmatpush1.msra.mxu0 0.0
      %6375 = vmatprep.subr.mxu0 0.0
      %6376 = vmatpush1.msra.mxu0 0.0
      %6377 = vmatprep.subr.mxu0 0.0
      %6378 = vmatpush1.msra.mxu0 0.0
      %6379 = vmatprep.subr.mxu0 0.0
      %6380 = vmatpush1.msra.mxu0 0.0
      %6381 = vmatprep.subr.mxu0 0.0
      %6382 = vmatpush1.msra.mxu0 0.0
      %6383 = vmatprep.subr.mxu0 0.0
      %6384 = vmatpush1.msra.mxu0 0.0
      %6385 = vmatprep.subr.mxu0 0.0
      %6386 = vmatpush1.msra.mxu0 0.0
      %6387 = vmatprep.subr.mxu0 0.0
      %v6388 = vand.u32 %v6314, 4294901760
      %6389 = vmatpush1.msra.mxu0 %v6388
      %6390 = vmatprep.subr.mxu0 0.0
      %v6391 = vand.u32 %v6313, 4294901760
      %6392 = vmatpush1.msra.mxu0 %v6391
      %6393 = vmatprep.subr.mxu0 0.0
      %v6394 = vand.u32 %v6312, 4294901760
      %6395 = vmatpush1.msra.mxu0 %v6394
      %6396 = vmatprep.subr.mxu0 0.0
      %v6397 = vand.u32 %v6311, 4294901760
      %6398 = vmatpush1.msra.mxu0 %v6397
      %6399 = vmatprep.subr.mxu0 0.0
      %6400 = vmatpush2.msra.mxu0 0.0
      %6401 = vmatprep.subr.mxu0 0.0
      %6402 = vmatpush2.msra.mxu0 0.0
      %6403 = vmatprep.subr.mxu0 0.0
      %6404 = vmatpush2.msra.mxu0 0.0
      %6405 = vmatprep.subr.mxu0 0.0
      %6406 = vmatpush2.msra.mxu0 0.0
      %6407 = vmatprep.subr.mxu0 0.0
      %6408 = vmatpush2.msra.mxu0 0.0
      %6409 = vmatprep.subr.mxu0 0.0
      %6410 = vmatpush2.msra.mxu0 0.0
      %6411 = vmatprep.subr.mxu0 0.0
      %6412 = vmatpush2.msra.mxu0 0.0
      %6413 = vmatprep.subr.mxu0 0.0
      %6414 = vmatpush2.msra.mxu0 0.0
      %6415 = vmatprep.subr.mxu0 0.0
      %6416 = vmatpush2.msra.mxu0 0.0
      %6417 = vmatprep.subr.mxu0 0.0
      %6418 = vmatpush2.msra.mxu0 0.0
      %6419 = vmatprep.subr.mxu0 0.0
      %6420 = vmatpush2.msra.mxu0 0.0
      %6421 = vmatprep.subr.mxu0 0.0
      %6422 = vmatpush2.msra.mxu0 0.0
      %6423 = vmatprep.subr.mxu0 0.0
      %6424 = vmatpush2.msra.mxu0 0.0
      %6425 = vmatprep.subr.mxu0 0.0
      %6426 = vmatpush2.msra.mxu0 0.0
      %6427 = vmatprep.subr.mxu0 0.0
      %6428 = vmatpush2.msra.mxu0 0.0
      %6429 = vmatprep.subr.mxu0 0.0
      %6430 = vmatpush2.msra.mxu0 0.0
      %6431 = vmatprep.mubr.f32.mxu0 0.0
      %v6432 = vand.u32 %v6316, 4294901760
      %v6433 = vsub.f32 %v6316, %v6432
      %v6434 = vand.u32 %v6433, 4294901760
      %v6435 = vsub.f32 %v6433, %v6434
      %v6436 = vand.u32 %v6435, 4294901760
      %6437 = vmatmul.mubr.f32.gmra.mxu0 %v6436
      %v6438 = vpop.f32.mrf.mxu0
      %v6439 = vadd.f32 0.0, %v6438
      %v6440 = vpop.f32.mrf.mxu0
      %6441 = vmatprep.mubr.f32.mxu0 0.0
      %v6442 = vand.u32 %v6319, 4294901760
      %v6443 = vsub.f32 %v6319, %v6442
      %v6444 = vand.u32 %v6443, 4294901760
      %v6445 = vsub.f32 %v6443, %v6444
      %v6446 = vand.u32 %v6445, 4294901760
      %6447 = vmatmul.mubr.f32.gmra.mxu0 %v6446
      %v6448 = vpop.f32.mrf.mxu0
      %v6449 = vadd.f32 0.0, %v6448
      %v6450 = vpop.f32.mrf.mxu0
      %6451 = vmatprep.mubr.f32.mxu0 0.0
      %v6452 = vand.u32 %v6322, 4294901760
      %v6453 = vsub.f32 %v6322, %v6452
      %v6454 = vand.u32 %v6453, 4294901760
      %v6455 = vsub.f32 %v6453, %v6454
      %v6456 = vand.u32 %v6455, 4294901760
      %6457 = vmatmul.mubr.f32.gmra.mxu0 %v6456
      %v6458 = vpop.f32.mrf.mxu0
      %v6459 = vadd.f32 0.0, %v6458
      %v6460 = vpop.f32.mrf.mxu0
      %6461 = vmatprep.mubr.f32.mxu0 0.0
      %v6462 = vand.u32 %v6325, 4294901760
      %v6463 = vsub.f32 %v6325, %v6462
      %v6464 = vand.u32 %v6463, 4294901760
      %v6465 = vsub.f32 %v6463, %v6464
      %v6466 = vand.u32 %v6465, 4294901760
      %6467 = vmatmul.mubr.f32.gmra.mxu0 %v6466
      %v6468 = vpop.f32.mrf.mxu0
      %v6469 = vadd.f32 0.0, %v6468
      %v6470 = vpop.f32.mrf.mxu0
      %6471 = vmatprep.mubr.f32.mxu0 0.0
      %v6472 = vand.u32 %v6328, 4294901760
      %v6473 = vsub.f32 %v6328, %v6472
      %v6474 = vand.u32 %v6473, 4294901760
      %v6475 = vsub.f32 %v6473, %v6474
      %v6476 = vand.u32 %v6475, 4294901760
      %6477 = vmatmul.mubr.f32.gmra.mxu0 %v6476
      %v6478 = vpop.f32.mrf.mxu0
      %v6479 = vadd.f32 0.0, %v6478
      %v6480 = vpop.f32.mrf.mxu0
      %6481 = vmatprep.mubr.f32.mxu0 0.0
      %v6482 = vand.u32 %v6331, 4294901760
      %v6483 = vsub.f32 %v6331, %v6482
      %v6484 = vand.u32 %v6483, 4294901760
      %v6485 = vsub.f32 %v6483, %v6484
      %v6486 = vand.u32 %v6485, 4294901760
      %6487 = vmatmul.mubr.f32.gmra.mxu0 %v6486
      %v6488 = vpop.f32.mrf.mxu0
      %v6489 = vadd.f32 0.0, %v6488
      %v6490 = vpop.f32.mrf.mxu0
      %6491 = vmatprep.mubr.f32.mxu0 0.0
      %v6492 = vand.u32 %v6334, 4294901760
      %v6493 = vsub.f32 %v6334, %v6492
      %v6494 = vand.u32 %v6493, 4294901760
      %v6495 = vsub.f32 %v6493, %v6494
      %v6496 = vand.u32 %v6495, 4294901760
      %6497 = vmatmul.mubr.f32.gmra.mxu0 %v6496
      %v6498 = vpop.f32.mrf.mxu0
      %v6499 = vadd.f32 0.0, %v6498
      %v6500 = vpop.f32.mrf.mxu0
      %6501 = vmatprep.mubr.f32.mxu0 0.0
      %v6502 = vand.u32 %v6337, 4294901760
      %v6503 = vsub.f32 %v6337, %v6502
      %v6504 = vand.u32 %v6503, 4294901760
      %v6505 = vsub.f32 %v6503, %v6504
      %v6506 = vand.u32 %v6505, 4294901760
      %6507 = vmatmul.mubr.f32.gmra.mxu0 %v6506
      %v6508 = vpop.f32.mrf.mxu0
      %v6509 = vadd.f32 0.0, %v6508
      %v6510 = vpop.f32.mrf.mxu0
      %6511 = vmatprep.mubr.f32.mxu0 0.0
      %v6512 = vand.u32 %v6340, 4294901760
      %v6513 = vsub.f32 %v6340, %v6512
      %v6514 = vand.u32 %v6513, 4294901760
      %v6515 = vsub.f32 %v6513, %v6514
      %v6516 = vand.u32 %v6515, 4294901760
      %6517 = vmatmul.mubr.f32.gmra.mxu0 %v6516
      %v6518 = vpop.f32.mrf.mxu0
      %v6519 = vadd.f32 0.0, %v6518
      %v6520 = vpop.f32.mrf.mxu0
      %6521 = vmatprep.mubr.f32.mxu0 0.0
      %v6522 = vand.u32 %v6343, 4294901760
      %v6523 = vsub.f32 %v6343, %v6522
      %v6524 = vand.u32 %v6523, 4294901760
      %v6525 = vsub.f32 %v6523, %v6524
      %v6526 = vand.u32 %v6525, 4294901760
      %6527 = vmatmul.mubr.f32.gmra.mxu0 %v6526
      %v6528 = vpop.f32.mrf.mxu0
      %v6529 = vadd.f32 0.0, %v6528
      %v6530 = vpop.f32.mrf.mxu0
      %6531 = vmatprep.mubr.f32.mxu0 0.0
      %v6532 = vand.u32 %v6346, 4294901760
      %v6533 = vsub.f32 %v6346, %v6532
      %v6534 = vand.u32 %v6533, 4294901760
      %v6535 = vsub.f32 %v6533, %v6534
      %v6536 = vand.u32 %v6535, 4294901760
      %6537 = vmatmul.mubr.f32.gmra.mxu0 %v6536
      %v6538 = vpop.f32.mrf.mxu0
      %v6539 = vadd.f32 0.0, %v6538
      %v6540 = vpop.f32.mrf.mxu0
      %6541 = vmatprep.mubr.f32.mxu0 0.0
      %v6542 = vand.u32 %v6349, 4294901760
      %v6543 = vsub.f32 %v6349, %v6542
      %v6544 = vand.u32 %v6543, 4294901760
      %v6545 = vsub.f32 %v6543, %v6544
      %v6546 = vand.u32 %v6545, 4294901760
      %6547 = vmatmul.mubr.f32.gmra.mxu0 %v6546
      %v6548 = vpop.f32.mrf.mxu0
      %v6549 = vadd.f32 0.0, %v6548
      %v6550 = vpop.f32.mrf.mxu0
      %6551 = vmatprep.mubr.f32.mxu0 0.0
      %v6552 = vand.u32 %v6352, 4294901760
      %v6553 = vsub.f32 %v6352, %v6552
      %v6554 = vand.u32 %v6553, 4294901760
      %v6555 = vsub.f32 %v6553, %v6554
      %v6556 = vand.u32 %v6555, 4294901760
      %6557 = vmatmul.mubr.f32.gmra.mxu0 %v6556
      %v6558 = vpop.f32.mrf.mxu0
      %v6559 = vadd.f32 0.0, %v6558
      %v6560 = vpop.f32.mrf.mxu0
      %6561 = vmatprep.mubr.f32.mxu0 0.0
      %v6562 = vand.u32 %v6355, 4294901760
      %v6563 = vsub.f32 %v6355, %v6562
      %v6564 = vand.u32 %v6563, 4294901760
      %v6565 = vsub.f32 %v6563, %v6564
      %v6566 = vand.u32 %v6565, 4294901760
      %6567 = vmatmul.mubr.f32.gmra.mxu0 %v6566
      %v6568 = vpop.f32.mrf.mxu0
      %v6569 = vadd.f32 0.0, %v6568
      %v6570 = vpop.f32.mrf.mxu0
      %6571 = vmatprep.mubr.f32.mxu0 0.0
      %v6572 = vand.u32 %v6358, 4294901760
      %v6573 = vsub.f32 %v6358, %v6572
      %v6574 = vand.u32 %v6573, 4294901760
      %v6575 = vsub.f32 %v6573, %v6574
      %v6576 = vand.u32 %v6575, 4294901760
      %6577 = vmatmul.mubr.f32.gmra.mxu0 %v6576
      %v6578 = vpop.f32.mrf.mxu0
      %v6579 = vadd.f32 0.0, %v6578
      %v6580 = vpop.f32.mrf.mxu0
      %6581 = vmatprep.mubr.f32.mxu0 0.0
      %v6582 = vand.u32 %v6361, 4294901760
      %v6583 = vsub.f32 %v6361, %v6582
      %v6584 = vand.u32 %v6583, 4294901760
      %v6585 = vsub.f32 %v6583, %v6584
      %v6586 = vand.u32 %v6585, 4294901760
      %6587 = vmatmul.mubr.f32.gmra.mxu0 %v6586
      %v6588 = vpop.f32.mrf.mxu0
      %v6589 = vadd.f32 0.0, %v6588
      %v6590 = vpop.f32.mrf.mxu0
      %6591 = vdwg.mxu0
      %6592 = vmatprep.subr.mxu0 0.0
      %6593 = vmatpush1.msra.mxu0 0.0
      %6594 = vmatprep.subr.mxu0 0.0
      %6595 = vmatpush1.msra.mxu0 0.0
      %6596 = vmatprep.subr.mxu0 0.0
      %6597 = vmatpush1.msra.mxu0 0.0
      %6598 = vmatprep.subr.mxu0 0.0
      %6599 = vmatpush1.msra.mxu0 0.0
      %6600 = vmatprep.subr.mxu0 0.0
      %6601 = vmatpush1.msra.mxu0 0.0
      %6602 = vmatprep.subr.mxu0 0.0
      %6603 = vmatpush1.msra.mxu0 0.0
      %6604 = vmatprep.subr.mxu0 0.0
      %6605 = vmatpush1.msra.mxu0 0.0
      %6606 = vmatprep.subr.mxu0 0.0
      %6607 = vmatpush1.msra.mxu0 0.0
      %6608 = vmatprep.subr.mxu0 0.0
      %6609 = vmatpush1.msra.mxu0 0.0
      %6610 = vmatprep.subr.mxu0 0.0
      %6611 = vmatpush1.msra.mxu0 0.0
      %6612 = vmatprep.subr.mxu0 0.0
      %6613 = vmatpush1.msra.mxu0 0.0
      %6614 = vmatprep.subr.mxu0 0.0
      %6615 = vmatpush1.msra.mxu0 0.0
      %6616 = vmatprep.subr.mxu0 0.0
      %v6617 = vand.u32 %v6314, 4294901760
      %v6618 = vsub.f32 %v6314, %v6617
      %v6619 = vand.u32 %v6618, 4294901760
      %v6620 = vsub.f32 %v6618, %v6619
      %v6621 = vand.u32 %v6620, 4294901760
      %6622 = vmatpush1.msra.mxu0 %v6621
      %6623 = vmatprep.subr.mxu0 0.0
      %v6624 = vand.u32 %v6313, 4294901760
      %v6625 = vsub.f32 %v6313, %v6624
      %v6626 = vand.u32 %v6625, 4294901760
      %v6627 = vsub.f32 %v6625, %v6626
      %v6628 = vand.u32 %v6627, 4294901760
      %6629 = vmatpush1.msra.mxu0 %v6628
      %6630 = vmatprep.subr.mxu0 0.0
      %v6631 = vand.u32 %v6312, 4294901760
      %v6632 = vsub.f32 %v6312, %v6631
      %v6633 = vand.u32 %v6632, 4294901760
      %v6634 = vsub.f32 %v6632, %v6633
      %v6635 = vand.u32 %v6634, 4294901760
      %6636 = vmatpush1.msra.mxu0 %v6635
      %6637 = vmatprep.subr.mxu0 0.0
      %v6638 = vand.u32 %v6311, 4294901760
      %v6639 = vsub.f32 %v6311, %v6638
      %v6640 = vand.u32 %v6639, 4294901760
      %v6641 = vsub.f32 %v6639, %v6640
      %v6642 = vand.u32 %v6641, 4294901760
      %6643 = vmatpush1.msra.mxu0 %v6642
      %6644 = vmatprep.subr.mxu0 0.0
      %6645 = vmatpush2.msra.mxu0 0.0
      %6646 = vmatprep.subr.mxu0 0.0
      %6647 = vmatpush2.msra.mxu0 0.0
      %6648 = vmatprep.subr.mxu0 0.0
      %6649 = vmatpush2.msra.mxu0 0.0
      %6650 = vmatprep.subr.mxu0 0.0
      %6651 = vmatpush2.msra.mxu0 0.0
      %6652 = vmatprep.subr.mxu0 0.0
      %6653 = vmatpush2.msra.mxu0 0.0
      %6654 = vmatprep.subr.mxu0 0.0
      %6655 = vmatpush2.msra.mxu0 0.0
      %6656 = vmatprep.subr.mxu0 0.0
      %6657 = vmatpush2.msra.mxu0 0.0
      %6658 = vmatprep.subr.mxu0 0.0
      %6659 = vmatpush2.msra.mxu0 0.0
      %6660 = vmatprep.subr.mxu0 0.0
      %6661 = vmatpush2.msra.mxu0 0.0
      %6662 = vmatprep.subr.mxu0 0.0
      %6663 = vmatpush2.msra.mxu0 0.0
      %6664 = vmatprep.subr.mxu0 0.0
      %6665 = vmatpush2.msra.mxu0 0.0
      %6666 = vmatprep.subr.mxu0 0.0
      %6667 = vmatpush2.msra.mxu0 0.0
      %6668 = vmatprep.subr.mxu0 0.0
      %6669 = vmatpush2.msra.mxu0 0.0
      %6670 = vmatprep.subr.mxu0 0.0
      %6671 = vmatpush2.msra.mxu0 0.0
      %6672 = vmatprep.subr.mxu0 0.0
      %6673 = vmatpush2.msra.mxu0 0.0
      %6674 = vmatprep.subr.mxu0 0.0
      %6675 = vmatpush2.msra.mxu0 0.0
      %6676 = vmatprep.mubr.f32.mxu0 0.0
      %v6677 = vand.u32 %v6316, 4294901760
      %6678 = vmatmul.mubr.f32.gmra.mxu0 %v6677
      %v6679 = vpop.f32.mrf.mxu0
      %v6680 = vadd.f32 %v6439, %v6679
      %v6681 = vpop.f32.mrf.mxu0
      %6682 = vmatprep.mubr.f32.mxu0 0.0
      %v6683 = vand.u32 %v6319, 4294901760
      %6684 = vmatmul.mubr.f32.gmra.mxu0 %v6683
      %v6685 = vpop.f32.mrf.mxu0
      %v6686 = vadd.f32 %v6449, %v6685
      %v6687 = vpop.f32.mrf.mxu0
      %6688 = vmatprep.mubr.f32.mxu0 0.0
      %v6689 = vand.u32 %v6322, 4294901760
      %6690 = vmatmul.mubr.f32.gmra.mxu0 %v6689
      %v6691 = vpop.f32.mrf.mxu0
      %v6692 = vadd.f32 %v6459, %v6691
      %v6693 = vpop.f32.mrf.mxu0
      %6694 = vmatprep.mubr.f32.mxu0 0.0
      %v6695 = vand.u32 %v6325, 4294901760
      %6696 = vmatmul.mubr.f32.gmra.mxu0 %v6695
      %v6697 = vpop.f32.mrf.mxu0
      %v6698 = vadd.f32 %v6469, %v6697
      %v6699 = vpop.f32.mrf.mxu0
      %6700 = vmatprep.mubr.f32.mxu0 0.0
      %v6701 = vand.u32 %v6328, 4294901760
      %6702 = vmatmul.mubr.f32.gmra.mxu0 %v6701
      %v6703 = vpop.f32.mrf.mxu0
      %v6704 = vadd.f32 %v6479, %v6703
      %v6705 = vpop.f32.mrf.mxu0
      %6706 = vmatprep.mubr.f32.mxu0 0.0
      %v6707 = vand.u32 %v6331, 4294901760
      %6708 = vmatmul.mubr.f32.gmra.mxu0 %v6707
      %v6709 = vpop.f32.mrf.mxu0
      %v6710 = vadd.f32 %v6489, %v6709
      %v6711 = vpop.f32.mrf.mxu0
      %6712 = vmatprep.mubr.f32.mxu0 0.0
      %v6713 = vand.u32 %v6334, 4294901760
      %6714 = vmatmul.mubr.f32.gmra.mxu0 %v6713
      %v6715 = vpop.f32.mrf.mxu0
      %v6716 = vadd.f32 %v6499, %v6715
      %v6717 = vpop.f32.mrf.mxu0
      %6718 = vmatprep.mubr.f32.mxu0 0.0
      %v6719 = vand.u32 %v6337, 4294901760
      %6720 = vmatmul.mubr.f32.gmra.mxu0 %v6719
      %v6721 = vpop.f32.mrf.mxu0
      %v6722 = vadd.f32 %v6509, %v6721
      %v6723 = vpop.f32.mrf.mxu0
      %6724 = vmatprep.mubr.f32.mxu0 0.0
      %v6725 = vand.u32 %v6340, 4294901760
      %6726 = vmatmul.mubr.f32.gmra.mxu0 %v6725
      %v6727 = vpop.f32.mrf.mxu0
      %v6728 = vadd.f32 %v6519, %v6727
      %v6729 = vpop.f32.mrf.mxu0
      %6730 = vmatprep.mubr.f32.mxu0 0.0
      %v6731 = vand.u32 %v6343, 4294901760
      %6732 = vmatmul.mubr.f32.gmra.mxu0 %v6731
      %v6733 = vpop.f32.mrf.mxu0
      %v6734 = vadd.f32 %v6529, %v6733
      %v6735 = vpop.f32.mrf.mxu0
      %6736 = vmatprep.mubr.f32.mxu0 0.0
      %v6737 = vand.u32 %v6346, 4294901760
      %6738 = vmatmul.mubr.f32.gmra.mxu0 %v6737
      %v6739 = vpop.f32.mrf.mxu0
      %v6740 = vadd.f32 %v6539, %v6739
      %v6741 = vpop.f32.mrf.mxu0
      %6742 = vmatprep.mubr.f32.mxu0 0.0
      %v6743 = vand.u32 %v6349, 4294901760
      %6744 = vmatmul.mubr.f32.gmra.mxu0 %v6743
      %v6745 = vpop.f32.mrf.mxu0
      %v6746 = vadd.f32 %v6549, %v6745
      %v6747 = vpop.f32.mrf.mxu0
      %6748 = vmatprep.mubr.f32.mxu0 0.0
      %v6749 = vand.u32 %v6352, 4294901760
      %6750 = vmatmul.mubr.f32.gmra.mxu0 %v6749
      %v6751 = vpop.f32.mrf.mxu0
      %v6752 = vadd.f32 %v6559, %v6751
      %v6753 = vpop.f32.mrf.mxu0
      %6754 = vmatprep.mubr.f32.mxu0 0.0
      %v6755 = vand.u32 %v6355, 4294901760
      %6756 = vmatmul.mubr.f32.gmra.mxu0 %v6755
      %v6757 = vpop.f32.mrf.mxu0
      %v6758 = vadd.f32 %v6569, %v6757
      %v6759 = vpop.f32.mrf.mxu0
      %6760 = vmatprep.mubr.f32.mxu0 0.0
      %v6761 = vand.u32 %v6358, 4294901760
      %6762 = vmatmul.mubr.f32.gmra.mxu0 %v6761
      %v6763 = vpop.f32.mrf.mxu0
      %v6764 = vadd.f32 %v6579, %v6763
      %v6765 = vpop.f32.mrf.mxu0
      %6766 = vmatprep.mubr.f32.mxu0 0.0
      %v6767 = vand.u32 %v6361, 4294901760
      %6768 = vmatmul.mubr.f32.gmra.mxu0 %v6767
      %v6769 = vpop.f32.mrf.mxu0
      %v6770 = vadd.f32 %v6589, %v6769
      %v6771 = vpop.f32.mrf.mxu0
      %6772 = vdwg.mxu0
      %6773 = vmatprep.subr.mxu0 0.0
      %6774 = vmatpush1.msra.mxu0 0.0
      %6775 = vmatprep.subr.mxu0 0.0
      %6776 = vmatpush1.msra.mxu0 0.0
      %6777 = vmatprep.subr.mxu0 0.0
      %6778 = vmatpush1.msra.mxu0 0.0
      %6779 = vmatprep.subr.mxu0 0.0
      %6780 = vmatpush1.msra.mxu0 0.0
      %6781 = vmatprep.subr.mxu0 0.0
      %6782 = vmatpush1.msra.mxu0 0.0
      %6783 = vmatprep.subr.mxu0 0.0
      %6784 = vmatpush1.msra.mxu0 0.0
      %6785 = vmatprep.subr.mxu0 0.0
      %6786 = vmatpush1.msra.mxu0 0.0
      %6787 = vmatprep.subr.mxu0 0.0
      %6788 = vmatpush1.msra.mxu0 0.0
      %6789 = vmatprep.subr.mxu0 0.0
      %6790 = vmatpush1.msra.mxu0 0.0
      %6791 = vmatprep.subr.mxu0 0.0
      %6792 = vmatpush1.msra.mxu0 0.0
      %6793 = vmatprep.subr.mxu0 0.0
      %6794 = vmatpush1.msra.mxu0 0.0
      %6795 = vmatprep.subr.mxu0 0.0
      %6796 = vmatpush1.msra.mxu0 0.0
      %6797 = vmatprep.subr.mxu0 0.0
      %v6798 = vand.u32 %v6314, 4294901760
      %v6799 = vsub.f32 %v6314, %v6798
      %6800 = vmatpush1.msra.mxu0 %v6799
      %6801 = vmatprep.subr.mxu0 0.0
      %v6802 = vand.u32 %v6313, 4294901760
      %v6803 = vsub.f32 %v6313, %v6802
      %6804 = vmatpush1.msra.mxu0 %v6803
      %6805 = vmatprep.subr.mxu0 0.0
      %v6806 = vand.u32 %v6312, 4294901760
      %v6807 = vsub.f32 %v6312, %v6806
      %6808 = vmatpush1.msra.mxu0 %v6807
      %6809 = vmatprep.subr.mxu0 0.0
      %v6810 = vand.u32 %v6311, 4294901760
      %v6811 = vsub.f32 %v6311, %v6810
      %6812 = vmatpush1.msra.mxu0 %v6811
      %6813 = vmatprep.subr.mxu0 0.0
      %6814 = vmatpush2.msra.mxu0 0.0
      %6815 = vmatprep.subr.mxu0 0.0
      %6816 = vmatpush2.msra.mxu0 0.0
      %6817 = vmatprep.subr.mxu0 0.0
      %6818 = vmatpush2.msra.mxu0 0.0
      %6819 = vmatprep.subr.mxu0 0.0
      %6820 = vmatpush2.msra.mxu0 0.0
      %6821 = vmatprep.subr.mxu0 0.0
      %6822 = vmatpush2.msra.mxu0 0.0
      %6823 = vmatprep.subr.mxu0 0.0
      %6824 = vmatpush2.msra.mxu0 0.0
      %6825 = vmatprep.subr.mxu0 0.0
      %6826 = vmatpush2.msra.mxu0 0.0
      %6827 = vmatprep.subr.mxu0 0.0
      %6828 = vmatpush2.msra.mxu0 0.0
      %6829 = vmatprep.subr.mxu0 0.0
      %6830 = vmatpush2.msra.mxu0 0.0
      %6831 = vmatprep.subr.mxu0 0.0
      %6832 = vmatpush2.msra.mxu0 0.0
      %6833 = vmatprep.subr.mxu0 0.0
      %6834 = vmatpush2.msra.mxu0 0.0
      %6835 = vmatprep.subr.mxu0 0.0
      %6836 = vmatpush2.msra.mxu0 0.0
      %6837 = vmatprep.subr.mxu0 0.0
      %6838 = vmatpush2.msra.mxu0 0.0
      %6839 = vmatprep.subr.mxu0 0.0
      %6840 = vmatpush2.msra.mxu0 0.0
      %6841 = vmatprep.subr.mxu0 0.0
      %6842 = vmatpush2.msra.mxu0 0.0
      %6843 = vmatprep.subr.mxu0 0.0
      %6844 = vmatpush2.msra.mxu0 0.0
      %6845 = vmatprep.mubr.f32.mxu0 0.0
      %v6846 = vand.u32 %v6316, 4294901760
      %v6847 = vsub.f32 %v6316, %v6846
      %6848 = vmatmul.mubr.f32.gmra.mxu0 %v6847
      %v6849 = vpop.f32.mrf.mxu0
      %v6850 = vadd.f32 %v6680, %v6849
      %v6851 = vpop.f32.mrf.mxu0
      %6852 = vmatprep.mubr.f32.mxu0 0.0
      %v6853 = vand.u32 %v6319, 4294901760
      %v6854 = vsub.f32 %v6319, %v6853
      %6855 = vmatmul.mubr.f32.gmra.mxu0 %v6854
      %v6856 = vpop.f32.mrf.mxu0
      %v6857 = vadd.f32 %v6686, %v6856
      %v6858 = vpop.f32.mrf.mxu0
      %6859 = vmatprep.mubr.f32.mxu0 0.0
      %v6860 = vand.u32 %v6322, 4294901760
      %v6861 = vsub.f32 %v6322, %v6860
      %6862 = vmatmul.mubr.f32.gmra.mxu0 %v6861
      %v6863 = vpop.f32.mrf.mxu0
      %v6864 = vadd.f32 %v6692, %v6863
      %v6865 = vpop.f32.mrf.mxu0
      %6866 = vmatprep.mubr.f32.mxu0 0.0
      %v6867 = vand.u32 %v6325, 4294901760
      %v6868 = vsub.f32 %v6325, %v6867
      %6869 = vmatmul.mubr.f32.gmra.mxu0 %v6868
      %v6870 = vpop.f32.mrf.mxu0
      %v6871 = vadd.f32 %v6698, %v6870
      %v6872 = vpop.f32.mrf.mxu0
      %6873 = vmatprep.mubr.f32.mxu0 0.0
      %v6874 = vand.u32 %v6328, 4294901760
      %v6875 = vsub.f32 %v6328, %v6874
      %6876 = vmatmul.mubr.f32.gmra.mxu0 %v6875
      %v6877 = vpop.f32.mrf.mxu0
      %v6878 = vadd.f32 %v6704, %v6877
      %v6879 = vpop.f32.mrf.mxu0
      %6880 = vmatprep.mubr.f32.mxu0 0.0
      %v6881 = vand.u32 %v6331, 4294901760
      %v6882 = vsub.f32 %v6331, %v6881
      %6883 = vmatmul.mubr.f32.gmra.mxu0 %v6882
      %v6884 = vpop.f32.mrf.mxu0
      %v6885 = vadd.f32 %v6710, %v6884
      %v6886 = vpop.f32.mrf.mxu0
      %6887 = vmatprep.mubr.f32.mxu0 0.0
      %v6888 = vand.u32 %v6334, 4294901760
      %v6889 = vsub.f32 %v6334, %v6888
      %6890 = vmatmul.mubr.f32.gmra.mxu0 %v6889
      %v6891 = vpop.f32.mrf.mxu0
      %v6892 = vadd.f32 %v6716, %v6891
      %v6893 = vpop.f32.mrf.mxu0
      %6894 = vmatprep.mubr.f32.mxu0 0.0
      %v6895 = vand.u32 %v6337, 4294901760
      %v6896 = vsub.f32 %v6337, %v6895
      %6897 = vmatmul.mubr.f32.gmra.mxu0 %v6896
      %v6898 = vpop.f32.mrf.mxu0
      %v6899 = vadd.f32 %v6722, %v6898
      %v6900 = vpop.f32.mrf.mxu0
      %6901 = vmatprep.mubr.f32.mxu0 0.0
      %v6902 = vand.u32 %v6340, 4294901760
      %v6903 = vsub.f32 %v6340, %v6902
      %6904 = vmatmul.mubr.f32.gmra.mxu0 %v6903
      %v6905 = vpop.f32.mrf.mxu0
      %v6906 = vadd.f32 %v6728, %v6905
      %v6907 = vpop.f32.mrf.mxu0
      %6908 = vmatprep.mubr.f32.mxu0 0.0
      %v6909 = vand.u32 %v6343, 4294901760
      %v6910 = vsub.f32 %v6343, %v6909
      %6911 = vmatmul.mubr.f32.gmra.mxu0 %v6910
      %v6912 = vpop.f32.mrf.mxu0
      %v6913 = vadd.f32 %v6734, %v6912
      %v6914 = vpop.f32.mrf.mxu0
      %6915 = vmatprep.mubr.f32.mxu0 0.0
      %v6916 = vand.u32 %v6346, 4294901760
      %v6917 = vsub.f32 %v6346, %v6916
      %6918 = vmatmul.mubr.f32.gmra.mxu0 %v6917
      %v6919 = vpop.f32.mrf.mxu0
      %v6920 = vadd.f32 %v6740, %v6919
      %v6921 = vpop.f32.mrf.mxu0
      %6922 = vmatprep.mubr.f32.mxu0 0.0
      %v6923 = vand.u32 %v6349, 4294901760
      %v6924 = vsub.f32 %v6349, %v6923
      %6925 = vmatmul.mubr.f32.gmra.mxu0 %v6924
      %v6926 = vpop.f32.mrf.mxu0
      %v6927 = vadd.f32 %v6746, %v6926
      %v6928 = vpop.f32.mrf.mxu0
      %6929 = vmatprep.mubr.f32.mxu0 0.0
      %v6930 = vand.u32 %v6352, 4294901760
      %v6931 = vsub.f32 %v6352, %v6930
      %6932 = vmatmul.mubr.f32.gmra.mxu0 %v6931
      %v6933 = vpop.f32.mrf.mxu0
      %v6934 = vadd.f32 %v6752, %v6933
      %v6935 = vpop.f32.mrf.mxu0
      %6936 = vmatprep.mubr.f32.mxu0 0.0
      %v6937 = vand.u32 %v6355, 4294901760
      %v6938 = vsub.f32 %v6355, %v6937
      %6939 = vmatmul.mubr.f32.gmra.mxu0 %v6938
      %v6940 = vpop.f32.mrf.mxu0
      %v6941 = vadd.f32 %v6758, %v6940
      %v6942 = vpop.f32.mrf.mxu0
      %6943 = vmatprep.mubr.f32.mxu0 0.0
      %v6944 = vand.u32 %v6358, 4294901760
      %v6945 = vsub.f32 %v6358, %v6944
      %6946 = vmatmul.mubr.f32.gmra.mxu0 %v6945
      %v6947 = vpop.f32.mrf.mxu0
      %v6948 = vadd.f32 %v6764, %v6947
      %v6949 = vpop.f32.mrf.mxu0
      %6950 = vmatprep.mubr.f32.mxu0 0.0
      %v6951 = vand.u32 %v6361, 4294901760
      %v6952 = vsub.f32 %v6361, %v6951
      %6953 = vmatmul.mubr.f32.gmra.mxu0 %v6952
      %v6954 = vpop.f32.mrf.mxu0
      %v6955 = vadd.f32 %v6770, %v6954
      %v6956 = vpop.f32.mrf.mxu0
      %6957 = vdwg.mxu0
      %6958 = vmatprep.subr.mxu0 0.0
      %6959 = vmatpush1.msra.mxu0 0.0
      %6960 = vmatprep.subr.mxu0 0.0
      %6961 = vmatpush1.msra.mxu0 0.0
      %6962 = vmatprep.subr.mxu0 0.0
      %6963 = vmatpush1.msra.mxu0 0.0
      %6964 = vmatprep.subr.mxu0 0.0
      %6965 = vmatpush1.msra.mxu0 0.0
      %6966 = vmatprep.subr.mxu0 0.0
      %6967 = vmatpush1.msra.mxu0 0.0
      %6968 = vmatprep.subr.mxu0 0.0
      %6969 = vmatpush1.msra.mxu0 0.0
      %6970 = vmatprep.subr.mxu0 0.0
      %6971 = vmatpush1.msra.mxu0 0.0
      %6972 = vmatprep.subr.mxu0 0.0
      %6973 = vmatpush1.msra.mxu0 0.0
      %6974 = vmatprep.subr.mxu0 0.0
      %6975 = vmatpush1.msra.mxu0 0.0
      %6976 = vmatprep.subr.mxu0 0.0
      %6977 = vmatpush1.msra.mxu0 0.0
      %6978 = vmatprep.subr.mxu0 0.0
      %6979 = vmatpush1.msra.mxu0 0.0
      %6980 = vmatprep.subr.mxu0 0.0
      %6981 = vmatpush1.msra.mxu0 0.0
      %6982 = vmatprep.subr.mxu0 0.0
      %v6983 = vand.u32 %v6314, 4294901760
      %6984 = vmatpush1.msra.mxu0 %v6983
      %6985 = vmatprep.subr.mxu0 0.0
      %v6986 = vand.u32 %v6313, 4294901760
      %6987 = vmatpush1.msra.mxu0 %v6986
      %6988 = vmatprep.subr.mxu0 0.0
      %v6989 = vand.u32 %v6312, 4294901760
      %6990 = vmatpush1.msra.mxu0 %v6989
      %6991 = vmatprep.subr.mxu0 0.0
      %v6992 = vand.u32 %v6311, 4294901760
      %6993 = vmatpush1.msra.mxu0 %v6992
      %6994 = vmatprep.subr.mxu0 0.0
      %6995 = vmatpush2.msra.mxu0 0.0
      %6996 = vmatprep.subr.mxu0 0.0
      %6997 = vmatpush2.msra.mxu0 0.0
      %6998 = vmatprep.subr.mxu0 0.0
      %6999 = vmatpush2.msra.mxu0 0.0
      %7000 = vmatprep.subr.mxu0 0.0
      %7001 = vmatpush2.msra.mxu0 0.0
      %7002 = vmatprep.subr.mxu0 0.0
      %7003 = vmatpush2.msra.mxu0 0.0
      %7004 = vmatprep.subr.mxu0 0.0
      %7005 = vmatpush2.msra.mxu0 0.0
      %7006 = vmatprep.subr.mxu0 0.0
      %7007 = vmatpush2.msra.mxu0 0.0
      %7008 = vmatprep.subr.mxu0 0.0
      %7009 = vmatpush2.msra.mxu0 0.0
      %7010 = vmatprep.subr.mxu0 0.0
      %7011 = vmatpush2.msra.mxu0 0.0
      %7012 = vmatprep.subr.mxu0 0.0
      %7013 = vmatpush2.msra.mxu0 0.0
      %7014 = vmatprep.subr.mxu0 0.0
      %7015 = vmatpush2.msra.mxu0 0.0
      %7016 = vmatprep.subr.mxu0 0.0
      %7017 = vmatpush2.msra.mxu0 0.0
      %7018 = vmatprep.subr.mxu0 0.0
      %7019 = vmatpush2.msra.mxu0 0.0
      %7020 = vmatprep.subr.mxu0 0.0
      %7021 = vmatpush2.msra.mxu0 0.0
      %7022 = vmatprep.subr.mxu0 0.0
      %7023 = vmatpush2.msra.mxu0 0.0
      %7024 = vmatprep.subr.mxu0 0.0
      %7025 = vmatpush2.msra.mxu0 0.0
      %7026 = vmatprep.mubr.f32.mxu0 0.0
      %v7027 = vand.u32 %v6316, 4294901760
      %v7028 = vsub.f32 %v6316, %v7027
      %v7029 = vand.u32 %v7028, 4294901760
      %7030 = vmatmul.mubr.f32.gmra.mxu0 %v7029
      %v7031 = vpop.f32.mrf.mxu0
      %v7032 = vadd.f32 %v6850, %v7031
      %v7033 = vpop.f32.mrf.mxu0
      %7034 = vmatprep.mubr.f32.mxu0 0.0
      %v7035 = vand.u32 %v6319, 4294901760
      %v7036 = vsub.f32 %v6319, %v7035
      %v7037 = vand.u32 %v7036, 4294901760
      %7038 = vmatmul.mubr.f32.gmra.mxu0 %v7037
      %v7039 = vpop.f32.mrf.mxu0
      %v7040 = vadd.f32 %v6857, %v7039
      %v7041 = vpop.f32.mrf.mxu0
      %7042 = vmatprep.mubr.f32.mxu0 0.0
      %v7043 = vand.u32 %v6322, 4294901760
      %v7044 = vsub.f32 %v6322, %v7043
      %v7045 = vand.u32 %v7044, 4294901760
      %7046 = vmatmul.mubr.f32.gmra.mxu0 %v7045
      %v7047 = vpop.f32.mrf.mxu0
      %v7048 = vadd.f32 %v6864, %v7047
      %v7049 = vpop.f32.mrf.mxu0
      %7050 = vmatprep.mubr.f32.mxu0 0.0
      %v7051 = vand.u32 %v6325, 4294901760
      %v7052 = vsub.f32 %v6325, %v7051
      %v7053 = vand.u32 %v7052, 4294901760
      %7054 = vmatmul.mubr.f32.gmra.mxu0 %v7053
      %v7055 = vpop.f32.mrf.mxu0
      %v7056 = vadd.f32 %v6871, %v7055
      %v7057 = vpop.f32.mrf.mxu0
      %7058 = vmatprep.mubr.f32.mxu0 0.0
      %v7059 = vand.u32 %v6328, 4294901760
      %v7060 = vsub.f32 %v6328, %v7059
      %v7061 = vand.u32 %v7060, 4294901760
      %7062 = vmatmul.mubr.f32.gmra.mxu0 %v7061
      %v7063 = vpop.f32.mrf.mxu0
      %v7064 = vadd.f32 %v6878, %v7063
      %v7065 = vpop.f32.mrf.mxu0
      %7066 = vmatprep.mubr.f32.mxu0 0.0
      %v7067 = vand.u32 %v6331, 4294901760
      %v7068 = vsub.f32 %v6331, %v7067
      %v7069 = vand.u32 %v7068, 4294901760
      %7070 = vmatmul.mubr.f32.gmra.mxu0 %v7069
      %v7071 = vpop.f32.mrf.mxu0
      %v7072 = vadd.f32 %v6885, %v7071
      %v7073 = vpop.f32.mrf.mxu0
      %7074 = vmatprep.mubr.f32.mxu0 0.0
      %v7075 = vand.u32 %v6334, 4294901760
      %v7076 = vsub.f32 %v6334, %v7075
      %v7077 = vand.u32 %v7076, 4294901760
      %7078 = vmatmul.mubr.f32.gmra.mxu0 %v7077
      %v7079 = vpop.f32.mrf.mxu0
      %v7080 = vadd.f32 %v6892, %v7079
      %v7081 = vpop.f32.mrf.mxu0
      %7082 = vmatprep.mubr.f32.mxu0 0.0
      %v7083 = vand.u32 %v6337, 4294901760
      %v7084 = vsub.f32 %v6337, %v7083
      %v7085 = vand.u32 %v7084, 4294901760
      %7086 = vmatmul.mubr.f32.gmra.mxu0 %v7085
      %v7087 = vpop.f32.mrf.mxu0
      %v7088 = vadd.f32 %v6899, %v7087
      %v7089 = vpop.f32.mrf.mxu0
      %7090 = vmatprep.mubr.f32.mxu0 0.0
      %v7091 = vand.u32 %v6340, 4294901760
      %v7092 = vsub.f32 %v6340, %v7091
      %v7093 = vand.u32 %v7092, 4294901760
      %7094 = vmatmul.mubr.f32.gmra.mxu0 %v7093
      %v7095 = vpop.f32.mrf.mxu0
      %v7096 = vadd.f32 %v6906, %v7095
      %v7097 = vpop.f32.mrf.mxu0
      %7098 = vmatprep.mubr.f32.mxu0 0.0
      %v7099 = vand.u32 %v6343, 4294901760
      %v7100 = vsub.f32 %v6343, %v7099
      %v7101 = vand.u32 %v7100, 4294901760
      %7102 = vmatmul.mubr.f32.gmra.mxu0 %v7101
      %v7103 = vpop.f32.mrf.mxu0
      %v7104 = vadd.f32 %v6913, %v7103
      %v7105 = vpop.f32.mrf.mxu0
      %7106 = vmatprep.mubr.f32.mxu0 0.0
      %v7107 = vand.u32 %v6346, 4294901760
      %v7108 = vsub.f32 %v6346, %v7107
      %v7109 = vand.u32 %v7108, 4294901760
      %7110 = vmatmul.mubr.f32.gmra.mxu0 %v7109
      %v7111 = vpop.f32.mrf.mxu0
      %v7112 = vadd.f32 %v6920, %v7111
      %v7113 = vpop.f32.mrf.mxu0
      %7114 = vmatprep.mubr.f32.mxu0 0.0
      %v7115 = vand.u32 %v6349, 4294901760
      %v7116 = vsub.f32 %v6349, %v7115
      %v7117 = vand.u32 %v7116, 4294901760
      %7118 = vmatmul.mubr.f32.gmra.mxu0 %v7117
      %v7119 = vpop.f32.mrf.mxu0
      %v7120 = vadd.f32 %v6927, %v7119
      %v7121 = vpop.f32.mrf.mxu0
      %7122 = vmatprep.mubr.f32.mxu0 0.0
      %v7123 = vand.u32 %v6352, 4294901760
      %v7124 = vsub.f32 %v6352, %v7123
      %v7125 = vand.u32 %v7124, 4294901760
      %7126 = vmatmul.mubr.f32.gmra.mxu0 %v7125
      %v7127 = vpop.f32.mrf.mxu0
      %v7128 = vadd.f32 %v6934, %v7127
      %v7129 = vpop.f32.mrf.mxu0
      %7130 = vmatprep.mubr.f32.mxu0 0.0
      %v7131 = vand.u32 %v6355, 4294901760
      %v7132 = vsub.f32 %v6355, %v7131
      %v7133 = vand.u32 %v7132, 4294901760
      %7134 = vmatmul.mubr.f32.gmra.mxu0 %v7133
      %v7135 = vpop.f32.mrf.mxu0
      %v7136 = vadd.f32 %v6941, %v7135
      %v7137 = vpop.f32.mrf.mxu0
      %7138 = vmatprep.mubr.f32.mxu0 0.0
      %v7139 = vand.u32 %v6358, 4294901760
      %v7140 = vsub.f32 %v6358, %v7139
      %v7141 = vand.u32 %v7140, 4294901760
      %7142 = vmatmul.mubr.f32.gmra.mxu0 %v7141
      %v7143 = vpop.f32.mrf.mxu0
      %v7144 = vadd.f32 %v6948, %v7143
      %v7145 = vpop.f32.mrf.mxu0
      %7146 = vmatprep.mubr.f32.mxu0 0.0
      %v7147 = vand.u32 %v6361, 4294901760
      %v7148 = vsub.f32 %v6361, %v7147
      %v7149 = vand.u32 %v7148, 4294901760
      %7150 = vmatmul.mubr.f32.gmra.mxu0 %v7149
      %v7151 = vpop.f32.mrf.mxu0
      %v7152 = vadd.f32 %v6955, %v7151
      %v7153 = vpop.f32.mrf.mxu0
      %7154 = vdwg.mxu0
      %7155 = vmatprep.subr.mxu0 0.0
      %7156 = vmatpush1.msra.mxu0 0.0
      %7157 = vmatprep.subr.mxu0 0.0
      %7158 = vmatpush1.msra.mxu0 0.0
      %7159 = vmatprep.subr.mxu0 0.0
      %7160 = vmatpush1.msra.mxu0 0.0
      %7161 = vmatprep.subr.mxu0 0.0
      %7162 = vmatpush1.msra.mxu0 0.0
      %7163 = vmatprep.subr.mxu0 0.0
      %7164 = vmatpush1.msra.mxu0 0.0
      %7165 = vmatprep.subr.mxu0 0.0
      %7166 = vmatpush1.msra.mxu0 0.0
      %7167 = vmatprep.subr.mxu0 0.0
      %7168 = vmatpush1.msra.mxu0 0.0
      %7169 = vmatprep.subr.mxu0 0.0
      %7170 = vmatpush1.msra.mxu0 0.0
      %7171 = vmatprep.subr.mxu0 0.0
      %7172 = vmatpush1.msra.mxu0 0.0
      %7173 = vmatprep.subr.mxu0 0.0
      %7174 = vmatpush1.msra.mxu0 0.0
      %7175 = vmatprep.subr.mxu0 0.0
      %7176 = vmatpush1.msra.mxu0 0.0
      %7177 = vmatprep.subr.mxu0 0.0
      %7178 = vmatpush1.msra.mxu0 0.0
      %7179 = vmatprep.subr.mxu0 0.0
      %v7180 = vand.u32 %v6314, 4294901760
      %v7181 = vsub.f32 %v6314, %v7180
      %v7182 = vand.u32 %v7181, 4294901760
      %7183 = vmatpush1.msra.mxu0 %v7182
      %7184 = vmatprep.subr.mxu0 0.0
      %v7185 = vand.u32 %v6313, 4294901760
      %v7186 = vsub.f32 %v6313, %v7185
      %v7187 = vand.u32 %v7186, 4294901760
      %7188 = vmatpush1.msra.mxu0 %v7187
      %7189 = vmatprep.subr.mxu0 0.0
      %v7190 = vand.u32 %v6312, 4294901760
      %v7191 = vsub.f32 %v6312, %v7190
      %v7192 = vand.u32 %v7191, 4294901760
      %7193 = vmatpush1.msra.mxu0 %v7192
      %7194 = vmatprep.subr.mxu0 0.0
      %v7195 = vand.u32 %v6311, 4294901760
      %v7196 = vsub.f32 %v6311, %v7195
      %v7197 = vand.u32 %v7196, 4294901760
      %7198 = vmatpush1.msra.mxu0 %v7197
      %7199 = vmatprep.subr.mxu0 0.0
      %7200 = vmatpush2.msra.mxu0 0.0
      %7201 = vmatprep.subr.mxu0 0.0
      %7202 = vmatpush2.msra.mxu0 0.0
      %7203 = vmatprep.subr.mxu0 0.0
      %7204 = vmatpush2.msra.mxu0 0.0
      %7205 = vmatprep.subr.mxu0 0.0
      %7206 = vmatpush2.msra.mxu0 0.0
      %7207 = vmatprep.subr.mxu0 0.0
      %7208 = vmatpush2.msra.mxu0 0.0
      %7209 = vmatprep.subr.mxu0 0.0
      %7210 = vmatpush2.msra.mxu0 0.0
      %7211 = vmatprep.subr.mxu0 0.0
      %7212 = vmatpush2.msra.mxu0 0.0
      %7213 = vmatprep.subr.mxu0 0.0
      %7214 = vmatpush2.msra.mxu0 0.0
      %7215 = vmatprep.subr.mxu0 0.0
      %7216 = vmatpush2.msra.mxu0 0.0
      %7217 = vmatprep.subr.mxu0 0.0
      %7218 = vmatpush2.msra.mxu0 0.0
      %7219 = vmatprep.subr.mxu0 0.0
      %7220 = vmatpush2.msra.mxu0 0.0
      %7221 = vmatprep.subr.mxu0 0.0
      %7222 = vmatpush2.msra.mxu0 0.0
      %7223 = vmatprep.subr.mxu0 0.0
      %7224 = vmatpush2.msra.mxu0 0.0
      %7225 = vmatprep.subr.mxu0 0.0
      %7226 = vmatpush2.msra.mxu0 0.0
      %7227 = vmatprep.subr.mxu0 0.0
      %7228 = vmatpush2.msra.mxu0 0.0
      %7229 = vmatprep.subr.mxu0 0.0
      %7230 = vmatpush2.msra.mxu0 0.0
      %7231 = vmatprep.mubr.f32.mxu0 0.0
      %v7232 = vand.u32 %v6316, 4294901760
      %7233 = vmatmul.mubr.f32.gmra.mxu0 %v7232
      %v7234 = vpop.f32.mrf.mxu0
      %v7235 = vadd.f32 %v7032, %v7234
      %v7236 = vpop.f32.mrf.mxu0
      %7237 = vmatprep.mubr.f32.mxu0 0.0
      %v7238 = vand.u32 %v6319, 4294901760
      %7239 = vmatmul.mubr.f32.gmra.mxu0 %v7238
      %v7240 = vpop.f32.mrf.mxu0
      %v7241 = vadd.f32 %v7040, %v7240
      %v7242 = vpop.f32.mrf.mxu0
      %7243 = vmatprep.mubr.f32.mxu0 0.0
      %v7244 = vand.u32 %v6322, 4294901760
      %7245 = vmatmul.mubr.f32.gmra.mxu0 %v7244
      %v7246 = vpop.f32.mrf.mxu0
      %v7247 = vadd.f32 %v7048, %v7246
      %v7248 = vpop.f32.mrf.mxu0
      %7249 = vmatprep.mubr.f32.mxu0 0.0
      %v7250 = vand.u32 %v6325, 4294901760
      %7251 = vmatmul.mubr.f32.gmra.mxu0 %v7250
      %v7252 = vpop.f32.mrf.mxu0
      %v7253 = vadd.f32 %v7056, %v7252
      %v7254 = vpop.f32.mrf.mxu0
      %7255 = vmatprep.mubr.f32.mxu0 0.0
      %v7256 = vand.u32 %v6328, 4294901760
      %7257 = vmatmul.mubr.f32.gmra.mxu0 %v7256
      %v7258 = vpop.f32.mrf.mxu0
      %v7259 = vadd.f32 %v7064, %v7258
      %v7260 = vpop.f32.mrf.mxu0
      %7261 = vmatprep.mubr.f32.mxu0 0.0
      %v7262 = vand.u32 %v6331, 4294901760
      %7263 = vmatmul.mubr.f32.gmra.mxu0 %v7262
      %v7264 = vpop.f32.mrf.mxu0
      %v7265 = vadd.f32 %v7072, %v7264
      %v7266 = vpop.f32.mrf.mxu0
      %7267 = vmatprep.mubr.f32.mxu0 0.0
      %v7268 = vand.u32 %v6334, 4294901760
      %7269 = vmatmul.mubr.f32.gmra.mxu0 %v7268
      %v7270 = vpop.f32.mrf.mxu0
      %v7271 = vadd.f32 %v7080, %v7270
      %v7272 = vpop.f32.mrf.mxu0
      %7273 = vmatprep.mubr.f32.mxu0 0.0
      %v7274 = vand.u32 %v6337, 4294901760
      %7275 = vmatmul.mubr.f32.gmra.mxu0 %v7274
      %v7276 = vpop.f32.mrf.mxu0
      %v7277 = vadd.f32 %v7088, %v7276
      %v7278 = vpop.f32.mrf.mxu0
      %7279 = vmatprep.mubr.f32.mxu0 0.0
      %v7280 = vand.u32 %v6340, 4294901760
      %7281 = vmatmul.mubr.f32.gmra.mxu0 %v7280
      %v7282 = vpop.f32.mrf.mxu0
      %v7283 = vadd.f32 %v7096, %v7282
      %v7284 = vpop.f32.mrf.mxu0
      %7285 = vmatprep.mubr.f32.mxu0 0.0
      %v7286 = vand.u32 %v6343, 4294901760
      %7287 = vmatmul.mubr.f32.gmra.mxu0 %v7286
      %v7288 = vpop.f32.mrf.mxu0
      %v7289 = vadd.f32 %v7104, %v7288
      %v7290 = vpop.f32.mrf.mxu0
      %7291 = vmatprep.mubr.f32.mxu0 0.0
      %v7292 = vand.u32 %v6346, 4294901760
      %7293 = vmatmul.mubr.f32.gmra.mxu0 %v7292
      %v7294 = vpop.f32.mrf.mxu0
      %v7295 = vadd.f32 %v7112, %v7294
      %v7296 = vpop.f32.mrf.mxu0
      %7297 = vmatprep.mubr.f32.mxu0 0.0
      %v7298 = vand.u32 %v6349, 4294901760
      %7299 = vmatmul.mubr.f32.gmra.mxu0 %v7298
      %v7300 = vpop.f32.mrf.mxu0
      %v7301 = vadd.f32 %v7120, %v7300
      %v7302 = vpop.f32.mrf.mxu0
      %7303 = vmatprep.mubr.f32.mxu0 0.0
      %v7304 = vand.u32 %v6352, 4294901760
      %7305 = vmatmul.mubr.f32.gmra.mxu0 %v7304
      %v7306 = vpop.f32.mrf.mxu0
      %v7307 = vadd.f32 %v7128, %v7306
      %v7308 = vpop.f32.mrf.mxu0
      %7309 = vmatprep.mubr.f32.mxu0 0.0
      %v7310 = vand.u32 %v6355, 4294901760
      %7311 = vmatmul.mubr.f32.gmra.mxu0 %v7310
      %v7312 = vpop.f32.mrf.mxu0
      %v7313 = vadd.f32 %v7136, %v7312
      %v7314 = vpop.f32.mrf.mxu0
      %7315 = vmatprep.mubr.f32.mxu0 0.0
      %v7316 = vand.u32 %v6358, 4294901760
      %7317 = vmatmul.mubr.f32.gmra.mxu0 %v7316
      %v7318 = vpop.f32.mrf.mxu0
      %v7319 = vadd.f32 %v7144, %v7318
      %v7320 = vpop.f32.mrf.mxu0
      %7321 = vmatprep.mubr.f32.mxu0 0.0
      %v7322 = vand.u32 %v6361, 4294901760
      %7323 = vmatmul.mubr.f32.gmra.mxu0 %v7322
      %v7324 = vpop.f32.mrf.mxu0
      %v7325 = vadd.f32 %v7152, %v7324
      %v7326 = vpop.f32.mrf.mxu0
      %7327 = vdwg.mxu0
      %7328 = vmatprep.subr.mxu0 0.0
      %7329 = vmatpush1.msra.mxu0 0.0
      %7330 = vmatprep.subr.mxu0 0.0
      %7331 = vmatpush1.msra.mxu0 0.0
      %7332 = vmatprep.subr.mxu0 0.0
      %7333 = vmatpush1.msra.mxu0 0.0
      %7334 = vmatprep.subr.mxu0 0.0
      %7335 = vmatpush1.msra.mxu0 0.0
      %7336 = vmatprep.subr.mxu0 0.0
      %7337 = vmatpush1.msra.mxu0 0.0
      %7338 = vmatprep.subr.mxu0 0.0
      %7339 = vmatpush1.msra.mxu0 0.0
      %7340 = vmatprep.subr.mxu0 0.0
      %7341 = vmatpush1.msra.mxu0 0.0
      %7342 = vmatprep.subr.mxu0 0.0
      %7343 = vmatpush1.msra.mxu0 0.0
      %7344 = vmatprep.subr.mxu0 0.0
      %7345 = vmatpush1.msra.mxu0 0.0
      %7346 = vmatprep.subr.mxu0 0.0
      %7347 = vmatpush1.msra.mxu0 0.0
      %7348 = vmatprep.subr.mxu0 0.0
      %7349 = vmatpush1.msra.mxu0 0.0
      %7350 = vmatprep.subr.mxu0 0.0
      %7351 = vmatpush1.msra.mxu0 0.0
      %7352 = vmatprep.subr.mxu0 0.0
      %v7353 = vand.u32 %v6314, 4294901760
      %7354 = vmatpush1.msra.mxu0 %v7353
      %7355 = vmatprep.subr.mxu0 0.0
      %v7356 = vand.u32 %v6313, 4294901760
      %7357 = vmatpush1.msra.mxu0 %v7356
      %7358 = vmatprep.subr.mxu0 0.0
      %v7359 = vand.u32 %v6312, 4294901760
      %7360 = vmatpush1.msra.mxu0 %v7359
      %7361 = vmatprep.subr.mxu0 0.0
      %v7362 = vand.u32 %v6311, 4294901760
      %7363 = vmatpush1.msra.mxu0 %v7362
      %7364 = vmatprep.subr.mxu0 0.0
      %7365 = vmatpush2.msra.mxu0 0.0
      %7366 = vmatprep.subr.mxu0 0.0
      %7367 = vmatpush2.msra.mxu0 0.0
      %7368 = vmatprep.subr.mxu0 0.0
      %7369 = vmatpush2.msra.mxu0 0.0
      %7370 = vmatprep.subr.mxu0 0.0
      %7371 = vmatpush2.msra.mxu0 0.0
      %7372 = vmatprep.subr.mxu0 0.0
      %7373 = vmatpush2.msra.mxu0 0.0
      %7374 = vmatprep.subr.mxu0 0.0
      %7375 = vmatpush2.msra.mxu0 0.0
      %7376 = vmatprep.subr.mxu0 0.0
      %7377 = vmatpush2.msra.mxu0 0.0
      %7378 = vmatprep.subr.mxu0 0.0
      %7379 = vmatpush2.msra.mxu0 0.0
      %7380 = vmatprep.subr.mxu0 0.0
      %7381 = vmatpush2.msra.mxu0 0.0
      %7382 = vmatprep.subr.mxu0 0.0
      %7383 = vmatpush2.msra.mxu0 0.0
      %7384 = vmatprep.subr.mxu0 0.0
      %7385 = vmatpush2.msra.mxu0 0.0
      %7386 = vmatprep.subr.mxu0 0.0
      %7387 = vmatpush2.msra.mxu0 0.0
      %7388 = vmatprep.subr.mxu0 0.0
      %7389 = vmatpush2.msra.mxu0 0.0
      %7390 = vmatprep.subr.mxu0 0.0
      %7391 = vmatpush2.msra.mxu0 0.0
      %7392 = vmatprep.subr.mxu0 0.0
      %7393 = vmatpush2.msra.mxu0 0.0
      %7394 = vmatprep.subr.mxu0 0.0
      %7395 = vmatpush2.msra.mxu0 0.0
      %7396 = vmatprep.mubr.f32.mxu0 0.0
      %v7397 = vand.u32 %v6316, 4294901760
      %7398 = vmatmul.mubr.f32.gmra.mxu0 %v7397
      %v7399 = vpop.f32.mrf.mxu0
      %v7400 = vadd.f32 %v7235, %v7399
      %v7401 = vpop.f32.mrf.mxu0
      %7402 = vmatprep.mubr.f32.mxu0 0.0
      %v7403 = vand.u32 %v6319, 4294901760
      %7404 = vmatmul.mubr.f32.gmra.mxu0 %v7403
      %v7405 = vpop.f32.mrf.mxu0
      %v7406 = vadd.f32 %v7241, %v7405
      %v7407 = vpop.f32.mrf.mxu0
      %7408 = vmatprep.mubr.f32.mxu0 0.0
      %v7409 = vand.u32 %v6322, 4294901760
      %7410 = vmatmul.mubr.f32.gmra.mxu0 %v7409
      %v7411 = vpop.f32.mrf.mxu0
      %v7412 = vadd.f32 %v7247, %v7411
      %v7413 = vpop.f32.mrf.mxu0
      %7414 = vmatprep.mubr.f32.mxu0 0.0
      %v7415 = vand.u32 %v6325, 4294901760
      %7416 = vmatmul.mubr.f32.gmra.mxu0 %v7415
      %v7417 = vpop.f32.mrf.mxu0
      %v7418 = vadd.f32 %v7253, %v7417
      %v7419 = vpop.f32.mrf.mxu0
      %7420 = vmatprep.mubr.f32.mxu0 0.0
      %v7421 = vand.u32 %v6328, 4294901760
      %7422 = vmatmul.mubr.f32.gmra.mxu0 %v7421
      %v7423 = vpop.f32.mrf.mxu0
      %v7424 = vadd.f32 %v7259, %v7423
      %v7425 = vpop.f32.mrf.mxu0
      %7426 = vmatprep.mubr.f32.mxu0 0.0
      %v7427 = vand.u32 %v6331, 4294901760
      %7428 = vmatmul.mubr.f32.gmra.mxu0 %v7427
      %v7429 = vpop.f32.mrf.mxu0
      %v7430 = vadd.f32 %v7265, %v7429
      %v7431 = vpop.f32.mrf.mxu0
      %7432 = vmatprep.mubr.f32.mxu0 0.0
      %v7433 = vand.u32 %v6334, 4294901760
      %7434 = vmatmul.mubr.f32.gmra.mxu0 %v7433
      %v7435 = vpop.f32.mrf.mxu0
      %v7436 = vadd.f32 %v7271, %v7435
      %v7437 = vpop.f32.mrf.mxu0
      %7438 = vmatprep.mubr.f32.mxu0 0.0
      %v7439 = vand.u32 %v6337, 4294901760
      %7440 = vmatmul.mubr.f32.gmra.mxu0 %v7439
      %v7441 = vpop.f32.mrf.mxu0
      %v7442 = vadd.f32 %v7277, %v7441
      %v7443 = vpop.f32.mrf.mxu0
      %7444 = vmatprep.mubr.f32.mxu0 0.0
      %v7445 = vand.u32 %v6340, 4294901760
      %7446 = vmatmul.mubr.f32.gmra.mxu0 %v7445
      %v7447 = vpop.f32.mrf.mxu0
      %v7448 = vadd.f32 %v7283, %v7447
      %v7449 = vpop.f32.mrf.mxu0
      %7450 = vmatprep.mubr.f32.mxu0 0.0
      %v7451 = vand.u32 %v6343, 4294901760
      %7452 = vmatmul.mubr.f32.gmra.mxu0 %v7451
      %v7453 = vpop.f32.mrf.mxu0
      %v7454 = vadd.f32 %v7289, %v7453
      %v7455 = vpop.f32.mrf.mxu0
      %7456 = vmatprep.mubr.f32.mxu0 0.0
      %v7457 = vand.u32 %v6346, 4294901760
      %7458 = vmatmul.mubr.f32.gmra.mxu0 %v7457
      %v7459 = vpop.f32.mrf.mxu0
      %v7460 = vadd.f32 %v7295, %v7459
      %v7461 = vpop.f32.mrf.mxu0
      %7462 = vmatprep.mubr.f32.mxu0 0.0
      %v7463 = vand.u32 %v6349, 4294901760
      %7464 = vmatmul.mubr.f32.gmra.mxu0 %v7463
      %v7465 = vpop.f32.mrf.mxu0
      %v7466 = vadd.f32 %v7301, %v7465
      %v7467 = vpop.f32.mrf.mxu0
      %7468 = vmatprep.mubr.f32.mxu0 0.0
      %v7469 = vand.u32 %v6352, 4294901760
      %7470 = vmatmul.mubr.f32.gmra.mxu0 %v7469
      %v7471 = vpop.f32.mrf.mxu0
      %v7472 = vadd.f32 %v7307, %v7471
      %v7473 = vpop.f32.mrf.mxu0
      %7474 = vmatprep.mubr.f32.mxu0 0.0
      %v7475 = vand.u32 %v6355, 4294901760
      %7476 = vmatmul.mubr.f32.gmra.mxu0 %v7475
      %v7477 = vpop.f32.mrf.mxu0
      %v7478 = vadd.f32 %v7313, %v7477
      %v7479 = vpop.f32.mrf.mxu0
      %7480 = vmatprep.mubr.f32.mxu0 0.0
      %v7481 = vand.u32 %v6358, 4294901760
      %7482 = vmatmul.mubr.f32.gmra.mxu0 %v7481
      %v7483 = vpop.f32.mrf.mxu0
      %v7484 = vadd.f32 %v7319, %v7483
      %v7485 = vpop.f32.mrf.mxu0
      %7486 = vmatprep.mubr.f32.mxu0 0.0
      %v7487 = vand.u32 %v6361, 4294901760
      %7488 = vmatmul.mubr.f32.gmra.mxu0 %v7487
      %v7489 = vpop.f32.mrf.mxu0
      %v7490 = vadd.f32 %v7325, %v7489
      %v7491 = vpop.f32.mrf.mxu0
      %7492 = vdwg.mxu0
      %v7494 = vlaneseq
      %v7495 = vshrl.u32 %v7494, 7
      %v7496 = vsub.s32 0, %v7495
      %v7497 = vrot.slane %v6310, %v7496
      %v7499 = vadd.f32 %v7497, %v7400
      %v7500 = vadd.f32 %v7497, %v7406
      %v7501 = vadd.f32 %v7497, %v7412
      %v7502 = vadd.f32 %v7497, %v7418
      %v7503 = vadd.f32 %v7497, %v7424
      %v7504 = vadd.f32 %v7497, %v7430
      %v7505 = vadd.f32 %v7497, %v7436
      %v7506 = vadd.f32 %v7497, %v7442
      %v7507 = vadd.f32 %v7497, %v7448
      %v7508 = vadd.f32 %v7497, %v7454
      %v7509 = vadd.f32 %v7497, %v7460
      %v7510 = vadd.f32 %v7497, %v7466
      %v7511 = vadd.f32 %v7497, %v7472
      %v7512 = vadd.f32 %v7497, %v7478
      %v7513 = vadd.f32 %v7497, %v7484
      %v7514 = vadd.f32 %v7497, %v7490
      %v7515 = vld [vmem:[#allocation4 + $0x1] sm:$0xff]
      %v7516 = vld [vmem:[#allocation4 + $0x9] sm:$0xff]
      %v7517 = vld [vmem:[#allocation4 + $0x11] sm:$0xff]
      %v7518 = vld [vmem:[#allocation4 + $0x19] sm:$0xff]
      %v7519 = vld [vmem:[#allocation4 + $0x21] sm:$0xff]
      %v7520 = vld [vmem:[#allocation4 + $0x29] sm:$0xff]
      %v7521 = vld [vmem:[#allocation4 + $0x31] sm:$0xff]
      %v7522 = vld [vmem:[#allocation4 + $0x39] sm:$0xff]
      %v7523 = vld [vmem:[#allocation4 + $0x41] sm:$0xff]
      %v7524 = vld [vmem:[#allocation4 + $0x49] sm:$0xff]
      %v7525 = vld [vmem:[#allocation4 + $0x51] sm:$0xff]
      %v7526 = vld [vmem:[#allocation4 + $0x59] sm:$0xff]
      %v7527 = vld [vmem:[#allocation4 + $0x61] sm:$0xff]
      %v7528 = vld [vmem:[#allocation4 + $0x69] sm:$0xff]
      %v7529 = vld [vmem:[#allocation4 + $0x71] sm:$0xff]
      %v7530 = vld [vmem:[#allocation4 + $0x79] sm:$0xff]
      %s7531 = scalar_lea.vmem %s3, 32
      %v7532 = vld [vmem:[%s7531] sm:$0xff]
      %v7533 = vld [vmem:[%s7531 + $0x8] sm:$0xff]
      %v7534 = vld [vmem:[%s7531 + $0x10] sm:$0xff]
      %v7535 = vld [vmem:[%s7531 + $0x18] sm:$0xff]
      %v7537 = vsel %vm6101, %v7515, 0
      %v7540 = vsel %vm6101, %v7516, 0
      %v7543 = vsel %vm6101, %v7517, 0
      %v7546 = vsel %vm6101, %v7518, 0
      %v7549 = vsel %vm6101, %v7519, 0
      %v7552 = vsel %vm6101, %v7520, 0
      %v7555 = vsel %vm6101, %v7521, 0
      %v7558 = vsel %vm6101, %v7522, 0
      %v7561 = vsel %vm6101, %v7523, 0
      %v7564 = vsel %vm6101, %v7524, 0
      %v7567 = vsel %vm6101, %v7525, 0
      %v7570 = vsel %vm6101, %v7526, 0
      %v7573 = vsel %vm6101, %v7527, 0
      %v7576 = vsel %vm6101, %v7528, 0
      %v7579 = vsel %vm6101, %v7529, 0
      %v7582 = vsel %vm6101, %v7530, 0
      %7584 = vmatprep.subr.mxu0 0.0
      %7585 = vmatpush1.msra.mxu0 0.0
      %7586 = vmatprep.subr.mxu0 0.0
      %7587 = vmatpush1.msra.mxu0 0.0
      %7588 = vmatprep.subr.mxu0 0.0
      %7589 = vmatpush1.msra.mxu0 0.0
      %7590 = vmatprep.subr.mxu0 0.0
      %7591 = vmatpush1.msra.mxu0 0.0
      %7592 = vmatprep.subr.mxu0 0.0
      %7593 = vmatpush1.msra.mxu0 0.0
      %7594 = vmatprep.subr.mxu0 0.0
      %7595 = vmatpush1.msra.mxu0 0.0
      %7596 = vmatprep.subr.mxu0 0.0
      %7597 = vmatpush1.msra.mxu0 0.0
      %7598 = vmatprep.subr.mxu0 0.0
      %7599 = vmatpush1.msra.mxu0 0.0
      %7600 = vmatprep.subr.mxu0 0.0
      %7601 = vmatpush1.msra.mxu0 0.0
      %7602 = vmatprep.subr.mxu0 0.0
      %7603 = vmatpush1.msra.mxu0 0.0
      %7604 = vmatprep.subr.mxu0 0.0
      %7605 = vmatpush1.msra.mxu0 0.0
      %7606 = vmatprep.subr.mxu0 0.0
      %7607 = vmatpush1.msra.mxu0 0.0
      %7608 = vmatprep.subr.mxu0 0.0
      %v7609 = vand.u32 %v7535, 4294901760
      %7610 = vmatpush1.msra.mxu0 %v7609
      %7611 = vmatprep.subr.mxu0 0.0
      %v7612 = vand.u32 %v7534, 4294901760
      %7613 = vmatpush1.msra.mxu0 %v7612
      %7614 = vmatprep.subr.mxu0 0.0
      %v7615 = vand.u32 %v7533, 4294901760
      %7616 = vmatpush1.msra.mxu0 %v7615
      %7617 = vmatprep.subr.mxu0 0.0
      %v7618 = vand.u32 %v7532, 4294901760
      %7619 = vmatpush1.msra.mxu0 %v7618
      %7620 = vmatprep.subr.mxu0 0.0
      %7621 = vmatpush2.msra.mxu0 0.0
      %7622 = vmatprep.subr.mxu0 0.0
      %7623 = vmatpush2.msra.mxu0 0.0
      %7624 = vmatprep.subr.mxu0 0.0
      %7625 = vmatpush2.msra.mxu0 0.0
      %7626 = vmatprep.subr.mxu0 0.0
      %7627 = vmatpush2.msra.mxu0 0.0
      %7628 = vmatprep.subr.mxu0 0.0
      %7629 = vmatpush2.msra.mxu0 0.0
      %7630 = vmatprep.subr.mxu0 0.0
      %7631 = vmatpush2.msra.mxu0 0.0
      %7632 = vmatprep.subr.mxu0 0.0
      %7633 = vmatpush2.msra.mxu0 0.0
      %7634 = vmatprep.subr.mxu0 0.0
      %7635 = vmatpush2.msra.mxu0 0.0
      %7636 = vmatprep.subr.mxu0 0.0
      %7637 = vmatpush2.msra.mxu0 0.0
      %7638 = vmatprep.subr.mxu0 0.0
      %7639 = vmatpush2.msra.mxu0 0.0
      %7640 = vmatprep.subr.mxu0 0.0
      %7641 = vmatpush2.msra.mxu0 0.0
      %7642 = vmatprep.subr.mxu0 0.0
      %7643 = vmatpush2.msra.mxu0 0.0
      %7644 = vmatprep.subr.mxu0 0.0
      %7645 = vmatpush2.msra.mxu0 0.0
      %7646 = vmatprep.subr.mxu0 0.0
      %7647 = vmatpush2.msra.mxu0 0.0
      %7648 = vmatprep.subr.mxu0 0.0
      %7649 = vmatpush2.msra.mxu0 0.0
      %7650 = vmatprep.subr.mxu0 0.0
      %7651 = vmatpush2.msra.mxu0 0.0
      %7652 = vmatprep.mubr.f32.mxu0 0.0
      %v7653 = vand.u32 %v7537, 4294901760
      %v7654 = vsub.f32 %v7537, %v7653
      %v7655 = vand.u32 %v7654, 4294901760
      %v7656 = vsub.f32 %v7654, %v7655
      %v7657 = vand.u32 %v7656, 4294901760
      %7658 = vmatmul.mubr.f32.gmra.mxu0 %v7657
      %v7659 = vpop.f32.mrf.mxu0
      %v7660 = vadd.f32 0.0, %v7659
      %v7661 = vpop.f32.mrf.mxu0
      %7662 = vmatprep.mubr.f32.mxu0 0.0
      %v7663 = vand.u32 %v7540, 4294901760
      %v7664 = vsub.f32 %v7540, %v7663
      %v7665 = vand.u32 %v7664, 4294901760
      %v7666 = vsub.f32 %v7664, %v7665
      %v7667 = vand.u32 %v7666, 4294901760
      %7668 = vmatmul.mubr.f32.gmra.mxu0 %v7667
      %v7669 = vpop.f32.mrf.mxu0
      %v7670 = vadd.f32 0.0, %v7669
      %v7671 = vpop.f32.mrf.mxu0
      %7672 = vmatprep.mubr.f32.mxu0 0.0
      %v7673 = vand.u32 %v7543, 4294901760
      %v7674 = vsub.f32 %v7543, %v7673
      %v7675 = vand.u32 %v7674, 4294901760
      %v7676 = vsub.f32 %v7674, %v7675
      %v7677 = vand.u32 %v7676, 4294901760
      %7678 = vmatmul.mubr.f32.gmra.mxu0 %v7677
      %v7679 = vpop.f32.mrf.mxu0
      %v7680 = vadd.f32 0.0, %v7679
      %v7681 = vpop.f32.mrf.mxu0
      %7682 = vmatprep.mubr.f32.mxu0 0.0
      %v7683 = vand.u32 %v7546, 4294901760
      %v7684 = vsub.f32 %v7546, %v7683
      %v7685 = vand.u32 %v7684, 4294901760
      %v7686 = vsub.f32 %v7684, %v7685
      %v7687 = vand.u32 %v7686, 4294901760
      %7688 = vmatmul.mubr.f32.gmra.mxu0 %v7687
      %v7689 = vpop.f32.mrf.mxu0
      %v7690 = vadd.f32 0.0, %v7689
      %v7691 = vpop.f32.mrf.mxu0
      %7692 = vmatprep.mubr.f32.mxu0 0.0
      %v7693 = vand.u32 %v7549, 4294901760
      %v7694 = vsub.f32 %v7549, %v7693
      %v7695 = vand.u32 %v7694, 4294901760
      %v7696 = vsub.f32 %v7694, %v7695
      %v7697 = vand.u32 %v7696, 4294901760
      %7698 = vmatmul.mubr.f32.gmra.mxu0 %v7697
      %v7699 = vpop.f32.mrf.mxu0
      %v7700 = vadd.f32 0.0, %v7699
      %v7701 = vpop.f32.mrf.mxu0
      %7702 = vmatprep.mubr.f32.mxu0 0.0
      %v7703 = vand.u32 %v7552, 4294901760
      %v7704 = vsub.f32 %v7552, %v7703
      %v7705 = vand.u32 %v7704, 4294901760
      %v7706 = vsub.f32 %v7704, %v7705
      %v7707 = vand.u32 %v7706, 4294901760
      %7708 = vmatmul.mubr.f32.gmra.mxu0 %v7707
      %v7709 = vpop.f32.mrf.mxu0
      %v7710 = vadd.f32 0.0, %v7709
      %v7711 = vpop.f32.mrf.mxu0
      %7712 = vmatprep.mubr.f32.mxu0 0.0
      %v7713 = vand.u32 %v7555, 4294901760
      %v7714 = vsub.f32 %v7555, %v7713
      %v7715 = vand.u32 %v7714, 4294901760
      %v7716 = vsub.f32 %v7714, %v7715
      %v7717 = vand.u32 %v7716, 4294901760
      %7718 = vmatmul.mubr.f32.gmra.mxu0 %v7717
      %v7719 = vpop.f32.mrf.mxu0
      %v7720 = vadd.f32 0.0, %v7719
      %v7721 = vpop.f32.mrf.mxu0
      %7722 = vmatprep.mubr.f32.mxu0 0.0
      %v7723 = vand.u32 %v7558, 4294901760
      %v7724 = vsub.f32 %v7558, %v7723
      %v7725 = vand.u32 %v7724, 4294901760
      %v7726 = vsub.f32 %v7724, %v7725
      %v7727 = vand.u32 %v7726, 4294901760
      %7728 = vmatmul.mubr.f32.gmra.mxu0 %v7727
      %v7729 = vpop.f32.mrf.mxu0
      %v7730 = vadd.f32 0.0, %v7729
      %v7731 = vpop.f32.mrf.mxu0
      %7732 = vmatprep.mubr.f32.mxu0 0.0
      %v7733 = vand.u32 %v7561, 4294901760
      %v7734 = vsub.f32 %v7561, %v7733
      %v7735 = vand.u32 %v7734, 4294901760
      %v7736 = vsub.f32 %v7734, %v7735
      %v7737 = vand.u32 %v7736, 4294901760
      %7738 = vmatmul.mubr.f32.gmra.mxu0 %v7737
      %v7739 = vpop.f32.mrf.mxu0
      %v7740 = vadd.f32 0.0, %v7739
      %v7741 = vpop.f32.mrf.mxu0
      %7742 = vmatprep.mubr.f32.mxu0 0.0
      %v7743 = vand.u32 %v7564, 4294901760
      %v7744 = vsub.f32 %v7564, %v7743
      %v7745 = vand.u32 %v7744, 4294901760
      %v7746 = vsub.f32 %v7744, %v7745
      %v7747 = vand.u32 %v7746, 4294901760
      %7748 = vmatmul.mubr.f32.gmra.mxu0 %v7747
      %v7749 = vpop.f32.mrf.mxu0
      %v7750 = vadd.f32 0.0, %v7749
      %v7751 = vpop.f32.mrf.mxu0
      %7752 = vmatprep.mubr.f32.mxu0 0.0
      %v7753 = vand.u32 %v7567, 4294901760
      %v7754 = vsub.f32 %v7567, %v7753
      %v7755 = vand.u32 %v7754, 4294901760
      %v7756 = vsub.f32 %v7754, %v7755
      %v7757 = vand.u32 %v7756, 4294901760
      %7758 = vmatmul.mubr.f32.gmra.mxu0 %v7757
      %v7759 = vpop.f32.mrf.mxu0
      %v7760 = vadd.f32 0.0, %v7759
      %v7761 = vpop.f32.mrf.mxu0
      %7762 = vmatprep.mubr.f32.mxu0 0.0
      %v7763 = vand.u32 %v7570, 4294901760
      %v7764 = vsub.f32 %v7570, %v7763
      %v7765 = vand.u32 %v7764, 4294901760
      %v7766 = vsub.f32 %v7764, %v7765
      %v7767 = vand.u32 %v7766, 4294901760
      %7768 = vmatmul.mubr.f32.gmra.mxu0 %v7767
      %v7769 = vpop.f32.mrf.mxu0
      %v7770 = vadd.f32 0.0, %v7769
      %v7771 = vpop.f32.mrf.mxu0
      %7772 = vmatprep.mubr.f32.mxu0 0.0
      %v7773 = vand.u32 %v7573, 4294901760
      %v7774 = vsub.f32 %v7573, %v7773
      %v7775 = vand.u32 %v7774, 4294901760
      %v7776 = vsub.f32 %v7774, %v7775
      %v7777 = vand.u32 %v7776, 4294901760
      %7778 = vmatmul.mubr.f32.gmra.mxu0 %v7777
      %v7779 = vpop.f32.mrf.mxu0
      %v7780 = vadd.f32 0.0, %v7779
      %v7781 = vpop.f32.mrf.mxu0
      %7782 = vmatprep.mubr.f32.mxu0 0.0
      %v7783 = vand.u32 %v7576, 4294901760
      %v7784 = vsub.f32 %v7576, %v7783
      %v7785 = vand.u32 %v7784, 4294901760
      %v7786 = vsub.f32 %v7784, %v7785
      %v7787 = vand.u32 %v7786, 4294901760
      %7788 = vmatmul.mubr.f32.gmra.mxu0 %v7787
      %v7789 = vpop.f32.mrf.mxu0
      %v7790 = vadd.f32 0.0, %v7789
      %v7791 = vpop.f32.mrf.mxu0
      %7792 = vmatprep.mubr.f32.mxu0 0.0
      %v7793 = vand.u32 %v7579, 4294901760
      %v7794 = vsub.f32 %v7579, %v7793
      %v7795 = vand.u32 %v7794, 4294901760
      %v7796 = vsub.f32 %v7794, %v7795
      %v7797 = vand.u32 %v7796, 4294901760
      %7798 = vmatmul.mubr.f32.gmra.mxu0 %v7797
      %v7799 = vpop.f32.mrf.mxu0
      %v7800 = vadd.f32 0.0, %v7799
      %v7801 = vpop.f32.mrf.mxu0
      %7802 = vmatprep.mubr.f32.mxu0 0.0
      %v7803 = vand.u32 %v7582, 4294901760
      %v7804 = vsub.f32 %v7582, %v7803
      %v7805 = vand.u32 %v7804, 4294901760
      %v7806 = vsub.f32 %v7804, %v7805
      %v7807 = vand.u32 %v7806, 4294901760
      %7808 = vmatmul.mubr.f32.gmra.mxu0 %v7807
      %v7809 = vpop.f32.mrf.mxu0
      %v7810 = vadd.f32 0.0, %v7809
      %v7811 = vpop.f32.mrf.mxu0
      %7812 = vdwg.mxu0
      %7813 = vmatprep.subr.mxu0 0.0
      %7814 = vmatpush1.msra.mxu0 0.0
      %7815 = vmatprep.subr.mxu0 0.0
      %7816 = vmatpush1.msra.mxu0 0.0
      %7817 = vmatprep.subr.mxu0 0.0
      %7818 = vmatpush1.msra.mxu0 0.0
      %7819 = vmatprep.subr.mxu0 0.0
      %7820 = vmatpush1.msra.mxu0 0.0
      %7821 = vmatprep.subr.mxu0 0.0
      %7822 = vmatpush1.msra.mxu0 0.0
      %7823 = vmatprep.subr.mxu0 0.0
      %7824 = vmatpush1.msra.mxu0 0.0
      %7825 = vmatprep.subr.mxu0 0.0
      %7826 = vmatpush1.msra.mxu0 0.0
      %7827 = vmatprep.subr.mxu0 0.0
      %7828 = vmatpush1.msra.mxu0 0.0
      %7829 = vmatprep.subr.mxu0 0.0
      %7830 = vmatpush1.msra.mxu0 0.0
      %7831 = vmatprep.subr.mxu0 0.0
      %7832 = vmatpush1.msra.mxu0 0.0
      %7833 = vmatprep.subr.mxu0 0.0
      %7834 = vmatpush1.msra.mxu0 0.0
      %7835 = vmatprep.subr.mxu0 0.0
      %7836 = vmatpush1.msra.mxu0 0.0
      %7837 = vmatprep.subr.mxu0 0.0
      %v7838 = vand.u32 %v7535, 4294901760
      %v7839 = vsub.f32 %v7535, %v7838
      %v7840 = vand.u32 %v7839, 4294901760
      %v7841 = vsub.f32 %v7839, %v7840
      %v7842 = vand.u32 %v7841, 4294901760
      %7843 = vmatpush1.msra.mxu0 %v7842
      %7844 = vmatprep.subr.mxu0 0.0
      %v7845 = vand.u32 %v7534, 4294901760
      %v7846 = vsub.f32 %v7534, %v7845
      %v7847 = vand.u32 %v7846, 4294901760
      %v7848 = vsub.f32 %v7846, %v7847
      %v7849 = vand.u32 %v7848, 4294901760
      %7850 = vmatpush1.msra.mxu0 %v7849
      %7851 = vmatprep.subr.mxu0 0.0
      %v7852 = vand.u32 %v7533, 4294901760
      %v7853 = vsub.f32 %v7533, %v7852
      %v7854 = vand.u32 %v7853, 4294901760
      %v7855 = vsub.f32 %v7853, %v7854
      %v7856 = vand.u32 %v7855, 4294901760
      %7857 = vmatpush1.msra.mxu0 %v7856
      %7858 = vmatprep.subr.mxu0 0.0
      %v7859 = vand.u32 %v7532, 4294901760
      %v7860 = vsub.f32 %v7532, %v7859
      %v7861 = vand.u32 %v7860, 4294901760
      %v7862 = vsub.f32 %v7860, %v7861
      %v7863 = vand.u32 %v7862, 4294901760
      %7864 = vmatpush1.msra.mxu0 %v7863
      %7865 = vmatprep.subr.mxu0 0.0
      %7866 = vmatpush2.msra.mxu0 0.0
      %7867 = vmatprep.subr.mxu0 0.0
      %7868 = vmatpush2.msra.mxu0 0.0
      %7869 = vmatprep.subr.mxu0 0.0
      %7870 = vmatpush2.msra.mxu0 0.0
      %7871 = vmatprep.subr.mxu0 0.0
      %7872 = vmatpush2.msra.mxu0 0.0
      %7873 = vmatprep.subr.mxu0 0.0
      %7874 = vmatpush2.msra.mxu0 0.0
      %7875 = vmatprep.subr.mxu0 0.0
      %7876 = vmatpush2.msra.mxu0 0.0
      %7877 = vmatprep.subr.mxu0 0.0
      %7878 = vmatpush2.msra.mxu0 0.0
      %7879 = vmatprep.subr.mxu0 0.0
      %7880 = vmatpush2.msra.mxu0 0.0
      %7881 = vmatprep.subr.mxu0 0.0
      %7882 = vmatpush2.msra.mxu0 0.0
      %7883 = vmatprep.subr.mxu0 0.0
      %7884 = vmatpush2.msra.mxu0 0.0
      %7885 = vmatprep.subr.mxu0 0.0
      %7886 = vmatpush2.msra.mxu0 0.0
      %7887 = vmatprep.subr.mxu0 0.0
      %7888 = vmatpush2.msra.mxu0 0.0
      %7889 = vmatprep.subr.mxu0 0.0
      %7890 = vmatpush2.msra.mxu0 0.0
      %7891 = vmatprep.subr.mxu0 0.0
      %7892 = vmatpush2.msra.mxu0 0.0
      %7893 = vmatprep.subr.mxu0 0.0
      %7894 = vmatpush2.msra.mxu0 0.0
      %7895 = vmatprep.subr.mxu0 0.0
      %7896 = vmatpush2.msra.mxu0 0.0
      %7897 = vmatprep.mubr.f32.mxu0 0.0
      %v7898 = vand.u32 %v7537, 4294901760
      %7899 = vmatmul.mubr.f32.gmra.mxu0 %v7898
      %v7900 = vpop.f32.mrf.mxu0
      %v7901 = vadd.f32 %v7660, %v7900
      %v7902 = vpop.f32.mrf.mxu0
      %7903 = vmatprep.mubr.f32.mxu0 0.0
      %v7904 = vand.u32 %v7540, 4294901760
      %7905 = vmatmul.mubr.f32.gmra.mxu0 %v7904
      %v7906 = vpop.f32.mrf.mxu0
      %v7907 = vadd.f32 %v7670, %v7906
      %v7908 = vpop.f32.mrf.mxu0
      %7909 = vmatprep.mubr.f32.mxu0 0.0
      %v7910 = vand.u32 %v7543, 4294901760
      %7911 = vmatmul.mubr.f32.gmra.mxu0 %v7910
      %v7912 = vpop.f32.mrf.mxu0
      %v7913 = vadd.f32 %v7680, %v7912
      %v7914 = vpop.f32.mrf.mxu0
      %7915 = vmatprep.mubr.f32.mxu0 0.0
      %v7916 = vand.u32 %v7546, 4294901760
      %7917 = vmatmul.mubr.f32.gmra.mxu0 %v7916
      %v7918 = vpop.f32.mrf.mxu0
      %v7919 = vadd.f32 %v7690, %v7918
      %v7920 = vpop.f32.mrf.mxu0
      %7921 = vmatprep.mubr.f32.mxu0 0.0
      %v7922 = vand.u32 %v7549, 4294901760
      %7923 = vmatmul.mubr.f32.gmra.mxu0 %v7922
      %v7924 = vpop.f32.mrf.mxu0
      %v7925 = vadd.f32 %v7700, %v7924
      %v7926 = vpop.f32.mrf.mxu0
      %7927 = vmatprep.mubr.f32.mxu0 0.0
      %v7928 = vand.u32 %v7552, 4294901760
      %7929 = vmatmul.mubr.f32.gmra.mxu0 %v7928
      %v7930 = vpop.f32.mrf.mxu0
      %v7931 = vadd.f32 %v7710, %v7930
      %v7932 = vpop.f32.mrf.mxu0
      %7933 = vmatprep.mubr.f32.mxu0 0.0
      %v7934 = vand.u32 %v7555, 4294901760
      %7935 = vmatmul.mubr.f32.gmra.mxu0 %v7934
      %v7936 = vpop.f32.mrf.mxu0
      %v7937 = vadd.f32 %v7720, %v7936
      %v7938 = vpop.f32.mrf.mxu0
      %7939 = vmatprep.mubr.f32.mxu0 0.0
      %v7940 = vand.u32 %v7558, 4294901760
      %7941 = vmatmul.mubr.f32.gmra.mxu0 %v7940
      %v7942 = vpop.f32.mrf.mxu0
      %v7943 = vadd.f32 %v7730, %v7942
      %v7944 = vpop.f32.mrf.mxu0
      %7945 = vmatprep.mubr.f32.mxu0 0.0
      %v7946 = vand.u32 %v7561, 4294901760
      %7947 = vmatmul.mubr.f32.gmra.mxu0 %v7946
      %v7948 = vpop.f32.mrf.mxu0
      %v7949 = vadd.f32 %v7740, %v7948
      %v7950 = vpop.f32.mrf.mxu0
      %7951 = vmatprep.mubr.f32.mxu0 0.0
      %v7952 = vand.u32 %v7564, 4294901760
      %7953 = vmatmul.mubr.f32.gmra.mxu0 %v7952
      %v7954 = vpop.f32.mrf.mxu0
      %v7955 = vadd.f32 %v7750, %v7954
      %v7956 = vpop.f32.mrf.mxu0
      %7957 = vmatprep.mubr.f32.mxu0 0.0
      %v7958 = vand.u32 %v7567, 4294901760
      %7959 = vmatmul.mubr.f32.gmra.mxu0 %v7958
      %v7960 = vpop.f32.mrf.mxu0
      %v7961 = vadd.f32 %v7760, %v7960
      %v7962 = vpop.f32.mrf.mxu0
      %7963 = vmatprep.mubr.f32.mxu0 0.0
      %v7964 = vand.u32 %v7570, 4294901760
      %7965 = vmatmul.mubr.f32.gmra.mxu0 %v7964
      %v7966 = vpop.f32.mrf.mxu0
      %v7967 = vadd.f32 %v7770, %v7966
      %v7968 = vpop.f32.mrf.mxu0
      %7969 = vmatprep.mubr.f32.mxu0 0.0
      %v7970 = vand.u32 %v7573, 4294901760
      %7971 = vmatmul.mubr.f32.gmra.mxu0 %v7970
      %v7972 = vpop.f32.mrf.mxu0
      %v7973 = vadd.f32 %v7780, %v7972
      %v7974 = vpop.f32.mrf.mxu0
      %7975 = vmatprep.mubr.f32.mxu0 0.0
      %v7976 = vand.u32 %v7576, 4294901760
      %7977 = vmatmul.mubr.f32.gmra.mxu0 %v7976
      %v7978 = vpop.f32.mrf.mxu0
      %v7979 = vadd.f32 %v7790, %v7978
      %v7980 = vpop.f32.mrf.mxu0
      %7981 = vmatprep.mubr.f32.mxu0 0.0
      %v7982 = vand.u32 %v7579, 4294901760
      %7983 = vmatmul.mubr.f32.gmra.mxu0 %v7982
      %v7984 = vpop.f32.mrf.mxu0
      %v7985 = vadd.f32 %v7800, %v7984
      %v7986 = vpop.f32.mrf.mxu0
      %7987 = vmatprep.mubr.f32.mxu0 0.0
      %v7988 = vand.u32 %v7582, 4294901760
      %7989 = vmatmul.mubr.f32.gmra.mxu0 %v7988
      %v7990 = vpop.f32.mrf.mxu0
      %v7991 = vadd.f32 %v7810, %v7990
      %v7992 = vpop.f32.mrf.mxu0
      %7993 = vdwg.mxu0
      %7994 = vmatprep.subr.mxu0 0.0
      %7995 = vmatpush1.msra.mxu0 0.0
      %7996 = vmatprep.subr.mxu0 0.0
      %7997 = vmatpush1.msra.mxu0 0.0
      %7998 = vmatprep.subr.mxu0 0.0
      %7999 = vmatpush1.msra.mxu0 0.0
      %8000 = vmatprep.subr.mxu0 0.0
      %8001 = vmatpush1.msra.mxu0 0.0
      %8002 = vmatprep.subr.mxu0 0.0
      %8003 = vmatpush1.msra.mxu0 0.0
      %8004 = vmatprep.subr.mxu0 0.0
      %8005 = vmatpush1.msra.mxu0 0.0
      %8006 = vmatprep.subr.mxu0 0.0
      %8007 = vmatpush1.msra.mxu0 0.0
      %8008 = vmatprep.subr.mxu0 0.0
      %8009 = vmatpush1.msra.mxu0 0.0
      %8010 = vmatprep.subr.mxu0 0.0
      %8011 = vmatpush1.msra.mxu0 0.0
      %8012 = vmatprep.subr.mxu0 0.0
      %8013 = vmatpush1.msra.mxu0 0.0
      %8014 = vmatprep.subr.mxu0 0.0
      %8015 = vmatpush1.msra.mxu0 0.0
      %8016 = vmatprep.subr.mxu0 0.0
      %8017 = vmatpush1.msra.mxu0 0.0
      %8018 = vmatprep.subr.mxu0 0.0
      %v8019 = vand.u32 %v7535, 4294901760
      %v8020 = vsub.f32 %v7535, %v8019
      %8021 = vmatpush1.msra.mxu0 %v8020
      %8022 = vmatprep.subr.mxu0 0.0
      %v8023 = vand.u32 %v7534, 4294901760
      %v8024 = vsub.f32 %v7534, %v8023
      %8025 = vmatpush1.msra.mxu0 %v8024
      %8026 = vmatprep.subr.mxu0 0.0
      %v8027 = vand.u32 %v7533, 4294901760
      %v8028 = vsub.f32 %v7533, %v8027
      %8029 = vmatpush1.msra.mxu0 %v8028
      %8030 = vmatprep.subr.mxu0 0.0
      %v8031 = vand.u32 %v7532, 4294901760
      %v8032 = vsub.f32 %v7532, %v8031
      %8033 = vmatpush1.msra.mxu0 %v8032
      %8034 = vmatprep.subr.mxu0 0.0
      %8035 = vmatpush2.msra.mxu0 0.0
      %8036 = vmatprep.subr.mxu0 0.0
      %8037 = vmatpush2.msra.mxu0 0.0
      %8038 = vmatprep.subr.mxu0 0.0
      %8039 = vmatpush2.msra.mxu0 0.0
      %8040 = vmatprep.subr.mxu0 0.0
      %8041 = vmatpush2.msra.mxu0 0.0
      %8042 = vmatprep.subr.mxu0 0.0
      %8043 = vmatpush2.msra.mxu0 0.0
      %8044 = vmatprep.subr.mxu0 0.0
      %8045 = vmatpush2.msra.mxu0 0.0
      %8046 = vmatprep.subr.mxu0 0.0
      %8047 = vmatpush2.msra.mxu0 0.0
      %8048 = vmatprep.subr.mxu0 0.0
      %8049 = vmatpush2.msra.mxu0 0.0
      %8050 = vmatprep.subr.mxu0 0.0
      %8051 = vmatpush2.msra.mxu0 0.0
      %8052 = vmatprep.subr.mxu0 0.0
      %8053 = vmatpush2.msra.mxu0 0.0
      %8054 = vmatprep.subr.mxu0 0.0
      %8055 = vmatpush2.msra.mxu0 0.0
      %8056 = vmatprep.subr.mxu0 0.0
      %8057 = vmatpush2.msra.mxu0 0.0
      %8058 = vmatprep.subr.mxu0 0.0
      %8059 = vmatpush2.msra.mxu0 0.0
      %8060 = vmatprep.subr.mxu0 0.0
      %8061 = vmatpush2.msra.mxu0 0.0
      %8062 = vmatprep.subr.mxu0 0.0
      %8063 = vmatpush2.msra.mxu0 0.0
      %8064 = vmatprep.subr.mxu0 0.0
      %8065 = vmatpush2.msra.mxu0 0.0
      %8066 = vmatprep.mubr.f32.mxu0 0.0
      %v8067 = vand.u32 %v7537, 4294901760
      %v8068 = vsub.f32 %v7537, %v8067
      %8069 = vmatmul.mubr.f32.gmra.mxu0 %v8068
      %v8070 = vpop.f32.mrf.mxu0
      %v8071 = vadd.f32 %v7901, %v8070
      %v8072 = vpop.f32.mrf.mxu0
      %8073 = vmatprep.mubr.f32.mxu0 0.0
      %v8074 = vand.u32 %v7540, 4294901760
      %v8075 = vsub.f32 %v7540, %v8074
      %8076 = vmatmul.mubr.f32.gmra.mxu0 %v8075
      %v8077 = vpop.f32.mrf.mxu0
      %v8078 = vadd.f32 %v7907, %v8077
      %v8079 = vpop.f32.mrf.mxu0
      %8080 = vmatprep.mubr.f32.mxu0 0.0
      %v8081 = vand.u32 %v7543, 4294901760
      %v8082 = vsub.f32 %v7543, %v8081
      %8083 = vmatmul.mubr.f32.gmra.mxu0 %v8082
      %v8084 = vpop.f32.mrf.mxu0
      %v8085 = vadd.f32 %v7913, %v8084
      %v8086 = vpop.f32.mrf.mxu0
      %8087 = vmatprep.mubr.f32.mxu0 0.0
      %v8088 = vand.u32 %v7546, 4294901760
      %v8089 = vsub.f32 %v7546, %v8088
      %8090 = vmatmul.mubr.f32.gmra.mxu0 %v8089
      %v8091 = vpop.f32.mrf.mxu0
      %v8092 = vadd.f32 %v7919, %v8091
      %v8093 = vpop.f32.mrf.mxu0
      %8094 = vmatprep.mubr.f32.mxu0 0.0
      %v8095 = vand.u32 %v7549, 4294901760
      %v8096 = vsub.f32 %v7549, %v8095
      %8097 = vmatmul.mubr.f32.gmra.mxu0 %v8096
      %v8098 = vpop.f32.mrf.mxu0
      %v8099 = vadd.f32 %v7925, %v8098
      %v8100 = vpop.f32.mrf.mxu0
      %8101 = vmatprep.mubr.f32.mxu0 0.0
      %v8102 = vand.u32 %v7552, 4294901760
      %v8103 = vsub.f32 %v7552, %v8102
      %8104 = vmatmul.mubr.f32.gmra.mxu0 %v8103
      %v8105 = vpop.f32.mrf.mxu0
      %v8106 = vadd.f32 %v7931, %v8105
      %v8107 = vpop.f32.mrf.mxu0
      %8108 = vmatprep.mubr.f32.mxu0 0.0
      %v8109 = vand.u32 %v7555, 4294901760
      %v8110 = vsub.f32 %v7555, %v8109
      %8111 = vmatmul.mubr.f32.gmra.mxu0 %v8110
      %v8112 = vpop.f32.mrf.mxu0
      %v8113 = vadd.f32 %v7937, %v8112
      %v8114 = vpop.f32.mrf.mxu0
      %8115 = vmatprep.mubr.f32.mxu0 0.0
      %v8116 = vand.u32 %v7558, 4294901760
      %v8117 = vsub.f32 %v7558, %v8116
      %8118 = vmatmul.mubr.f32.gmra.mxu0 %v8117
      %v8119 = vpop.f32.mrf.mxu0
      %v8120 = vadd.f32 %v7943, %v8119
      %v8121 = vpop.f32.mrf.mxu0
      %8122 = vmatprep.mubr.f32.mxu0 0.0
      %v8123 = vand.u32 %v7561, 4294901760
      %v8124 = vsub.f32 %v7561, %v8123
      %8125 = vmatmul.mubr.f32.gmra.mxu0 %v8124
      %v8126 = vpop.f32.mrf.mxu0
      %v8127 = vadd.f32 %v7949, %v8126
      %v8128 = vpop.f32.mrf.mxu0
      %8129 = vmatprep.mubr.f32.mxu0 0.0
      %v8130 = vand.u32 %v7564, 4294901760
      %v8131 = vsub.f32 %v7564, %v8130
      %8132 = vmatmul.mubr.f32.gmra.mxu0 %v8131
      %v8133 = vpop.f32.mrf.mxu0
      %v8134 = vadd.f32 %v7955, %v8133
      %v8135 = vpop.f32.mrf.mxu0
      %8136 = vmatprep.mubr.f32.mxu0 0.0
      %v8137 = vand.u32 %v7567, 4294901760
      %v8138 = vsub.f32 %v7567, %v8137
      %8139 = vmatmul.mubr.f32.gmra.mxu0 %v8138
      %v8140 = vpop.f32.mrf.mxu0
      %v8141 = vadd.f32 %v7961, %v8140
      %v8142 = vpop.f32.mrf.mxu0
      %8143 = vmatprep.mubr.f32.mxu0 0.0
      %v8144 = vand.u32 %v7570, 4294901760
      %v8145 = vsub.f32 %v7570, %v8144
      %8146 = vmatmul.mubr.f32.gmra.mxu0 %v8145
      %v8147 = vpop.f32.mrf.mxu0
      %v8148 = vadd.f32 %v7967, %v8147
      %v8149 = vpop.f32.mrf.mxu0
      %8150 = vmatprep.mubr.f32.mxu0 0.0
      %v8151 = vand.u32 %v7573, 4294901760
      %v8152 = vsub.f32 %v7573, %v8151
      %8153 = vmatmul.mubr.f32.gmra.mxu0 %v8152
      %v8154 = vpop.f32.mrf.mxu0
      %v8155 = vadd.f32 %v7973, %v8154
      %v8156 = vpop.f32.mrf.mxu0
      %8157 = vmatprep.mubr.f32.mxu0 0.0
      %v8158 = vand.u32 %v7576, 4294901760
      %v8159 = vsub.f32 %v7576, %v8158
      %8160 = vmatmul.mubr.f32.gmra.mxu0 %v8159
      %v8161 = vpop.f32.mrf.mxu0
      %v8162 = vadd.f32 %v7979, %v8161
      %v8163 = vpop.f32.mrf.mxu0
      %8164 = vmatprep.mubr.f32.mxu0 0.0
      %v8165 = vand.u32 %v7579, 4294901760
      %v8166 = vsub.f32 %v7579, %v8165
      %8167 = vmatmul.mubr.f32.gmra.mxu0 %v8166
      %v8168 = vpop.f32.mrf.mxu0
      %v8169 = vadd.f32 %v7985, %v8168
      %v8170 = vpop.f32.mrf.mxu0
      %8171 = vmatprep.mubr.f32.mxu0 0.0
      %v8172 = vand.u32 %v7582, 4294901760
      %v8173 = vsub.f32 %v7582, %v8172
      %8174 = vmatmul.mubr.f32.gmra.mxu0 %v8173
      %v8175 = vpop.f32.mrf.mxu0
      %v8176 = vadd.f32 %v7991, %v8175
      %v8177 = vpop.f32.mrf.mxu0
      %8178 = vdwg.mxu0
      %8179 = vmatprep.subr.mxu0 0.0
      %8180 = vmatpush1.msra.mxu0 0.0
      %8181 = vmatprep.subr.mxu0 0.0
      %8182 = vmatpush1.msra.mxu0 0.0
      %8183 = vmatprep.subr.mxu0 0.0
      %8184 = vmatpush1.msra.mxu0 0.0
      %8185 = vmatprep.subr.mxu0 0.0
      %8186 = vmatpush1.msra.mxu0 0.0
      %8187 = vmatprep.subr.mxu0 0.0
      %8188 = vmatpush1.msra.mxu0 0.0
      %8189 = vmatprep.subr.mxu0 0.0
      %8190 = vmatpush1.msra.mxu0 0.0
      %8191 = vmatprep.subr.mxu0 0.0
      %8192 = vmatpush1.msra.mxu0 0.0
      %8193 = vmatprep.subr.mxu0 0.0
      %8194 = vmatpush1.msra.mxu0 0.0
      %8195 = vmatprep.subr.mxu0 0.0
      %8196 = vmatpush1.msra.mxu0 0.0
      %8197 = vmatprep.subr.mxu0 0.0
      %8198 = vmatpush1.msra.mxu0 0.0
      %8199 = vmatprep.subr.mxu0 0.0
      %8200 = vmatpush1.msra.mxu0 0.0
      %8201 = vmatprep.subr.mxu0 0.0
      %8202 = vmatpush1.msra.mxu0 0.0
      %8203 = vmatprep.subr.mxu0 0.0
      %v8204 = vand.u32 %v7535, 4294901760
      %8205 = vmatpush1.msra.mxu0 %v8204
      %8206 = vmatprep.subr.mxu0 0.0
      %v8207 = vand.u32 %v7534, 4294901760
      %8208 = vmatpush1.msra.mxu0 %v8207
      %8209 = vmatprep.subr.mxu0 0.0
      %v8210 = vand.u32 %v7533, 4294901760
      %8211 = vmatpush1.msra.mxu0 %v8210
      %8212 = vmatprep.subr.mxu0 0.0
      %v8213 = vand.u32 %v7532, 4294901760
      %8214 = vmatpush1.msra.mxu0 %v8213
      %8215 = vmatprep.subr.mxu0 0.0
      %8216 = vmatpush2.msra.mxu0 0.0
      %8217 = vmatprep.subr.mxu0 0.0
      %8218 = vmatpush2.msra.mxu0 0.0
      %8219 = vmatprep.subr.mxu0 0.0
      %8220 = vmatpush2.msra.mxu0 0.0
      %8221 = vmatprep.subr.mxu0 0.0
      %8222 = vmatpush2.msra.mxu0 0.0
      %8223 = vmatprep.subr.mxu0 0.0
      %8224 = vmatpush2.msra.mxu0 0.0
      %8225 = vmatprep.subr.mxu0 0.0
      %8226 = vmatpush2.msra.mxu0 0.0
      %8227 = vmatprep.subr.mxu0 0.0
      %8228 = vmatpush2.msra.mxu0 0.0
      %8229 = vmatprep.subr.mxu0 0.0
      %8230 = vmatpush2.msra.mxu0 0.0
      %8231 = vmatprep.subr.mxu0 0.0
      %8232 = vmatpush2.msra.mxu0 0.0
      %8233 = vmatprep.subr.mxu0 0.0
      %8234 = vmatpush2.msra.mxu0 0.0
      %8235 = vmatprep.subr.mxu0 0.0
      %8236 = vmatpush2.msra.mxu0 0.0
      %8237 = vmatprep.subr.mxu0 0.0
      %8238 = vmatpush2.msra.mxu0 0.0
      %8239 = vmatprep.subr.mxu0 0.0
      %8240 = vmatpush2.msra.mxu0 0.0
      %8241 = vmatprep.subr.mxu0 0.0
      %8242 = vmatpush2.msra.mxu0 0.0
      %8243 = vmatprep.subr.mxu0 0.0
      %8244 = vmatpush2.msra.mxu0 0.0
      %8245 = vmatprep.subr.mxu0 0.0
      %8246 = vmatpush2.msra.mxu0 0.0
      %8247 = vmatprep.mubr.f32.mxu0 0.0
      %v8248 = vand.u32 %v7537, 4294901760
      %v8249 = vsub.f32 %v7537, %v8248
      %v8250 = vand.u32 %v8249, 4294901760
      %8251 = vmatmul.mubr.f32.gmra.mxu0 %v8250
      %v8252 = vpop.f32.mrf.mxu0
      %v8253 = vadd.f32 %v8071, %v8252
      %v8254 = vpop.f32.mrf.mxu0
      %8255 = vmatprep.mubr.f32.mxu0 0.0
      %v8256 = vand.u32 %v7540, 4294901760
      %v8257 = vsub.f32 %v7540, %v8256
      %v8258 = vand.u32 %v8257, 4294901760
      %8259 = vmatmul.mubr.f32.gmra.mxu0 %v8258
      %v8260 = vpop.f32.mrf.mxu0
      %v8261 = vadd.f32 %v8078, %v8260
      %v8262 = vpop.f32.mrf.mxu0
      %8263 = vmatprep.mubr.f32.mxu0 0.0
      %v8264 = vand.u32 %v7543, 4294901760
      %v8265 = vsub.f32 %v7543, %v8264
      %v8266 = vand.u32 %v8265, 4294901760
      %8267 = vmatmul.mubr.f32.gmra.mxu0 %v8266
      %v8268 = vpop.f32.mrf.mxu0
      %v8269 = vadd.f32 %v8085, %v8268
      %v8270 = vpop.f32.mrf.mxu0
      %8271 = vmatprep.mubr.f32.mxu0 0.0
      %v8272 = vand.u32 %v7546, 4294901760
      %v8273 = vsub.f32 %v7546, %v8272
      %v8274 = vand.u32 %v8273, 4294901760
      %8275 = vmatmul.mubr.f32.gmra.mxu0 %v8274
      %v8276 = vpop.f32.mrf.mxu0
      %v8277 = vadd.f32 %v8092, %v8276
      %v8278 = vpop.f32.mrf.mxu0
      %8279 = vmatprep.mubr.f32.mxu0 0.0
      %v8280 = vand.u32 %v7549, 4294901760
      %v8281 = vsub.f32 %v7549, %v8280
      %v8282 = vand.u32 %v8281, 4294901760
      %8283 = vmatmul.mubr.f32.gmra.mxu0 %v8282
      %v8284 = vpop.f32.mrf.mxu0
      %v8285 = vadd.f32 %v8099, %v8284
      %v8286 = vpop.f32.mrf.mxu0
      %8287 = vmatprep.mubr.f32.mxu0 0.0
      %v8288 = vand.u32 %v7552, 4294901760
      %v8289 = vsub.f32 %v7552, %v8288
      %v8290 = vand.u32 %v8289, 4294901760
      %8291 = vmatmul.mubr.f32.gmra.mxu0 %v8290
      %v8292 = vpop.f32.mrf.mxu0
      %v8293 = vadd.f32 %v8106, %v8292
      %v8294 = vpop.f32.mrf.mxu0
      %8295 = vmatprep.mubr.f32.mxu0 0.0
      %v8296 = vand.u32 %v7555, 4294901760
      %v8297 = vsub.f32 %v7555, %v8296
      %v8298 = vand.u32 %v8297, 4294901760
      %8299 = vmatmul.mubr.f32.gmra.mxu0 %v8298
      %v8300 = vpop.f32.mrf.mxu0
      %v8301 = vadd.f32 %v8113, %v8300
      %v8302 = vpop.f32.mrf.mxu0
      %8303 = vmatprep.mubr.f32.mxu0 0.0
      %v8304 = vand.u32 %v7558, 4294901760
      %v8305 = vsub.f32 %v7558, %v8304
      %v8306 = vand.u32 %v8305, 4294901760
      %8307 = vmatmul.mubr.f32.gmra.mxu0 %v8306
      %v8308 = vpop.f32.mrf.mxu0
      %v8309 = vadd.f32 %v8120, %v8308
      %v8310 = vpop.f32.mrf.mxu0
      %8311 = vmatprep.mubr.f32.mxu0 0.0
      %v8312 = vand.u32 %v7561, 4294901760
      %v8313 = vsub.f32 %v7561, %v8312
      %v8314 = vand.u32 %v8313, 4294901760
      %8315 = vmatmul.mubr.f32.gmra.mxu0 %v8314
      %v8316 = vpop.f32.mrf.mxu0
      %v8317 = vadd.f32 %v8127, %v8316
      %v8318 = vpop.f32.mrf.mxu0
      %8319 = vmatprep.mubr.f32.mxu0 0.0
      %v8320 = vand.u32 %v7564, 4294901760
      %v8321 = vsub.f32 %v7564, %v8320
      %v8322 = vand.u32 %v8321, 4294901760
      %8323 = vmatmul.mubr.f32.gmra.mxu0 %v8322
      %v8324 = vpop.f32.mrf.mxu0
      %v8325 = vadd.f32 %v8134, %v8324
      %v8326 = vpop.f32.mrf.mxu0
      %8327 = vmatprep.mubr.f32.mxu0 0.0
      %v8328 = vand.u32 %v7567, 4294901760
      %v8329 = vsub.f32 %v7567, %v8328
      %v8330 = vand.u32 %v8329, 4294901760
      %8331 = vmatmul.mubr.f32.gmra.mxu0 %v8330
      %v8332 = vpop.f32.mrf.mxu0
      %v8333 = vadd.f32 %v8141, %v8332
      %v8334 = vpop.f32.mrf.mxu0
      %8335 = vmatprep.mubr.f32.mxu0 0.0
      %v8336 = vand.u32 %v7570, 4294901760
      %v8337 = vsub.f32 %v7570, %v8336
      %v8338 = vand.u32 %v8337, 4294901760
      %8339 = vmatmul.mubr.f32.gmra.mxu0 %v8338
      %v8340 = vpop.f32.mrf.mxu0
      %v8341 = vadd.f32 %v8148, %v8340
      %v8342 = vpop.f32.mrf.mxu0
      %8343 = vmatprep.mubr.f32.mxu0 0.0
      %v8344 = vand.u32 %v7573, 4294901760
      %v8345 = vsub.f32 %v7573, %v8344
      %v8346 = vand.u32 %v8345, 4294901760
      %8347 = vmatmul.mubr.f32.gmra.mxu0 %v8346
      %v8348 = vpop.f32.mrf.mxu0
      %v8349 = vadd.f32 %v8155, %v8348
      %v8350 = vpop.f32.mrf.mxu0
      %8351 = vmatprep.mubr.f32.mxu0 0.0
      %v8352 = vand.u32 %v7576, 4294901760
      %v8353 = vsub.f32 %v7576, %v8352
      %v8354 = vand.u32 %v8353, 4294901760
      %8355 = vmatmul.mubr.f32.gmra.mxu0 %v8354
      %v8356 = vpop.f32.mrf.mxu0
      %v8357 = vadd.f32 %v8162, %v8356
      %v8358 = vpop.f32.mrf.mxu0
      %8359 = vmatprep.mubr.f32.mxu0 0.0
      %v8360 = vand.u32 %v7579, 4294901760
      %v8361 = vsub.f32 %v7579, %v8360
      %v8362 = vand.u32 %v8361, 4294901760
      %8363 = vmatmul.mubr.f32.gmra.mxu0 %v8362
      %v8364 = vpop.f32.mrf.mxu0
      %v8365 = vadd.f32 %v8169, %v8364
      %v8366 = vpop.f32.mrf.mxu0
      %8367 = vmatprep.mubr.f32.mxu0 0.0
      %v8368 = vand.u32 %v7582, 4294901760
      %v8369 = vsub.f32 %v7582, %v8368
      %v8370 = vand.u32 %v8369, 4294901760
      %8371 = vmatmul.mubr.f32.gmra.mxu0 %v8370
      %v8372 = vpop.f32.mrf.mxu0
      %v8373 = vadd.f32 %v8176, %v8372
      %v8374 = vpop.f32.mrf.mxu0
      %8375 = vdwg.mxu0
      %8376 = vmatprep.subr.mxu0 0.0
      %8377 = vmatpush1.msra.mxu0 0.0
      %8378 = vmatprep.subr.mxu0 0.0
      %8379 = vmatpush1.msra.mxu0 0.0
      %8380 = vmatprep.subr.mxu0 0.0
      %8381 = vmatpush1.msra.mxu0 0.0
      %8382 = vmatprep.subr.mxu0 0.0
      %8383 = vmatpush1.msra.mxu0 0.0
      %8384 = vmatprep.subr.mxu0 0.0
      %8385 = vmatpush1.msra.mxu0 0.0
      %8386 = vmatprep.subr.mxu0 0.0
      %8387 = vmatpush1.msra.mxu0 0.0
      %8388 = vmatprep.subr.mxu0 0.0
      %8389 = vmatpush1.msra.mxu0 0.0
      %8390 = vmatprep.subr.mxu0 0.0
      %8391 = vmatpush1.msra.mxu0 0.0
      %8392 = vmatprep.subr.mxu0 0.0
      %8393 = vmatpush1.msra.mxu0 0.0
      %8394 = vmatprep.subr.mxu0 0.0
      %8395 = vmatpush1.msra.mxu0 0.0
      %8396 = vmatprep.subr.mxu0 0.0
      %8397 = vmatpush1.msra.mxu0 0.0
      %8398 = vmatprep.subr.mxu0 0.0
      %8399 = vmatpush1.msra.mxu0 0.0
      %8400 = vmatprep.subr.mxu0 0.0
      %v8401 = vand.u32 %v7535, 4294901760
      %v8402 = vsub.f32 %v7535, %v8401
      %v8403 = vand.u32 %v8402, 4294901760
      %8404 = vmatpush1.msra.mxu0 %v8403
      %8405 = vmatprep.subr.mxu0 0.0
      %v8406 = vand.u32 %v7534, 4294901760
      %v8407 = vsub.f32 %v7534, %v8406
      %v8408 = vand.u32 %v8407, 4294901760
      %8409 = vmatpush1.msra.mxu0 %v8408
      %8410 = vmatprep.subr.mxu0 0.0
      %v8411 = vand.u32 %v7533, 4294901760
      %v8412 = vsub.f32 %v7533, %v8411
      %v8413 = vand.u32 %v8412, 4294901760
      %8414 = vmatpush1.msra.mxu0 %v8413
      %8415 = vmatprep.subr.mxu0 0.0
      %v8416 = vand.u32 %v7532, 4294901760
      %v8417 = vsub.f32 %v7532, %v8416
      %v8418 = vand.u32 %v8417, 4294901760
      %8419 = vmatpush1.msra.mxu0 %v8418
      %8420 = vmatprep.subr.mxu0 0.0
      %8421 = vmatpush2.msra.mxu0 0.0
      %8422 = vmatprep.subr.mxu0 0.0
      %8423 = vmatpush2.msra.mxu0 0.0
      %8424 = vmatprep.subr.mxu0 0.0
      %8425 = vmatpush2.msra.mxu0 0.0
      %8426 = vmatprep.subr.mxu0 0.0
      %8427 = vmatpush2.msra.mxu0 0.0
      %8428 = vmatprep.subr.mxu0 0.0
      %8429 = vmatpush2.msra.mxu0 0.0
      %8430 = vmatprep.subr.mxu0 0.0
      %8431 = vmatpush2.msra.mxu0 0.0
      %8432 = vmatprep.subr.mxu0 0.0
      %8433 = vmatpush2.msra.mxu0 0.0
      %8434 = vmatprep.subr.mxu0 0.0
      %8435 = vmatpush2.msra.mxu0 0.0
      %8436 = vmatprep.subr.mxu0 0.0
      %8437 = vmatpush2.msra.mxu0 0.0
      %8438 = vmatprep.subr.mxu0 0.0
      %8439 = vmatpush2.msra.mxu0 0.0
      %8440 = vmatprep.subr.mxu0 0.0
      %8441 = vmatpush2.msra.mxu0 0.0
      %8442 = vmatprep.subr.mxu0 0.0
      %8443 = vmatpush2.msra.mxu0 0.0
      %8444 = vmatprep.subr.mxu0 0.0
      %8445 = vmatpush2.msra.mxu0 0.0
      %8446 = vmatprep.subr.mxu0 0.0
      %8447 = vmatpush2.msra.mxu0 0.0
      %8448 = vmatprep.subr.mxu0 0.0
      %8449 = vmatpush2.msra.mxu0 0.0
      %8450 = vmatprep.subr.mxu0 0.0
      %8451 = vmatpush2.msra.mxu0 0.0
      %8452 = vmatprep.mubr.f32.mxu0 0.0
      %v8453 = vand.u32 %v7537, 4294901760
      %8454 = vmatmul.mubr.f32.gmra.mxu0 %v8453
      %v8455 = vpop.f32.mrf.mxu0
      %v8456 = vadd.f32 %v8253, %v8455
      %v8457 = vpop.f32.mrf.mxu0
      %8458 = vmatprep.mubr.f32.mxu0 0.0
      %v8459 = vand.u32 %v7540, 4294901760
      %8460 = vmatmul.mubr.f32.gmra.mxu0 %v8459
      %v8461 = vpop.f32.mrf.mxu0
      %v8462 = vadd.f32 %v8261, %v8461
      %v8463 = vpop.f32.mrf.mxu0
      %8464 = vmatprep.mubr.f32.mxu0 0.0
      %v8465 = vand.u32 %v7543, 4294901760
      %8466 = vmatmul.mubr.f32.gmra.mxu0 %v8465
      %v8467 = vpop.f32.mrf.mxu0
      %v8468 = vadd.f32 %v8269, %v8467
      %v8469 = vpop.f32.mrf.mxu0
      %8470 = vmatprep.mubr.f32.mxu0 0.0
      %v8471 = vand.u32 %v7546, 4294901760
      %8472 = vmatmul.mubr.f32.gmra.mxu0 %v8471
      %v8473 = vpop.f32.mrf.mxu0
      %v8474 = vadd.f32 %v8277, %v8473
      %v8475 = vpop.f32.mrf.mxu0
      %8476 = vmatprep.mubr.f32.mxu0 0.0
      %v8477 = vand.u32 %v7549, 4294901760
      %8478 = vmatmul.mubr.f32.gmra.mxu0 %v8477
      %v8479 = vpop.f32.mrf.mxu0
      %v8480 = vadd.f32 %v8285, %v8479
      %v8481 = vpop.f32.mrf.mxu0
      %8482 = vmatprep.mubr.f32.mxu0 0.0
      %v8483 = vand.u32 %v7552, 4294901760
      %8484 = vmatmul.mubr.f32.gmra.mxu0 %v8483
      %v8485 = vpop.f32.mrf.mxu0
      %v8486 = vadd.f32 %v8293, %v8485
      %v8487 = vpop.f32.mrf.mxu0
      %8488 = vmatprep.mubr.f32.mxu0 0.0
      %v8489 = vand.u32 %v7555, 4294901760
      %8490 = vmatmul.mubr.f32.gmra.mxu0 %v8489
      %v8491 = vpop.f32.mrf.mxu0
      %v8492 = vadd.f32 %v8301, %v8491
      %v8493 = vpop.f32.mrf.mxu0
      %8494 = vmatprep.mubr.f32.mxu0 0.0
      %v8495 = vand.u32 %v7558, 4294901760
      %8496 = vmatmul.mubr.f32.gmra.mxu0 %v8495
      %v8497 = vpop.f32.mrf.mxu0
      %v8498 = vadd.f32 %v8309, %v8497
      %v8499 = vpop.f32.mrf.mxu0
      %8500 = vmatprep.mubr.f32.mxu0 0.0
      %v8501 = vand.u32 %v7561, 4294901760
      %8502 = vmatmul.mubr.f32.gmra.mxu0 %v8501
      %v8503 = vpop.f32.mrf.mxu0
      %v8504 = vadd.f32 %v8317, %v8503
      %v8505 = vpop.f32.mrf.mxu0
      %8506 = vmatprep.mubr.f32.mxu0 0.0
      %v8507 = vand.u32 %v7564, 4294901760
      %8508 = vmatmul.mubr.f32.gmra.mxu0 %v8507
      %v8509 = vpop.f32.mrf.mxu0
      %v8510 = vadd.f32 %v8325, %v8509
      %v8511 = vpop.f32.mrf.mxu0
      %8512 = vmatprep.mubr.f32.mxu0 0.0
      %v8513 = vand.u32 %v7567, 4294901760
      %8514 = vmatmul.mubr.f32.gmra.mxu0 %v8513
      %v8515 = vpop.f32.mrf.mxu0
      %v8516 = vadd.f32 %v8333, %v8515
      %v8517 = vpop.f32.mrf.mxu0
      %8518 = vmatprep.mubr.f32.mxu0 0.0
      %v8519 = vand.u32 %v7570, 4294901760
      %8520 = vmatmul.mubr.f32.gmra.mxu0 %v8519
      %v8521 = vpop.f32.mrf.mxu0
      %v8522 = vadd.f32 %v8341, %v8521
      %v8523 = vpop.f32.mrf.mxu0
      %8524 = vmatprep.mubr.f32.mxu0 0.0
      %v8525 = vand.u32 %v7573, 4294901760
      %8526 = vmatmul.mubr.f32.gmra.mxu0 %v8525
      %v8527 = vpop.f32.mrf.mxu0
      %v8528 = vadd.f32 %v8349, %v8527
      %v8529 = vpop.f32.mrf.mxu0
      %8530 = vmatprep.mubr.f32.mxu0 0.0
      %v8531 = vand.u32 %v7576, 4294901760
      %8532 = vmatmul.mubr.f32.gmra.mxu0 %v8531
      %v8533 = vpop.f32.mrf.mxu0
      %v8534 = vadd.f32 %v8357, %v8533
      %v8535 = vpop.f32.mrf.mxu0
      %8536 = vmatprep.mubr.f32.mxu0 0.0
      %v8537 = vand.u32 %v7579, 4294901760
      %8538 = vmatmul.mubr.f32.gmra.mxu0 %v8537
      %v8539 = vpop.f32.mrf.mxu0
      %v8540 = vadd.f32 %v8365, %v8539
      %v8541 = vpop.f32.mrf.mxu0
      %8542 = vmatprep.mubr.f32.mxu0 0.0
      %v8543 = vand.u32 %v7582, 4294901760
      %8544 = vmatmul.mubr.f32.gmra.mxu0 %v8543
      %v8545 = vpop.f32.mrf.mxu0
      %v8546 = vadd.f32 %v8373, %v8545
      %v8547 = vpop.f32.mrf.mxu0
      %8548 = vdwg.mxu0
      %8549 = vmatprep.subr.mxu0 0.0
      %8550 = vmatpush1.msra.mxu0 0.0
      %8551 = vmatprep.subr.mxu0 0.0
      %8552 = vmatpush1.msra.mxu0 0.0
      %8553 = vmatprep.subr.mxu0 0.0
      %8554 = vmatpush1.msra.mxu0 0.0
      %8555 = vmatprep.subr.mxu0 0.0
      %8556 = vmatpush1.msra.mxu0 0.0
      %8557 = vmatprep.subr.mxu0 0.0
      %8558 = vmatpush1.msra.mxu0 0.0
      %8559 = vmatprep.subr.mxu0 0.0
      %8560 = vmatpush1.msra.mxu0 0.0
      %8561 = vmatprep.subr.mxu0 0.0
      %8562 = vmatpush1.msra.mxu0 0.0
      %8563 = vmatprep.subr.mxu0 0.0
      %8564 = vmatpush1.msra.mxu0 0.0
      %8565 = vmatprep.subr.mxu0 0.0
      %8566 = vmatpush1.msra.mxu0 0.0
      %8567 = vmatprep.subr.mxu0 0.0
      %8568 = vmatpush1.msra.mxu0 0.0
      %8569 = vmatprep.subr.mxu0 0.0
      %8570 = vmatpush1.msra.mxu0 0.0
      %8571 = vmatprep.subr.mxu0 0.0
      %8572 = vmatpush1.msra.mxu0 0.0
      %8573 = vmatprep.subr.mxu0 0.0
      %v8574 = vand.u32 %v7535, 4294901760
      %8575 = vmatpush1.msra.mxu0 %v8574
      %8576 = vmatprep.subr.mxu0 0.0
      %v8577 = vand.u32 %v7534, 4294901760
      %8578 = vmatpush1.msra.mxu0 %v8577
      %8579 = vmatprep.subr.mxu0 0.0
      %v8580 = vand.u32 %v7533, 4294901760
      %8581 = vmatpush1.msra.mxu0 %v8580
      %8582 = vmatprep.subr.mxu0 0.0
      %v8583 = vand.u32 %v7532, 4294901760
      %8584 = vmatpush1.msra.mxu0 %v8583
      %8585 = vmatprep.subr.mxu0 0.0
      %8586 = vmatpush2.msra.mxu0 0.0
      %8587 = vmatprep.subr.mxu0 0.0
      %8588 = vmatpush2.msra.mxu0 0.0
      %8589 = vmatprep.subr.mxu0 0.0
      %8590 = vmatpush2.msra.mxu0 0.0
      %8591 = vmatprep.subr.mxu0 0.0
      %8592 = vmatpush2.msra.mxu0 0.0
      %8593 = vmatprep.subr.mxu0 0.0
      %8594 = vmatpush2.msra.mxu0 0.0
      %8595 = vmatprep.subr.mxu0 0.0
      %8596 = vmatpush2.msra.mxu0 0.0
      %8597 = vmatprep.subr.mxu0 0.0
      %8598 = vmatpush2.msra.mxu0 0.0
      %8599 = vmatprep.subr.mxu0 0.0
      %8600 = vmatpush2.msra.mxu0 0.0
      %8601 = vmatprep.subr.mxu0 0.0
      %8602 = vmatpush2.msra.mxu0 0.0
      %8603 = vmatprep.subr.mxu0 0.0
      %8604 = vmatpush2.msra.mxu0 0.0
      %8605 = vmatprep.subr.mxu0 0.0
      %8606 = vmatpush2.msra.mxu0 0.0
      %8607 = vmatprep.subr.mxu0 0.0
      %8608 = vmatpush2.msra.mxu0 0.0
      %8609 = vmatprep.subr.mxu0 0.0
      %8610 = vmatpush2.msra.mxu0 0.0
      %8611 = vmatprep.subr.mxu0 0.0
      %8612 = vmatpush2.msra.mxu0 0.0
      %8613 = vmatprep.subr.mxu0 0.0
      %8614 = vmatpush2.msra.mxu0 0.0
      %8615 = vmatprep.subr.mxu0 0.0
      %8616 = vmatpush2.msra.mxu0 0.0
      %8617 = vmatprep.mubr.f32.mxu0 0.0
      %v8618 = vand.u32 %v7537, 4294901760
      %8619 = vmatmul.mubr.f32.gmra.mxu0 %v8618
      %v8620 = vpop.f32.mrf.mxu0
      %v8621 = vadd.f32 %v8456, %v8620
      %v8622 = vpop.f32.mrf.mxu0
      %8623 = vmatprep.mubr.f32.mxu0 0.0
      %v8624 = vand.u32 %v7540, 4294901760
      %8625 = vmatmul.mubr.f32.gmra.mxu0 %v8624
      %v8626 = vpop.f32.mrf.mxu0
      %v8627 = vadd.f32 %v8462, %v8626
      %v8628 = vpop.f32.mrf.mxu0
      %8629 = vmatprep.mubr.f32.mxu0 0.0
      %v8630 = vand.u32 %v7543, 4294901760
      %8631 = vmatmul.mubr.f32.gmra.mxu0 %v8630
      %v8632 = vpop.f32.mrf.mxu0
      %v8633 = vadd.f32 %v8468, %v8632
      %v8634 = vpop.f32.mrf.mxu0
      %8635 = vmatprep.mubr.f32.mxu0 0.0
      %v8636 = vand.u32 %v7546, 4294901760
      %8637 = vmatmul.mubr.f32.gmra.mxu0 %v8636
      %v8638 = vpop.f32.mrf.mxu0
      %v8639 = vadd.f32 %v8474, %v8638
      %v8640 = vpop.f32.mrf.mxu0
      %8641 = vmatprep.mubr.f32.mxu0 0.0
      %v8642 = vand.u32 %v7549, 4294901760
      %8643 = vmatmul.mubr.f32.gmra.mxu0 %v8642
      %v8644 = vpop.f32.mrf.mxu0
      %v8645 = vadd.f32 %v8480, %v8644
      %v8646 = vpop.f32.mrf.mxu0
      %8647 = vmatprep.mubr.f32.mxu0 0.0
      %v8648 = vand.u32 %v7552, 4294901760
      %8649 = vmatmul.mubr.f32.gmra.mxu0 %v8648
      %v8650 = vpop.f32.mrf.mxu0
      %v8651 = vadd.f32 %v8486, %v8650
      %v8652 = vpop.f32.mrf.mxu0
      %8653 = vmatprep.mubr.f32.mxu0 0.0
      %v8654 = vand.u32 %v7555, 4294901760
      %8655 = vmatmul.mubr.f32.gmra.mxu0 %v8654
      %v8656 = vpop.f32.mrf.mxu0
      %v8657 = vadd.f32 %v8492, %v8656
      %v8658 = vpop.f32.mrf.mxu0
      %8659 = vmatprep.mubr.f32.mxu0 0.0
      %v8660 = vand.u32 %v7558, 4294901760
      %8661 = vmatmul.mubr.f32.gmra.mxu0 %v8660
      %v8662 = vpop.f32.mrf.mxu0
      %v8663 = vadd.f32 %v8498, %v8662
      %v8664 = vpop.f32.mrf.mxu0
      %8665 = vmatprep.mubr.f32.mxu0 0.0
      %v8666 = vand.u32 %v7561, 4294901760
      %8667 = vmatmul.mubr.f32.gmra.mxu0 %v8666
      %v8668 = vpop.f32.mrf.mxu0
      %v8669 = vadd.f32 %v8504, %v8668
      %v8670 = vpop.f32.mrf.mxu0
      %8671 = vmatprep.mubr.f32.mxu0 0.0
      %v8672 = vand.u32 %v7564, 4294901760
      %8673 = vmatmul.mubr.f32.gmra.mxu0 %v8672
      %v8674 = vpop.f32.mrf.mxu0
      %v8675 = vadd.f32 %v8510, %v8674
      %v8676 = vpop.f32.mrf.mxu0
      %8677 = vmatprep.mubr.f32.mxu0 0.0
      %v8678 = vand.u32 %v7567, 4294901760
      %8679 = vmatmul.mubr.f32.gmra.mxu0 %v8678
      %v8680 = vpop.f32.mrf.mxu0
      %v8681 = vadd.f32 %v8516, %v8680
      %v8682 = vpop.f32.mrf.mxu0
      %8683 = vmatprep.mubr.f32.mxu0 0.0
      %v8684 = vand.u32 %v7570, 4294901760
      %8685 = vmatmul.mubr.f32.gmra.mxu0 %v8684
      %v8686 = vpop.f32.mrf.mxu0
      %v8687 = vadd.f32 %v8522, %v8686
      %v8688 = vpop.f32.mrf.mxu0
      %8689 = vmatprep.mubr.f32.mxu0 0.0
      %v8690 = vand.u32 %v7573, 4294901760
      %8691 = vmatmul.mubr.f32.gmra.mxu0 %v8690
      %v8692 = vpop.f32.mrf.mxu0
      %v8693 = vadd.f32 %v8528, %v8692
      %v8694 = vpop.f32.mrf.mxu0
      %8695 = vmatprep.mubr.f32.mxu0 0.0
      %v8696 = vand.u32 %v7576, 4294901760
      %8697 = vmatmul.mubr.f32.gmra.mxu0 %v8696
      %v8698 = vpop.f32.mrf.mxu0
      %v8699 = vadd.f32 %v8534, %v8698
      %v8700 = vpop.f32.mrf.mxu0
      %8701 = vmatprep.mubr.f32.mxu0 0.0
      %v8702 = vand.u32 %v7579, 4294901760
      %8703 = vmatmul.mubr.f32.gmra.mxu0 %v8702
      %v8704 = vpop.f32.mrf.mxu0
      %v8705 = vadd.f32 %v8540, %v8704
      %v8706 = vpop.f32.mrf.mxu0
      %8707 = vmatprep.mubr.f32.mxu0 0.0
      %v8708 = vand.u32 %v7582, 4294901760
      %8709 = vmatmul.mubr.f32.gmra.mxu0 %v8708
      %v8710 = vpop.f32.mrf.mxu0
      %v8711 = vadd.f32 %v8546, %v8710
      %v8712 = vpop.f32.mrf.mxu0
      %8713 = vdwg.mxu0
      %v8714 = vadd.f32 %v7499, %v8621
      %v8715 = vadd.f32 %v7500, %v8627
      %v8716 = vadd.f32 %v7501, %v8633
      %v8717 = vadd.f32 %v7502, %v8639
      %v8718 = vadd.f32 %v7503, %v8645
      %v8719 = vadd.f32 %v7504, %v8651
      %v8720 = vadd.f32 %v7505, %v8657
      %v8721 = vadd.f32 %v7506, %v8663
      %v8722 = vadd.f32 %v7507, %v8669
      %v8723 = vadd.f32 %v7508, %v8675
      %v8724 = vadd.f32 %v7509, %v8681
      %v8725 = vadd.f32 %v7510, %v8687
      %v8726 = vadd.f32 %v7511, %v8693
      %v8727 = vadd.f32 %v7512, %v8699
      %v8728 = vadd.f32 %v7513, %v8705
      %v8729 = vadd.f32 %v7514, %v8711
      %v8730 = vld [vmem:[#allocation4 + $0x2] sm:$0xff]
      %v8731 = vld [vmem:[#allocation4 + $0xa] sm:$0xff]
      %v8732 = vld [vmem:[#allocation4 + $0x12] sm:$0xff]
      %v8733 = vld [vmem:[#allocation4 + $0x1a] sm:$0xff]
      %v8734 = vld [vmem:[#allocation4 + $0x22] sm:$0xff]
      %v8735 = vld [vmem:[#allocation4 + $0x2a] sm:$0xff]
      %v8736 = vld [vmem:[#allocation4 + $0x32] sm:$0xff]
      %v8737 = vld [vmem:[#allocation4 + $0x3a] sm:$0xff]
      %v8738 = vld [vmem:[#allocation4 + $0x42] sm:$0xff]
      %v8739 = vld [vmem:[#allocation4 + $0x4a] sm:$0xff]
      %v8740 = vld [vmem:[#allocation4 + $0x52] sm:$0xff]
      %v8741 = vld [vmem:[#allocation4 + $0x5a] sm:$0xff]
      %v8742 = vld [vmem:[#allocation4 + $0x62] sm:$0xff]
      %v8743 = vld [vmem:[#allocation4 + $0x6a] sm:$0xff]
      %v8744 = vld [vmem:[#allocation4 + $0x72] sm:$0xff]
      %v8745 = vld [vmem:[#allocation4 + $0x7a] sm:$0xff]
      %s8746 = scalar_lea.vmem %s3, 64
      %v8747 = vld [vmem:[%s8746] sm:$0xff]
      %v8748 = vld [vmem:[%s8746 + $0x8] sm:$0xff]
      %v8749 = vld [vmem:[%s8746 + $0x10] sm:$0xff]
      %v8750 = vld [vmem:[%s8746 + $0x18] sm:$0xff]
      %v8752 = vsel %vm6101, %v8730, 0
      %v8755 = vsel %vm6101, %v8731, 0
      %v8758 = vsel %vm6101, %v8732, 0
      %v8761 = vsel %vm6101, %v8733, 0
      %v8764 = vsel %vm6101, %v8734, 0
      %v8767 = vsel %vm6101, %v8735, 0
      %v8770 = vsel %vm6101, %v8736, 0
      %v8773 = vsel %vm6101, %v8737, 0
      %v8776 = vsel %vm6101, %v8738, 0
      %v8779 = vsel %vm6101, %v8739, 0
      %v8782 = vsel %vm6101, %v8740, 0
      %v8785 = vsel %vm6101, %v8741, 0
      %v8788 = vsel %vm6101, %v8742, 0
      %v8791 = vsel %vm6101, %v8743, 0
      %v8794 = vsel %vm6101, %v8744, 0
      %v8797 = vsel %vm6101, %v8745, 0
      %8799 = vmatprep.subr.mxu0 0.0
      %8800 = vmatpush1.msra.mxu0 0.0
      %8801 = vmatprep.subr.mxu0 0.0
      %8802 = vmatpush1.msra.mxu0 0.0
      %8803 = vmatprep.subr.mxu0 0.0
      %8804 = vmatpush1.msra.mxu0 0.0
      %8805 = vmatprep.subr.mxu0 0.0
      %8806 = vmatpush1.msra.mxu0 0.0
      %8807 = vmatprep.subr.mxu0 0.0
      %8808 = vmatpush1.msra.mxu0 0.0
      %8809 = vmatprep.subr.mxu0 0.0
      %8810 = vmatpush1.msra.mxu0 0.0
      %8811 = vmatprep.subr.mxu0 0.0
      %8812 = vmatpush1.msra.mxu0 0.0
      %8813 = vmatprep.subr.mxu0 0.0
      %8814 = vmatpush1.msra.mxu0 0.0
      %8815 = vmatprep.subr.mxu0 0.0
      %8816 = vmatpush1.msra.mxu0 0.0
      %8817 = vmatprep.subr.mxu0 0.0
      %8818 = vmatpush1.msra.mxu0 0.0
      %8819 = vmatprep.subr.mxu0 0.0
      %8820 = vmatpush1.msra.mxu0 0.0
      %8821 = vmatprep.subr.mxu0 0.0
      %8822 = vmatpush1.msra.mxu0 0.0
      %8823 = vmatprep.subr.mxu0 0.0
      %v8824 = vand.u32 %v8750, 4294901760
      %8825 = vmatpush1.msra.mxu0 %v8824
      %8826 = vmatprep.subr.mxu0 0.0
      %v8827 = vand.u32 %v8749, 4294901760
      %8828 = vmatpush1.msra.mxu0 %v8827
      %8829 = vmatprep.subr.mxu0 0.0
      %v8830 = vand.u32 %v8748, 4294901760
      %8831 = vmatpush1.msra.mxu0 %v8830
      %8832 = vmatprep.subr.mxu0 0.0
      %v8833 = vand.u32 %v8747, 4294901760
      %8834 = vmatpush1.msra.mxu0 %v8833
      %8835 = vmatprep.subr.mxu0 0.0
      %8836 = vmatpush2.msra.mxu0 0.0
      %8837 = vmatprep.subr.mxu0 0.0
      %8838 = vmatpush2.msra.mxu0 0.0
      %8839 = vmatprep.subr.mxu0 0.0
      %8840 = vmatpush2.msra.mxu0 0.0
      %8841 = vmatprep.subr.mxu0 0.0
      %8842 = vmatpush2.msra.mxu0 0.0
      %8843 = vmatprep.subr.mxu0 0.0
      %8844 = vmatpush2.msra.mxu0 0.0
      %8845 = vmatprep.subr.mxu0 0.0
      %8846 = vmatpush2.msra.mxu0 0.0
      %8847 = vmatprep.subr.mxu0 0.0
      %8848 = vmatpush2.msra.mxu0 0.0
      %8849 = vmatprep.subr.mxu0 0.0
      %8850 = vmatpush2.msra.mxu0 0.0
      %8851 = vmatprep.subr.mxu0 0.0
      %8852 = vmatpush2.msra.mxu0 0.0
      %8853 = vmatprep.subr.mxu0 0.0
      %8854 = vmatpush2.msra.mxu0 0.0
      %8855 = vmatprep.subr.mxu0 0.0
      %8856 = vmatpush2.msra.mxu0 0.0
      %8857 = vmatprep.subr.mxu0 0.0
      %8858 = vmatpush2.msra.mxu0 0.0
      %8859 = vmatprep.subr.mxu0 0.0
      %8860 = vmatpush2.msra.mxu0 0.0
      %8861 = vmatprep.subr.mxu0 0.0
      %8862 = vmatpush2.msra.mxu0 0.0
      %8863 = vmatprep.subr.mxu0 0.0
      %8864 = vmatpush2.msra.mxu0 0.0
      %8865 = vmatprep.subr.mxu0 0.0
      %8866 = vmatpush2.msra.mxu0 0.0
      %8867 = vmatprep.mubr.f32.mxu0 0.0
      %v8868 = vand.u32 %v8752, 4294901760
      %v8869 = vsub.f32 %v8752, %v8868
      %v8870 = vand.u32 %v8869, 4294901760
      %v8871 = vsub.f32 %v8869, %v8870
      %v8872 = vand.u32 %v8871, 4294901760
      %8873 = vmatmul.mubr.f32.gmra.mxu0 %v8872
      %v8874 = vpop.f32.mrf.mxu0
      %v8875 = vadd.f32 0.0, %v8874
      %v8876 = vpop.f32.mrf.mxu0
      %8877 = vmatprep.mubr.f32.mxu0 0.0
      %v8878 = vand.u32 %v8755, 4294901760
      %v8879 = vsub.f32 %v8755, %v8878
      %v8880 = vand.u32 %v8879, 4294901760
      %v8881 = vsub.f32 %v8879, %v8880
      %v8882 = vand.u32 %v8881, 4294901760
      %8883 = vmatmul.mubr.f32.gmra.mxu0 %v8882
      %v8884 = vpop.f32.mrf.mxu0
      %v8885 = vadd.f32 0.0, %v8884
      %v8886 = vpop.f32.mrf.mxu0
      %8887 = vmatprep.mubr.f32.mxu0 0.0
      %v8888 = vand.u32 %v8758, 4294901760
      %v8889 = vsub.f32 %v8758, %v8888
      %v8890 = vand.u32 %v8889, 4294901760
      %v8891 = vsub.f32 %v8889, %v8890
      %v8892 = vand.u32 %v8891, 4294901760
      %8893 = vmatmul.mubr.f32.gmra.mxu0 %v8892
      %v8894 = vpop.f32.mrf.mxu0
      %v8895 = vadd.f32 0.0, %v8894
      %v8896 = vpop.f32.mrf.mxu0
      %8897 = vmatprep.mubr.f32.mxu0 0.0
      %v8898 = vand.u32 %v8761, 4294901760
      %v8899 = vsub.f32 %v8761, %v8898
      %v8900 = vand.u32 %v8899, 4294901760
      %v8901 = vsub.f32 %v8899, %v8900
      %v8902 = vand.u32 %v8901, 4294901760
      %8903 = vmatmul.mubr.f32.gmra.mxu0 %v8902
      %v8904 = vpop.f32.mrf.mxu0
      %v8905 = vadd.f32 0.0, %v8904
      %v8906 = vpop.f32.mrf.mxu0
      %8907 = vmatprep.mubr.f32.mxu0 0.0
      %v8908 = vand.u32 %v8764, 4294901760
      %v8909 = vsub.f32 %v8764, %v8908
      %v8910 = vand.u32 %v8909, 4294901760
      %v8911 = vsub.f32 %v8909, %v8910
      %v8912 = vand.u32 %v8911, 4294901760
      %8913 = vmatmul.mubr.f32.gmra.mxu0 %v8912
      %v8914 = vpop.f32.mrf.mxu0
      %v8915 = vadd.f32 0.0, %v8914
      %v8916 = vpop.f32.mrf.mxu0
      %8917 = vmatprep.mubr.f32.mxu0 0.0
      %v8918 = vand.u32 %v8767, 4294901760
      %v8919 = vsub.f32 %v8767, %v8918
      %v8920 = vand.u32 %v8919, 4294901760
      %v8921 = vsub.f32 %v8919, %v8920
      %v8922 = vand.u32 %v8921, 4294901760
      %8923 = vmatmul.mubr.f32.gmra.mxu0 %v8922
      %v8924 = vpop.f32.mrf.mxu0
      %v8925 = vadd.f32 0.0, %v8924
      %v8926 = vpop.f32.mrf.mxu0
      %8927 = vmatprep.mubr.f32.mxu0 0.0
      %v8928 = vand.u32 %v8770, 4294901760
      %v8929 = vsub.f32 %v8770, %v8928
      %v8930 = vand.u32 %v8929, 4294901760
      %v8931 = vsub.f32 %v8929, %v8930
      %v8932 = vand.u32 %v8931, 4294901760
      %8933 = vmatmul.mubr.f32.gmra.mxu0 %v8932
      %v8934 = vpop.f32.mrf.mxu0
      %v8935 = vadd.f32 0.0, %v8934
      %v8936 = vpop.f32.mrf.mxu0
      %8937 = vmatprep.mubr.f32.mxu0 0.0
      %v8938 = vand.u32 %v8773, 4294901760
      %v8939 = vsub.f32 %v8773, %v8938
      %v8940 = vand.u32 %v8939, 4294901760
      %v8941 = vsub.f32 %v8939, %v8940
      %v8942 = vand.u32 %v8941, 4294901760
      %8943 = vmatmul.mubr.f32.gmra.mxu0 %v8942
      %v8944 = vpop.f32.mrf.mxu0
      %v8945 = vadd.f32 0.0, %v8944
      %v8946 = vpop.f32.mrf.mxu0
      %8947 = vmatprep.mubr.f32.mxu0 0.0
      %v8948 = vand.u32 %v8776, 4294901760
      %v8949 = vsub.f32 %v8776, %v8948
      %v8950 = vand.u32 %v8949, 4294901760
      %v8951 = vsub.f32 %v8949, %v8950
      %v8952 = vand.u32 %v8951, 4294901760
      %8953 = vmatmul.mubr.f32.gmra.mxu0 %v8952
      %v8954 = vpop.f32.mrf.mxu0
      %v8955 = vadd.f32 0.0, %v8954
      %v8956 = vpop.f32.mrf.mxu0
      %8957 = vmatprep.mubr.f32.mxu0 0.0
      %v8958 = vand.u32 %v8779, 4294901760
      %v8959 = vsub.f32 %v8779, %v8958
      %v8960 = vand.u32 %v8959, 4294901760
      %v8961 = vsub.f32 %v8959, %v8960
      %v8962 = vand.u32 %v8961, 4294901760
      %8963 = vmatmul.mubr.f32.gmra.mxu0 %v8962
      %v8964 = vpop.f32.mrf.mxu0
      %v8965 = vadd.f32 0.0, %v8964
      %v8966 = vpop.f32.mrf.mxu0
      %8967 = vmatprep.mubr.f32.mxu0 0.0
      %v8968 = vand.u32 %v8782, 4294901760
      %v8969 = vsub.f32 %v8782, %v8968
      %v8970 = vand.u32 %v8969, 4294901760
      %v8971 = vsub.f32 %v8969, %v8970
      %v8972 = vand.u32 %v8971, 4294901760
      %8973 = vmatmul.mubr.f32.gmra.mxu0 %v8972
      %v8974 = vpop.f32.mrf.mxu0
      %v8975 = vadd.f32 0.0, %v8974
      %v8976 = vpop.f32.mrf.mxu0
      %8977 = vmatprep.mubr.f32.mxu0 0.0
      %v8978 = vand.u32 %v8785, 4294901760
      %v8979 = vsub.f32 %v8785, %v8978
      %v8980 = vand.u32 %v8979, 4294901760
      %v8981 = vsub.f32 %v8979, %v8980
      %v8982 = vand.u32 %v8981, 4294901760
      %8983 = vmatmul.mubr.f32.gmra.mxu0 %v8982
      %v8984 = vpop.f32.mrf.mxu0
      %v8985 = vadd.f32 0.0, %v8984
      %v8986 = vpop.f32.mrf.mxu0
      %8987 = vmatprep.mubr.f32.mxu0 0.0
      %v8988 = vand.u32 %v8788, 4294901760
      %v8989 = vsub.f32 %v8788, %v8988
      %v8990 = vand.u32 %v8989, 4294901760
      %v8991 = vsub.f32 %v8989, %v8990
      %v8992 = vand.u32 %v8991, 4294901760
      %8993 = vmatmul.mubr.f32.gmra.mxu0 %v8992
      %v8994 = vpop.f32.mrf.mxu0
      %v8995 = vadd.f32 0.0, %v8994
      %v8996 = vpop.f32.mrf.mxu0
      %8997 = vmatprep.mubr.f32.mxu0 0.0
      %v8998 = vand.u32 %v8791, 4294901760
      %v8999 = vsub.f32 %v8791, %v8998
      %v9000 = vand.u32 %v8999, 4294901760
      %v9001 = vsub.f32 %v8999, %v9000
      %v9002 = vand.u32 %v9001, 4294901760
      %9003 = vmatmul.mubr.f32.gmra.mxu0 %v9002
      %v9004 = vpop.f32.mrf.mxu0
      %v9005 = vadd.f32 0.0, %v9004
      %v9006 = vpop.f32.mrf.mxu0
      %9007 = vmatprep.mubr.f32.mxu0 0.0
      %v9008 = vand.u32 %v8794, 4294901760
      %v9009 = vsub.f32 %v8794, %v9008
      %v9010 = vand.u32 %v9009, 4294901760
      %v9011 = vsub.f32 %v9009, %v9010
      %v9012 = vand.u32 %v9011, 4294901760
      %9013 = vmatmul.mubr.f32.gmra.mxu0 %v9012
      %v9014 = vpop.f32.mrf.mxu0
      %v9015 = vadd.f32 0.0, %v9014
      %v9016 = vpop.f32.mrf.mxu0
      %9017 = vmatprep.mubr.f32.mxu0 0.0
      %v9018 = vand.u32 %v8797, 4294901760
      %v9019 = vsub.f32 %v8797, %v9018
      %v9020 = vand.u32 %v9019, 4294901760
      %v9021 = vsub.f32 %v9019, %v9020
      %v9022 = vand.u32 %v9021, 4294901760
      %9023 = vmatmul.mubr.f32.gmra.mxu0 %v9022
      %v9024 = vpop.f32.mrf.mxu0
      %v9025 = vadd.f32 0.0, %v9024
      %v9026 = vpop.f32.mrf.mxu0
      %9027 = vdwg.mxu0
      %9028 = vmatprep.subr.mxu0 0.0
      %9029 = vmatpush1.msra.mxu0 0.0
      %9030 = vmatprep.subr.mxu0 0.0
      %9031 = vmatpush1.msra.mxu0 0.0
      %9032 = vmatprep.subr.mxu0 0.0
      %9033 = vmatpush1.msra.mxu0 0.0
      %9034 = vmatprep.subr.mxu0 0.0
      %9035 = vmatpush1.msra.mxu0 0.0
      %9036 = vmatprep.subr.mxu0 0.0
      %9037 = vmatpush1.msra.mxu0 0.0
      %9038 = vmatprep.subr.mxu0 0.0
      %9039 = vmatpush1.msra.mxu0 0.0
      %9040 = vmatprep.subr.mxu0 0.0
      %9041 = vmatpush1.msra.mxu0 0.0
      %9042 = vmatprep.subr.mxu0 0.0
      %9043 = vmatpush1.msra.mxu0 0.0
      %9044 = vmatprep.subr.mxu0 0.0
      %9045 = vmatpush1.msra.mxu0 0.0
      %9046 = vmatprep.subr.mxu0 0.0
      %9047 = vmatpush1.msra.mxu0 0.0
      %9048 = vmatprep.subr.mxu0 0.0
      %9049 = vmatpush1.msra.mxu0 0.0
      %9050 = vmatprep.subr.mxu0 0.0
      %9051 = vmatpush1.msra.mxu0 0.0
      %9052 = vmatprep.subr.mxu0 0.0
      %v9053 = vand.u32 %v8750, 4294901760
      %v9054 = vsub.f32 %v8750, %v9053
      %v9055 = vand.u32 %v9054, 4294901760
      %v9056 = vsub.f32 %v9054, %v9055
      %v9057 = vand.u32 %v9056, 4294901760
      %9058 = vmatpush1.msra.mxu0 %v9057
      %9059 = vmatprep.subr.mxu0 0.0
      %v9060 = vand.u32 %v8749, 4294901760
      %v9061 = vsub.f32 %v8749, %v9060
      %v9062 = vand.u32 %v9061, 4294901760
      %v9063 = vsub.f32 %v9061, %v9062
      %v9064 = vand.u32 %v9063, 4294901760
      %9065 = vmatpush1.msra.mxu0 %v9064
      %9066 = vmatprep.subr.mxu0 0.0
      %v9067 = vand.u32 %v8748, 4294901760
      %v9068 = vsub.f32 %v8748, %v9067
      %v9069 = vand.u32 %v9068, 4294901760
      %v9070 = vsub.f32 %v9068, %v9069
      %v9071 = vand.u32 %v9070, 4294901760
      %9072 = vmatpush1.msra.mxu0 %v9071
      %9073 = vmatprep.subr.mxu0 0.0
      %v9074 = vand.u32 %v8747, 4294901760
      %v9075 = vsub.f32 %v8747, %v9074
      %v9076 = vand.u32 %v9075, 4294901760
      %v9077 = vsub.f32 %v9075, %v9076
      %v9078 = vand.u32 %v9077, 4294901760
      %9079 = vmatpush1.msra.mxu0 %v9078
      %9080 = vmatprep.subr.mxu0 0.0
      %9081 = vmatpush2.msra.mxu0 0.0
      %9082 = vmatprep.subr.mxu0 0.0
      %9083 = vmatpush2.msra.mxu0 0.0
      %9084 = vmatprep.subr.mxu0 0.0
      %9085 = vmatpush2.msra.mxu0 0.0
      %9086 = vmatprep.subr.mxu0 0.0
      %9087 = vmatpush2.msra.mxu0 0.0
      %9088 = vmatprep.subr.mxu0 0.0
      %9089 = vmatpush2.msra.mxu0 0.0
      %9090 = vmatprep.subr.mxu0 0.0
      %9091 = vmatpush2.msra.mxu0 0.0
      %9092 = vmatprep.subr.mxu0 0.0
      %9093 = vmatpush2.msra.mxu0 0.0
      %9094 = vmatprep.subr.mxu0 0.0
      %9095 = vmatpush2.msra.mxu0 0.0
      %9096 = vmatprep.subr.mxu0 0.0
      %9097 = vmatpush2.msra.mxu0 0.0
      %9098 = vmatprep.subr.mxu0 0.0
      %9099 = vmatpush2.msra.mxu0 0.0
      %9100 = vmatprep.subr.mxu0 0.0
      %9101 = vmatpush2.msra.mxu0 0.0
      %9102 = vmatprep.subr.mxu0 0.0
      %9103 = vmatpush2.msra.mxu0 0.0
      %9104 = vmatprep.subr.mxu0 0.0
      %9105 = vmatpush2.msra.mxu0 0.0
      %9106 = vmatprep.subr.mxu0 0.0
      %9107 = vmatpush2.msra.mxu0 0.0
      %9108 = vmatprep.subr.mxu0 0.0
      %9109 = vmatpush2.msra.mxu0 0.0
      %9110 = vmatprep.subr.mxu0 0.0
      %9111 = vmatpush2.msra.mxu0 0.0
      %9112 = vmatprep.mubr.f32.mxu0 0.0
      %v9113 = vand.u32 %v8752, 4294901760
      %9114 = vmatmul.mubr.f32.gmra.mxu0 %v9113
      %v9115 = vpop.f32.mrf.mxu0
      %v9116 = vadd.f32 %v8875, %v9115
      %v9117 = vpop.f32.mrf.mxu0
      %9118 = vmatprep.mubr.f32.mxu0 0.0
      %v9119 = vand.u32 %v8755, 4294901760
      %9120 = vmatmul.mubr.f32.gmra.mxu0 %v9119
      %v9121 = vpop.f32.mrf.mxu0
      %v9122 = vadd.f32 %v8885, %v9121
      %v9123 = vpop.f32.mrf.mxu0
      %9124 = vmatprep.mubr.f32.mxu0 0.0
      %v9125 = vand.u32 %v8758, 4294901760
      %9126 = vmatmul.mubr.f32.gmra.mxu0 %v9125
      %v9127 = vpop.f32.mrf.mxu0
      %v9128 = vadd.f32 %v8895, %v9127
      %v9129 = vpop.f32.mrf.mxu0
      %9130 = vmatprep.mubr.f32.mxu0 0.0
      %v9131 = vand.u32 %v8761, 4294901760
      %9132 = vmatmul.mubr.f32.gmra.mxu0 %v9131
      %v9133 = vpop.f32.mrf.mxu0
      %v9134 = vadd.f32 %v8905, %v9133
      %v9135 = vpop.f32.mrf.mxu0
      %9136 = vmatprep.mubr.f32.mxu0 0.0
      %v9137 = vand.u32 %v8764, 4294901760
      %9138 = vmatmul.mubr.f32.gmra.mxu0 %v9137
      %v9139 = vpop.f32.mrf.mxu0
      %v9140 = vadd.f32 %v8915, %v9139
      %v9141 = vpop.f32.mrf.mxu0
      %9142 = vmatprep.mubr.f32.mxu0 0.0
      %v9143 = vand.u32 %v8767, 4294901760
      %9144 = vmatmul.mubr.f32.gmra.mxu0 %v9143
      %v9145 = vpop.f32.mrf.mxu0
      %v9146 = vadd.f32 %v8925, %v9145
      %v9147 = vpop.f32.mrf.mxu0
      %9148 = vmatprep.mubr.f32.mxu0 0.0
      %v9149 = vand.u32 %v8770, 4294901760
      %9150 = vmatmul.mubr.f32.gmra.mxu0 %v9149
      %v9151 = vpop.f32.mrf.mxu0
      %v9152 = vadd.f32 %v8935, %v9151
      %v9153 = vpop.f32.mrf.mxu0
      %9154 = vmatprep.mubr.f32.mxu0 0.0
      %v9155 = vand.u32 %v8773, 4294901760
      %9156 = vmatmul.mubr.f32.gmra.mxu0 %v9155
      %v9157 = vpop.f32.mrf.mxu0
      %v9158 = vadd.f32 %v8945, %v9157
      %v9159 = vpop.f32.mrf.mxu0
      %9160 = vmatprep.mubr.f32.mxu0 0.0
      %v9161 = vand.u32 %v8776, 4294901760
      %9162 = vmatmul.mubr.f32.gmra.mxu0 %v9161
      %v9163 = vpop.f32.mrf.mxu0
      %v9164 = vadd.f32 %v8955, %v9163
      %v9165 = vpop.f32.mrf.mxu0
      %9166 = vmatprep.mubr.f32.mxu0 0.0
      %v9167 = vand.u32 %v8779, 4294901760
      %9168 = vmatmul.mubr.f32.gmra.mxu0 %v9167
      %v9169 = vpop.f32.mrf.mxu0
      %v9170 = vadd.f32 %v8965, %v9169
      %v9171 = vpop.f32.mrf.mxu0
      %9172 = vmatprep.mubr.f32.mxu0 0.0
      %v9173 = vand.u32 %v8782, 4294901760
      %9174 = vmatmul.mubr.f32.gmra.mxu0 %v9173
      %v9175 = vpop.f32.mrf.mxu0
      %v9176 = vadd.f32 %v8975, %v9175
      %v9177 = vpop.f32.mrf.mxu0
      %9178 = vmatprep.mubr.f32.mxu0 0.0
      %v9179 = vand.u32 %v8785, 4294901760
      %9180 = vmatmul.mubr.f32.gmra.mxu0 %v9179
      %v9181 = vpop.f32.mrf.mxu0
      %v9182 = vadd.f32 %v8985, %v9181
      %v9183 = vpop.f32.mrf.mxu0
      %9184 = vmatprep.mubr.f32.mxu0 0.0
      %v9185 = vand.u32 %v8788, 4294901760
      %9186 = vmatmul.mubr.f32.gmra.mxu0 %v9185
      %v9187 = vpop.f32.mrf.mxu0
      %v9188 = vadd.f32 %v8995, %v9187
      %v9189 = vpop.f32.mrf.mxu0
      %9190 = vmatprep.mubr.f32.mxu0 0.0
      %v9191 = vand.u32 %v8791, 4294901760
      %9192 = vmatmul.mubr.f32.gmra.mxu0 %v9191
      %v9193 = vpop.f32.mrf.mxu0
      %v9194 = vadd.f32 %v9005, %v9193
      %v9195 = vpop.f32.mrf.mxu0
      %9196 = vmatprep.mubr.f32.mxu0 0.0
      %v9197 = vand.u32 %v8794, 4294901760
      %9198 = vmatmul.mubr.f32.gmra.mxu0 %v9197
      %v9199 = vpop.f32.mrf.mxu0
      %v9200 = vadd.f32 %v9015, %v9199
      %v9201 = vpop.f32.mrf.mxu0
      %9202 = vmatprep.mubr.f32.mxu0 0.0
      %v9203 = vand.u32 %v8797, 4294901760
      %9204 = vmatmul.mubr.f32.gmra.mxu0 %v9203
      %v9205 = vpop.f32.mrf.mxu0
      %v9206 = vadd.f32 %v9025, %v9205
      %v9207 = vpop.f32.mrf.mxu0
      %9208 = vdwg.mxu0
      %9209 = vmatprep.subr.mxu0 0.0
      %9210 = vmatpush1.msra.mxu0 0.0
      %9211 = vmatprep.subr.mxu0 0.0
      %9212 = vmatpush1.msra.mxu0 0.0
      %9213 = vmatprep.subr.mxu0 0.0
      %9214 = vmatpush1.msra.mxu0 0.0
      %9215 = vmatprep.subr.mxu0 0.0
      %9216 = vmatpush1.msra.mxu0 0.0
      %9217 = vmatprep.subr.mxu0 0.0
      %9218 = vmatpush1.msra.mxu0 0.0
      %9219 = vmatprep.subr.mxu0 0.0
      %9220 = vmatpush1.msra.mxu0 0.0
      %9221 = vmatprep.subr.mxu0 0.0
      %9222 = vmatpush1.msra.mxu0 0.0
      %9223 = vmatprep.subr.mxu0 0.0
      %9224 = vmatpush1.msra.mxu0 0.0
      %9225 = vmatprep.subr.mxu0 0.0
      %9226 = vmatpush1.msra.mxu0 0.0
      %9227 = vmatprep.subr.mxu0 0.0
      %9228 = vmatpush1.msra.mxu0 0.0
      %9229 = vmatprep.subr.mxu0 0.0
      %9230 = vmatpush1.msra.mxu0 0.0
      %9231 = vmatprep.subr.mxu0 0.0
      %9232 = vmatpush1.msra.mxu0 0.0
      %9233 = vmatprep.subr.mxu0 0.0
      %v9234 = vand.u32 %v8750, 4294901760
      %v9235 = vsub.f32 %v8750, %v9234
      %9236 = vmatpush1.msra.mxu0 %v9235
      %9237 = vmatprep.subr.mxu0 0.0
      %v9238 = vand.u32 %v8749, 4294901760
      %v9239 = vsub.f32 %v8749, %v9238
      %9240 = vmatpush1.msra.mxu0 %v9239
      %9241 = vmatprep.subr.mxu0 0.0
      %v9242 = vand.u32 %v8748, 4294901760
      %v9243 = vsub.f32 %v8748, %v9242
      %9244 = vmatpush1.msra.mxu0 %v9243
      %9245 = vmatprep.subr.mxu0 0.0
      %v9246 = vand.u32 %v8747, 4294901760
      %v9247 = vsub.f32 %v8747, %v9246
      %9248 = vmatpush1.msra.mxu0 %v9247
      %9249 = vmatprep.subr.mxu0 0.0
      %9250 = vmatpush2.msra.mxu0 0.0
      %9251 = vmatprep.subr.mxu0 0.0
      %9252 = vmatpush2.msra.mxu0 0.0
      %9253 = vmatprep.subr.mxu0 0.0
      %9254 = vmatpush2.msra.mxu0 0.0
      %9255 = vmatprep.subr.mxu0 0.0
      %9256 = vmatpush2.msra.mxu0 0.0
      %9257 = vmatprep.subr.mxu0 0.0
      %9258 = vmatpush2.msra.mxu0 0.0
      %9259 = vmatprep.subr.mxu0 0.0
      %9260 = vmatpush2.msra.mxu0 0.0
      %9261 = vmatprep.subr.mxu0 0.0
      %9262 = vmatpush2.msra.mxu0 0.0
      %9263 = vmatprep.subr.mxu0 0.0
      %9264 = vmatpush2.msra.mxu0 0.0
      %9265 = vmatprep.subr.mxu0 0.0
      %9266 = vmatpush2.msra.mxu0 0.0
      %9267 = vmatprep.subr.mxu0 0.0
      %9268 = vmatpush2.msra.mxu0 0.0
      %9269 = vmatprep.subr.mxu0 0.0
      %9270 = vmatpush2.msra.mxu0 0.0
      %9271 = vmatprep.subr.mxu0 0.0
      %9272 = vmatpush2.msra.mxu0 0.0
      %9273 = vmatprep.subr.mxu0 0.0
      %9274 = vmatpush2.msra.mxu0 0.0
      %9275 = vmatprep.subr.mxu0 0.0
      %9276 = vmatpush2.msra.mxu0 0.0
      %9277 = vmatprep.subr.mxu0 0.0
      %9278 = vmatpush2.msra.mxu0 0.0
      %9279 = vmatprep.subr.mxu0 0.0
      %9280 = vmatpush2.msra.mxu0 0.0
      %9281 = vmatprep.mubr.f32.mxu0 0.0
      %v9282 = vand.u32 %v8752, 4294901760
      %v9283 = vsub.f32 %v8752, %v9282
      %9284 = vmatmul.mubr.f32.gmra.mxu0 %v9283
      %v9285 = vpop.f32.mrf.mxu0
      %v9286 = vadd.f32 %v9116, %v9285
      %v9287 = vpop.f32.mrf.mxu0
      %9288 = vmatprep.mubr.f32.mxu0 0.0
      %v9289 = vand.u32 %v8755, 4294901760
      %v9290 = vsub.f32 %v8755, %v9289
      %9291 = vmatmul.mubr.f32.gmra.mxu0 %v9290
      %v9292 = vpop.f32.mrf.mxu0
      %v9293 = vadd.f32 %v9122, %v9292
      %v9294 = vpop.f32.mrf.mxu0
      %9295 = vmatprep.mubr.f32.mxu0 0.0
      %v9296 = vand.u32 %v8758, 4294901760
      %v9297 = vsub.f32 %v8758, %v9296
      %9298 = vmatmul.mubr.f32.gmra.mxu0 %v9297
      %v9299 = vpop.f32.mrf.mxu0
      %v9300 = vadd.f32 %v9128, %v9299
      %v9301 = vpop.f32.mrf.mxu0
      %9302 = vmatprep.mubr.f32.mxu0 0.0
      %v9303 = vand.u32 %v8761, 4294901760
      %v9304 = vsub.f32 %v8761, %v9303
      %9305 = vmatmul.mubr.f32.gmra.mxu0 %v9304
      %v9306 = vpop.f32.mrf.mxu0
      %v9307 = vadd.f32 %v9134, %v9306
      %v9308 = vpop.f32.mrf.mxu0
      %9309 = vmatprep.mubr.f32.mxu0 0.0
      %v9310 = vand.u32 %v8764, 4294901760
      %v9311 = vsub.f32 %v8764, %v9310
      %9312 = vmatmul.mubr.f32.gmra.mxu0 %v9311
      %v9313 = vpop.f32.mrf.mxu0
      %v9314 = vadd.f32 %v9140, %v9313
      %v9315 = vpop.f32.mrf.mxu0
      %9316 = vmatprep.mubr.f32.mxu0 0.0
      %v9317 = vand.u32 %v8767, 4294901760
      %v9318 = vsub.f32 %v8767, %v9317
      %9319 = vmatmul.mubr.f32.gmra.mxu0 %v9318
      %v9320 = vpop.f32.mrf.mxu0
      %v9321 = vadd.f32 %v9146, %v9320
      %v9322 = vpop.f32.mrf.mxu0
      %9323 = vmatprep.mubr.f32.mxu0 0.0
      %v9324 = vand.u32 %v8770, 4294901760
      %v9325 = vsub.f32 %v8770, %v9324
      %9326 = vmatmul.mubr.f32.gmra.mxu0 %v9325
      %v9327 = vpop.f32.mrf.mxu0
      %v9328 = vadd.f32 %v9152, %v9327
      %v9329 = vpop.f32.mrf.mxu0
      %9330 = vmatprep.mubr.f32.mxu0 0.0
      %v9331 = vand.u32 %v8773, 4294901760
      %v9332 = vsub.f32 %v8773, %v9331
      %9333 = vmatmul.mubr.f32.gmra.mxu0 %v9332
      %v9334 = vpop.f32.mrf.mxu0
      %v9335 = vadd.f32 %v9158, %v9334
      %v9336 = vpop.f32.mrf.mxu0
      %9337 = vmatprep.mubr.f32.mxu0 0.0
      %v9338 = vand.u32 %v8776, 4294901760
      %v9339 = vsub.f32 %v8776, %v9338
      %9340 = vmatmul.mubr.f32.gmra.mxu0 %v9339
      %v9341 = vpop.f32.mrf.mxu0
      %v9342 = vadd.f32 %v9164, %v9341
      %v9343 = vpop.f32.mrf.mxu0
      %9344 = vmatprep.mubr.f32.mxu0 0.0
      %v9345 = vand.u32 %v8779, 4294901760
      %v9346 = vsub.f32 %v8779, %v9345
      %9347 = vmatmul.mubr.f32.gmra.mxu0 %v9346
      %v9348 = vpop.f32.mrf.mxu0
      %v9349 = vadd.f32 %v9170, %v9348
      %v9350 = vpop.f32.mrf.mxu0
      %9351 = vmatprep.mubr.f32.mxu0 0.0
      %v9352 = vand.u32 %v8782, 4294901760
      %v9353 = vsub.f32 %v8782, %v9352
      %9354 = vmatmul.mubr.f32.gmra.mxu0 %v9353
      %v9355 = vpop.f32.mrf.mxu0
      %v9356 = vadd.f32 %v9176, %v9355
      %v9357 = vpop.f32.mrf.mxu0
      %9358 = vmatprep.mubr.f32.mxu0 0.0
      %v9359 = vand.u32 %v8785, 4294901760
      %v9360 = vsub.f32 %v8785, %v9359
      %9361 = vmatmul.mubr.f32.gmra.mxu0 %v9360
      %v9362 = vpop.f32.mrf.mxu0
      %v9363 = vadd.f32 %v9182, %v9362
      %v9364 = vpop.f32.mrf.mxu0
      %9365 = vmatprep.mubr.f32.mxu0 0.0
      %v9366 = vand.u32 %v8788, 4294901760
      %v9367 = vsub.f32 %v8788, %v9366
      %9368 = vmatmul.mubr.f32.gmra.mxu0 %v9367
      %v9369 = vpop.f32.mrf.mxu0
      %v9370 = vadd.f32 %v9188, %v9369
      %v9371 = vpop.f32.mrf.mxu0
      %9372 = vmatprep.mubr.f32.mxu0 0.0
      %v9373 = vand.u32 %v8791, 4294901760
      %v9374 = vsub.f32 %v8791, %v9373
      %9375 = vmatmul.mubr.f32.gmra.mxu0 %v9374
      %v9376 = vpop.f32.mrf.mxu0
      %v9377 = vadd.f32 %v9194, %v9376
      %v9378 = vpop.f32.mrf.mxu0
      %9379 = vmatprep.mubr.f32.mxu0 0.0
      %v9380 = vand.u32 %v8794, 4294901760
      %v9381 = vsub.f32 %v8794, %v9380
      %9382 = vmatmul.mubr.f32.gmra.mxu0 %v9381
      %v9383 = vpop.f32.mrf.mxu0
      %v9384 = vadd.f32 %v9200, %v9383
      %v9385 = vpop.f32.mrf.mxu0
      %9386 = vmatprep.mubr.f32.mxu0 0.0
      %v9387 = vand.u32 %v8797, 4294901760
      %v9388 = vsub.f32 %v8797, %v9387
      %9389 = vmatmul.mubr.f32.gmra.mxu0 %v9388
      %v9390 = vpop.f32.mrf.mxu0
      %v9391 = vadd.f32 %v9206, %v9390
      %v9392 = vpop.f32.mrf.mxu0
      %9393 = vdwg.mxu0
      %9394 = vmatprep.subr.mxu0 0.0
      %9395 = vmatpush1.msra.mxu0 0.0
      %9396 = vmatprep.subr.mxu0 0.0
      %9397 = vmatpush1.msra.mxu0 0.0
      %9398 = vmatprep.subr.mxu0 0.0
      %9399 = vmatpush1.msra.mxu0 0.0
      %9400 = vmatprep.subr.mxu0 0.0
      %9401 = vmatpush1.msra.mxu0 0.0
      %9402 = vmatprep.subr.mxu0 0.0
      %9403 = vmatpush1.msra.mxu0 0.0
      %9404 = vmatprep.subr.mxu0 0.0
      %9405 = vmatpush1.msra.mxu0 0.0
      %9406 = vmatprep.subr.mxu0 0.0
      %9407 = vmatpush1.msra.mxu0 0.0
      %9408 = vmatprep.subr.mxu0 0.0
      %9409 = vmatpush1.msra.mxu0 0.0
      %9410 = vmatprep.subr.mxu0 0.0
      %9411 = vmatpush1.msra.mxu0 0.0
      %9412 = vmatprep.subr.mxu0 0.0
      %9413 = vmatpush1.msra.mxu0 0.0
      %9414 = vmatprep.subr.mxu0 0.0
      %9415 = vmatpush1.msra.mxu0 0.0
      %9416 = vmatprep.subr.mxu0 0.0
      %9417 = vmatpush1.msra.mxu0 0.0
      %9418 = vmatprep.subr.mxu0 0.0
      %v9419 = vand.u32 %v8750, 4294901760
      %9420 = vmatpush1.msra.mxu0 %v9419
      %9421 = vmatprep.subr.mxu0 0.0
      %v9422 = vand.u32 %v8749, 4294901760
      %9423 = vmatpush1.msra.mxu0 %v9422
      %9424 = vmatprep.subr.mxu0 0.0
      %v9425 = vand.u32 %v8748, 4294901760
      %9426 = vmatpush1.msra.mxu0 %v9425
      %9427 = vmatprep.subr.mxu0 0.0
      %v9428 = vand.u32 %v8747, 4294901760
      %9429 = vmatpush1.msra.mxu0 %v9428
      %9430 = vmatprep.subr.mxu0 0.0
      %9431 = vmatpush2.msra.mxu0 0.0
      %9432 = vmatprep.subr.mxu0 0.0
      %9433 = vmatpush2.msra.mxu0 0.0
      %9434 = vmatprep.subr.mxu0 0.0
      %9435 = vmatpush2.msra.mxu0 0.0
      %9436 = vmatprep.subr.mxu0 0.0
      %9437 = vmatpush2.msra.mxu0 0.0
      %9438 = vmatprep.subr.mxu0 0.0
      %9439 = vmatpush2.msra.mxu0 0.0
      %9440 = vmatprep.subr.mxu0 0.0
      %9441 = vmatpush2.msra.mxu0 0.0
      %9442 = vmatprep.subr.mxu0 0.0
      %9443 = vmatpush2.msra.mxu0 0.0
      %9444 = vmatprep.subr.mxu0 0.0
      %9445 = vmatpush2.msra.mxu0 0.0
      %9446 = vmatprep.subr.mxu0 0.0
      %9447 = vmatpush2.msra.mxu0 0.0
      %9448 = vmatprep.subr.mxu0 0.0
      %9449 = vmatpush2.msra.mxu0 0.0
      %9450 = vmatprep.subr.mxu0 0.0
      %9451 = vmatpush2.msra.mxu0 0.0
      %9452 = vmatprep.subr.mxu0 0.0
      %9453 = vmatpush2.msra.mxu0 0.0
      %9454 = vmatprep.subr.mxu0 0.0
      %9455 = vmatpush2.msra.mxu0 0.0
      %9456 = vmatprep.subr.mxu0 0.0
      %9457 = vmatpush2.msra.mxu0 0.0
      %9458 = vmatprep.subr.mxu0 0.0
      %9459 = vmatpush2.msra.mxu0 0.0
      %9460 = vmatprep.subr.mxu0 0.0
      %9461 = vmatpush2.msra.mxu0 0.0
      %9462 = vmatprep.mubr.f32.mxu0 0.0
      %v9463 = vand.u32 %v8752, 4294901760
      %v9464 = vsub.f32 %v8752, %v9463
      %v9465 = vand.u32 %v9464, 4294901760
      %9466 = vmatmul.mubr.f32.gmra.mxu0 %v9465
      %v9467 = vpop.f32.mrf.mxu0
      %v9468 = vadd.f32 %v9286, %v9467
      %v9469 = vpop.f32.mrf.mxu0
      %9470 = vmatprep.mubr.f32.mxu0 0.0
      %v9471 = vand.u32 %v8755, 4294901760
      %v9472 = vsub.f32 %v8755, %v9471
      %v9473 = vand.u32 %v9472, 4294901760
      %9474 = vmatmul.mubr.f32.gmra.mxu0 %v9473
      %v9475 = vpop.f32.mrf.mxu0
      %v9476 = vadd.f32 %v9293, %v9475
      %v9477 = vpop.f32.mrf.mxu0
      %9478 = vmatprep.mubr.f32.mxu0 0.0
      %v9479 = vand.u32 %v8758, 4294901760
      %v9480 = vsub.f32 %v8758, %v9479
      %v9481 = vand.u32 %v9480, 4294901760
      %9482 = vmatmul.mubr.f32.gmra.mxu0 %v9481
      %v9483 = vpop.f32.mrf.mxu0
      %v9484 = vadd.f32 %v9300, %v9483
      %v9485 = vpop.f32.mrf.mxu0
      %9486 = vmatprep.mubr.f32.mxu0 0.0
      %v9487 = vand.u32 %v8761, 4294901760
      %v9488 = vsub.f32 %v8761, %v9487
      %v9489 = vand.u32 %v9488, 4294901760
      %9490 = vmatmul.mubr.f32.gmra.mxu0 %v9489
      %v9491 = vpop.f32.mrf.mxu0
      %v9492 = vadd.f32 %v9307, %v9491
      %v9493 = vpop.f32.mrf.mxu0
      %9494 = vmatprep.mubr.f32.mxu0 0.0
      %v9495 = vand.u32 %v8764, 4294901760
      %v9496 = vsub.f32 %v8764, %v9495
      %v9497 = vand.u32 %v9496, 4294901760
      %9498 = vmatmul.mubr.f32.gmra.mxu0 %v9497
      %v9499 = vpop.f32.mrf.mxu0
      %v9500 = vadd.f32 %v9314, %v9499
      %v9501 = vpop.f32.mrf.mxu0
      %9502 = vmatprep.mubr.f32.mxu0 0.0
      %v9503 = vand.u32 %v8767, 4294901760
      %v9504 = vsub.f32 %v8767, %v9503
      %v9505 = vand.u32 %v9504, 4294901760
      %9506 = vmatmul.mubr.f32.gmra.mxu0 %v9505
      %v9507 = vpop.f32.mrf.mxu0
      %v9508 = vadd.f32 %v9321, %v9507
      %v9509 = vpop.f32.mrf.mxu0
      %9510 = vmatprep.mubr.f32.mxu0 0.0
      %v9511 = vand.u32 %v8770, 4294901760
      %v9512 = vsub.f32 %v8770, %v9511
      %v9513 = vand.u32 %v9512, 4294901760
      %9514 = vmatmul.mubr.f32.gmra.mxu0 %v9513
      %v9515 = vpop.f32.mrf.mxu0
      %v9516 = vadd.f32 %v9328, %v9515
      %v9517 = vpop.f32.mrf.mxu0
      %9518 = vmatprep.mubr.f32.mxu0 0.0
      %v9519 = vand.u32 %v8773, 4294901760
      %v9520 = vsub.f32 %v8773, %v9519
      %v9521 = vand.u32 %v9520, 4294901760
      %9522 = vmatmul.mubr.f32.gmra.mxu0 %v9521
      %v9523 = vpop.f32.mrf.mxu0
      %v9524 = vadd.f32 %v9335, %v9523
      %v9525 = vpop.f32.mrf.mxu0
      %9526 = vmatprep.mubr.f32.mxu0 0.0
      %v9527 = vand.u32 %v8776, 4294901760
      %v9528 = vsub.f32 %v8776, %v9527
      %v9529 = vand.u32 %v9528, 4294901760
      %9530 = vmatmul.mubr.f32.gmra.mxu0 %v9529
      %v9531 = vpop.f32.mrf.mxu0
      %v9532 = vadd.f32 %v9342, %v9531
      %v9533 = vpop.f32.mrf.mxu0
      %9534 = vmatprep.mubr.f32.mxu0 0.0
      %v9535 = vand.u32 %v8779, 4294901760
      %v9536 = vsub.f32 %v8779, %v9535
      %v9537 = vand.u32 %v9536, 4294901760
      %9538 = vmatmul.mubr.f32.gmra.mxu0 %v9537
      %v9539 = vpop.f32.mrf.mxu0
      %v9540 = vadd.f32 %v9349, %v9539
      %v9541 = vpop.f32.mrf.mxu0
      %9542 = vmatprep.mubr.f32.mxu0 0.0
      %v9543 = vand.u32 %v8782, 4294901760
      %v9544 = vsub.f32 %v8782, %v9543
      %v9545 = vand.u32 %v9544, 4294901760
      %9546 = vmatmul.mubr.f32.gmra.mxu0 %v9545
      %v9547 = vpop.f32.mrf.mxu0
      %v9548 = vadd.f32 %v9356, %v9547
      %v9549 = vpop.f32.mrf.mxu0
      %9550 = vmatprep.mubr.f32.mxu0 0.0
      %v9551 = vand.u32 %v8785, 4294901760
      %v9552 = vsub.f32 %v8785, %v9551
      %v9553 = vand.u32 %v9552, 4294901760
      %9554 = vmatmul.mubr.f32.gmra.mxu0 %v9553
      %v9555 = vpop.f32.mrf.mxu0
      %v9556 = vadd.f32 %v9363, %v9555
      %v9557 = vpop.f32.mrf.mxu0
      %9558 = vmatprep.mubr.f32.mxu0 0.0
      %v9559 = vand.u32 %v8788, 4294901760
      %v9560 = vsub.f32 %v8788, %v9559
      %v9561 = vand.u32 %v9560, 4294901760
      %9562 = vmatmul.mubr.f32.gmra.mxu0 %v9561
      %v9563 = vpop.f32.mrf.mxu0
      %v9564 = vadd.f32 %v9370, %v9563
      %v9565 = vpop.f32.mrf.mxu0
      %9566 = vmatprep.mubr.f32.mxu0 0.0
      %v9567 = vand.u32 %v8791, 4294901760
      %v9568 = vsub.f32 %v8791, %v9567
      %v9569 = vand.u32 %v9568, 4294901760
      %9570 = vmatmul.mubr.f32.gmra.mxu0 %v9569
      %v9571 = vpop.f32.mrf.mxu0
      %v9572 = vadd.f32 %v9377, %v9571
      %v9573 = vpop.f32.mrf.mxu0
      %9574 = vmatprep.mubr.f32.mxu0 0.0
      %v9575 = vand.u32 %v8794, 4294901760
      %v9576 = vsub.f32 %v8794, %v9575
      %v9577 = vand.u32 %v9576, 4294901760
      %9578 = vmatmul.mubr.f32.gmra.mxu0 %v9577
      %v9579 = vpop.f32.mrf.mxu0
      %v9580 = vadd.f32 %v9384, %v9579
      %v9581 = vpop.f32.mrf.mxu0
      %9582 = vmatprep.mubr.f32.mxu0 0.0
      %v9583 = vand.u32 %v8797, 4294901760
      %v9584 = vsub.f32 %v8797, %v9583
      %v9585 = vand.u32 %v9584, 4294901760
      %9586 = vmatmul.mubr.f32.gmra.mxu0 %v9585
      %v9587 = vpop.f32.mrf.mxu0
      %v9588 = vadd.f32 %v9391, %v9587
      %v9589 = vpop.f32.mrf.mxu0
      %9590 = vdwg.mxu0
      %9591 = vmatprep.subr.mxu0 0.0
      %9592 = vmatpush1.msra.mxu0 0.0
      %9593 = vmatprep.subr.mxu0 0.0
      %9594 = vmatpush1.msra.mxu0 0.0
      %9595 = vmatprep.subr.mxu0 0.0
      %9596 = vmatpush1.msra.mxu0 0.0
      %9597 = vmatprep.subr.mxu0 0.0
      %9598 = vmatpush1.msra.mxu0 0.0
      %9599 = vmatprep.subr.mxu0 0.0
      %9600 = vmatpush1.msra.mxu0 0.0
      %9601 = vmatprep.subr.mxu0 0.0
      %9602 = vmatpush1.msra.mxu0 0.0
      %9603 = vmatprep.subr.mxu0 0.0
      %9604 = vmatpush1.msra.mxu0 0.0
      %9605 = vmatprep.subr.mxu0 0.0
      %9606 = vmatpush1.msra.mxu0 0.0
      %9607 = vmatprep.subr.mxu0 0.0
      %9608 = vmatpush1.msra.mxu0 0.0
      %9609 = vmatprep.subr.mxu0 0.0
      %9610 = vmatpush1.msra.mxu0 0.0
      %9611 = vmatprep.subr.mxu0 0.0
      %9612 = vmatpush1.msra.mxu0 0.0
      %9613 = vmatprep.subr.mxu0 0.0
      %9614 = vmatpush1.msra.mxu0 0.0
      %9615 = vmatprep.subr.mxu0 0.0
      %v9616 = vand.u32 %v8750, 4294901760
      %v9617 = vsub.f32 %v8750, %v9616
      %v9618 = vand.u32 %v9617, 4294901760
      %9619 = vmatpush1.msra.mxu0 %v9618
      %9620 = vmatprep.subr.mxu0 0.0
      %v9621 = vand.u32 %v8749, 4294901760
      %v9622 = vsub.f32 %v8749, %v9621
      %v9623 = vand.u32 %v9622, 4294901760
      %9624 = vmatpush1.msra.mxu0 %v9623
      %9625 = vmatprep.subr.mxu0 0.0
      %v9626 = vand.u32 %v8748, 4294901760
      %v9627 = vsub.f32 %v8748, %v9626
      %v9628 = vand.u32 %v9627, 4294901760
      %9629 = vmatpush1.msra.mxu0 %v9628
      %9630 = vmatprep.subr.mxu0 0.0
      %v9631 = vand.u32 %v8747, 4294901760
      %v9632 = vsub.f32 %v8747, %v9631
      %v9633 = vand.u32 %v9632, 4294901760
      %9634 = vmatpush1.msra.mxu0 %v9633
      %9635 = vmatprep.subr.mxu0 0.0
      %9636 = vmatpush2.msra.mxu0 0.0
      %9637 = vmatprep.subr.mxu0 0.0
      %9638 = vmatpush2.msra.mxu0 0.0
      %9639 = vmatprep.subr.mxu0 0.0
      %9640 = vmatpush2.msra.mxu0 0.0
      %9641 = vmatprep.subr.mxu0 0.0
      %9642 = vmatpush2.msra.mxu0 0.0
      %9643 = vmatprep.subr.mxu0 0.0
      %9644 = vmatpush2.msra.mxu0 0.0
      %9645 = vmatprep.subr.mxu0 0.0
      %9646 = vmatpush2.msra.mxu0 0.0
      %9647 = vmatprep.subr.mxu0 0.0
      %9648 = vmatpush2.msra.mxu0 0.0
      %9649 = vmatprep.subr.mxu0 0.0
      %9650 = vmatpush2.msra.mxu0 0.0
      %9651 = vmatprep.subr.mxu0 0.0
      %9652 = vmatpush2.msra.mxu0 0.0
      %9653 = vmatprep.subr.mxu0 0.0
      %9654 = vmatpush2.msra.mxu0 0.0
      %9655 = vmatprep.subr.mxu0 0.0
      %9656 = vmatpush2.msra.mxu0 0.0
      %9657 = vmatprep.subr.mxu0 0.0
      %9658 = vmatpush2.msra.mxu0 0.0
      %9659 = vmatprep.subr.mxu0 0.0
      %9660 = vmatpush2.msra.mxu0 0.0
      %9661 = vmatprep.subr.mxu0 0.0
      %9662 = vmatpush2.msra.mxu0 0.0
      %9663 = vmatprep.subr.mxu0 0.0
      %9664 = vmatpush2.msra.mxu0 0.0
      %9665 = vmatprep.subr.mxu0 0.0
      %9666 = vmatpush2.msra.mxu0 0.0
      %9667 = vmatprep.mubr.f32.mxu0 0.0
      %v9668 = vand.u32 %v8752, 4294901760
      %9669 = vmatmul.mubr.f32.gmra.mxu0 %v9668
      %v9670 = vpop.f32.mrf.mxu0
      %v9671 = vadd.f32 %v9468, %v9670
      %v9672 = vpop.f32.mrf.mxu0
      %9673 = vmatprep.mubr.f32.mxu0 0.0
      %v9674 = vand.u32 %v8755, 4294901760
      %9675 = vmatmul.mubr.f32.gmra.mxu0 %v9674
      %v9676 = vpop.f32.mrf.mxu0
      %v9677 = vadd.f32 %v9476, %v9676
      %v9678 = vpop.f32.mrf.mxu0
      %9679 = vmatprep.mubr.f32.mxu0 0.0
      %v9680 = vand.u32 %v8758, 4294901760
      %9681 = vmatmul.mubr.f32.gmra.mxu0 %v9680
      %v9682 = vpop.f32.mrf.mxu0
      %v9683 = vadd.f32 %v9484, %v9682
      %v9684 = vpop.f32.mrf.mxu0
      %9685 = vmatprep.mubr.f32.mxu0 0.0
      %v9686 = vand.u32 %v8761, 4294901760
      %9687 = vmatmul.mubr.f32.gmra.mxu0 %v9686
      %v9688 = vpop.f32.mrf.mxu0
      %v9689 = vadd.f32 %v9492, %v9688
      %v9690 = vpop.f32.mrf.mxu0
      %9691 = vmatprep.mubr.f32.mxu0 0.0
      %v9692 = vand.u32 %v8764, 4294901760
      %9693 = vmatmul.mubr.f32.gmra.mxu0 %v9692
      %v9694 = vpop.f32.mrf.mxu0
      %v9695 = vadd.f32 %v9500, %v9694
      %v9696 = vpop.f32.mrf.mxu0
      %9697 = vmatprep.mubr.f32.mxu0 0.0
      %v9698 = vand.u32 %v8767, 4294901760
      %9699 = vmatmul.mubr.f32.gmra.mxu0 %v9698
      %v9700 = vpop.f32.mrf.mxu0
      %v9701 = vadd.f32 %v9508, %v9700
      %v9702 = vpop.f32.mrf.mxu0
      %9703 = vmatprep.mubr.f32.mxu0 0.0
      %v9704 = vand.u32 %v8770, 4294901760
      %9705 = vmatmul.mubr.f32.gmra.mxu0 %v9704
      %v9706 = vpop.f32.mrf.mxu0
      %v9707 = vadd.f32 %v9516, %v9706
      %v9708 = vpop.f32.mrf.mxu0
      %9709 = vmatprep.mubr.f32.mxu0 0.0
      %v9710 = vand.u32 %v8773, 4294901760
      %9711 = vmatmul.mubr.f32.gmra.mxu0 %v9710
      %v9712 = vpop.f32.mrf.mxu0
      %v9713 = vadd.f32 %v9524, %v9712
      %v9714 = vpop.f32.mrf.mxu0
      %9715 = vmatprep.mubr.f32.mxu0 0.0
      %v9716 = vand.u32 %v8776, 4294901760
      %9717 = vmatmul.mubr.f32.gmra.mxu0 %v9716
      %v9718 = vpop.f32.mrf.mxu0
      %v9719 = vadd.f32 %v9532, %v9718
      %v9720 = vpop.f32.mrf.mxu0
      %9721 = vmatprep.mubr.f32.mxu0 0.0
      %v9722 = vand.u32 %v8779, 4294901760
      %9723 = vmatmul.mubr.f32.gmra.mxu0 %v9722
      %v9724 = vpop.f32.mrf.mxu0
      %v9725 = vadd.f32 %v9540, %v9724
      %v9726 = vpop.f32.mrf.mxu0
      %9727 = vmatprep.mubr.f32.mxu0 0.0
      %v9728 = vand.u32 %v8782, 4294901760
      %9729 = vmatmul.mubr.f32.gmra.mxu0 %v9728
      %v9730 = vpop.f32.mrf.mxu0
      %v9731 = vadd.f32 %v9548, %v9730
      %v9732 = vpop.f32.mrf.mxu0
      %9733 = vmatprep.mubr.f32.mxu0 0.0
      %v9734 = vand.u32 %v8785, 4294901760
      %9735 = vmatmul.mubr.f32.gmra.mxu0 %v9734
      %v9736 = vpop.f32.mrf.mxu0
      %v9737 = vadd.f32 %v9556, %v9736
      %v9738 = vpop.f32.mrf.mxu0
      %9739 = vmatprep.mubr.f32.mxu0 0.0
      %v9740 = vand.u32 %v8788, 4294901760
      %9741 = vmatmul.mubr.f32.gmra.mxu0 %v9740
      %v9742 = vpop.f32.mrf.mxu0
      %v9743 = vadd.f32 %v9564, %v9742
      %v9744 = vpop.f32.mrf.mxu0
      %9745 = vmatprep.mubr.f32.mxu0 0.0
      %v9746 = vand.u32 %v8791, 4294901760
      %9747 = vmatmul.mubr.f32.gmra.mxu0 %v9746
      %v9748 = vpop.f32.mrf.mxu0
      %v9749 = vadd.f32 %v9572, %v9748
      %v9750 = vpop.f32.mrf.mxu0
      %9751 = vmatprep.mubr.f32.mxu0 0.0
      %v9752 = vand.u32 %v8794, 4294901760
      %9753 = vmatmul.mubr.f32.gmra.mxu0 %v9752
      %v9754 = vpop.f32.mrf.mxu0
      %v9755 = vadd.f32 %v9580, %v9754
      %v9756 = vpop.f32.mrf.mxu0
      %9757 = vmatprep.mubr.f32.mxu0 0.0
      %v9758 = vand.u32 %v8797, 4294901760
      %9759 = vmatmul.mubr.f32.gmra.mxu0 %v9758
      %v9760 = vpop.f32.mrf.mxu0
      %v9761 = vadd.f32 %v9588, %v9760
      %v9762 = vpop.f32.mrf.mxu0
      %9763 = vdwg.mxu0
      %9764 = vmatprep.subr.mxu0 0.0
      %9765 = vmatpush1.msra.mxu0 0.0
      %9766 = vmatprep.subr.mxu0 0.0
      %9767 = vmatpush1.msra.mxu0 0.0
      %9768 = vmatprep.subr.mxu0 0.0
      %9769 = vmatpush1.msra.mxu0 0.0
      %9770 = vmatprep.subr.mxu0 0.0
      %9771 = vmatpush1.msra.mxu0 0.0
      %9772 = vmatprep.subr.mxu0 0.0
      %9773 = vmatpush1.msra.mxu0 0.0
      %9774 = vmatprep.subr.mxu0 0.0
      %9775 = vmatpush1.msra.mxu0 0.0
      %9776 = vmatprep.subr.mxu0 0.0
      %9777 = vmatpush1.msra.mxu0 0.0
      %9778 = vmatprep.subr.mxu0 0.0
      %9779 = vmatpush1.msra.mxu0 0.0
      %9780 = vmatprep.subr.mxu0 0.0
      %9781 = vmatpush1.msra.mxu0 0.0
      %9782 = vmatprep.subr.mxu0 0.0
      %9783 = vmatpush1.msra.mxu0 0.0
      %9784 = vmatprep.subr.mxu0 0.0
      %9785 = vmatpush1.msra.mxu0 0.0
      %9786 = vmatprep.subr.mxu0 0.0
      %9787 = vmatpush1.msra.mxu0 0.0
      %9788 = vmatprep.subr.mxu0 0.0
      %v9789 = vand.u32 %v8750, 4294901760
      %9790 = vmatpush1.msra.mxu0 %v9789
      %9791 = vmatprep.subr.mxu0 0.0
      %v9792 = vand.u32 %v8749, 4294901760
      %9793 = vmatpush1.msra.mxu0 %v9792
      %9794 = vmatprep.subr.mxu0 0.0
      %v9795 = vand.u32 %v8748, 4294901760
      %9796 = vmatpush1.msra.mxu0 %v9795
      %9797 = vmatprep.subr.mxu0 0.0
      %v9798 = vand.u32 %v8747, 4294901760
      %9799 = vmatpush1.msra.mxu0 %v9798
      %9800 = vmatprep.subr.mxu0 0.0
      %9801 = vmatpush2.msra.mxu0 0.0
      %9802 = vmatprep.subr.mxu0 0.0
      %9803 = vmatpush2.msra.mxu0 0.0
      %9804 = vmatprep.subr.mxu0 0.0
      %9805 = vmatpush2.msra.mxu0 0.0
      %9806 = vmatprep.subr.mxu0 0.0
      %9807 = vmatpush2.msra.mxu0 0.0
      %9808 = vmatprep.subr.mxu0 0.0
      %9809 = vmatpush2.msra.mxu0 0.0
      %9810 = vmatprep.subr.mxu0 0.0
      %9811 = vmatpush2.msra.mxu0 0.0
      %9812 = vmatprep.subr.mxu0 0.0
      %9813 = vmatpush2.msra.mxu0 0.0
      %9814 = vmatprep.subr.mxu0 0.0
      %9815 = vmatpush2.msra.mxu0 0.0
      %9816 = vmatprep.subr.mxu0 0.0
      %9817 = vmatpush2.msra.mxu0 0.0
      %9818 = vmatprep.subr.mxu0 0.0
      %9819 = vmatpush2.msra.mxu0 0.0
      %9820 = vmatprep.subr.mxu0 0.0
      %9821 = vmatpush2.msra.mxu0 0.0
      %9822 = vmatprep.subr.mxu0 0.0
      %9823 = vmatpush2.msra.mxu0 0.0
      %9824 = vmatprep.subr.mxu0 0.0
      %9825 = vmatpush2.msra.mxu0 0.0
      %9826 = vmatprep.subr.mxu0 0.0
      %9827 = vmatpush2.msra.mxu0 0.0
      %9828 = vmatprep.subr.mxu0 0.0
      %9829 = vmatpush2.msra.mxu0 0.0
      %9830 = vmatprep.subr.mxu0 0.0
      %9831 = vmatpush2.msra.mxu0 0.0
      %9832 = vmatprep.mubr.f32.mxu0 0.0
      %v9833 = vand.u32 %v8752, 4294901760
      %9834 = vmatmul.mubr.f32.gmra.mxu0 %v9833
      %v9835 = vpop.f32.mrf.mxu0
      %v9836 = vadd.f32 %v9671, %v9835
      %v9837 = vpop.f32.mrf.mxu0
      %9838 = vmatprep.mubr.f32.mxu0 0.0
      %v9839 = vand.u32 %v8755, 4294901760
      %9840 = vmatmul.mubr.f32.gmra.mxu0 %v9839
      %v9841 = vpop.f32.mrf.mxu0
      %v9842 = vadd.f32 %v9677, %v9841
      %v9843 = vpop.f32.mrf.mxu0
      %9844 = vmatprep.mubr.f32.mxu0 0.0
      %v9845 = vand.u32 %v8758, 4294901760
      %9846 = vmatmul.mubr.f32.gmra.mxu0 %v9845
      %v9847 = vpop.f32.mrf.mxu0
      %v9848 = vadd.f32 %v9683, %v9847
      %v9849 = vpop.f32.mrf.mxu0
      %9850 = vmatprep.mubr.f32.mxu0 0.0
      %v9851 = vand.u32 %v8761, 4294901760
      %9852 = vmatmul.mubr.f32.gmra.mxu0 %v9851
      %v9853 = vpop.f32.mrf.mxu0
      %v9854 = vadd.f32 %v9689, %v9853
      %v9855 = vpop.f32.mrf.mxu0
      %9856 = vmatprep.mubr.f32.mxu0 0.0
      %v9857 = vand.u32 %v8764, 4294901760
      %9858 = vmatmul.mubr.f32.gmra.mxu0 %v9857
      %v9859 = vpop.f32.mrf.mxu0
      %v9860 = vadd.f32 %v9695, %v9859
      %v9861 = vpop.f32.mrf.mxu0
      %9862 = vmatprep.mubr.f32.mxu0 0.0
      %v9863 = vand.u32 %v8767, 4294901760
      %9864 = vmatmul.mubr.f32.gmra.mxu0 %v9863
      %v9865 = vpop.f32.mrf.mxu0
      %v9866 = vadd.f32 %v9701, %v9865
      %v9867 = vpop.f32.mrf.mxu0
      %9868 = vmatprep.mubr.f32.mxu0 0.0
      %v9869 = vand.u32 %v8770, 4294901760
      %9870 = vmatmul.mubr.f32.gmra.mxu0 %v9869
      %v9871 = vpop.f32.mrf.mxu0
      %v9872 = vadd.f32 %v9707, %v9871
      %v9873 = vpop.f32.mrf.mxu0
      %9874 = vmatprep.mubr.f32.mxu0 0.0
      %v9875 = vand.u32 %v8773, 4294901760
      %9876 = vmatmul.mubr.f32.gmra.mxu0 %v9875
      %v9877 = vpop.f32.mrf.mxu0
      %v9878 = vadd.f32 %v9713, %v9877
      %v9879 = vpop.f32.mrf.mxu0
      %9880 = vmatprep.mubr.f32.mxu0 0.0
      %v9881 = vand.u32 %v8776, 4294901760
      %9882 = vmatmul.mubr.f32.gmra.mxu0 %v9881
      %v9883 = vpop.f32.mrf.mxu0
      %v9884 = vadd.f32 %v9719, %v9883
      %v9885 = vpop.f32.mrf.mxu0
      %9886 = vmatprep.mubr.f32.mxu0 0.0
      %v9887 = vand.u32 %v8779, 4294901760
      %9888 = vmatmul.mubr.f32.gmra.mxu0 %v9887
      %v9889 = vpop.f32.mrf.mxu0
      %v9890 = vadd.f32 %v9725, %v9889
      %v9891 = vpop.f32.mrf.mxu0
      %9892 = vmatprep.mubr.f32.mxu0 0.0
      %v9893 = vand.u32 %v8782, 4294901760
      %9894 = vmatmul.mubr.f32.gmra.mxu0 %v9893
      %v9895 = vpop.f32.mrf.mxu0
      %v9896 = vadd.f32 %v9731, %v9895
      %v9897 = vpop.f32.mrf.mxu0
      %9898 = vmatprep.mubr.f32.mxu0 0.0
      %v9899 = vand.u32 %v8785, 4294901760
      %9900 = vmatmul.mubr.f32.gmra.mxu0 %v9899
      %v9901 = vpop.f32.mrf.mxu0
      %v9902 = vadd.f32 %v9737, %v9901
      %v9903 = vpop.f32.mrf.mxu0
      %9904 = vmatprep.mubr.f32.mxu0 0.0
      %v9905 = vand.u32 %v8788, 4294901760
      %9906 = vmatmul.mubr.f32.gmra.mxu0 %v9905
      %v9907 = vpop.f32.mrf.mxu0
      %v9908 = vadd.f32 %v9743, %v9907
      %v9909 = vpop.f32.mrf.mxu0
      %9910 = vmatprep.mubr.f32.mxu0 0.0
      %v9911 = vand.u32 %v8791, 4294901760
      %9912 = vmatmul.mubr.f32.gmra.mxu0 %v9911
      %v9913 = vpop.f32.mrf.mxu0
      %v9914 = vadd.f32 %v9749, %v9913
      %v9915 = vpop.f32.mrf.mxu0
      %9916 = vmatprep.mubr.f32.mxu0 0.0
      %v9917 = vand.u32 %v8794, 4294901760
      %9918 = vmatmul.mubr.f32.gmra.mxu0 %v9917
      %v9919 = vpop.f32.mrf.mxu0
      %v9920 = vadd.f32 %v9755, %v9919
      %v9921 = vpop.f32.mrf.mxu0
      %9922 = vmatprep.mubr.f32.mxu0 0.0
      %v9923 = vand.u32 %v8797, 4294901760
      %9924 = vmatmul.mubr.f32.gmra.mxu0 %v9923
      %v9925 = vpop.f32.mrf.mxu0
      %v9926 = vadd.f32 %v9761, %v9925
      %v9927 = vpop.f32.mrf.mxu0
      %9928 = vdwg.mxu0
      %v9929 = vadd.f32 %v8714, %v9836
      %v9930 = vadd.f32 %v8715, %v9842
      %v9931 = vadd.f32 %v8716, %v9848
      %v9932 = vadd.f32 %v8717, %v9854
      %v9933 = vadd.f32 %v8718, %v9860
      %v9934 = vadd.f32 %v8719, %v9866
      %v9935 = vadd.f32 %v8720, %v9872
      %v9936 = vadd.f32 %v8721, %v9878
      %v9937 = vadd.f32 %v8722, %v9884
      %v9938 = vadd.f32 %v8723, %v9890
      %v9939 = vadd.f32 %v8724, %v9896
      %v9940 = vadd.f32 %v8725, %v9902
      %v9941 = vadd.f32 %v8726, %v9908
      %v9942 = vadd.f32 %v8727, %v9914
      %v9943 = vadd.f32 %v8728, %v9920
      %v9944 = vadd.f32 %v8729, %v9926
      %vm9945 = vcmask 130048
      %9946 = vst.msk [vmem:[#allocation5] sm:$0xff] %vm9945, %v9929
      %9947 = vst.msk [vmem:[#allocation5 + $0x8] sm:$0xff] %vm9945, %v9930
      %9948 = vst.msk [vmem:[#allocation5 + $0x10] sm:$0xff] %vm9945, %v9931
      %9949 = vst.msk [vmem:[#allocation5 + $0x18] sm:$0xff] %vm9945, %v9932
      %9950 = vst.msk [vmem:[#allocation5 + $0x20] sm:$0xff] %vm9945, %v9933
      %9951 = vst.msk [vmem:[#allocation5 + $0x28] sm:$0xff] %vm9945, %v9934
      %9952 = vst.msk [vmem:[#allocation5 + $0x30] sm:$0xff] %vm9945, %v9935
      %9953 = vst.msk [vmem:[#allocation5 + $0x38] sm:$0xff] %vm9945, %v9936
      %9954 = vst.msk [vmem:[#allocation5 + $0x40] sm:$0xff] %vm9945, %v9937
      %9955 = vst.msk [vmem:[#allocation5 + $0x48] sm:$0xff] %vm9945, %v9938
      %9956 = vst.msk [vmem:[#allocation5 + $0x50] sm:$0xff] %vm9945, %v9939
      %9957 = vst.msk [vmem:[#allocation5 + $0x58] sm:$0xff] %vm9945, %v9940
      %9958 = vst.msk [vmem:[#allocation5 + $0x60] sm:$0xff] %vm9945, %v9941
      %9959 = vst.msk [vmem:[#allocation5 + $0x68] sm:$0xff] %vm9945, %v9942
      %9960 = vst.msk [vmem:[#allocation5 + $0x70] sm:$0xff] %vm9945, %v9943
      %9961 = vst.msk [vmem:[#allocation5 + $0x78] sm:$0xff] %vm9945, %v9944
      %v9962 = vld [vmem:[#allocation5] ss:$2 sm:$0xff]
      %s9963 = scalar_lea.vmem [#allocation5], 16
      %v9964 = vld [vmem:[%s9963] ss:$2 sm:$0xff]
      %s9965 = scalar_lea.vmem [#allocation5], 32
      %v9966 = vld [vmem:[%s9965] ss:$2 sm:$0xff]
      %s9967 = scalar_lea.vmem [#allocation5], 48
      %v9968 = vld [vmem:[%s9967] ss:$2 sm:$0xff]
      %s9969 = scalar_lea.vmem [#allocation5], 64
      %v9970 = vld [vmem:[%s9969] ss:$2 sm:$0xff]
      %s9971 = scalar_lea.vmem [#allocation5], 80
      %v9972 = vld [vmem:[%s9971] ss:$2 sm:$0xff]
      %s9973 = scalar_lea.vmem [#allocation5], 96
      %v9974 = vld [vmem:[%s9973] ss:$2 sm:$0xff]
      %s9975 = scalar_lea.vmem [#allocation5], 112
      %v9976 = vld [vmem:[%s9975] ss:$2 sm:$0xff]
      %s9977 = scalar_lea.vmem [#allocation5], 1
      %v9978 = vld [vmem:[%s9977] ss:$2 sm:$0xff]
      %s9979 = scalar_lea.vmem [#allocation5], 17
      %v9980 = vld [vmem:[%s9979] ss:$2 sm:$0xff]
      %s9981 = scalar_lea.vmem [#allocation5], 33
      %v9982 = vld [vmem:[%s9981] ss:$2 sm:$0xff]
      %s9983 = scalar_lea.vmem [#allocation5], 49
      %v9984 = vld [vmem:[%s9983] ss:$2 sm:$0xff]
      %s9985 = scalar_lea.vmem [#allocation5], 65
      %v9986 = vld [vmem:[%s9985] ss:$2 sm:$0xff]
      %s9987 = scalar_lea.vmem [#allocation5], 81
      %v9988 = vld [vmem:[%s9987] ss:$2 sm:$0xff]
      %s9989 = scalar_lea.vmem [#allocation5], 97
      %v9990 = vld [vmem:[%s9989] ss:$2 sm:$0xff]
      %s9991 = scalar_lea.vmem [#allocation5], 113
      %v9992 = vld [vmem:[%s9991] ss:$2 sm:$0xff]
      %v9993 = vmax.f32 %v9962, %v9978
      %v9994 = vmax.f32 %v9964, %v9980
      %v9995 = vmax.f32 %v9966, %v9982
      %v9996 = vmax.f32 %v9968, %v9984
      %v9997 = vmax.f32 %v9970, %v9986
      %v9998 = vmax.f32 %v9972, %v9988
      %v9999 = vmax.f32 %v9974, %v9990
      %v10000 = vmax.f32 %v9976, %v9992
      %vm10001 = vcmp.gt.f32.partialorder %v9993, 0.0
      %vm10002 = vcmp.gt.f32.partialorder %v9994, 0.0
      %vm10003 = vcmp.gt.f32.partialorder %v9995, 0.0
      %vm10004 = vcmp.gt.f32.partialorder %v9996, 0.0
      %vm10005 = vcmp.gt.f32.partialorder %v9997, 0.0
      %vm10006 = vcmp.gt.f32.partialorder %v9998, 0.0
      %vm10007 = vcmp.gt.f32.partialorder %v9999, 0.0
      %vm10008 = vcmp.gt.f32.partialorder %v10000, 0.0
      %v10009 = vmul.f32 %v9993, 1.442695
      %v10010 = vpow.pop %v10009
      %v10011 = vmul.f32 %v9994, 1.442695
      %v10012 = vpow.pop %v10011
      %v10013 = vmul.f32 %v9995, 1.442695
      %v10014 = vpow.pop %v10013
      %v10015 = vmul.f32 %v9996, 1.442695
      %v10016 = vpow.pop %v10015
      %v10017 = vmul.f32 %v9997, 1.442695
      %v10018 = vpow.pop %v10017
      %v10019 = vmul.f32 %v9998, 1.442695
      %v10020 = vpow.pop %v10019
      %v10021 = vmul.f32 %v9999, 1.442695
      %v10022 = vpow.pop %v10021
      %v10023 = vmul.f32 %v10000, 1.442695
      %v10024 = vpow.pop %v10023
      %v10025 = vsub.f32 %v10010, 1.0
      %v10026 = vsub.f32 %v10012, 1.0
      %v10027 = vsub.f32 %v10014, 1.0
      %v10028 = vsub.f32 %v10016, 1.0
      %v10029 = vsub.f32 %v10018, 1.0
      %v10030 = vsub.f32 %v10020, 1.0
      %v10031 = vsub.f32 %v10022, 1.0
      %v10032 = vsub.f32 %v10024, 1.0
      %v10033 = vsel %vm10001, %v9993, %v10025
      %v10034 = vsel %vm10002, %v9994, %v10026
      %v10035 = vsel %vm10003, %v9995, %v10027
      %v10036 = vsel %vm10004, %v9996, %v10028
      %v10037 = vsel %vm10005, %v9997, %v10029
      %v10038 = vsel %vm10006, %v9998, %v10030
      %v10039 = vsel %vm10007, %v9999, %v10031
      %v10040 = vsel %vm10008, %v10000, %v10032
      %10041 = vst.msk [vmem:[%s226] sm:$0xff] %vm9945, %v10033
      %10042 = vst.msk [vmem:[%s226 + $0x8] sm:$0xff] %vm9945, %v10034
      %10043 = vst.msk [vmem:[%s226 + $0x10] sm:$0xff] %vm9945, %v10035
      %10044 = vst.msk [vmem:[%s226 + $0x18] sm:$0xff] %vm9945, %v10036
      %10045 = vst.msk [vmem:[%s226 + $0x20] sm:$0xff] %vm9945, %v10037
      %10046 = vst.msk [vmem:[%s226 + $0x28] sm:$0xff] %vm9945, %v10038
      %10047 = vst.msk [vmem:[%s226 + $0x30] sm:$0xff] %vm9945, %v10039
      %10048 = vst.msk [vmem:[%s226 + $0x38] sm:$0xff] %vm9945, %v10040
      %s10049 = smul.u32 8, %s16
      %p10050 = scmp.lt.s32.totalorder %s10049, 15
      %s10051 = scalar_select %p10050, %s10049, 15
      %s10052 = smul.addr %s10051, 8
      %s10053 = scalar_lea.vmem %s5, %s10052
      // Predicated region
      $region41: #{conv_encoder.1} parent=39 // pred_check
        %p10054 = pneg %p144
      $region42: #{conv_encoder.1} parent=39 // pred_check_branch
        %10056 = sbr.rel (%p10054) target = $region44
      $region43: #{conv_encoder.1} parent=39 // pred_region
        %s10057 = smul.u32 8, %s16
      $region44: #{conv_encoder.1} parent=39 // pred_fallthru
        _
    $region40: #{conv_encoder.1} parent=5 // pred_fallthru
      _
    %p10058 = scmp.le.s32.totalorder 2, %s11
    // Predicated region
    $region45: #{conv_encoder.1} parent=5 // pred_check
      %p10059 = pneg %p10058
    $region46: #{conv_encoder.1} parent=5 // pred_check_branch
      %10061 = sbr.rel (%p10059) target = $region48
    $region47: #{conv_encoder.1} parent=5 // pred_region
      %s10062 = ssub.s32 %s11, 2
      // Predicated region
      $region49: #{conv_encoder.1} parent=47 // pred_check
        %p10063 = pneg %p150
      $region50: #{conv_encoder.1} parent=47 // pred_check_branch
        %10065 = sbr.rel (%p10063) target = $region52
      $region51: #{conv_encoder.1} parent=47 // pred_region
        %s10066 = smul.u32 8, %s17
        %p10067 = scmp.lt.s32.totalorder %s10066, 15
        %s10068 = scalar_select %p10067, %s10066, 15
        %s10069 = smul.addr %s10068, 8
        %s10070 = scalar_lea.vmem %s5, %s10069
      $region52: #{conv_encoder.1} parent=47 // pred_fallthru
        _
    $region48: #{conv_encoder.1} parent=5 // pred_fallthru
      _
  $region6: #{conv_encoder.1} parent=0 // loop_footer
    %s15 = sadd.s32 1, %s11
  $region7: #{conv_encoder.1} parent=0 // loop_footer_branch
    %10 = sbr.rel target = $region3
  $region8: #{conv_encoder.1} parent=0 // loop_exit
    _

</llo_original>
